<compile_context>
chip_gen: v5e
topology: v5e:2x2
jax: 0.10.0
libtpu: 0.0.40
codegen_flags: <defaults>
</compile_context>

<pallas_src>
import jax
import jax.numpy as jnp
from jax import lax
from jax.experimental import pallas as pl
from jax.experimental.pallas import tpu as pltpu

_TB = 8  # images per grid step (review item 1: amortize per-step overhead)


# ---------------------------------------------------------------------------
# Fused kernel: conv1+pool1+conv2+pool2 per image, then fc head per TB block.
#
# Layouts (per image, channels on sublanes, flattened spatial on lanes):
#   x_stk : (64,256)  rows a*16 + (kw*3+c) hold the kw-shifted phase plane of
#                     phase a (ow = 4s+a); row a*16+15 is a zero pad row.
#   conv1 : Y_a[f, oh*8+s]  (s<=6 valid)            -> 20 dots, K=16
#   pool1 : z_e[c, 16*i+t]  (t<=6 valid, stride-16 rows, NOT compacted)
#   conv2 : C_b[g, 16*oh2+v] (v<=4 valid)           -> 10 dots, K=80
#   pool2 : p2[g, 32*j+w]   (w<=4 valid, width 134) -> stored per image
#   fc1   : 32 dots (TB,134)x(134,128); garbage lanes hit zero weight rows.
# ---------------------------------------------------------------------------
def _net_kernel(x_ref, w1s_ref, b1_ref, w2s_ref, b2_ref,
                w1p_ref, fb1_ref, fw2_ref, fb2_ref, fw3_ref, fb3_ref,
                o_ref, zs_ref, feats_ref):
    f32 = jnp.float32
    TB = x_ref.shape[0]

    def tower(t, carry):
        xs = x_ref[t]                                   # (64, 256)
        b1 = b1_ref[...]                                # (16, 1)

        # ---- conv1 + relu + horizontal half of pool1 (phase max) ----
        hs = []
        for e in range(2):                              # pooled-column parity
            phase_out = []
            for a in (2 * e, 2 * e + 1):                # conv column phase
                sa = xs[a * 16:(a + 1) * 16, :]         # (16, 256)
                acc = jnp.dot(w1s_ref[0], sa[:, 0:224],
                              preferred_element_type=f32)
                for kh in range(1, 5):
                    acc = acc + jnp.dot(
                        w1s_ref[kh], sa[:, kh * 8:kh * 8 + 224],
                        preferred_element_type=f32)
                phase_out.append(jnp.maximum(acc + b1, 0.0))   # (16, 224)
            hs.append(jnp.maximum(phase_out[0], phase_out[1]))

        # ---- vertical half of pool1 + kh-stacked conv2 input ----
        # z_e[c, l] = max(h_e[c, l], h_e[c, l+8]); valid at l = 16*i + t.
        # zs[e, kh*16+c, m] = z_e[c, m + 16*kh]  (every lane written -> finite)
        for e in range(2):
            z = jnp.maximum(hs[e][:, 0:216], hs[e][:, 8:224])   # (16, 216)
            for kh in range(5):
                zs_ref[e, kh * 16:(kh + 1) * 16, :] = \
                    z[:, 16 * kh:16 * kh + 152]

        # ---- conv2 + relu (2 output-column phases, kh fused into K=80) ----
        b2 = b2_ref[...]                                # (32, 1)
        rs = []
        for b in range(2):
            acc = None
            for kw in range(5):
                r = (b + kw) % 2                        # pooled-column parity
                d = (b + kw) // 2                       # intra-row lane shift
                part = jnp.dot(w2s_ref[kw], zs_ref[r, :, d:d + 150],
                               preferred_element_type=f32)
                acc = part if acc is None else acc + part
            rs.append(jnp.maximum(acc + b2, 0.0))       # (32, 150)

        # ---- pool2 (uncompacted: valid lanes 32*j + w, w <= 4) ----
        hp = jnp.maximum(rs[0], rs[1])                  # (32, 150)
        feats_ref[t] = jnp.maximum(hp[:, 0:134], hp[:, 16:150])  # (32, 134)
        return carry

    lax.fori_loop(0, TB, tower, 0)

    # ---- fused MLP head over the whole TB-image block ----
    # fc1: garbage feature lanes (finite) multiply zero rows of w1p -> 0.
    h = None
    for c in range(32):
        part = jnp.dot(feats_ref[:, c, :], w1p_ref[c],
                       preferred_element_type=jnp.float32)
        h = part if h is None else h + part
    h = jnp.maximum(h + fb1_ref[...], 0.0)                         # (TB,128)
    h = jnp.maximum(jnp.dot(h, fw2_ref[...],
                            preferred_element_type=jnp.float32)
                    + fb2_ref[...], 0.0)                           # (TB,128)
    logits = jnp.dot(h, fw3_ref[...],
                     preferred_element_type=jnp.float32) + fb3_ref[...]
    m = jnp.max(logits, axis=-1, keepdims=True)
    s = logits - m
    lse = jnp.log(jnp.sum(jnp.exp(s), axis=-1, keepdims=True))
    o_ref[...] = (s - lse).astype(o_ref.dtype)


def net_pallas(prep, x_stk, TB):
    Bp = x_stk.shape[0]
    return pl.pallas_call(
        _net_kernel,
        out_shape=jax.ShapeDtypeStruct((Bp, 10), jnp.float32),
        grid=(Bp // TB,),
        in_specs=[
            pl.BlockSpec((TB, 64, 256), lambda i: (i, 0, 0)),
            pl.BlockSpec((5, 16, 16), lambda i: (0, 0, 0)),
            pl.BlockSpec((16, 1), lambda i: (0, 0)),
            pl.BlockSpec((5, 32, 80), lambda i: (0, 0, 0)),
            pl.BlockSpec((32, 1), lambda i: (0, 0)),
            pl.BlockSpec((32, 134, 128), lambda i: (0, 0, 0)),
            pl.BlockSpec((1, 128), lambda i: (0, 0)),
            pl.BlockSpec((128, 128), lambda i: (0, 0)),
            pl.BlockSpec((1, 128), lambda i: (0, 0)),
            pl.BlockSpec((128, 10), lambda i: (0, 0)),
            pl.BlockSpec((1, 10), lambda i: (0, 0)),
        ],
        out_specs=pl.BlockSpec((TB, 10), lambda i: (i, 0)),
        scratch_shapes=[
            pltpu.VMEM((2, 80, 152), jnp.float32),      # conv2 K-stack
            pltpu.VMEM((TB, 32, 134), jnp.float32),     # pooled features
        ],
        compiler_params=pltpu.CompilerParams(
            dimension_semantics=("parallel",)),
    )(x_stk, prep["w1s"], prep["b1"], prep["w2s"], prep["b2"],
      prep["w1p"], prep["fb1"], prep["fw2"], prep["fb2"],
      prep["fw3"], prep["fb3"])


# ---------------------------------------------------------------------------
# Parameters (PyTorch-convention) + one-time kernel-ready relayout
# ---------------------------------------------------------------------------
def init_params(key):
    ks = jax.random.split(key, 10)

    def u(k, shape, fan_in):
        bound = 1.0 / (float(fan_in) ** 0.5)
        return jax.random.uniform(k, shape, jnp.float32, -bound, bound)

    return {
        "conv1_w": u(ks[0], (16, 3, 5, 5), 3 * 25),
        "conv1_b": u(ks[1], (16,), 3 * 25),
        "conv2_w": u(ks[2], (32, 16, 5, 5), 16 * 25),
        "conv2_b": u(ks[3], (32,), 16 * 25),
        "fc1_w": u(ks[4], (120, 800), 800),
        "fc1_b": u(ks[5], (120,), 800),
        "fc2_w": u(ks[6], (84, 120), 120),
        "fc2_b": u(ks[7], (84,), 120),
        "fc3_w": u(ks[8], (10, 84), 84),
        "fc3_b": u(ks[9], (10,), 84),
    }


def prepare_params(p):
    """One-time re-layout of weights into kernel-ready form."""
    f32 = jnp.float32
    # conv1 taps fused over kw: w1s[kh][f, kw*3+c] = conv1_w[f,c,kh,kw]; K 15->16
    w1s = jnp.transpose(p["conv1_w"].astype(f32), (2, 0, 3, 1)).reshape(5, 16, 15)
    w1s = jnp.pad(w1s, ((0, 0), (0, 0), (0, 1)))
    b1 = p["conv1_b"].reshape(16, 1).astype(f32)
    # conv2 taps fused over kh: w2s[kw][g, kh*16+c] = conv2_w[g,c,kh,kw]
    w2s = jnp.transpose(p["conv2_w"].astype(f32), (3, 0, 2, 1)).reshape(5, 32, 80)
    b2 = p["conv2_b"].reshape(32, 1).astype(f32)
    # fc1 mapped onto the uncompacted pool2 layout (lane = 32*j + w); padding
    # lanes get zero weight rows (kills garbage lanes); out dim 120 -> 128.
    w = p["fc1_w"].astype(f32).reshape(120, 32, 5, 5)      # [o, g, j, w]
    w = jnp.transpose(w, (1, 2, 3, 0))                     # (32, 5, 5, 120)
    w = jnp.pad(w, ((0, 0), (0, 0), (0, 27), (0, 8)))      # (32, 5, 32, 128)
    w1p = w.reshape(32, 160, 128)[:, :134, :]              # (32, 134, 128)
    fb1 = jnp.pad(p["fc1_b"].astype(f32), (0, 8)).reshape(1, 128)
    fw2 = jnp.pad(p["fc2_w"].astype(f32).T, ((0, 8), (0, 44)))   # (128, 128)
    fb2 = jnp.pad(p["fc2_b"].astype(f32), (0, 44)).reshape(1, 128)
    fw3 = jnp.pad(p["fc3_w"].astype(f32).T, ((0, 44), (0, 0)))   # (128, 10)
    fb3 = p["fc3_b"].astype(f32).reshape(1, 10)
    return dict(w1s=w1s, b1=b1, w2s=w2s, b2=b2, w1p=w1p, fb1=fb1,
                fw2=fw2, fb2=fb2, fw3=fw3, fb3=fb3)


# ---------------------------------------------------------------------------
# Input preprocessing (single pass): phase split + kw-stacked conv1 planes
# ---------------------------------------------------------------------------
def _prep_inputs(x_nchw, TB):
    f32 = jnp.float32
    B = x_nchw.shape[0]
    Bp = ((B + TB - 1) // TB) * TB
    x = x_nchw.astype(f32)
    if Bp != B:
        x = jnp.pad(x, ((0, Bp - B), (0, 0), (0, 0), (0, 0)))
    xp = jnp.pad(x, ((0, 0), (0, 0), (0, 1), (0, 0)))            # (Bp,3,33,32)
    # phase planes: planes[b, r, c, h*8+u] = x[b, c, h, 4u+r]
    planes = jnp.stack(
        [xp[:, :, :, r::4].reshape(Bp, 3, 264) for r in range(4)], axis=1)
    zero_row = jnp.zeros((Bp, 1, 256), f32)
    blocks = []
    for a in range(4):
        rows = [planes[:, (a + kw) % 4, :, (a + kw) // 4:(a + kw) // 4 + 256]
                for kw in range(5)]
        rows.append(zero_row)                                    # pad K 15->16
        blocks.append(jnp.concatenate(rows, axis=1))             # (Bp,16,256)
    return jnp.concatenate(blocks, axis=1)                       # (Bp,64,256)


def net_forward(prep, x_nchw):
    B = x_nchw.shape[0]
    TB = _TB if B >= _TB else B
    x_stk = _prep_inputs(x_nchw, TB)
    out = net_pallas(prep, x_stk, TB)
    return out[:B]


# Plain-JAX/XLA reference of the PyTorch forward (for numerical validation).
def reference_forward(params, x_nchw):
    hp = lax.Precision.HIGHEST
    x = x_nchw.astype(jnp.float32)
    y = lax.conv_general_dilated(x, params["conv1_w"], (1, 1), "VALID",
                                 dimension_numbers=("NCHW", "OIHW", "NCHW"),
                                 precision=hp)
    y = jnp.maximum(y + params["conv1_b"][None, :, None, None], 0.0)
    y = lax.reduce_window(y, -jnp.inf, lax.max, (1, 1, 2, 2), (1, 1, 2, 2),
                          "VALID")
    y = lax.conv_general_dilated(y, params["conv2_w"], (1, 1), "VALID",
                                 dimension_numbers=("NCHW", "OIHW", "NCHW"),
                                 precision=hp)
    y = jnp.maximum(y + params["conv2_b"][None, :, None, None], 0.0)
    y = lax.reduce_window(y, -jnp.inf, lax.max, (1, 1, 2, 2), (1, 1, 2, 2),
                          "VALID")
    z = y.reshape(x.shape[0], 32 * 5 * 5)
    z = jnp.maximum(jnp.dot(z, params["fc1_w"].T, precision=hp)
                    + params["fc1_b"], 0.0)
    z = jnp.maximum(jnp.dot(z, params["fc2_w"].T, precision=hp)
                    + params["fc2_b"], 0.0)
    logits = jnp.dot(z, params["fc3_w"].T, precision=hp) + params["fc3_b"]
    return jax.nn.log_softmax(logits, axis=-1)


# TODO(synk): training-only members (NLLLoss, SGD optimizer, step/test loops)
# are not part of the forward pass and are not implemented.

if __name__ == "__main__":
    key = jax.random.PRNGKey(0)
    pkey, xkey = jax.random.split(key)
    params = init_params(pkey)
    prep = prepare_params(params)   # one-time, kernel-ready weight layout

    # The forward's fixed 32*5*5 flatten implies 32x32 spatial input (CIFAR-10).
    x = jax.random.normal(xkey, (4, 3, 32, 32), jnp.float32)

    out = jax.jit(net_forward)(prep, x)
    out = jax.block_until_ready(out)

    assert out.shape == (4, 10), out.shape
    # log_softmax rows must exponentiate-sum to 1
    assert bool(jnp.allclose(jnp.sum(jnp.exp(out), axis=1), 1.0, atol=1e-4))
    # cross-check against the plain-JAX reference of the PyTorch module
    ref = jax.jit(reference_forward)(params, x)
    assert bool(jnp.allclose(out, ref, atol=1e-3, rtol=0.0)), (
        float(jnp.max(jnp.abs(out - ref))))
    print("KERNEL_OK")
</pallas_src>

<mosaic_0001>
module attributes {stable_mosaic.version = 11 : i64} {
  func.func @_net_kernel(%arg0: i32, %arg1: memref<4x64x256xf32, #tpu.memory_space<vmem>>, %arg2: memref<5x16x16xf32, #tpu.memory_space<vmem>>, %arg3: memref<16x1xf32, #tpu.memory_space<vmem>>, %arg4: memref<5x32x80xf32, #tpu.memory_space<vmem>>, %arg5: memref<32x1xf32, #tpu.memory_space<vmem>>, %arg6: memref<32x134x128xf32, #tpu.memory_space<vmem>>, %arg7: memref<1x128xf32, #tpu.memory_space<vmem>>, %arg8: memref<128x128xf32, #tpu.memory_space<vmem>>, %arg9: memref<1x128xf32, #tpu.memory_space<vmem>>, %arg10: memref<128x10xf32, #tpu.memory_space<vmem>>, %arg11: memref<1x10xf32, #tpu.memory_space<vmem>>, %arg12: memref<4x10xf32, #tpu.memory_space<vmem>>, %arg13: memref<2x80x152xf32, #tpu.memory_space<vmem>>, %arg14: memref<4x32x134xf32, #tpu.memory_space<vmem>>) attributes {dimension_semantics = [#tpu.dimension_semantics<parallel>], iteration_bounds = array<i64: 1>, scalar_prefetch = 0 : i64, scratch_operands = 2 : i64, tpu.core_type = #tpu.core_type<tc>, window_params = [{transform_indices = @transform_0, window_bounds = array<i64: 4, 64, 256>}, {pipeline_mode = #tpu.pipeline_mode<synchronous>, transform_indices = @transform_1, window_bounds = array<i64: 5, 16, 16>}, {pipeline_mode = #tpu.pipeline_mode<synchronous>, transform_indices = @transform_2, window_bounds = array<i64: 16, 1>}, {pipeline_mode = #tpu.pipeline_mode<synchronous>, transform_indices = @transform_3, window_bounds = array<i64: 5, 32, 80>}, {pipeline_mode = #tpu.pipeline_mode<synchronous>, transform_indices = @transform_4, window_bounds = array<i64: 32, 1>}, {pipeline_mode = #tpu.pipeline_mode<synchronous>, transform_indices = @transform_5, window_bounds = array<i64: 32, 134, 128>}, {pipeline_mode = #tpu.pipeline_mode<synchronous>, transform_indices = @transform_6, window_bounds = array<i64: 1, 128>}, {pipeline_mode = #tpu.pipeline_mode<synchronous>, transform_indices = @transform_7, window_bounds = array<i64: 128, 128>}, {pipeline_mode = #tpu.pipeline_mode<synchronous>, transform_indices = @transform_8, window_bounds = array<i64: 1, 128>}, {pipeline_mode = #tpu.pipeline_mode<synchronous>, transform_indices = @transform_9, window_bounds = array<i64: 128, 10>}, {pipeline_mode = #tpu.pipeline_mode<synchronous>, transform_indices = @transform_10, window_bounds = array<i64: 1, 10>}, {transform_indices = @transform_11, window_bounds = array<i64: 4, 10>}]} {
    %c0_i32 = arith.constant 0 : i32
    %c4_i32 = arith.constant 4 : i32
    %0 = arith.addi %c0_i32, %c4_i32 : i32
    %c1_i32 = arith.constant 1 : i32
    scf.for %arg15 = %c0_i32 to %0 step %c1_i32  : i32 {
      %220 = arith.index_cast %arg15 : i32 to index
      %c0_210 = arith.constant 0 : index
      %c0_211 = arith.constant 0 : index
      %221 = vector.load %arg1[%220, %c0_210, %c0_211] : memref<4x64x256xf32, #tpu.memory_space<vmem>>, vector<1x64x256xf32>
      %222 = vector.shape_cast %221 : vector<1x64x256xf32> to vector<64x256xf32>
      %c0_212 = arith.constant 0 : index
      %c0_213 = arith.constant 0 : index
      %223 = vector.load %arg3[%c0_212, %c0_213] : memref<16x1xf32, #tpu.memory_space<vmem>>, vector<16x1xf32>
      %224 = vector.extract_strided_slice %222 {offsets = [0, 0], sizes = [16, 256], strides = [1, 1]} : vector<64x256xf32> to vector<16x256xf32>
      %c0_214 = arith.constant 0 : index
      %c0_215 = arith.constant 0 : index
      %c0_216 = arith.constant 0 : index
      %225 = vector.load %arg2[%c0_214, %c0_215, %c0_216] : memref<5x16x16xf32, #tpu.memory_space<vmem>>, vector<1x16x16xf32>
      %226 = vector.shape_cast %225 : vector<1x16x16xf32> to vector<16x16xf32>
      %227 = vector.extract_strided_slice %224 {offsets = [0, 0], sizes = [16, 224], strides = [1, 1]} : vector<16x256xf32> to vector<16x224xf32>
      %cst_217 = arith.constant dense<0.000000e+00> : vector<16x224xf32>
      %228 = tpu.matmul %226, %227, %cst_217 {dimension_numbers = #tpu.dot_dimension_numbers<[1], [0], [0], [1], [0, 0, 1, 1], [], []>} : vector<16x16xf32>, vector<16x224xf32>, vector<16x224xf32> -> vector<16x224xf32>
      %c1_218 = arith.constant 1 : index
      %c0_219 = arith.constant 0 : index
      %c0_220 = arith.constant 0 : index
      %229 = vector.load %arg2[%c1_218, %c0_219, %c0_220] : memref<5x16x16xf32, #tpu.memory_space<vmem>>, vector<1x16x16xf32>
      %230 = vector.shape_cast %229 : vector<1x16x16xf32> to vector<16x16xf32>
      %231 = vector.extract_strided_slice %224 {offsets = [0, 8], sizes = [16, 224], strides = [1, 1]} : vector<16x256xf32> to vector<16x224xf32>
      %cst_221 = arith.constant dense<0.000000e+00> : vector<16x224xf32>
      %232 = tpu.matmul %230, %231, %cst_221 {dimension_numbers = #tpu.dot_dimension_numbers<[1], [0], [0], [1], [0, 0, 1, 1], [], []>} : vector<16x16xf32>, vector<16x224xf32>, vector<16x224xf32> -> vector<16x224xf32>
      %233 = arith.addf %228, %232 : vector<16x224xf32>
      %c2_222 = arith.constant 2 : index
      %c0_223 = arith.constant 0 : index
      %c0_224 = arith.constant 0 : index
      %234 = vector.load %arg2[%c2_222, %c0_223, %c0_224] : memref<5x16x16xf32, #tpu.memory_space<vmem>>, vector<1x16x16xf32>
      %235 = vector.shape_cast %234 : vector<1x16x16xf32> to vector<16x16xf32>
      %236 = vector.extract_strided_slice %224 {offsets = [0, 16], sizes = [16, 224], strides = [1, 1]} : vector<16x256xf32> to vector<16x224xf32>
      %cst_225 = arith.constant dense<0.000000e+00> : vector<16x224xf32>
      %237 = tpu.matmul %235, %236, %cst_225 {dimension_numbers = #tpu.dot_dimension_numbers<[1], [0], [0], [1], [0, 0, 1, 1], [], []>} : vector<16x16xf32>, vector<16x224xf32>, vector<16x224xf32> -> vector<16x224xf32>
      %238 = arith.addf %233, %237 : vector<16x224xf32>
      %c3_226 = arith.constant 3 : index
      %c0_227 = arith.constant 0 : index
      %c0_228 = arith.constant 0 : index
      %239 = vector.load %arg2[%c3_226, %c0_227, %c0_228] : memref<5x16x16xf32, #tpu.memory_space<vmem>>, vector<1x16x16xf32>
      %240 = vector.shape_cast %239 : vector<1x16x16xf32> to vector<16x16xf32>
      %241 = vector.extract_strided_slice %224 {offsets = [0, 24], sizes = [16, 224], strides = [1, 1]} : vector<16x256xf32> to vector<16x224xf32>
      %cst_229 = arith.constant dense<0.000000e+00> : vector<16x224xf32>
      %242 = tpu.matmul %240, %241, %cst_229 {dimension_numbers = #tpu.dot_dimension_numbers<[1], [0], [0], [1], [0, 0, 1, 1], [], []>} : vector<16x16xf32>, vector<16x224xf32>, vector<16x224xf32> -> vector<16x224xf32>
      %243 = arith.addf %238, %242 : vector<16x224xf32>
      %c4_230 = arith.constant 4 : index
      %c0_231 = arith.constant 0 : index
      %c0_232 = arith.constant 0 : index
      %244 = vector.load %arg2[%c4_230, %c0_231, %c0_232] : memref<5x16x16xf32, #tpu.memory_space<vmem>>, vector<1x16x16xf32>
      %245 = vector.shape_cast %244 : vector<1x16x16xf32> to vector<16x16xf32>
      %246 = vector.extract_strided_slice %224 {offsets = [0, 32], sizes = [16, 224], strides = [1, 1]} : vector<16x256xf32> to vector<16x224xf32>
      %cst_233 = arith.constant dense<0.000000e+00> : vector<16x224xf32>
      %247 = tpu.matmul %245, %246, %cst_233 {dimension_numbers = #tpu.dot_dimension_numbers<[1], [0], [0], [1], [0, 0, 1, 1], [], []>} : vector<16x16xf32>, vector<16x224xf32>, vector<16x224xf32> -> vector<16x224xf32>
      %248 = arith.addf %243, %247 : vector<16x224xf32>
      %249 = vector.broadcast %223 : vector<16x1xf32> to vector<16x224xf32>
      %250 = arith.addf %248, %249 : vector<16x224xf32>
      %cst_234 = arith.constant 0.000000e+00 : f32
      %251 = vector.broadcast %cst_234 : f32 to vector<16x224xf32>
      %252 = arith.maximumf %250, %251 : vector<16x224xf32>
      %253 = vector.extract_strided_slice %222 {offsets = [16, 0], sizes = [16, 256], strides = [1, 1]} : vector<64x256xf32> to vector<16x256xf32>
      %c0_235 = arith.constant 0 : index
      %c0_236 = arith.constant 0 : index
      %c0_237 = arith.constant 0 : index
      %254 = vector.load %arg2[%c0_235, %c0_236, %c0_237] : memref<5x16x16xf32, #tpu.memory_space<vmem>>, vector<1x16x16xf32>
      %255 = vector.shape_cast %254 : vector<1x16x16xf32> to vector<16x16xf32>
      %256 = vector.extract_strided_slice %253 {offsets = [0, 0], sizes = [16, 224], strides = [1, 1]} : vector<16x256xf32> to vector<16x224xf32>
      %cst_238 = arith.constant dense<0.000000e+00> : vector<16x224xf32>
      %257 = tpu.matmul %255, %256, %cst_238 {dimension_numbers = #tpu.dot_dimension_numbers<[1], [0], [0], [1], [0, 0, 1, 1], [], []>} : vector<16x16xf32>, vector<16x224xf32>, vector<16x224xf32> -> vector<16x224xf32>
      %c1_239 = arith.constant 1 : index
      %c0_240 = arith.constant 0 : index
      %c0_241 = arith.constant 0 : index
      %258 = vector.load %arg2[%c1_239, %c0_240, %c0_241] : memref<5x16x16xf32, #tpu.memory_space<vmem>>, vector<1x16x16xf32>
      %259 = vector.shape_cast %258 : vector<1x16x16xf32> to vector<16x16xf32>
      %260 = vector.extract_strided_slice %253 {offsets = [0, 8], sizes = [16, 224], strides = [1, 1]} : vector<16x256xf32> to vector<16x224xf32>
      %cst_242 = arith.constant dense<0.000000e+00> : vector<16x224xf32>
      %261 = tpu.matmul %259, %260, %cst_242 {dimension_numbers = #tpu.dot_dimension_numbers<[1], [0], [0], [1], [0, 0, 1, 1], [], []>} : vector<16x16xf32>, vector<16x224xf32>, vector<16x224xf32> -> vector<16x224xf32>
      %262 = arith.addf %257, %261 : vector<16x224xf32>
      %c2_243 = arith.constant 2 : index
      %c0_244 = arith.constant 0 : index
      %c0_245 = arith.constant 0 : index
      %263 = vector.load %arg2[%c2_243, %c0_244, %c0_245] : memref<5x16x16xf32, #tpu.memory_space<vmem>>, vector<1x16x16xf32>
      %264 = vector.shape_cast %263 : vector<1x16x16xf32> to vector<16x16xf32>
      %265 = vector.extract_strided_slice %253 {offsets = [0, 16], sizes = [16, 224], strides = [1, 1]} : vector<16x256xf32> to vector<16x224xf32>
      %cst_246 = arith.constant dense<0.000000e+00> : vector<16x224xf32>
      %266 = tpu.matmul %264, %265, %cst_246 {dimension_numbers = #tpu.dot_dimension_numbers<[1], [0], [0], [1], [0, 0, 1, 1], [], []>} : vector<16x16xf32>, vector<16x224xf32>, vector<16x224xf32> -> vector<16x224xf32>
      %267 = arith.addf %262, %266 : vector<16x224xf32>
      %c3_247 = arith.constant 3 : index
      %c0_248 = arith.constant 0 : index
      %c0_249 = arith.constant 0 : index
      %268 = vector.load %arg2[%c3_247, %c0_248, %c0_249] : memref<5x16x16xf32, #tpu.memory_space<vmem>>, vector<1x16x16xf32>
      %269 = vector.shape_cast %268 : vector<1x16x16xf32> to vector<16x16xf32>
      %270 = vector.extract_strided_slice %253 {offsets = [0, 24], sizes = [16, 224], strides = [1, 1]} : vector<16x256xf32> to vector<16x224xf32>
      %cst_250 = arith.constant dense<0.000000e+00> : vector<16x224xf32>
      %271 = tpu.matmul %269, %270, %cst_250 {dimension_numbers = #tpu.dot_dimension_numbers<[1], [0], [0], [1], [0, 0, 1, 1], [], []>} : vector<16x16xf32>, vector<16x224xf32>, vector<16x224xf32> -> vector<16x224xf32>
      %272 = arith.addf %267, %271 : vector<16x224xf32>
      %c4_251 = arith.constant 4 : index
      %c0_252 = arith.constant 0 : index
      %c0_253 = arith.constant 0 : index
      %273 = vector.load %arg2[%c4_251, %c0_252, %c0_253] : memref<5x16x16xf32, #tpu.memory_space<vmem>>, vector<1x16x16xf32>
      %274 = vector.shape_cast %273 : vector<1x16x16xf32> to vector<16x16xf32>
      %275 = vector.extract_strided_slice %253 {offsets = [0, 32], sizes = [16, 224], strides = [1, 1]} : vector<16x256xf32> to vector<16x224xf32>
      %cst_254 = arith.constant dense<0.000000e+00> : vector<16x224xf32>
      %276 = tpu.matmul %274, %275, %cst_254 {dimension_numbers = #tpu.dot_dimension_numbers<[1], [0], [0], [1], [0, 0, 1, 1], [], []>} : vector<16x16xf32>, vector<16x224xf32>, vector<16x224xf32> -> vector<16x224xf32>
      %277 = arith.addf %272, %276 : vector<16x224xf32>
      %278 = vector.broadcast %223 : vector<16x1xf32> to vector<16x224xf32>
      %279 = arith.addf %277, %278 : vector<16x224xf32>
      %cst_255 = arith.constant 0.000000e+00 : f32
      %280 = vector.broadcast %cst_255 : f32 to vector<16x224xf32>
      %281 = arith.maximumf %279, %280 : vector<16x224xf32>
      %282 = arith.maximumf %252, %281 : vector<16x224xf32>
      %283 = vector.extract_strided_slice %222 {offsets = [32, 0], sizes = [16, 256], strides = [1, 1]} : vector<64x256xf32> to vector<16x256xf32>
      %c0_256 = arith.constant 0 : index
      %c0_257 = arith.constant 0 : index
      %c0_258 = arith.constant 0 : index
      %284 = vector.load %arg2[%c0_256, %c0_257, %c0_258] : memref<5x16x16xf32, #tpu.memory_space<vmem>>, vector<1x16x16xf32>
      %285 = vector.shape_cast %284 : vector<1x16x16xf32> to vector<16x16xf32>
      %286 = vector.extract_strided_slice %283 {offsets = [0, 0], sizes = [16, 224], strides = [1, 1]} : vector<16x256xf32> to vector<16x224xf32>
      %cst_259 = arith.constant dense<0.000000e+00> : vector<16x224xf32>
      %287 = tpu.matmul %285, %286, %cst_259 {dimension_numbers = #tpu.dot_dimension_numbers<[1], [0], [0], [1], [0, 0, 1, 1], [], []>} : vector<16x16xf32>, vector<16x224xf32>, vector<16x224xf32> -> vector<16x224xf32>
      %c1_260 = arith.constant 1 : index
      %c0_261 = arith.constant 0 : index
      %c0_262 = arith.constant 0 : index
      %288 = vector.load %arg2[%c1_260, %c0_261, %c0_262] : memref<5x16x16xf32, #tpu.memory_space<vmem>>, vector<1x16x16xf32>
      %289 = vector.shape_cast %288 : vector<1x16x16xf32> to vector<16x16xf32>
      %290 = vector.extract_strided_slice %283 {offsets = [0, 8], sizes = [16, 224], strides = [1, 1]} : vector<16x256xf32> to vector<16x224xf32>
      %cst_263 = arith.constant dense<0.000000e+00> : vector<16x224xf32>
      %291 = tpu.matmul %289, %290, %cst_263 {dimension_numbers = #tpu.dot_dimension_numbers<[1], [0], [0], [1], [0, 0, 1, 1], [], []>} : vector<16x16xf32>, vector<16x224xf32>, vector<16x224xf32> -> vector<16x224xf32>
      %292 = arith.addf %287, %291 : vector<16x224xf32>
      %c2_264 = arith.constant 2 : index
      %c0_265 = arith.constant 0 : index
      %c0_266 = arith.constant 0 : index
      %293 = vector.load %arg2[%c2_264, %c0_265, %c0_266] : memref<5x16x16xf32, #tpu.memory_space<vmem>>, vector<1x16x16xf32>
      %294 = vector.shape_cast %293 : vector<1x16x16xf32> to vector<16x16xf32>
      %295 = vector.extract_strided_slice %283 {offsets = [0, 16], sizes = [16, 224], strides = [1, 1]} : vector<16x256xf32> to vector<16x224xf32>
      %cst_267 = arith.constant dense<0.000000e+00> : vector<16x224xf32>
      %296 = tpu.matmul %294, %295, %cst_267 {dimension_numbers = #tpu.dot_dimension_numbers<[1], [0], [0], [1], [0, 0, 1, 1], [], []>} : vector<16x16xf32>, vector<16x224xf32>, vector<16x224xf32> -> vector<16x224xf32>
      %297 = arith.addf %292, %296 : vector<16x224xf32>
      %c3_268 = arith.constant 3 : index
      %c0_269 = arith.constant 0 : index
      %c0_270 = arith.constant 0 : index
      %298 = vector.load %arg2[%c3_268, %c0_269, %c0_270] : memref<5x16x16xf32, #tpu.memory_space<vmem>>, vector<1x16x16xf32>
      %299 = vector.shape_cast %298 : vector<1x16x16xf32> to vector<16x16xf32>
      %300 = vector.extract_strided_slice %283 {offsets = [0, 24], sizes = [16, 224], strides = [1, 1]} : vector<16x256xf32> to vector<16x224xf32>
      %cst_271 = arith.constant dense<0.000000e+00> : vector<16x224xf32>
      %301 = tpu.matmul %299, %300, %cst_271 {dimension_numbers = #tpu.dot_dimension_numbers<[1], [0], [0], [1], [0, 0, 1, 1], [], []>} : vector<16x16xf32>, vector<16x224xf32>, vector<16x224xf32> -> vector<16x224xf32>
      %302 = arith.addf %297, %301 : vector<16x224xf32>
      %c4_272 = arith.constant 4 : index
      %c0_273 = arith.constant 0 : index
      %c0_274 = arith.constant 0 : index
      %303 = vector.load %arg2[%c4_272, %c0_273, %c0_274] : memref<5x16x16xf32, #tpu.memory_space<vmem>>, vector<1x16x16xf32>
      %304 = vector.shape_cast %303 : vector<1x16x16xf32> to vector<16x16xf32>
      %305 = vector.extract_strided_slice %283 {offsets = [0, 32], sizes = [16, 224], strides = [1, 1]} : vector<16x256xf32> to vector<16x224xf32>
      %cst_275 = arith.constant dense<0.000000e+00> : vector<16x224xf32>
      %306 = tpu.matmul %304, %305, %cst_275 {dimension_numbers = #tpu.dot_dimension_numbers<[1], [0], [0], [1], [0, 0, 1, 1], [], []>} : vector<16x16xf32>, vector<16x224xf32>, vector<16x224xf32> -> vector<16x224xf32>
      %307 = arith.addf %302, %306 : vector<16x224xf32>
      %308 = vector.broadcast %223 : vector<16x1xf32> to vector<16x224xf32>
      %309 = arith.addf %307, %308 : vector<16x224xf32>
      %cst_276 = arith.constant 0.000000e+00 : f32
      %310 = vector.broadcast %cst_276 : f32 to vector<16x224xf32>
      %311 = arith.maximumf %309, %310 : vector<16x224xf32>
      %312 = vector.extract_strided_slice %222 {offsets = [48, 0], sizes = [16, 256], strides = [1, 1]} : vector<64x256xf32> to vector<16x256xf32>
      %c0_277 = arith.constant 0 : index
      %c0_278 = arith.constant 0 : index
      %c0_279 = arith.constant 0 : index
      %313 = vector.load %arg2[%c0_277, %c0_278, %c0_279] : memref<5x16x16xf32, #tpu.memory_space<vmem>>, vector<1x16x16xf32>
      %314 = vector.shape_cast %313 : vector<1x16x16xf32> to vector<16x16xf32>
      %315 = vector.extract_strided_slice %312 {offsets = [0, 0], sizes = [16, 224], strides = [1, 1]} : vector<16x256xf32> to vector<16x224xf32>
      %cst_280 = arith.constant dense<0.000000e+00> : vector<16x224xf32>
      %316 = tpu.matmul %314, %315, %cst_280 {dimension_numbers = #tpu.dot_dimension_numbers<[1], [0], [0], [1], [0, 0, 1, 1], [], []>} : vector<16x16xf32>, vector<16x224xf32>, vector<16x224xf32> -> vector<16x224xf32>
      %c1_281 = arith.constant 1 : index
      %c0_282 = arith.constant 0 : index
      %c0_283 = arith.constant 0 : index
      %317 = vector.load %arg2[%c1_281, %c0_282, %c0_283] : memref<5x16x16xf32, #tpu.memory_space<vmem>>, vector<1x16x16xf32>
      %318 = vector.shape_cast %317 : vector<1x16x16xf32> to vector<16x16xf32>
      %319 = vector.extract_strided_slice %312 {offsets = [0, 8], sizes = [16, 224], strides = [1, 1]} : vector<16x256xf32> to vector<16x224xf32>
      %cst_284 = arith.constant dense<0.000000e+00> : vector<16x224xf32>
      %320 = tpu.matmul %318, %319, %cst_284 {dimension_numbers = #tpu.dot_dimension_numbers<[1], [0], [0], [1], [0, 0, 1, 1], [], []>} : vector<16x16xf32>, vector<16x224xf32>, vector<16x224xf32> -> vector<16x224xf32>
      %321 = arith.addf %316, %320 : vector<16x224xf32>
      %c2_285 = arith.constant 2 : index
      %c0_286 = arith.constant 0 : index
      %c0_287 = arith.constant 0 : index
      %322 = vector.load %arg2[%c2_285, %c0_286, %c0_287] : memref<5x16x16xf32, #tpu.memory_space<vmem>>, vector<1x16x16xf32>
      %323 = vector.shape_cast %322 : vector<1x16x16xf32> to vector<16x16xf32>
      %324 = vector.extract_strided_slice %312 {offsets = [0, 16], sizes = [16, 224], strides = [1, 1]} : vector<16x256xf32> to vector<16x224xf32>
      %cst_288 = arith.constant dense<0.000000e+00> : vector<16x224xf32>
      %325 = tpu.matmul %323, %324, %cst_288 {dimension_numbers = #tpu.dot_dimension_numbers<[1], [0], [0], [1], [0, 0, 1, 1], [], []>} : vector<16x16xf32>, vector<16x224xf32>, vector<16x224xf32> -> vector<16x224xf32>
      %326 = arith.addf %321, %325 : vector<16x224xf32>
      %c3_289 = arith.constant 3 : index
      %c0_290 = arith.constant 0 : index
      %c0_291 = arith.constant 0 : index
      %327 = vector.load %arg2[%c3_289, %c0_290, %c0_291] : memref<5x16x16xf32, #tpu.memory_space<vmem>>, vector<1x16x16xf32>
      %328 = vector.shape_cast %327 : vector<1x16x16xf32> to vector<16x16xf32>
      %329 = vector.extract_strided_slice %312 {offsets = [0, 24], sizes = [16, 224], strides = [1, 1]} : vector<16x256xf32> to vector<16x224xf32>
      %cst_292 = arith.constant dense<0.000000e+00> : vector<16x224xf32>
      %330 = tpu.matmul %328, %329, %cst_292 {dimension_numbers = #tpu.dot_dimension_numbers<[1], [0], [0], [1], [0, 0, 1, 1], [], []>} : vector<16x16xf32>, vector<16x224xf32>, vector<16x224xf32> -> vector<16x224xf32>
      %331 = arith.addf %326, %330 : vector<16x224xf32>
      %c4_293 = arith.constant 4 : index
      %c0_294 = arith.constant 0 : index
      %c0_295 = arith.constant 0 : index
      %332 = vector.load %arg2[%c4_293, %c0_294, %c0_295] : memref<5x16x16xf32, #tpu.memory_space<vmem>>, vector<1x16x16xf32>
      %333 = vector.shape_cast %332 : vector<1x16x16xf32> to vector<16x16xf32>
      %334 = vector.extract_strided_slice %312 {offsets = [0, 32], sizes = [16, 224], strides = [1, 1]} : vector<16x256xf32> to vector<16x224xf32>
      %cst_296 = arith.constant dense<0.000000e+00> : vector<16x224xf32>
      %335 = tpu.matmul %333, %334, %cst_296 {dimension_numbers = #tpu.dot_dimension_numbers<[1], [0], [0], [1], [0, 0, 1, 1], [], []>} : vector<16x16xf32>, vector<16x224xf32>, vector<16x224xf32> -> vector<16x224xf32>
      %336 = arith.addf %331, %335 : vector<16x224xf32>
      %337 = vector.broadcast %223 : vector<16x1xf32> to vector<16x224xf32>
      %338 = arith.addf %336, %337 : vector<16x224xf32>
      %cst_297 = arith.constant 0.000000e+00 : f32
      %339 = vector.broadcast %cst_297 : f32 to vector<16x224xf32>
      %340 = arith.maximumf %338, %339 : vector<16x224xf32>
      %341 = arith.maximumf %311, %340 : vector<16x224xf32>
      %342 = vector.extract_strided_slice %282 {offsets = [0, 0], sizes = [16, 216], strides = [1, 1]} : vector<16x224xf32> to vector<16x216xf32>
      %343 = vector.extract_strided_slice %282 {offsets = [0, 8], sizes = [16, 216], strides = [1, 1]} : vector<16x224xf32> to vector<16x216xf32>
      %344 = arith.maximumf %342, %343 : vector<16x216xf32>
      %345 = vector.extract_strided_slice %344 {offsets = [0, 0], sizes = [16, 152], strides = [1, 1]} : vector<16x216xf32> to vector<16x152xf32>
      %c0_298 = arith.constant 0 : index
      %c0_299 = arith.constant 0 : index
      %c0_300 = arith.constant 0 : index
      %346 = vector.load %arg13[%c0_298, %c0_299, %c0_300] : memref<2x80x152xf32, #tpu.memory_space<vmem>>, vector<1x16x152xf32>
      %347 = vector.shape_cast %346 : vector<1x16x152xf32> to vector<16x152xf32>
      %348 = vector.shape_cast %345 : vector<16x152xf32> to vector<1x16x152xf32>
      tpu.vector_store %arg13[%c0_298, %c0_299, %c0_300], %348 {strides = array<i32>} : memref<2x80x152xf32, #tpu.memory_space<vmem>>, vector<1x16x152xf32>,
      %349 = vector.extract_strided_slice %344 {offsets = [0, 16], sizes = [16, 152], strides = [1, 1]} : vector<16x216xf32> to vector<16x152xf32>
      %c0_301 = arith.constant 0 : index
      %c16_302 = arith.constant 16 : index
      %c0_303 = arith.constant 0 : index
      %350 = vector.load %arg13[%c0_301, %c16_302, %c0_303] : memref<2x80x152xf32, #tpu.memory_space<vmem>>, vector<1x16x152xf32>
      %351 = vector.shape_cast %350 : vector<1x16x152xf32> to vector<16x152xf32>
      %352 = vector.shape_cast %349 : vector<16x152xf32> to vector<1x16x152xf32>
      tpu.vector_store %arg13[%c0_301, %c16_302, %c0_303], %352 {strides = array<i32>} : memref<2x80x152xf32, #tpu.memory_space<vmem>>, vector<1x16x152xf32>,
      %353 = vector.extract_strided_slice %344 {offsets = [0, 32], sizes = [16, 152], strides = [1, 1]} : vector<16x216xf32> to vector<16x152xf32>
      %c0_304 = arith.constant 0 : index
      %c32 = arith.constant 32 : index
      %c0_305 = arith.constant 0 : index
      %354 = vector.load %arg13[%c0_304, %c32, %c0_305] : memref<2x80x152xf32, #tpu.memory_space<vmem>>, vector<1x16x152xf32>
      %355 = vector.shape_cast %354 : vector<1x16x152xf32> to vector<16x152xf32>
      %356 = vector.shape_cast %353 : vector<16x152xf32> to vector<1x16x152xf32>
      tpu.vector_store %arg13[%c0_304, %c32, %c0_305], %356 {strides = array<i32>} : memref<2x80x152xf32, #tpu.memory_space<vmem>>, vector<1x16x152xf32>,
      %357 = vector.extract_strided_slice %344 {offsets = [0, 48], sizes = [16, 152], strides = [1, 1]} : vector<16x216xf32> to vector<16x152xf32>
      %c0_306 = arith.constant 0 : index
      %c48 = arith.constant 48 : index
      %c0_307 = arith.constant 0 : index
      %358 = vector.load %arg13[%c0_306, %c48, %c0_307] : memref<2x80x152xf32, #tpu.memory_space<vmem>>, vector<1x16x152xf32>
      %359 = vector.shape_cast %358 : vector<1x16x152xf32> to vector<16x152xf32>
      %360 = vector.shape_cast %357 : vector<16x152xf32> to vector<1x16x152xf32>
      tpu.vector_store %arg13[%c0_306, %c48, %c0_307], %360 {strides = array<i32>} : memref<2x80x152xf32, #tpu.memory_space<vmem>>, vector<1x16x152xf32>,
      %361 = vector.extract_strided_slice %344 {offsets = [0, 64], sizes = [16, 152], strides = [1, 1]} : vector<16x216xf32> to vector<16x152xf32>
      %c0_308 = arith.constant 0 : index
      %c64 = arith.constant 64 : index
      %c0_309 = arith.constant 0 : index
      %362 = vector.load %arg13[%c0_308, %c64, %c0_309] : memref<2x80x152xf32, #tpu.memory_space<vmem>>, vector<1x16x152xf32>
      %363 = vector.shape_cast %362 : vector<1x16x152xf32> to vector<16x152xf32>
      %364 = vector.shape_cast %361 : vector<16x152xf32> to vector<1x16x152xf32>
      tpu.vector_store %arg13[%c0_308, %c64, %c0_309], %364 {strides = array<i32>} : memref<2x80x152xf32, #tpu.memory_space<vmem>>, vector<1x16x152xf32>,
      %365 = vector.extract_strided_slice %341 {offsets = [0, 0], sizes = [16, 216], strides = [1, 1]} : vector<16x224xf32> to vector<16x216xf32>
      %366 = vector.extract_strided_slice %341 {offsets = [0, 8], sizes = [16, 216], strides = [1, 1]} : vector<16x224xf32> to vector<16x216xf32>
      %367 = arith.maximumf %365, %366 : vector<16x216xf32>
      %368 = vector.extract_strided_slice %367 {offsets = [0, 0], sizes = [16, 152], strides = [1, 1]} : vector<16x216xf32> to vector<16x152xf32>
      %c1_310 = arith.constant 1 : index
      %c0_311 = arith.constant 0 : index
      %c0_312 = arith.constant 0 : index
      %369 = vector.load %arg13[%c1_310, %c0_311, %c0_312] : memref<2x80x152xf32, #tpu.memory_space<vmem>>, vector<1x16x152xf32>
      %370 = vector.shape_cast %369 : vector<1x16x152xf32> to vector<16x152xf32>
      %371 = vector.shape_cast %368 : vector<16x152xf32> to vector<1x16x152xf32>
      tpu.vector_store %arg13[%c1_310, %c0_311, %c0_312], %371 {strides = array<i32>} : memref<2x80x152xf32, #tpu.memory_space<vmem>>, vector<1x16x152xf32>,
      %372 = vector.extract_strided_slice %367 {offsets = [0, 16], sizes = [16, 152], strides = [1, 1]} : vector<16x216xf32> to vector<16x152xf32>
      %c1_313 = arith.constant 1 : index
      %c16_314 = arith.constant 16 : index
      %c0_315 = arith.constant 0 : index
      %373 = vector.load %arg13[%c1_313, %c16_314, %c0_315] : memref<2x80x152xf32, #tpu.memory_space<vmem>>, vector<1x16x152xf32>
      %374 = vector.shape_cast %373 : vector<1x16x152xf32> to vector<16x152xf32>
      %375 = vector.shape_cast %372 : vector<16x152xf32> to vector<1x16x152xf32>
      tpu.vector_store %arg13[%c1_313, %c16_314, %c0_315], %375 {strides = array<i32>} : memref<2x80x152xf32, #tpu.memory_space<vmem>>, vector<1x16x152xf32>,
      %376 = vector.extract_strided_slice %367 {offsets = [0, 32], sizes = [16, 152], strides = [1, 1]} : vector<16x216xf32> to vector<16x152xf32>
      %c1_316 = arith.constant 1 : index
      %c32_317 = arith.constant 32 : index
      %c0_318 = arith.constant 0 : index
      %377 = vector.load %arg13[%c1_316, %c32_317, %c0_318] : memref<2x80x152xf32, #tpu.memory_space<vmem>>, vector<1x16x152xf32>
      %378 = vector.shape_cast %377 : vector<1x16x152xf32> to vector<16x152xf32>
      %379 = vector.shape_cast %376 : vector<16x152xf32> to vector<1x16x152xf32>
      tpu.vector_store %arg13[%c1_316, %c32_317, %c0_318], %379 {strides = array<i32>} : memref<2x80x152xf32, #tpu.memory_space<vmem>>, vector<1x16x152xf32>,
      %380 = vector.extract_strided_slice %367 {offsets = [0, 48], sizes = [16, 152], strides = [1, 1]} : vector<16x216xf32> to vector<16x152xf32>
      %c1_319 = arith.constant 1 : index
      %c48_320 = arith.constant 48 : index
      %c0_321 = arith.constant 0 : index
      %381 = vector.load %arg13[%c1_319, %c48_320, %c0_321] : memref<2x80x152xf32, #tpu.memory_space<vmem>>, vector<1x16x152xf32>
      %382 = vector.shape_cast %381 : vector<1x16x152xf32> to vector<16x152xf32>
      %383 = vector.shape_cast %380 : vector<16x152xf32> to vector<1x16x152xf32>
      tpu.vector_store %arg13[%c1_319, %c48_320, %c0_321], %383 {strides = array<i32>} : memref<2x80x152xf32, #tpu.memory_space<vmem>>, vector<1x16x152xf32>,
      %384 = vector.extract_strided_slice %367 {offsets = [0, 64], sizes = [16, 152], strides = [1, 1]} : vector<16x216xf32> to vector<16x152xf32>
      %c1_322 = arith.constant 1 : index
      %c64_323 = arith.constant 64 : index
      %c0_324 = arith.constant 0 : index
      %385 = vector.load %arg13[%c1_322, %c64_323, %c0_324] : memref<2x80x152xf32, #tpu.memory_space<vmem>>, vector<1x16x152xf32>
      %386 = vector.shape_cast %385 : vector<1x16x152xf32> to vector<16x152xf32>
      %387 = vector.shape_cast %384 : vector<16x152xf32> to vector<1x16x152xf32>
      tpu.vector_store %arg13[%c1_322, %c64_323, %c0_324], %387 {strides = array<i32>} : memref<2x80x152xf32, #tpu.memory_space<vmem>>, vector<1x16x152xf32>,
      %c0_325 = arith.constant 0 : index
      %c0_326 = arith.constant 0 : index
      %388 = vector.load %arg5[%c0_325, %c0_326] : memref<32x1xf32, #tpu.memory_space<vmem>>, vector<32x1xf32>
      %c0_327 = arith.constant 0 : index
      %c0_328 = arith.constant 0 : index
      %c0_329 = arith.constant 0 : index
      %389 = vector.load %arg4[%c0_327, %c0_328, %c0_329] : memref<5x32x80xf32, #tpu.memory_space<vmem>>, vector<1x32x80xf32>
      %390 = vector.shape_cast %389 : vector<1x32x80xf32> to vector<32x80xf32>
      %c0_330 = arith.constant 0 : index
      %c0_331 = arith.constant 0 : index
      %c0_332 = arith.constant 0 : index
      %391 = vector.load %arg13[%c0_330, %c0_331, %c0_332] : memref<2x80x152xf32, #tpu.memory_space<vmem>>, vector<1x80x150xf32>
      %392 = vector.shape_cast %391 : vector<1x80x150xf32> to vector<80x150xf32>
      %cst_333 = arith.constant dense<0.000000e+00> : vector<32x150xf32>
      %393 = tpu.matmul %390, %392, %cst_333 {dimension_numbers = #tpu.dot_dimension_numbers<[1], [0], [0], [1], [0, 0, 1, 1], [], []>} : vector<32x80xf32>, vector<80x150xf32>, vector<32x150xf32> -> vector<32x150xf32>
      %c1_334 = arith.constant 1 : index
      %c0_335 = arith.constant 0 : index
      %c0_336 = arith.constant 0 : index
      %394 = vector.load %arg4[%c1_334, %c0_335, %c0_336] : memref<5x32x80xf32, #tpu.memory_space<vmem>>, vector<1x32x80xf32>
      %395 = vector.shape_cast %394 : vector<1x32x80xf32> to vector<32x80xf32>
      %c1_337 = arith.constant 1 : index
      %c0_338 = arith.constant 0 : index
      %c0_339 = arith.constant 0 : index
      %396 = vector.load %arg13[%c1_337, %c0_338, %c0_339] : memref<2x80x152xf32, #tpu.memory_space<vmem>>, vector<1x80x150xf32>
      %397 = vector.shape_cast %396 : vector<1x80x150xf32> to vector<80x150xf32>
      %cst_340 = arith.constant dense<0.000000e+00> : vector<32x150xf32>
      %398 = tpu.matmul %395, %397, %cst_340 {dimension_numbers = #tpu.dot_dimension_numbers<[1], [0], [0], [1], [0, 0, 1, 1], [], []>} : vector<32x80xf32>, vector<80x150xf32>, vector<32x150xf32> -> vector<32x150xf32>
      %399 = arith.addf %393, %398 : vector<32x150xf32>
      %c2_341 = arith.constant 2 : index
      %c0_342 = arith.constant 0 : index
      %c0_343 = arith.constant 0 : index
      %400 = vector.load %arg4[%c2_341, %c0_342, %c0_343] : memref<5x32x80xf32, #tpu.memory_space<vmem>>, vector<1x32x80xf32>
      %401 = vector.shape_cast %400 : vector<1x32x80xf32> to vector<32x80xf32>
      %c0_344 = arith.constant 0 : index
      %c0_345 = arith.constant 0 : index
      %c1_346 = arith.constant 1 : index
      %402 = vector.load %arg13[%c0_344, %c0_345, %c1_346] : memref<2x80x152xf32, #tpu.memory_space<vmem>>, vector<1x80x150xf32>
      %403 = vector.shape_cast %402 : vector<1x80x150xf32> to vector<80x150xf32>
      %cst_347 = arith.constant dense<0.000000e+00> : vector<32x150xf32>
      %404 = tpu.matmul %401, %403, %cst_347 {dimension_numbers = #tpu.dot_dimension_numbers<[1], [0], [0], [1], [0, 0, 1, 1], [], []>} : vector<32x80xf32>, vector<80x150xf32>, vector<32x150xf32> -> vector<32x150xf32>
      %405 = arith.addf %399, %404 : vector<32x150xf32>
      %c3_348 = arith.constant 3 : index
      %c0_349 = arith.constant 0 : index
      %c0_350 = arith.constant 0 : index
      %406 = vector.load %arg4[%c3_348, %c0_349, %c0_350] : memref<5x32x80xf32, #tpu.memory_space<vmem>>, vector<1x32x80xf32>
      %407 = vector.shape_cast %406 : vector<1x32x80xf32> to vector<32x80xf32>
      %c1_351 = arith.constant 1 : index
      %c0_352 = arith.constant 0 : index
      %c1_353 = arith.constant 1 : index
      %408 = vector.load %arg13[%c1_351, %c0_352, %c1_353] : memref<2x80x152xf32, #tpu.memory_space<vmem>>, vector<1x80x150xf32>
      %409 = vector.shape_cast %408 : vector<1x80x150xf32> to vector<80x150xf32>
      %cst_354 = arith.constant dense<0.000000e+00> : vector<32x150xf32>
      %410 = tpu.matmul %407, %409, %cst_354 {dimension_numbers = #tpu.dot_dimension_numbers<[1], [0], [0], [1], [0, 0, 1, 1], [], []>} : vector<32x80xf32>, vector<80x150xf32>, vector<32x150xf32> -> vector<32x150xf32>
      %411 = arith.addf %405, %410 : vector<32x150xf32>
      %c4_355 = arith.constant 4 : index
      %c0_356 = arith.constant 0 : index
      %c0_357 = arith.constant 0 : index
      %412 = vector.load %arg4[%c4_355, %c0_356, %c0_357] : memref<5x32x80xf32, #tpu.memory_space<vmem>>, vector<1x32x80xf32>
      %413 = vector.shape_cast %412 : vector<1x32x80xf32> to vector<32x80xf32>
      %c0_358 = arith.constant 0 : index
      %c0_359 = arith.constant 0 : index
      %c2_360 = arith.constant 2 : index
      %414 = vector.load %arg13[%c0_358, %c0_359, %c2_360] : memref<2x80x152xf32, #tpu.memory_space<vmem>>, vector<1x80x150xf32>
      %415 = vector.shape_cast %414 : vector<1x80x150xf32> to vector<80x150xf32>
      %cst_361 = arith.constant dense<0.000000e+00> : vector<32x150xf32>
      %416 = tpu.matmul %413, %415, %cst_361 {dimension_numbers = #tpu.dot_dimension_numbers<[1], [0], [0], [1], [0, 0, 1, 1], [], []>} : vector<32x80xf32>, vector<80x150xf32>, vector<32x150xf32> -> vector<32x150xf32>
      %417 = arith.addf %411, %416 : vector<32x150xf32>
      %418 = vector.broadcast %388 : vector<32x1xf32> to vector<32x150xf32>
      %419 = arith.addf %417, %418 : vector<32x150xf32>
      %cst_362 = arith.constant 0.000000e+00 : f32
      %420 = vector.broadcast %cst_362 : f32 to vector<32x150xf32>
      %421 = arith.maximumf %419, %420 : vector<32x150xf32>
      %c0_363 = arith.constant 0 : index
      %c0_364 = arith.constant 0 : index
      %c0_365 = arith.constant 0 : index
      %422 = vector.load %arg4[%c0_363, %c0_364, %c0_365] : memref<5x32x80xf32, #tpu.memory_space<vmem>>, vector<1x32x80xf32>
      %423 = vector.shape_cast %422 : vector<1x32x80xf32> to vector<32x80xf32>
      %c1_366 = arith.constant 1 : index
      %c0_367 = arith.constant 0 : index
      %c0_368 = arith.constant 0 : index
      %424 = vector.load %arg13[%c1_366, %c0_367, %c0_368] : memref<2x80x152xf32, #tpu.memory_space<vmem>>, vector<1x80x150xf32>
      %425 = vector.shape_cast %424 : vector<1x80x150xf32> to vector<80x150xf32>
      %cst_369 = arith.constant dense<0.000000e+00> : vector<32x150xf32>
      %426 = tpu.matmul %423, %425, %cst_369 {dimension_numbers = #tpu.dot_dimension_numbers<[1], [0], [0], [1], [0, 0, 1, 1], [], []>} : vector<32x80xf32>, vector<80x150xf32>, vector<32x150xf32> -> vector<32x150xf32>
      %c1_370 = arith.constant 1 : index
      %c0_371 = arith.constant 0 : index
      %c0_372 = arith.constant 0 : index
      %427 = vector.load %arg4[%c1_370, %c0_371, %c0_372] : memref<5x32x80xf32, #tpu.memory_space<vmem>>, vector<1x32x80xf32>
      %428 = vector.shape_cast %427 : vector<1x32x80xf32> to vector<32x80xf32>
      %c0_373 = arith.constant 0 : index
      %c0_374 = arith.constant 0 : index
      %c1_375 = arith.constant 1 : index
      %429 = vector.load %arg13[%c0_373, %c0_374, %c1_375] : memref<2x80x152xf32, #tpu.memory_space<vmem>>, vector<1x80x150xf32>
      %430 = vector.shape_cast %429 : vector<1x80x150xf32> to vector<80x150xf32>
      %cst_376 = arith.constant dense<0.000000e+00> : vector<32x150xf32>
      %431 = tpu.matmul %428, %430, %cst_376 {dimension_numbers = #tpu.dot_dimension_numbers<[1], [0], [0], [1], [0, 0, 1, 1], [], []>} : vector<32x80xf32>, vector<80x150xf32>, vector<32x150xf32> -> vector<32x150xf32>
      %432 = arith.addf %426, %431 : vector<32x150xf32>
      %c2_377 = arith.constant 2 : index
      %c0_378 = arith.constant 0 : index
      %c0_379 = arith.constant 0 : index
      %433 = vector.load %arg4[%c2_377, %c0_378, %c0_379] : memref<5x32x80xf32, #tpu.memory_space<vmem>>, vector<1x32x80xf32>
      %434 = vector.shape_cast %433 : vector<1x32x80xf32> to vector<32x80xf32>
      %c1_380 = arith.constant 1 : index
      %c0_381 = arith.constant 0 : index
      %c1_382 = arith.constant 1 : index
      %435 = vector.load %arg13[%c1_380, %c0_381, %c1_382] : memref<2x80x152xf32, #tpu.memory_space<vmem>>, vector<1x80x150xf32>
      %436 = vector.shape_cast %435 : vector<1x80x150xf32> to vector<80x150xf32>
      %cst_383 = arith.constant dense<0.000000e+00> : vector<32x150xf32>
      %437 = tpu.matmul %434, %436, %cst_383 {dimension_numbers = #tpu.dot_dimension_numbers<[1], [0], [0], [1], [0, 0, 1, 1], [], []>} : vector<32x80xf32>, vector<80x150xf32>, vector<32x150xf32> -> vector<32x150xf32>
      %438 = arith.addf %432, %437 : vector<32x150xf32>
      %c3_384 = arith.constant 3 : index
      %c0_385 = arith.constant 0 : index
      %c0_386 = arith.constant 0 : index
      %439 = vector.load %arg4[%c3_384, %c0_385, %c0_386] : memref<5x32x80xf32, #tpu.memory_space<vmem>>, vector<1x32x80xf32>
      %440 = vector.shape_cast %439 : vector<1x32x80xf32> to vector<32x80xf32>
      %c0_387 = arith.constant 0 : index
      %c0_388 = arith.constant 0 : index
      %c2_389 = arith.constant 2 : index
      %441 = vector.load %arg13[%c0_387, %c0_388, %c2_389] : memref<2x80x152xf32, #tpu.memory_space<vmem>>, vector<1x80x150xf32>
      %442 = vector.shape_cast %441 : vector<1x80x150xf32> to vector<80x150xf32>
      %cst_390 = arith.constant dense<0.000000e+00> : vector<32x150xf32>
      %443 = tpu.matmul %440, %442, %cst_390 {dimension_numbers = #tpu.dot_dimension_numbers<[1], [0], [0], [1], [0, 0, 1, 1], [], []>} : vector<32x80xf32>, vector<80x150xf32>, vector<32x150xf32> -> vector<32x150xf32>
      %444 = arith.addf %438, %443 : vector<32x150xf32>
      %c4_391 = arith.constant 4 : index
      %c0_392 = arith.constant 0 : index
      %c0_393 = arith.constant 0 : index
      %445 = vector.load %arg4[%c4_391, %c0_392, %c0_393] : memref<5x32x80xf32, #tpu.memory_space<vmem>>, vector<1x32x80xf32>
      %446 = vector.shape_cast %445 : vector<1x32x80xf32> to vector<32x80xf32>
      %c1_394 = arith.constant 1 : index
      %c0_395 = arith.constant 0 : index
      %c2_396 = arith.constant 2 : index
      %447 = vector.load %arg13[%c1_394, %c0_395, %c2_396] : memref<2x80x152xf32, #tpu.memory_space<vmem>>, vector<1x80x150xf32>
      %448 = vector.shape_cast %447 : vector<1x80x150xf32> to vector<80x150xf32>
      %cst_397 = arith.constant dense<0.000000e+00> : vector<32x150xf32>
      %449 = tpu.matmul %446, %448, %cst_397 {dimension_numbers = #tpu.dot_dimension_numbers<[1], [0], [0], [1], [0, 0, 1, 1], [], []>} : vector<32x80xf32>, vector<80x150xf32>, vector<32x150xf32> -> vector<32x150xf32>
      %450 = arith.addf %444, %449 : vector<32x150xf32>
      %451 = vector.broadcast %388 : vector<32x1xf32> to vector<32x150xf32>
      %452 = arith.addf %450, %451 : vector<32x150xf32>
      %cst_398 = arith.constant 0.000000e+00 : f32
      %453 = vector.broadcast %cst_398 : f32 to vector<32x150xf32>
      %454 = arith.maximumf %452, %453 : vector<32x150xf32>
      %455 = arith.maximumf %421, %454 : vector<32x150xf32>
      %456 = vector.extract_strided_slice %455 {offsets = [0, 0], sizes = [32, 134], strides = [1, 1]} : vector<32x150xf32> to vector<32x134xf32>
      %457 = vector.extract_strided_slice %455 {offsets = [0, 16], sizes = [32, 134], strides = [1, 1]} : vector<32x150xf32> to vector<32x134xf32>
      %458 = arith.maximumf %456, %457 : vector<32x134xf32>
      %459 = arith.index_cast %arg15 : i32 to index
      %c0_399 = arith.constant 0 : index
      %c0_400 = arith.constant 0 : index
      %460 = vector.load %arg14[%459, %c0_399, %c0_400] : memref<4x32x134xf32, #tpu.memory_space<vmem>>, vector<1x32x134xf32>
      %461 = vector.shape_cast %460 : vector<1x32x134xf32> to vector<32x134xf32>
      %462 = vector.shape_cast %458 : vector<32x134xf32> to vector<1x32x134xf32>
      tpu.vector_store %arg14[%459, %c0_399, %c0_400], %462 {strides = array<i32>} : memref<4x32x134xf32, #tpu.memory_space<vmem>>, vector<1x32x134xf32>,
    }
    %c4_i32_0 = arith.constant 4 : i32
    %c0 = arith.constant 0 : index
    %c0_1 = arith.constant 0 : index
    %c0_2 = arith.constant 0 : index
    %1 = vector.load %arg14[%c0, %c0_1, %c0_2] : memref<4x32x134xf32, #tpu.memory_space<vmem>>, vector<4x1x134xf32>
    %2 = vector.shape_cast %1 : vector<4x1x134xf32> to vector<4x134xf32>
    %c0_3 = arith.constant 0 : index
    %c0_4 = arith.constant 0 : index
    %c0_5 = arith.constant 0 : index
    %3 = vector.load %arg6[%c0_3, %c0_4, %c0_5] : memref<32x134x128xf32, #tpu.memory_space<vmem>>, vector<1x134x128xf32>
    %4 = vector.shape_cast %3 : vector<1x134x128xf32> to vector<134x128xf32>
    %cst = arith.constant dense<0.000000e+00> : vector<4x128xf32>
    %5 = tpu.matmul %2, %4, %cst {dimension_numbers = #tpu.dot_dimension_numbers<[1], [0], [0], [1], [0, 0, 1, 1], [], []>} : vector<4x134xf32>, vector<134x128xf32>, vector<4x128xf32> -> vector<4x128xf32>
    %c0_6 = arith.constant 0 : index
    %c1 = arith.constant 1 : index
    %c0_7 = arith.constant 0 : index
    %6 = vector.load %arg14[%c0_6, %c1, %c0_7] : memref<4x32x134xf32, #tpu.memory_space<vmem>>, vector<4x1x134xf32>
    %7 = vector.shape_cast %6 : vector<4x1x134xf32> to vector<4x134xf32>
    %c1_8 = arith.constant 1 : index
    %c0_9 = arith.constant 0 : index
    %c0_10 = arith.constant 0 : index
    %8 = vector.load %arg6[%c1_8, %c0_9, %c0_10] : memref<32x134x128xf32, #tpu.memory_space<vmem>>, vector<1x134x128xf32>
    %9 = vector.shape_cast %8 : vector<1x134x128xf32> to vector<134x128xf32>
    %cst_11 = arith.constant dense<0.000000e+00> : vector<4x128xf32>
    %10 = tpu.matmul %7, %9, %cst_11 {dimension_numbers = #tpu.dot_dimension_numbers<[1], [0], [0], [1], [0, 0, 1, 1], [], []>} : vector<4x134xf32>, vector<134x128xf32>, vector<4x128xf32> -> vector<4x128xf32>
    %11 = arith.addf %5, %10 : vector<4x128xf32>
    %c0_12 = arith.constant 0 : index
    %c2 = arith.constant 2 : index
    %c0_13 = arith.constant 0 : index
    %12 = vector.load %arg14[%c0_12, %c2, %c0_13] : memref<4x32x134xf32, #tpu.memory_space<vmem>>, vector<4x1x134xf32>
    %13 = vector.shape_cast %12 : vector<4x1x134xf32> to vector<4x134xf32>
    %c2_14 = arith.constant 2 : index
    %c0_15 = arith.constant 0 : index
    %c0_16 = arith.constant 0 : index
    %14 = vector.load %arg6[%c2_14, %c0_15, %c0_16] : memref<32x134x128xf32, #tpu.memory_space<vmem>>, vector<1x134x128xf32>
    %15 = vector.shape_cast %14 : vector<1x134x128xf32> to vector<134x128xf32>
    %cst_17 = arith.constant dense<0.000000e+00> : vector<4x128xf32>
    %16 = tpu.matmul %13, %15, %cst_17 {dimension_numbers = #tpu.dot_dimension_numbers<[1], [0], [0], [1], [0, 0, 1, 1], [], []>} : vector<4x134xf32>, vector<134x128xf32>, vector<4x128xf32> -> vector<4x128xf32>
    %17 = arith.addf %11, %16 : vector<4x128xf32>
    %c0_18 = arith.constant 0 : index
    %c3 = arith.constant 3 : index
    %c0_19 = arith.constant 0 : index
    %18 = vector.load %arg14[%c0_18, %c3, %c0_19] : memref<4x32x134xf32, #tpu.memory_space<vmem>>, vector<4x1x134xf32>
    %19 = vector.shape_cast %18 : vector<4x1x134xf32> to vector<4x134xf32>
    %c3_20 = arith.constant 3 : index
    %c0_21 = arith.constant 0 : index
    %c0_22 = arith.constant 0 : index
    %20 = vector.load %arg6[%c3_20, %c0_21, %c0_22] : memref<32x134x128xf32, #tpu.memory_space<vmem>>, vector<1x134x128xf32>
    %21 = vector.shape_cast %20 : vector<1x134x128xf32> to vector<134x128xf32>
    %cst_23 = arith.constant dense<0.000000e+00> : vector<4x128xf32>
    %22 = tpu.matmul %19, %21, %cst_23 {dimension_numbers = #tpu.dot_dimension_numbers<[1], [0], [0], [1], [0, 0, 1, 1], [], []>} : vector<4x134xf32>, vector<134x128xf32>, vector<4x128xf32> -> vector<4x128xf32>
    %23 = arith.addf %17, %22 : vector<4x128xf32>
    %c0_24 = arith.constant 0 : index
    %c4 = arith.constant 4 : index
    %c0_25 = arith.constant 0 : index
    %24 = vector.load %arg14[%c0_24, %c4, %c0_25] : memref<4x32x134xf32, #tpu.memory_space<vmem>>, vector<4x1x134xf32>
    %25 = vector.shape_cast %24 : vector<4x1x134xf32> to vector<4x134xf32>
    %c4_26 = arith.constant 4 : index
    %c0_27 = arith.constant 0 : index
    %c0_28 = arith.constant 0 : index
    %26 = vector.load %arg6[%c4_26, %c0_27, %c0_28] : memref<32x134x128xf32, #tpu.memory_space<vmem>>, vector<1x134x128xf32>
    %27 = vector.shape_cast %26 : vector<1x134x128xf32> to vector<134x128xf32>
    %cst_29 = arith.constant dense<0.000000e+00> : vector<4x128xf32>
    %28 = tpu.matmul %25, %27, %cst_29 {dimension_numbers = #tpu.dot_dimension_numbers<[1], [0], [0], [1], [0, 0, 1, 1], [], []>} : vector<4x134xf32>, vector<134x128xf32>, vector<4x128xf32> -> vector<4x128xf32>
    %29 = arith.addf %23, %28 : vector<4x128xf32>
    %c0_30 = arith.constant 0 : index
    %c5 = arith.constant 5 : index
    %c0_31 = arith.constant 0 : index
    %30 = vector.load %arg14[%c0_30, %c5, %c0_31] : memref<4x32x134xf32, #tpu.memory_space<vmem>>, vector<4x1x134xf32>
    %31 = vector.shape_cast %30 : vector<4x1x134xf32> to vector<4x134xf32>
    %c5_32 = arith.constant 5 : index
    %c0_33 = arith.constant 0 : index
    %c0_34 = arith.constant 0 : index
    %32 = vector.load %arg6[%c5_32, %c0_33, %c0_34] : memref<32x134x128xf32, #tpu.memory_space<vmem>>, vector<1x134x128xf32>
    %33 = vector.shape_cast %32 : vector<1x134x128xf32> to vector<134x128xf32>
    %cst_35 = arith.constant dense<0.000000e+00> : vector<4x128xf32>
    %34 = tpu.matmul %31, %33, %cst_35 {dimension_numbers = #tpu.dot_dimension_numbers<[1], [0], [0], [1], [0, 0, 1, 1], [], []>} : vector<4x134xf32>, vector<134x128xf32>, vector<4x128xf32> -> vector<4x128xf32>
    %35 = arith.addf %29, %34 : vector<4x128xf32>
    %c0_36 = arith.constant 0 : index
    %c6 = arith.constant 6 : index
    %c0_37 = arith.constant 0 : index
    %36 = vector.load %arg14[%c0_36, %c6, %c0_37] : memref<4x32x134xf32, #tpu.memory_space<vmem>>, vector<4x1x134xf32>
    %37 = vector.shape_cast %36 : vector<4x1x134xf32> to vector<4x134xf32>
    %c6_38 = arith.constant 6 : index
    %c0_39 = arith.constant 0 : index
    %c0_40 = arith.constant 0 : index
    %38 = vector.load %arg6[%c6_38, %c0_39, %c0_40] : memref<32x134x128xf32, #tpu.memory_space<vmem>>, vector<1x134x128xf32>
    %39 = vector.shape_cast %38 : vector<1x134x128xf32> to vector<134x128xf32>
    %cst_41 = arith.constant dense<0.000000e+00> : vector<4x128xf32>
    %40 = tpu.matmul %37, %39, %cst_41 {dimension_numbers = #tpu.dot_dimension_numbers<[1], [0], [0], [1], [0, 0, 1, 1], [], []>} : vector<4x134xf32>, vector<134x128xf32>, vector<4x128xf32> -> vector<4x128xf32>
    %41 = arith.addf %35, %40 : vector<4x128xf32>
    %c0_42 = arith.constant 0 : index
    %c7 = arith.constant 7 : index
    %c0_43 = arith.constant 0 : index
    %42 = vector.load %arg14[%c0_42, %c7, %c0_43] : memref<4x32x134xf32, #tpu.memory_space<vmem>>, vector<4x1x134xf32>
    %43 = vector.shape_cast %42 : vector<4x1x134xf32> to vector<4x134xf32>
    %c7_44 = arith.constant 7 : index
    %c0_45 = arith.constant 0 : index
    %c0_46 = arith.constant 0 : index
    %44 = vector.load %arg6[%c7_44, %c0_45, %c0_46] : memref<32x134x128xf32, #tpu.memory_space<vmem>>, vector<1x134x128xf32>
    %45 = vector.shape_cast %44 : vector<1x134x128xf32> to vector<134x128xf32>
    %cst_47 = arith.constant dense<0.000000e+00> : vector<4x128xf32>
    %46 = tpu.matmul %43, %45, %cst_47 {dimension_numbers = #tpu.dot_dimension_numbers<[1], [0], [0], [1], [0, 0, 1, 1], [], []>} : vector<4x134xf32>, vector<134x128xf32>, vector<4x128xf32> -> vector<4x128xf32>
    %47 = arith.addf %41, %46 : vector<4x128xf32>
    %c0_48 = arith.constant 0 : index
    %c8 = arith.constant 8 : index
    %c0_49 = arith.constant 0 : index
    %48 = vector.load %arg14[%c0_48, %c8, %c0_49] : memref<4x32x134xf32, #tpu.memory_space<vmem>>, vector<4x1x134xf32>
    %49 = vector.shape_cast %48 : vector<4x1x134xf32> to vector<4x134xf32>
    %c8_50 = arith.constant 8 : index
    %c0_51 = arith.constant 0 : index
    %c0_52 = arith.constant 0 : index
    %50 = vector.load %arg6[%c8_50, %c0_51, %c0_52] : memref<32x134x128xf32, #tpu.memory_space<vmem>>, vector<1x134x128xf32>
    %51 = vector.shape_cast %50 : vector<1x134x128xf32> to vector<134x128xf32>
    %cst_53 = arith.constant dense<0.000000e+00> : vector<4x128xf32>
    %52 = tpu.matmul %49, %51, %cst_53 {dimension_numbers = #tpu.dot_dimension_numbers<[1], [0], [0], [1], [0, 0, 1, 1], [], []>} : vector<4x134xf32>, vector<134x128xf32>, vector<4x128xf32> -> vector<4x128xf32>
    %53 = arith.addf %47, %52 : vector<4x128xf32>
    %c0_54 = arith.constant 0 : index
    %c9 = arith.constant 9 : index
    %c0_55 = arith.constant 0 : index
    %54 = vector.load %arg14[%c0_54, %c9, %c0_55] : memref<4x32x134xf32, #tpu.memory_space<vmem>>, vector<4x1x134xf32>
    %55 = vector.shape_cast %54 : vector<4x1x134xf32> to vector<4x134xf32>
    %c9_56 = arith.constant 9 : index
    %c0_57 = arith.constant 0 : index
    %c0_58 = arith.constant 0 : index
    %56 = vector.load %arg6[%c9_56, %c0_57, %c0_58] : memref<32x134x128xf32, #tpu.memory_space<vmem>>, vector<1x134x128xf32>
    %57 = vector.shape_cast %56 : vector<1x134x128xf32> to vector<134x128xf32>
    %cst_59 = arith.constant dense<0.000000e+00> : vector<4x128xf32>
    %58 = tpu.matmul %55, %57, %cst_59 {dimension_numbers = #tpu.dot_dimension_numbers<[1], [0], [0], [1], [0, 0, 1, 1], [], []>} : vector<4x134xf32>, vector<134x128xf32>, vector<4x128xf32> -> vector<4x128xf32>
    %59 = arith.addf %53, %58 : vector<4x128xf32>
    %c0_60 = arith.constant 0 : index
    %c10 = arith.constant 10 : index
    %c0_61 = arith.constant 0 : index
    %60 = vector.load %arg14[%c0_60, %c10, %c0_61] : memref<4x32x134xf32, #tpu.memory_space<vmem>>, vector<4x1x134xf32>
    %61 = vector.shape_cast %60 : vector<4x1x134xf32> to vector<4x134xf32>
    %c10_62 = arith.constant 10 : index
    %c0_63 = arith.constant 0 : index
    %c0_64 = arith.constant 0 : index
    %62 = vector.load %arg6[%c10_62, %c0_63, %c0_64] : memref<32x134x128xf32, #tpu.memory_space<vmem>>, vector<1x134x128xf32>
    %63 = vector.shape_cast %62 : vector<1x134x128xf32> to vector<134x128xf32>
    %cst_65 = arith.constant dense<0.000000e+00> : vector<4x128xf32>
    %64 = tpu.matmul %61, %63, %cst_65 {dimension_numbers = #tpu.dot_dimension_numbers<[1], [0], [0], [1], [0, 0, 1, 1], [], []>} : vector<4x134xf32>, vector<134x128xf32>, vector<4x128xf32> -> vector<4x128xf32>
    %65 = arith.addf %59, %64 : vector<4x128xf32>
    %c0_66 = arith.constant 0 : index
    %c11 = arith.constant 11 : index
    %c0_67 = arith.constant 0 : index
    %66 = vector.load %arg14[%c0_66, %c11, %c0_67] : memref<4x32x134xf32, #tpu.memory_space<vmem>>, vector<4x1x134xf32>
    %67 = vector.shape_cast %66 : vector<4x1x134xf32> to vector<4x134xf32>
    %c11_68 = arith.constant 11 : index
    %c0_69 = arith.constant 0 : index
    %c0_70 = arith.constant 0 : index
    %68 = vector.load %arg6[%c11_68, %c0_69, %c0_70] : memref<32x134x128xf32, #tpu.memory_space<vmem>>, vector<1x134x128xf32>
    %69 = vector.shape_cast %68 : vector<1x134x128xf32> to vector<134x128xf32>
    %cst_71 = arith.constant dense<0.000000e+00> : vector<4x128xf32>
    %70 = tpu.matmul %67, %69, %cst_71 {dimension_numbers = #tpu.dot_dimension_numbers<[1], [0], [0], [1], [0, 0, 1, 1], [], []>} : vector<4x134xf32>, vector<134x128xf32>, vector<4x128xf32> -> vector<4x128xf32>
    %71 = arith.addf %65, %70 : vector<4x128xf32>
    %c0_72 = arith.constant 0 : index
    %c12 = arith.constant 12 : index
    %c0_73 = arith.constant 0 : index
    %72 = vector.load %arg14[%c0_72, %c12, %c0_73] : memref<4x32x134xf32, #tpu.memory_space<vmem>>, vector<4x1x134xf32>
    %73 = vector.shape_cast %72 : vector<4x1x134xf32> to vector<4x134xf32>
    %c12_74 = arith.constant 12 : index
    %c0_75 = arith.constant 0 : index
    %c0_76 = arith.constant 0 : index
    %74 = vector.load %arg6[%c12_74, %c0_75, %c0_76] : memref<32x134x128xf32, #tpu.memory_space<vmem>>, vector<1x134x128xf32>
    %75 = vector.shape_cast %74 : vector<1x134x128xf32> to vector<134x128xf32>
    %cst_77 = arith.constant dense<0.000000e+00> : vector<4x128xf32>
    %76 = tpu.matmul %73, %75, %cst_77 {dimension_numbers = #tpu.dot_dimension_numbers<[1], [0], [0], [1], [0, 0, 1, 1], [], []>} : vector<4x134xf32>, vector<134x128xf32>, vector<4x128xf32> -> vector<4x128xf32>
    %77 = arith.addf %71, %76 : vector<4x128xf32>
    %c0_78 = arith.constant 0 : index
    %c13 = arith.constant 13 : index
    %c0_79 = arith.constant 0 : index
    %78 = vector.load %arg14[%c0_78, %c13, %c0_79] : memref<4x32x134xf32, #tpu.memory_space<vmem>>, vector<4x1x134xf32>
    %79 = vector.shape_cast %78 : vector<4x1x134xf32> to vector<4x134xf32>
    %c13_80 = arith.constant 13 : index
    %c0_81 = arith.constant 0 : index
    %c0_82 = arith.constant 0 : index
    %80 = vector.load %arg6[%c13_80, %c0_81, %c0_82] : memref<32x134x128xf32, #tpu.memory_space<vmem>>, vector<1x134x128xf32>
    %81 = vector.shape_cast %80 : vector<1x134x128xf32> to vector<134x128xf32>
    %cst_83 = arith.constant dense<0.000000e+00> : vector<4x128xf32>
    %82 = tpu.matmul %79, %81, %cst_83 {dimension_numbers = #tpu.dot_dimension_numbers<[1], [0], [0], [1], [0, 0, 1, 1], [], []>} : vector<4x134xf32>, vector<134x128xf32>, vector<4x128xf32> -> vector<4x128xf32>
    %83 = arith.addf %77, %82 : vector<4x128xf32>
    %c0_84 = arith.constant 0 : index
    %c14 = arith.constant 14 : index
    %c0_85 = arith.constant 0 : index
    %84 = vector.load %arg14[%c0_84, %c14, %c0_85] : memref<4x32x134xf32, #tpu.memory_space<vmem>>, vector<4x1x134xf32>
    %85 = vector.shape_cast %84 : vector<4x1x134xf32> to vector<4x134xf32>
    %c14_86 = arith.constant 14 : index
    %c0_87 = arith.constant 0 : index
    %c0_88 = arith.constant 0 : index
    %86 = vector.load %arg6[%c14_86, %c0_87, %c0_88] : memref<32x134x128xf32, #tpu.memory_space<vmem>>, vector<1x134x128xf32>
    %87 = vector.shape_cast %86 : vector<1x134x128xf32> to vector<134x128xf32>
    %cst_89 = arith.constant dense<0.000000e+00> : vector<4x128xf32>
    %88 = tpu.matmul %85, %87, %cst_89 {dimension_numbers = #tpu.dot_dimension_numbers<[1], [0], [0], [1], [0, 0, 1, 1], [], []>} : vector<4x134xf32>, vector<134x128xf32>, vector<4x128xf32> -> vector<4x128xf32>
    %89 = arith.addf %83, %88 : vector<4x128xf32>
    %c0_90 = arith.constant 0 : index
    %c15 = arith.constant 15 : index
    %c0_91 = arith.constant 0 : index
    %90 = vector.load %arg14[%c0_90, %c15, %c0_91] : memref<4x32x134xf32, #tpu.memory_space<vmem>>, vector<4x1x134xf32>
    %91 = vector.shape_cast %90 : vector<4x1x134xf32> to vector<4x134xf32>
    %c15_92 = arith.constant 15 : index
    %c0_93 = arith.constant 0 : index
    %c0_94 = arith.constant 0 : index
    %92 = vector.load %arg6[%c15_92, %c0_93, %c0_94] : memref<32x134x128xf32, #tpu.memory_space<vmem>>, vector<1x134x128xf32>
    %93 = vector.shape_cast %92 : vector<1x134x128xf32> to vector<134x128xf32>
    %cst_95 = arith.constant dense<0.000000e+00> : vector<4x128xf32>
    %94 = tpu.matmul %91, %93, %cst_95 {dimension_numbers = #tpu.dot_dimension_numbers<[1], [0], [0], [1], [0, 0, 1, 1], [], []>} : vector<4x134xf32>, vector<134x128xf32>, vector<4x128xf32> -> vector<4x128xf32>
    %95 = arith.addf %89, %94 : vector<4x128xf32>
    %c0_96 = arith.constant 0 : index
    %c16 = arith.constant 16 : index
    %c0_97 = arith.constant 0 : index
    %96 = vector.load %arg14[%c0_96, %c16, %c0_97] : memref<4x32x134xf32, #tpu.memory_space<vmem>>, vector<4x1x134xf32>
    %97 = vector.shape_cast %96 : vector<4x1x134xf32> to vector<4x134xf32>
    %c16_98 = arith.constant 16 : index
    %c0_99 = arith.constant 0 : index
    %c0_100 = arith.constant 0 : index
    %98 = vector.load %arg6[%c16_98, %c0_99, %c0_100] : memref<32x134x128xf32, #tpu.memory_space<vmem>>, vector<1x134x128xf32>
    %99 = vector.shape_cast %98 : vector<1x134x128xf32> to vector<134x128xf32>
    %cst_101 = arith.constant dense<0.000000e+00> : vector<4x128xf32>
    %100 = tpu.matmul %97, %99, %cst_101 {dimension_numbers = #tpu.dot_dimension_numbers<[1], [0], [0], [1], [0, 0, 1, 1], [], []>} : vector<4x134xf32>, vector<134x128xf32>, vector<4x128xf32> -> vector<4x128xf32>
    %101 = arith.addf %95, %100 : vector<4x128xf32>
    %c0_102 = arith.constant 0 : index
    %c17 = arith.constant 17 : index
    %c0_103 = arith.constant 0 : index
    %102 = vector.load %arg14[%c0_102, %c17, %c0_103] : memref<4x32x134xf32, #tpu.memory_space<vmem>>, vector<4x1x134xf32>
    %103 = vector.shape_cast %102 : vector<4x1x134xf32> to vector<4x134xf32>
    %c17_104 = arith.constant 17 : index
    %c0_105 = arith.constant 0 : index
    %c0_106 = arith.constant 0 : index
    %104 = vector.load %arg6[%c17_104, %c0_105, %c0_106] : memref<32x134x128xf32, #tpu.memory_space<vmem>>, vector<1x134x128xf32>
    %105 = vector.shape_cast %104 : vector<1x134x128xf32> to vector<134x128xf32>
    %cst_107 = arith.constant dense<0.000000e+00> : vector<4x128xf32>
    %106 = tpu.matmul %103, %105, %cst_107 {dimension_numbers = #tpu.dot_dimension_numbers<[1], [0], [0], [1], [0, 0, 1, 1], [], []>} : vector<4x134xf32>, vector<134x128xf32>, vector<4x128xf32> -> vector<4x128xf32>
    %107 = arith.addf %101, %106 : vector<4x128xf32>
    %c0_108 = arith.constant 0 : index
    %c18 = arith.constant 18 : index
    %c0_109 = arith.constant 0 : index
    %108 = vector.load %arg14[%c0_108, %c18, %c0_109] : memref<4x32x134xf32, #tpu.memory_space<vmem>>, vector<4x1x134xf32>
    %109 = vector.shape_cast %108 : vector<4x1x134xf32> to vector<4x134xf32>
    %c18_110 = arith.constant 18 : index
    %c0_111 = arith.constant 0 : index
    %c0_112 = arith.constant 0 : index
    %110 = vector.load %arg6[%c18_110, %c0_111, %c0_112] : memref<32x134x128xf32, #tpu.memory_space<vmem>>, vector<1x134x128xf32>
    %111 = vector.shape_cast %110 : vector<1x134x128xf32> to vector<134x128xf32>
    %cst_113 = arith.constant dense<0.000000e+00> : vector<4x128xf32>
    %112 = tpu.matmul %109, %111, %cst_113 {dimension_numbers = #tpu.dot_dimension_numbers<[1], [0], [0], [1], [0, 0, 1, 1], [], []>} : vector<4x134xf32>, vector<134x128xf32>, vector<4x128xf32> -> vector<4x128xf32>
    %113 = arith.addf %107, %112 : vector<4x128xf32>
    %c0_114 = arith.constant 0 : index
    %c19 = arith.constant 19 : index
    %c0_115 = arith.constant 0 : index
    %114 = vector.load %arg14[%c0_114, %c19, %c0_115] : memref<4x32x134xf32, #tpu.memory_space<vmem>>, vector<4x1x134xf32>
    %115 = vector.shape_cast %114 : vector<4x1x134xf32> to vector<4x134xf32>
    %c19_116 = arith.constant 19 : index
    %c0_117 = arith.constant 0 : index
    %c0_118 = arith.constant 0 : index
    %116 = vector.load %arg6[%c19_116, %c0_117, %c0_118] : memref<32x134x128xf32, #tpu.memory_space<vmem>>, vector<1x134x128xf32>
    %117 = vector.shape_cast %116 : vector<1x134x128xf32> to vector<134x128xf32>
    %cst_119 = arith.constant dense<0.000000e+00> : vector<4x128xf32>
    %118 = tpu.matmul %115, %117, %cst_119 {dimension_numbers = #tpu.dot_dimension_numbers<[1], [0], [0], [1], [0, 0, 1, 1], [], []>} : vector<4x134xf32>, vector<134x128xf32>, vector<4x128xf32> -> vector<4x128xf32>
    %119 = arith.addf %113, %118 : vector<4x128xf32>
    %c0_120 = arith.constant 0 : index
    %c20 = arith.constant 20 : index
    %c0_121 = arith.constant 0 : index
    %120 = vector.load %arg14[%c0_120, %c20, %c0_121] : memref<4x32x134xf32, #tpu.memory_space<vmem>>, vector<4x1x134xf32>
    %121 = vector.shape_cast %120 : vector<4x1x134xf32> to vector<4x134xf32>
    %c20_122 = arith.constant 20 : index
    %c0_123 = arith.constant 0 : index
    %c0_124 = arith.constant 0 : index
    %122 = vector.load %arg6[%c20_122, %c0_123, %c0_124] : memref<32x134x128xf32, #tpu.memory_space<vmem>>, vector<1x134x128xf32>
    %123 = vector.shape_cast %122 : vector<1x134x128xf32> to vector<134x128xf32>
    %cst_125 = arith.constant dense<0.000000e+00> : vector<4x128xf32>
    %124 = tpu.matmul %121, %123, %cst_125 {dimension_numbers = #tpu.dot_dimension_numbers<[1], [0], [0], [1], [0, 0, 1, 1], [], []>} : vector<4x134xf32>, vector<134x128xf32>, vector<4x128xf32> -> vector<4x128xf32>
    %125 = arith.addf %119, %124 : vector<4x128xf32>
    %c0_126 = arith.constant 0 : index
    %c21 = arith.constant 21 : index
    %c0_127 = arith.constant 0 : index
    %126 = vector.load %arg14[%c0_126, %c21, %c0_127] : memref<4x32x134xf32, #tpu.memory_space<vmem>>, vector<4x1x134xf32>
    %127 = vector.shape_cast %126 : vector<4x1x134xf32> to vector<4x134xf32>
    %c21_128 = arith.constant 21 : index
    %c0_129 = arith.constant 0 : index
    %c0_130 = arith.constant 0 : index
    %128 = vector.load %arg6[%c21_128, %c0_129, %c0_130] : memref<32x134x128xf32, #tpu.memory_space<vmem>>, vector<1x134x128xf32>
    %129 = vector.shape_cast %128 : vector<1x134x128xf32> to vector<134x128xf32>
    %cst_131 = arith.constant dense<0.000000e+00> : vector<4x128xf32>
    %130 = tpu.matmul %127, %129, %cst_131 {dimension_numbers = #tpu.dot_dimension_numbers<[1], [0], [0], [1], [0, 0, 1, 1], [], []>} : vector<4x134xf32>, vector<134x128xf32>, vector<4x128xf32> -> vector<4x128xf32>
    %131 = arith.addf %125, %130 : vector<4x128xf32>
    %c0_132 = arith.constant 0 : index
    %c22 = arith.constant 22 : index
    %c0_133 = arith.constant 0 : index
    %132 = vector.load %arg14[%c0_132, %c22, %c0_133] : memref<4x32x134xf32, #tpu.memory_space<vmem>>, vector<4x1x134xf32>
    %133 = vector.shape_cast %132 : vector<4x1x134xf32> to vector<4x134xf32>
    %c22_134 = arith.constant 22 : index
    %c0_135 = arith.constant 0 : index
    %c0_136 = arith.constant 0 : index
    %134 = vector.load %arg6[%c22_134, %c0_135, %c0_136] : memref<32x134x128xf32, #tpu.memory_space<vmem>>, vector<1x134x128xf32>
    %135 = vector.shape_cast %134 : vector<1x134x128xf32> to vector<134x128xf32>
    %cst_137 = arith.constant dense<0.000000e+00> : vector<4x128xf32>
    %136 = tpu.matmul %133, %135, %cst_137 {dimension_numbers = #tpu.dot_dimension_numbers<[1], [0], [0], [1], [0, 0, 1, 1], [], []>} : vector<4x134xf32>, vector<134x128xf32>, vector<4x128xf32> -> vector<4x128xf32>
    %137 = arith.addf %131, %136 : vector<4x128xf32>
    %c0_138 = arith.constant 0 : index
    %c23 = arith.constant 23 : index
    %c0_139 = arith.constant 0 : index
    %138 = vector.load %arg14[%c0_138, %c23, %c0_139] : memref<4x32x134xf32, #tpu.memory_space<vmem>>, vector<4x1x134xf32>
    %139 = vector.shape_cast %138 : vector<4x1x134xf32> to vector<4x134xf32>
    %c23_140 = arith.constant 23 : index
    %c0_141 = arith.constant 0 : index
    %c0_142 = arith.constant 0 : index
    %140 = vector.load %arg6[%c23_140, %c0_141, %c0_142] : memref<32x134x128xf32, #tpu.memory_space<vmem>>, vector<1x134x128xf32>
    %141 = vector.shape_cast %140 : vector<1x134x128xf32> to vector<134x128xf32>
    %cst_143 = arith.constant dense<0.000000e+00> : vector<4x128xf32>
    %142 = tpu.matmul %139, %141, %cst_143 {dimension_numbers = #tpu.dot_dimension_numbers<[1], [0], [0], [1], [0, 0, 1, 1], [], []>} : vector<4x134xf32>, vector<134x128xf32>, vector<4x128xf32> -> vector<4x128xf32>
    %143 = arith.addf %137, %142 : vector<4x128xf32>
    %c0_144 = arith.constant 0 : index
    %c24 = arith.constant 24 : index
    %c0_145 = arith.constant 0 : index
    %144 = vector.load %arg14[%c0_144, %c24, %c0_145] : memref<4x32x134xf32, #tpu.memory_space<vmem>>, vector<4x1x134xf32>
    %145 = vector.shape_cast %144 : vector<4x1x134xf32> to vector<4x134xf32>
    %c24_146 = arith.constant 24 : index
    %c0_147 = arith.constant 0 : index
    %c0_148 = arith.constant 0 : index
    %146 = vector.load %arg6[%c24_146, %c0_147, %c0_148] : memref<32x134x128xf32, #tpu.memory_space<vmem>>, vector<1x134x128xf32>
    %147 = vector.shape_cast %146 : vector<1x134x128xf32> to vector<134x128xf32>
    %cst_149 = arith.constant dense<0.000000e+00> : vector<4x128xf32>
    %148 = tpu.matmul %145, %147, %cst_149 {dimension_numbers = #tpu.dot_dimension_numbers<[1], [0], [0], [1], [0, 0, 1, 1], [], []>} : vector<4x134xf32>, vector<134x128xf32>, vector<4x128xf32> -> vector<4x128xf32>
    %149 = arith.addf %143, %148 : vector<4x128xf32>
    %c0_150 = arith.constant 0 : index
    %c25 = arith.constant 25 : index
    %c0_151 = arith.constant 0 : index
    %150 = vector.load %arg14[%c0_150, %c25, %c0_151] : memref<4x32x134xf32, #tpu.memory_space<vmem>>, vector<4x1x134xf32>
    %151 = vector.shape_cast %150 : vector<4x1x134xf32> to vector<4x134xf32>
    %c25_152 = arith.constant 25 : index
    %c0_153 = arith.constant 0 : index
    %c0_154 = arith.constant 0 : index
    %152 = vector.load %arg6[%c25_152, %c0_153, %c0_154] : memref<32x134x128xf32, #tpu.memory_space<vmem>>, vector<1x134x128xf32>
    %153 = vector.shape_cast %152 : vector<1x134x128xf32> to vector<134x128xf32>
    %cst_155 = arith.constant dense<0.000000e+00> : vector<4x128xf32>
    %154 = tpu.matmul %151, %153, %cst_155 {dimension_numbers = #tpu.dot_dimension_numbers<[1], [0], [0], [1], [0, 0, 1, 1], [], []>} : vector<4x134xf32>, vector<134x128xf32>, vector<4x128xf32> -> vector<4x128xf32>
    %155 = arith.addf %149, %154 : vector<4x128xf32>
    %c0_156 = arith.constant 0 : index
    %c26 = arith.constant 26 : index
    %c0_157 = arith.constant 0 : index
    %156 = vector.load %arg14[%c0_156, %c26, %c0_157] : memref<4x32x134xf32, #tpu.memory_space<vmem>>, vector<4x1x134xf32>
    %157 = vector.shape_cast %156 : vector<4x1x134xf32> to vector<4x134xf32>
    %c26_158 = arith.constant 26 : index
    %c0_159 = arith.constant 0 : index
    %c0_160 = arith.constant 0 : index
    %158 = vector.load %arg6[%c26_158, %c0_159, %c0_160] : memref<32x134x128xf32, #tpu.memory_space<vmem>>, vector<1x134x128xf32>
    %159 = vector.shape_cast %158 : vector<1x134x128xf32> to vector<134x128xf32>
    %cst_161 = arith.constant dense<0.000000e+00> : vector<4x128xf32>
    %160 = tpu.matmul %157, %159, %cst_161 {dimension_numbers = #tpu.dot_dimension_numbers<[1], [0], [0], [1], [0, 0, 1, 1], [], []>} : vector<4x134xf32>, vector<134x128xf32>, vector<4x128xf32> -> vector<4x128xf32>
    %161 = arith.addf %155, %160 : vector<4x128xf32>
    %c0_162 = arith.constant 0 : index
    %c27 = arith.constant 27 : index
    %c0_163 = arith.constant 0 : index
    %162 = vector.load %arg14[%c0_162, %c27, %c0_163] : memref<4x32x134xf32, #tpu.memory_space<vmem>>, vector<4x1x134xf32>
    %163 = vector.shape_cast %162 : vector<4x1x134xf32> to vector<4x134xf32>
    %c27_164 = arith.constant 27 : index
    %c0_165 = arith.constant 0 : index
    %c0_166 = arith.constant 0 : index
    %164 = vector.load %arg6[%c27_164, %c0_165, %c0_166] : memref<32x134x128xf32, #tpu.memory_space<vmem>>, vector<1x134x128xf32>
    %165 = vector.shape_cast %164 : vector<1x134x128xf32> to vector<134x128xf32>
    %cst_167 = arith.constant dense<0.000000e+00> : vector<4x128xf32>
    %166 = tpu.matmul %163, %165, %cst_167 {dimension_numbers = #tpu.dot_dimension_numbers<[1], [0], [0], [1], [0, 0, 1, 1], [], []>} : vector<4x134xf32>, vector<134x128xf32>, vector<4x128xf32> -> vector<4x128xf32>
    %167 = arith.addf %161, %166 : vector<4x128xf32>
    %c0_168 = arith.constant 0 : index
    %c28 = arith.constant 28 : index
    %c0_169 = arith.constant 0 : index
    %168 = vector.load %arg14[%c0_168, %c28, %c0_169] : memref<4x32x134xf32, #tpu.memory_space<vmem>>, vector<4x1x134xf32>
    %169 = vector.shape_cast %168 : vector<4x1x134xf32> to vector<4x134xf32>
    %c28_170 = arith.constant 28 : index
    %c0_171 = arith.constant 0 : index
    %c0_172 = arith.constant 0 : index
    %170 = vector.load %arg6[%c28_170, %c0_171, %c0_172] : memref<32x134x128xf32, #tpu.memory_space<vmem>>, vector<1x134x128xf32>
    %171 = vector.shape_cast %170 : vector<1x134x128xf32> to vector<134x128xf32>
    %cst_173 = arith.constant dense<0.000000e+00> : vector<4x128xf32>
    %172 = tpu.matmul %169, %171, %cst_173 {dimension_numbers = #tpu.dot_dimension_numbers<[1], [0], [0], [1], [0, 0, 1, 1], [], []>} : vector<4x134xf32>, vector<134x128xf32>, vector<4x128xf32> -> vector<4x128xf32>
    %173 = arith.addf %167, %172 : vector<4x128xf32>
    %c0_174 = arith.constant 0 : index
    %c29 = arith.constant 29 : index
    %c0_175 = arith.constant 0 : index
    %174 = vector.load %arg14[%c0_174, %c29, %c0_175] : memref<4x32x134xf32, #tpu.memory_space<vmem>>, vector<4x1x134xf32>
    %175 = vector.shape_cast %174 : vector<4x1x134xf32> to vector<4x134xf32>
    %c29_176 = arith.constant 29 : index
    %c0_177 = arith.constant 0 : index
    %c0_178 = arith.constant 0 : index
    %176 = vector.load %arg6[%c29_176, %c0_177, %c0_178] : memref<32x134x128xf32, #tpu.memory_space<vmem>>, vector<1x134x128xf32>
    %177 = vector.shape_cast %176 : vector<1x134x128xf32> to vector<134x128xf32>
    %cst_179 = arith.constant dense<0.000000e+00> : vector<4x128xf32>
    %178 = tpu.matmul %175, %177, %cst_179 {dimension_numbers = #tpu.dot_dimension_numbers<[1], [0], [0], [1], [0, 0, 1, 1], [], []>} : vector<4x134xf32>, vector<134x128xf32>, vector<4x128xf32> -> vector<4x128xf32>
    %179 = arith.addf %173, %178 : vector<4x128xf32>
    %c0_180 = arith.constant 0 : index
    %c30 = arith.constant 30 : index
    %c0_181 = arith.constant 0 : index
    %180 = vector.load %arg14[%c0_180, %c30, %c0_181] : memref<4x32x134xf32, #tpu.memory_space<vmem>>, vector<4x1x134xf32>
    %181 = vector.shape_cast %180 : vector<4x1x134xf32> to vector<4x134xf32>
    %c30_182 = arith.constant 30 : index
    %c0_183 = arith.constant 0 : index
    %c0_184 = arith.constant 0 : index
    %182 = vector.load %arg6[%c30_182, %c0_183, %c0_184] : memref<32x134x128xf32, #tpu.memory_space<vmem>>, vector<1x134x128xf32>
    %183 = vector.shape_cast %182 : vector<1x134x128xf32> to vector<134x128xf32>
    %cst_185 = arith.constant dense<0.000000e+00> : vector<4x128xf32>
    %184 = tpu.matmul %181, %183, %cst_185 {dimension_numbers = #tpu.dot_dimension_numbers<[1], [0], [0], [1], [0, 0, 1, 1], [], []>} : vector<4x134xf32>, vector<134x128xf32>, vector<4x128xf32> -> vector<4x128xf32>
    %185 = arith.addf %179, %184 : vector<4x128xf32>
    %c0_186 = arith.constant 0 : index
    %c31 = arith.constant 31 : index
    %c0_187 = arith.constant 0 : index
    %186 = vector.load %arg14[%c0_186, %c31, %c0_187] : memref<4x32x134xf32, #tpu.memory_space<vmem>>, vector<4x1x134xf32>
    %187 = vector.shape_cast %186 : vector<4x1x134xf32> to vector<4x134xf32>
    %c31_188 = arith.constant 31 : index
    %c0_189 = arith.constant 0 : index
    %c0_190 = arith.constant 0 : index
    %188 = vector.load %arg6[%c31_188, %c0_189, %c0_190] : memref<32x134x128xf32, #tpu.memory_space<vmem>>, vector<1x134x128xf32>
    %189 = vector.shape_cast %188 : vector<1x134x128xf32> to vector<134x128xf32>
    %cst_191 = arith.constant dense<0.000000e+00> : vector<4x128xf32>
    %190 = tpu.matmul %187, %189, %cst_191 {dimension_numbers = #tpu.dot_dimension_numbers<[1], [0], [0], [1], [0, 0, 1, 1], [], []>} : vector<4x134xf32>, vector<134x128xf32>, vector<4x128xf32> -> vector<4x128xf32>
    %191 = arith.addf %185, %190 : vector<4x128xf32>
    %c0_192 = arith.constant 0 : index
    %c0_193 = arith.constant 0 : index
    %192 = vector.load %arg7[%c0_192, %c0_193] : memref<1x128xf32, #tpu.memory_space<vmem>>, vector<1x128xf32>
    %193 = vector.broadcast %192 : vector<1x128xf32> to vector<4x128xf32>
    %194 = arith.addf %191, %193 : vector<4x128xf32>
    %cst_194 = arith.constant 0.000000e+00 : f32
    %195 = vector.broadcast %cst_194 : f32 to vector<4x128xf32>
    %196 = arith.maximumf %194, %195 : vector<4x128xf32>
    %c0_195 = arith.constant 0 : index
    %c0_196 = arith.constant 0 : index
    %197 = vector.load %arg8[%c0_195, %c0_196] : memref<128x128xf32, #tpu.memory_space<vmem>>, vector<128x128xf32>
    %cst_197 = arith.constant dense<0.000000e+00> : vector<4x128xf32>
    %198 = tpu.matmul %196, %197, %cst_197 {dimension_numbers = #tpu.dot_dimension_numbers<[1], [0], [0], [1], [0, 0, 1, 1], [], []>} : vector<4x128xf32>, vector<128x128xf32>, vector<4x128xf32> -> vector<4x128xf32>
    %c0_198 = arith.constant 0 : index
    %c0_199 = arith.constant 0 : index
    %199 = vector.load %arg9[%c0_198, %c0_199] : memref<1x128xf32, #tpu.memory_space<vmem>>, vector<1x128xf32>
    %200 = vector.broadcast %199 : vector<1x128xf32> to vector<4x128xf32>
    %201 = arith.addf %198, %200 : vector<4x128xf32>
    %cst_200 = arith.constant 0.000000e+00 : f32
    %202 = vector.broadcast %cst_200 : f32 to vector<4x128xf32>
    %203 = arith.maximumf %201, %202 : vector<4x128xf32>
    %c0_201 = arith.constant 0 : index
    %c0_202 = arith.constant 0 : index
    %204 = vector.load %arg10[%c0_201, %c0_202] : memref<128x10xf32, #tpu.memory_space<vmem>>, vector<128x10xf32>
    %cst_203 = arith.constant dense<0.000000e+00> : vector<4x10xf32>
    %205 = tpu.matmul %203, %204, %cst_203 {dimension_numbers = #tpu.dot_dimension_numbers<[1], [0], [0], [1], [0, 0, 1, 1], [], []>} : vector<4x128xf32>, vector<128x10xf32>, vector<4x10xf32> -> vector<4x10xf32>
    %c0_204 = arith.constant 0 : index
    %c0_205 = arith.constant 0 : index
    %206 = vector.load %arg11[%c0_204, %c0_205] : memref<1x10xf32, #tpu.memory_space<vmem>>, vector<1x10xf32>
    %207 = vector.broadcast %206 : vector<1x10xf32> to vector<4x10xf32>
    %208 = arith.addf %205, %207 : vector<4x10xf32>
    %cst_206 = arith.constant dense<0xFF800000> : vector<4xf32>
    %209 = vector.multi_reduction <maximumf>, %208, %cst_206 [1] : vector<4x10xf32> to vector<4xf32>
    %210 = vector.shape_cast %209 : vector<4xf32> to vector<4x1xf32>
    %211 = vector.broadcast %210 : vector<4x1xf32> to vector<4x10xf32>
    %212 = arith.subf %208, %211 : vector<4x10xf32>
    %213 = math.exp %212 : vector<4x10xf32>
    %cst_207 = arith.constant dense<0.000000e+00> : vector<4xf32>
    %214 = vector.multi_reduction <add>, %213, %cst_207 [1] : vector<4x10xf32> to vector<4xf32>
    %215 = vector.shape_cast %214 : vector<4xf32> to vector<4x1xf32>
    %216 = math.log %215 : vector<4x1xf32>
    %217 = vector.broadcast %216 : vector<4x1xf32> to vector<4x10xf32>
    %218 = arith.subf %212, %217 : vector<4x10xf32>
    %c0_208 = arith.constant 0 : index
    %c0_209 = arith.constant 0 : index
    %219 = vector.load %arg12[%c0_208, %c0_209] : memref<4x10xf32, #tpu.memory_space<vmem>>, vector<4x10xf32>
    tpu.vector_store %arg12[%c0_208, %c0_209], %218 {strides = array<i32>} : memref<4x10xf32, #tpu.memory_space<vmem>>, vector<4x10xf32>,
    return
  }
  func.func @transform_0(%arg0: i32) -> (i32, i32, i32) {
    %c0_i32 = arith.constant 0 : i32
    %c0_i32_0 = arith.constant 0 : i32
    %c0_i32_1 = arith.constant 0 : i32
    return %arg0, %c0_i32, %c0_i32_0 : i32, i32, i32
  }
  func.func @transform_1(%arg0: i32) -> (i32, i32, i32) {
    %c0_i32 = arith.constant 0 : i32
    %c0_i32_0 = arith.constant 0 : i32
    %c0_i32_1 = arith.constant 0 : i32
    %c0_i32_2 = arith.constant 0 : i32
    return %c0_i32, %c0_i32_0, %c0_i32_1 : i32, i32, i32
  }
  func.func @transform_2(%arg0: i32) -> (i32, i32) {
    %c0_i32 = arith.constant 0 : i32
    %c0_i32_0 = arith.constant 0 : i32
    %c0_i32_1 = arith.constant 0 : i32
    return %c0_i32, %c0_i32_0 : i32, i32
  }
  func.func @transform_3(%arg0: i32) -> (i32, i32, i32) {
    %c0_i32 = arith.constant 0 : i32
    %c0_i32_0 = arith.constant 0 : i32
    %c0_i32_1 = arith.constant 0 : i32
    %c0_i32_2 = arith.constant 0 : i32
    return %c0_i32, %c0_i32_0, %c0_i32_1 : i32, i32, i32
  }
  func.func @transform_4(%arg0: i32) -> (i32, i32) {
    %c0_i32 = arith.constant 0 : i32
    %c0_i32_0 = arith.constant 0 : i32
    %c0_i32_1 = arith.constant 0 : i32
    return %c0_i32, %c0_i32_0 : i32, i32
  }
  func.func @transform_5(%arg0: i32) -> (i32, i32, i32) {
    %c0_i32 = arith.constant 0 : i32
    %c0_i32_0 = arith.constant 0 : i32
    %c0_i32_1 = arith.constant 0 : i32
    %c0_i32_2 = arith.constant 0 : i32
    return %c0_i32, %c0_i32_0, %c0_i32_1 : i32, i32, i32
  }
  func.func @transform_6(%arg0: i32) -> (i32, i32) {
    %c0_i32 = arith.constant 0 : i32
    %c0_i32_0 = arith.constant 0 : i32
    %c0_i32_1 = arith.constant 0 : i32
    return %c0_i32, %c0_i32_0 : i32, i32
  }
  func.func @transform_7(%arg0: i32) -> (i32, i32) {
    %c0_i32 = arith.constant 0 : i32
    %c0_i32_0 = arith.constant 0 : i32
    %c0_i32_1 = arith.constant 0 : i32
    return %c0_i32, %c0_i32_0 : i32, i32
  }
  func.func @transform_8(%arg0: i32) -> (i32, i32) {
    %c0_i32 = arith.constant 0 : i32
    %c0_i32_0 = arith.constant 0 : i32
    %c0_i32_1 = arith.constant 0 : i32
    return %c0_i32, %c0_i32_0 : i32, i32
  }
  func.func @transform_9(%arg0: i32) -> (i32, i32) {
    %c0_i32 = arith.constant 0 : i32
    %c0_i32_0 = arith.constant 0 : i32
    %c0_i32_1 = arith.constant 0 : i32
    return %c0_i32, %c0_i32_0 : i32, i32
  }
  func.func @transform_10(%arg0: i32) -> (i32, i32) {
    %c0_i32 = arith.constant 0 : i32
    %c0_i32_0 = arith.constant 0 : i32
    %c0_i32_1 = arith.constant 0 : i32
    return %c0_i32, %c0_i32_0 : i32, i32
  }
  func.func @transform_11(%arg0: i32) -> (i32, i32) {
    %c0_i32 = arith.constant 0 : i32
    %c0_i32_0 = arith.constant 0 : i32
    return %arg0, %c0_i32 : i32, i32
  }
}

</mosaic_0001>

<llo_original>
// kernel: net_forward.1
$region0: #{net_forward.1}
  #allocation0 [shape = 'u32[]', space=smem, size = 0x4, offset = 0x4, fixed_abs, tag = 'smem constant byte address 0x4 - core index']
  #allocation1 [shape = 'u32[72,128]{1,0:T(1,128)}', space=vmem, size = 0x9000, scoped, tag = 'internal scratch']
  #allocation2 [shape = 'f32[2,80,152]{2,1,0:T(8,128)}', space=vmem, size = 0x28000, scoped, tag = 'scratch operand']
  #allocation3 [shape = 'f32[4,32,134]{2,1,0:T(8,128)}', space=vmem, size = 0x20000, scoped, tag = 'scratch operand']
  %s0 = inlined_call_operand.vmem [shape: f32[4,64,256], index: 0, kind: input, shape index: {}]
  %s1 = inlined_call_operand.vmem [shape: f32[5,16,16], index: 1, kind: input, shape index: {}]
  %s2 = inlined_call_operand.vmem [shape: f32[16,1], index: 2, kind: input, shape index: {}]
  %s3 = inlined_call_operand.vmem [shape: f32[5,32,80], index: 3, kind: input, shape index: {}]
  %s4 = inlined_call_operand.vmem [shape: f32[32,1], index: 4, kind: input, shape index: {}]
  %s5 = inlined_call_operand.vmem [shape: f32[32,134,128], index: 5, kind: input, shape index: {}]
  %s6 = inlined_call_operand.vmem [shape: f32[1,128], index: 6, kind: input, shape index: {}]
  %s7 = inlined_call_operand.vmem [shape: f32[128,128], index: 7, kind: input, shape index: {}]
  %s8 = inlined_call_operand.vmem [shape: f32[1,128], index: 8, kind: input, shape index: {}]
  %s9 = inlined_call_operand.vmem [shape: f32[128,10], index: 9, kind: input, shape index: {}]
  %s10 = inlined_call_operand.vmem [shape: f32[1,10], index: 10, kind: input, shape index: {}]
  %s11 = inlined_call_operand.hbm [shape: f32[4,10], index: 11, kind: output, shape index: {}]
  %s12 = sld [smem:[#allocation0]]
  $region61: #{net_forward.1} parent=0
    _
  %s14 = ssub.s32 1, %s12
  %s15 = scalar_select 0, %s14, %s12
  $region1: #{net_forward.1} parent=0
    #allocation4 [shape = 'u8[2048]{0}', space=vmem, size = 0x800, scoped, tag = 'output window, operand 0, single buffered']
    #allocation5 [shape = 's32[1]{0}', space=sflag, size = 0x4, scoped, tag = 'scoped memory for net_forward.1']
    %16 = vsyncpa [#allocation5], 0
    // Predicated region
    $region2: #{net_forward.1} parent=1 // pred_check
      _
    $region3: #{net_forward.1} parent=1 // pred_check_branch
      %18 = sbr.rel (0) target = $region5
    $region4: #{net_forward.1} parent=1 // pred_region
      _
    $region5: #{net_forward.1} parent=1 // pred_fallthru
      _
    // Predicated region
    $region6: #{net_forward.1} parent=1 // pred_check
      _
    $region7: #{net_forward.1} parent=1 // pred_check_branch
      %20 = sbr.rel (0) target = $region9
    $region8: #{net_forward.1} parent=1 // pred_region
      _
    $region9: #{net_forward.1} parent=1 // pred_fallthru
      _
    // Predicated region
    $region10: #{net_forward.1} parent=1 // pred_check
      _
    $region11: #{net_forward.1} parent=1 // pred_check_branch
      %22 = sbr.rel (0) target = $region13
    $region12: #{net_forward.1} parent=1 // pred_region
      _
    $region13: #{net_forward.1} parent=1 // pred_fallthru
      _
    // Predicated region
    $region14: #{net_forward.1} parent=1 // pred_check
      _
    $region15: #{net_forward.1} parent=1 // pred_check_branch
      %24 = sbr.rel (0) target = $region17
    $region16: #{net_forward.1} parent=1 // pred_region
      _
    $region17: #{net_forward.1} parent=1 // pred_fallthru
      _
    // Predicated region
    $region18: #{net_forward.1} parent=1 // pred_check
      _
    $region19: #{net_forward.1} parent=1 // pred_check_branch
      %26 = sbr.rel (0) target = $region21
    $region20: #{net_forward.1} parent=1 // pred_region
      _
    $region21: #{net_forward.1} parent=1 // pred_fallthru
      _
    // Predicated region
    $region22: #{net_forward.1} parent=1 // pred_check
      _
    $region23: #{net_forward.1} parent=1 // pred_check_branch
      %28 = sbr.rel (0) target = $region25
    $region24: #{net_forward.1} parent=1 // pred_region
      _
    $region25: #{net_forward.1} parent=1 // pred_fallthru
      _
    // Predicated region
    $region26: #{net_forward.1} parent=1 // pred_check
      _
    $region27: #{net_forward.1} parent=1 // pred_check_branch
      %30 = sbr.rel (0) target = $region29
    $region28: #{net_forward.1} parent=1 // pred_region
      _
    $region29: #{net_forward.1} parent=1 // pred_fallthru
      _
    // Predicated region
    $region30: #{net_forward.1} parent=1 // pred_check
      _
    $region31: #{net_forward.1} parent=1 // pred_check_branch
      %32 = sbr.rel (0) target = $region33
    $region32: #{net_forward.1} parent=1 // pred_region
      _
    $region33: #{net_forward.1} parent=1 // pred_fallthru
      _
    // Predicated region
    $region34: #{net_forward.1} parent=1 // pred_check
      _
    $region35: #{net_forward.1} parent=1 // pred_check_branch
      %34 = sbr.rel (0) target = $region37
    $region36: #{net_forward.1} parent=1 // pred_region
      _
    $region37: #{net_forward.1} parent=1 // pred_fallthru
      _
    // Predicated region
    $region38: #{net_forward.1} parent=1 // pred_check
      _
    $region39: #{net_forward.1} parent=1 // pred_check_branch
      %36 = sbr.rel (0) target = $region41
    $region40: #{net_forward.1} parent=1 // pred_region
      _
    $region41: #{net_forward.1} parent=1 // pred_fallthru
      _
    // Predicated region
    $region42: #{net_forward.1} parent=1 // pred_check
      _
    $region43: #{net_forward.1} parent=1 // pred_check_branch
      %38 = sbr.rel (0) target = $region45
    $region44: #{net_forward.1} parent=1 // pred_region
      _
    $region45: #{net_forward.1} parent=1 // pred_fallthru
      _
    loop: start=0, step=1, limit=4
    $region46: #{net_forward.1} parent=1 // loop_pre_header
      _
    $region47: #{net_forward.1} parent=1 // loop_header
      %s40 = sphi 0, %s44
      %p41 = scmp.ge.s32.totalorder %s40, 4
    $region48: #{net_forward.1} parent=1 // loop_header_branch
      %43 = sbr.rel (%p41) target = $region52
    $region49: #{net_forward.1} parent=1 // loop_body
      %s45 = smul.u32 %s40, 16
      %s46 = smul.addr %s45, 8
      %s47 = scalar_lea.vmem %s0, %s46
      %v48 = vld [vmem:[%s47] sm:$0xff]
      %v49 = vld [vmem:[%s47 + $0x8] sm:$0xff]
      %v50 = vld [vmem:[%s47 + $0x10] sm:$0xff]
      %v51 = vld [vmem:[%s47 + $0x18] sm:$0xff]
      %v52 = vld [vmem:[%s47 + $0x20] sm:$0xff]
      %v53 = vld [vmem:[%s47 + $0x28] sm:$0xff]
      %v54 = vld [vmem:[%s47 + $0x30] sm:$0xff]
      %v55 = vld [vmem:[%s47 + $0x38] sm:$0xff]
      %v56 = vld [vmem:[%s47 + $0x40] sm:$0xff]
      %v57 = vld [vmem:[%s47 + $0x48] sm:$0xff]
      %v58 = vld [vmem:[%s47 + $0x50] sm:$0xff]
      %v59 = vld [vmem:[%s47 + $0x58] sm:$0xff]
      %v60 = vld [vmem:[%s47 + $0x60] sm:$0xff]
      %v61 = vld [vmem:[%s47 + $0x68] sm:$0xff]
      %v62 = vld [vmem:[%s47 + $0x70] sm:$0xff]
      %v63 = vld [vmem:[%s47 + $0x78] sm:$0xff]
      %v64 = vld [vmem:[%s2] sm:$0xff]
      %v65 = vld [vmem:[%s2 + $0x8] sm:$0xff]
      %v66 = vld [vmem:[%s1] sm:$0xff]
      %v67 = vld [vmem:[%s1 + $0x8] sm:$0xff]
      %s68 = scalar_lea.vmem %s1, 16
      %v69 = vld [vmem:[%s68] sm:$0xff]
      %v70 = vld [vmem:[%s68 + $0x8] sm:$0xff]
      %75 = vrot.lane.b32.xlu0 %v48, 120
      %v76 = vpop.permute.xlu0 %75
      %77 = vrot.lane.b32.xlu0 %v49, 120
      %v78 = vpop.permute.xlu0 %77
      %79 = vrot.lane.b32.xlu0 %v50, 120
      %v80 = vpop.permute.xlu0 %79
      %81 = vrot.lane.b32.xlu0 %v51, 120
      %v82 = vpop.permute.xlu0 %81
      %vm83 = vcmask 982016
      %v84 = vsel %vm83, %v76, %v78
      %v85 = vsel %vm83, %v80, %v82
      %vm90 = vcmask 130048
      %v92 = vsel %vm90, %v69, 0
      %v95 = vsel %vm90, %v70, 0
      %97 = vmatpush.msra.mxu0 0.0
      %98 = vmatpush.msra.mxu0 0.0
      %99 = vmatpush.msra.mxu0 0.0
      %100 = vmatpush.msra.mxu0 0.0
      %101 = vmatpush.msra.mxu0 0.0
      %102 = vmatpush.msra.mxu0 0.0
      %103 = vmatpush.msra.mxu0 0.0
      %104 = vmatpush.msra.mxu0 0.0
      %105 = vmatpush.msra.mxu0 0.0
      %106 = vmatpush.msra.mxu0 0.0
      %107 = vmatpush.msra.mxu0 0.0
      %108 = vmatpush.msra.mxu0 0.0
      %109 = vmatpush.msra.mxu0 0.0
      %110 = vmatpush.msra.mxu0 0.0
      %111 = vmatpush.msra.mxu0 %v85
      %112 = vmatpush.msra.mxu0 %v84
      %113 = vmatmul.f32.gmra.mxu0 %v92
      %v114 = vpop.f32.mrf.mxu0
      %v115 = vadd.f32 0.0, %v114
      %116 = vmatmul.f32.gmra.mxu0 %v95
      %v117 = vpop.f32.mrf.mxu0
      %v118 = vadd.f32 0.0, %v117
      %119 = vdwg.mxu0
      %120 = vmatpush.msra.mxu0 0.0
      %121 = vmatpush.msra.mxu0 0.0
      %122 = vmatpush.msra.mxu0 0.0
      %123 = vmatpush.msra.mxu0 0.0
      %124 = vmatpush.msra.mxu0 0.0
      %125 = vmatpush.msra.mxu0 0.0
      %126 = vmatpush.msra.mxu0 0.0
      %127 = vmatpush.msra.mxu0 0.0
      %128 = vmatpush.msra.mxu0 0.0
      %129 = vmatpush.msra.mxu0 0.0
      %130 = vmatpush.msra.mxu0 0.0
      %131 = vmatpush.msra.mxu0 0.0
      %132 = vmatpush.msra.mxu0 0.0
      %133 = vmatpush.msra.mxu0 0.0
      %134 = vmatpush.msra.mxu0 %v82
      %135 = vmatpush.msra.mxu0 %v78
      %136 = vmatmul.f32.gmra.mxu0 %v92
      %v137 = vpop.f32.mrf.mxu0
      %v138 = vadd.f32 0.0, %v137
      %139 = vmatmul.f32.gmra.mxu0 %v95
      %v140 = vpop.f32.mrf.mxu0
      %v141 = vadd.f32 0.0, %v140
      %142 = vdwg.mxu0
      %v144 = vsel %vm90, %v66, 0
      %v147 = vsel %vm90, %v67, 0
      %149 = vmatpush.msra.mxu0 0.0
      %150 = vmatpush.msra.mxu0 0.0
      %151 = vmatpush.msra.mxu0 0.0
      %152 = vmatpush.msra.mxu0 0.0
      %153 = vmatpush.msra.mxu0 0.0
      %154 = vmatpush.msra.mxu0 0.0
      %155 = vmatpush.msra.mxu0 0.0
      %156 = vmatpush.msra.mxu0 0.0
      %157 = vmatpush.msra.mxu0 0.0
      %158 = vmatpush.msra.mxu0 0.0
      %159 = vmatpush.msra.mxu0 0.0
      %160 = vmatpush.msra.mxu0 0.0
      %161 = vmatpush.msra.mxu0 0.0
      %162 = vmatpush.msra.mxu0 0.0
      %163 = vmatpush.msra.mxu0 %v50
      %164 = vmatpush.msra.mxu0 %v48
      %165 = vmatmul.f32.gmra.mxu0 %v144
      %v166 = vpop.f32.mrf.mxu0
      %v167 = vadd.f32 %v115, %v166
      %168 = vmatmul.f32.gmra.mxu0 %v147
      %v169 = vpop.f32.mrf.mxu0
      %v170 = vadd.f32 %v118, %v169
      %171 = vdwg.mxu0
      %172 = vmatpush.msra.mxu0 0.0
      %173 = vmatpush.msra.mxu0 0.0
      %174 = vmatpush.msra.mxu0 0.0
      %175 = vmatpush.msra.mxu0 0.0
      %176 = vmatpush.msra.mxu0 0.0
      %177 = vmatpush.msra.mxu0 0.0
      %178 = vmatpush.msra.mxu0 0.0
      %179 = vmatpush.msra.mxu0 0.0
      %180 = vmatpush.msra.mxu0 0.0
      %181 = vmatpush.msra.mxu0 0.0
      %182 = vmatpush.msra.mxu0 0.0
      %183 = vmatpush.msra.mxu0 0.0
      %184 = vmatpush.msra.mxu0 0.0
      %185 = vmatpush.msra.mxu0 0.0
      %186 = vmatpush.msra.mxu0 %v51
      %187 = vmatpush.msra.mxu0 %v49
      %188 = vmatmul.f32.gmra.mxu0 %v144
      %v189 = vpop.f32.mrf.mxu0
      %v190 = vadd.f32 %v138, %v189
      %191 = vmatmul.f32.gmra.mxu0 %v147
      %v192 = vpop.f32.mrf.mxu0
      %v193 = vadd.f32 %v141, %v192
      %194 = vdwg.mxu0
      %s195 = scalar_lea.vmem %s1, 32
      %v196 = vld [vmem:[%s195] sm:$0xff]
      %v197 = vld [vmem:[%s195 + $0x8] sm:$0xff]
      %198 = vrot.lane.b32.xlu0 %v48, 112
      %v199 = vpop.permute.xlu0 %198
      %200 = vrot.lane.b32.xlu0 %v49, 112
      %v201 = vpop.permute.xlu0 %200
      %202 = vrot.lane.b32.xlu0 %v50, 112
      %v203 = vpop.permute.xlu0 %202
      %204 = vrot.lane.b32.xlu0 %v51, 112
      %v205 = vpop.permute.xlu0 %204
      %vm206 = vcmask 916480
      %v207 = vsel %vm206, %v199, %v201
      %v208 = vsel %vm206, %v203, %v205
      %v214 = vsel %vm90, %v196, 0
      %v217 = vsel %vm90, %v197, 0
      %219 = vmatpush.msra.mxu0 0.0
      %220 = vmatpush.msra.mxu0 0.0
      %221 = vmatpush.msra.mxu0 0.0
      %222 = vmatpush.msra.mxu0 0.0
      %223 = vmatpush.msra.mxu0 0.0
      %224 = vmatpush.msra.mxu0 0.0
      %225 = vmatpush.msra.mxu0 0.0
      %226 = vmatpush.msra.mxu0 0.0
      %227 = vmatpush.msra.mxu0 0.0
      %228 = vmatpush.msra.mxu0 0.0
      %229 = vmatpush.msra.mxu0 0.0
      %230 = vmatpush.msra.mxu0 0.0
      %231 = vmatpush.msra.mxu0 0.0
      %232 = vmatpush.msra.mxu0 0.0
      %233 = vmatpush.msra.mxu0 %v208
      %234 = vmatpush.msra.mxu0 %v207
      %235 = vmatmul.f32.gmra.mxu0 %v214
      %v236 = vpop.f32.mrf.mxu0
      %v237 = vadd.f32 0.0, %v236
      %238 = vmatmul.f32.gmra.mxu0 %v217
      %v239 = vpop.f32.mrf.mxu0
      %v240 = vadd.f32 0.0, %v239
      %241 = vdwg.mxu0
      %242 = vmatpush.msra.mxu0 0.0
      %243 = vmatpush.msra.mxu0 0.0
      %244 = vmatpush.msra.mxu0 0.0
      %245 = vmatpush.msra.mxu0 0.0
      %246 = vmatpush.msra.mxu0 0.0
      %247 = vmatpush.msra.mxu0 0.0
      %248 = vmatpush.msra.mxu0 0.0
      %249 = vmatpush.msra.mxu0 0.0
      %250 = vmatpush.msra.mxu0 0.0
      %251 = vmatpush.msra.mxu0 0.0
      %252 = vmatpush.msra.mxu0 0.0
      %253 = vmatpush.msra.mxu0 0.0
      %254 = vmatpush.msra.mxu0 0.0
      %255 = vmatpush.msra.mxu0 0.0
      %256 = vmatpush.msra.mxu0 %v205
      %257 = vmatpush.msra.mxu0 %v201
      %258 = vmatmul.f32.gmra.mxu0 %v214
      %v259 = vpop.f32.mrf.mxu0
      %v260 = vadd.f32 0.0, %v259
      %261 = vmatmul.f32.gmra.mxu0 %v217
      %v262 = vpop.f32.mrf.mxu0
      %v263 = vadd.f32 0.0, %v262
      %264 = vdwg.mxu0
      %v265 = vadd.f32 %v167, %v237
      %v266 = vadd.f32 %v190, %v260
      %v267 = vadd.f32 %v170, %v240
      %v268 = vadd.f32 %v193, %v263
      %s269 = scalar_lea.vmem %s1, 48
      %v270 = vld [vmem:[%s269] sm:$0xff]
      %v271 = vld [vmem:[%s269 + $0x8] sm:$0xff]
      %272 = vrot.lane.b32.xlu0 %v48, 104
      %v273 = vpop.permute.xlu0 %272
      %274 = vrot.lane.b32.xlu0 %v49, 104
      %v275 = vpop.permute.xlu0 %274
      %276 = vrot.lane.b32.xlu0 %v50, 104
      %v277 = vpop.permute.xlu0 %276
      %278 = vrot.lane.b32.xlu0 %v51, 104
      %v279 = vpop.permute.xlu0 %278
      %vm280 = vcmask 850944
      %v281 = vsel %vm280, %v273, %v275
      %v282 = vsel %vm280, %v277, %v279
      %v288 = vsel %vm90, %v270, 0
      %v291 = vsel %vm90, %v271, 0
      %293 = vmatpush.msra.mxu0 0.0
      %294 = vmatpush.msra.mxu0 0.0
      %295 = vmatpush.msra.mxu0 0.0
      %296 = vmatpush.msra.mxu0 0.0
      %297 = vmatpush.msra.mxu0 0.0
      %298 = vmatpush.msra.mxu0 0.0
      %299 = vmatpush.msra.mxu0 0.0
      %300 = vmatpush.msra.mxu0 0.0
      %301 = vmatpush.msra.mxu0 0.0
      %302 = vmatpush.msra.mxu0 0.0
      %303 = vmatpush.msra.mxu0 0.0
      %304 = vmatpush.msra.mxu0 0.0
      %305 = vmatpush.msra.mxu0 0.0
      %306 = vmatpush.msra.mxu0 0.0
      %307 = vmatpush.msra.mxu0 %v282
      %308 = vmatpush.msra.mxu0 %v281
      %309 = vmatmul.f32.gmra.mxu0 %v288
      %v310 = vpop.f32.mrf.mxu0
      %v311 = vadd.f32 0.0, %v310
      %312 = vmatmul.f32.gmra.mxu0 %v291
      %v313 = vpop.f32.mrf.mxu0
      %v314 = vadd.f32 0.0, %v313
      %315 = vdwg.mxu0
      %316 = vmatpush.msra.mxu0 0.0
      %317 = vmatpush.msra.mxu0 0.0
      %318 = vmatpush.msra.mxu0 0.0
      %319 = vmatpush.msra.mxu0 0.0
      %320 = vmatpush.msra.mxu0 0.0
      %321 = vmatpush.msra.mxu0 0.0
      %322 = vmatpush.msra.mxu0 0.0
      %323 = vmatpush.msra.mxu0 0.0
      %324 = vmatpush.msra.mxu0 0.0
      %325 = vmatpush.msra.mxu0 0.0
      %326 = vmatpush.msra.mxu0 0.0
      %327 = vmatpush.msra.mxu0 0.0
      %328 = vmatpush.msra.mxu0 0.0
      %329 = vmatpush.msra.mxu0 0.0
      %330 = vmatpush.msra.mxu0 %v279
      %331 = vmatpush.msra.mxu0 %v275
      %332 = vmatmul.f32.gmra.mxu0 %v288
      %v333 = vpop.f32.mrf.mxu0
      %v334 = vadd.f32 0.0, %v333
      %335 = vmatmul.f32.gmra.mxu0 %v291
      %v336 = vpop.f32.mrf.mxu0
      %v337 = vadd.f32 0.0, %v336
      %338 = vdwg.mxu0
      %v339 = vadd.f32 %v265, %v311
      %v340 = vadd.f32 %v266, %v334
      %v341 = vadd.f32 %v267, %v314
      %v342 = vadd.f32 %v268, %v337
      %s343 = scalar_lea.vmem %s1, 64
      %v344 = vld [vmem:[%s343] sm:$0xff]
      %v345 = vld [vmem:[%s343 + $0x8] sm:$0xff]
      %346 = vrot.lane.b32.xlu0 %v48, 96
      %v347 = vpop.permute.xlu0 %346
      %348 = vrot.lane.b32.xlu0 %v49, 96
      %v349 = vpop.permute.xlu0 %348
      %350 = vrot.lane.b32.xlu0 %v50, 96
      %v351 = vpop.permute.xlu0 %350
      %352 = vrot.lane.b32.xlu0 %v51, 96
      %v353 = vpop.permute.xlu0 %352
      %vm354 = vcmask 785408
      %v355 = vsel %vm354, %v347, %v349
      %v356 = vsel %vm354, %v351, %v353
      %v362 = vsel %vm90, %v344, 0
      %v365 = vsel %vm90, %v345, 0
      %367 = vmatpush.msra.mxu0 0.0
      %368 = vmatpush.msra.mxu0 0.0
      %369 = vmatpush.msra.mxu0 0.0
      %370 = vmatpush.msra.mxu0 0.0
      %371 = vmatpush.msra.mxu0 0.0
      %372 = vmatpush.msra.mxu0 0.0
      %373 = vmatpush.msra.mxu0 0.0
      %374 = vmatpush.msra.mxu0 0.0
      %375 = vmatpush.msra.mxu0 0.0
      %376 = vmatpush.msra.mxu0 0.0
      %377 = vmatpush.msra.mxu0 0.0
      %378 = vmatpush.msra.mxu0 0.0
      %379 = vmatpush.msra.mxu0 0.0
      %380 = vmatpush.msra.mxu0 0.0
      %381 = vmatpush.msra.mxu0 %v356
      %382 = vmatpush.msra.mxu0 %v355
      %383 = vmatmul.f32.gmra.mxu0 %v362
      %v384 = vpop.f32.mrf.mxu0
      %v385 = vadd.f32 0.0, %v384
      %386 = vmatmul.f32.gmra.mxu0 %v365
      %v387 = vpop.f32.mrf.mxu0
      %v388 = vadd.f32 0.0, %v387
      %389 = vdwg.mxu0
      %390 = vmatpush.msra.mxu0 0.0
      %391 = vmatpush.msra.mxu0 0.0
      %392 = vmatpush.msra.mxu0 0.0
      %393 = vmatpush.msra.mxu0 0.0
      %394 = vmatpush.msra.mxu0 0.0
      %395 = vmatpush.msra.mxu0 0.0
      %396 = vmatpush.msra.mxu0 0.0
      %397 = vmatpush.msra.mxu0 0.0
      %398 = vmatpush.msra.mxu0 0.0
      %399 = vmatpush.msra.mxu0 0.0
      %400 = vmatpush.msra.mxu0 0.0
      %401 = vmatpush.msra.mxu0 0.0
      %402 = vmatpush.msra.mxu0 0.0
      %403 = vmatpush.msra.mxu0 0.0
      %404 = vmatpush.msra.mxu0 %v353
      %405 = vmatpush.msra.mxu0 %v349
      %406 = vmatmul.f32.gmra.mxu0 %v362
      %v407 = vpop.f32.mrf.mxu0
      %v408 = vadd.f32 0.0, %v407
      %409 = vmatmul.f32.gmra.mxu0 %v365
      %v410 = vpop.f32.mrf.mxu0
      %v411 = vadd.f32 0.0, %v410
      %412 = vdwg.mxu0
      %v413 = vadd.f32 %v339, %v385
      %v414 = vadd.f32 %v340, %v408
      %v415 = vadd.f32 %v341, %v388
      %v416 = vadd.f32 %v342, %v411
      %418 = vset.pattern.permute.xlu0 0
      %419 = vperm.xlu0 %418, %v64
      %v420 = vpop.permute.xlu0 %419
      %423 = vset.pattern.permute.xlu0 0
      %424 = vperm.xlu0 %423, %v65
      %v425 = vpop.permute.xlu0 %424
      %v427 = vadd.f32 %v413, %v420
      %v428 = vadd.f32 %v414, %v420
      %v429 = vadd.f32 %v415, %v425
      %v430 = vadd.f32 %v416, %v425
      %v431 = vmax.f32 %v427, 0.0
      %v432 = vmax.f32 %v428, 0.0
      %v433 = vmax.f32 %v429, 0.0
      %v434 = vmax.f32 %v430, 0.0
      %439 = vrot.lane.b32.xlu0 %v52, 120
      %v440 = vpop.permute.xlu0 %439
      %441 = vrot.lane.b32.xlu0 %v53, 120
      %v442 = vpop.permute.xlu0 %441
      %443 = vrot.lane.b32.xlu0 %v54, 120
      %v444 = vpop.permute.xlu0 %443
      %445 = vrot.lane.b32.xlu0 %v55, 120
      %v446 = vpop.permute.xlu0 %445
      %v447 = vsel %vm83, %v440, %v442
      %v448 = vsel %vm83, %v444, %v446
      %453 = vmatpush.msra.mxu0 0.0
      %454 = vmatpush.msra.mxu0 0.0
      %455 = vmatpush.msra.mxu0 0.0
      %456 = vmatpush.msra.mxu0 0.0
      %457 = vmatpush.msra.mxu0 0.0
      %458 = vmatpush.msra.mxu0 0.0
      %459 = vmatpush.msra.mxu0 0.0
      %460 = vmatpush.msra.mxu0 0.0
      %461 = vmatpush.msra.mxu0 0.0
      %462 = vmatpush.msra.mxu0 0.0
      %463 = vmatpush.msra.mxu0 0.0
      %464 = vmatpush.msra.mxu0 0.0
      %465 = vmatpush.msra.mxu0 0.0
      %466 = vmatpush.msra.mxu0 0.0
      %467 = vmatpush.msra.mxu0 %v448
      %468 = vmatpush.msra.mxu0 %v447
      %469 = vmatmul.f32.gmra.mxu0 %v92
      %v470 = vpop.f32.mrf.mxu0
      %v471 = vadd.f32 0.0, %v470
      %472 = vmatmul.f32.gmra.mxu0 %v95
      %v473 = vpop.f32.mrf.mxu0
      %v474 = vadd.f32 0.0, %v473
      %475 = vdwg.mxu0
      %476 = vmatpush.msra.mxu0 0.0
      %477 = vmatpush.msra.mxu0 0.0
      %478 = vmatpush.msra.mxu0 0.0
      %479 = vmatpush.msra.mxu0 0.0
      %480 = vmatpush.msra.mxu0 0.0
      %481 = vmatpush.msra.mxu0 0.0
      %482 = vmatpush.msra.mxu0 0.0
      %483 = vmatpush.msra.mxu0 0.0
      %484 = vmatpush.msra.mxu0 0.0
      %485 = vmatpush.msra.mxu0 0.0
      %486 = vmatpush.msra.mxu0 0.0
      %487 = vmatpush.msra.mxu0 0.0
      %488 = vmatpush.msra.mxu0 0.0
      %489 = vmatpush.msra.mxu0 0.0
      %490 = vmatpush.msra.mxu0 %v446
      %491 = vmatpush.msra.mxu0 %v442
      %492 = vmatmul.f32.gmra.mxu0 %v92
      %v493 = vpop.f32.mrf.mxu0
      %v494 = vadd.f32 0.0, %v493
      %495 = vmatmul.f32.gmra.mxu0 %v95
      %v496 = vpop.f32.mrf.mxu0
      %v497 = vadd.f32 0.0, %v496
      %498 = vdwg.mxu0
      %499 = vmatpush.msra.mxu0 0.0
      %500 = vmatpush.msra.mxu0 0.0
      %501 = vmatpush.msra.mxu0 0.0
      %502 = vmatpush.msra.mxu0 0.0
      %503 = vmatpush.msra.mxu0 0.0
      %504 = vmatpush.msra.mxu0 0.0
      %505 = vmatpush.msra.mxu0 0.0
      %506 = vmatpush.msra.mxu0 0.0
      %507 = vmatpush.msra.mxu0 0.0
      %508 = vmatpush.msra.mxu0 0.0
      %509 = vmatpush.msra.mxu0 0.0
      %510 = vmatpush.msra.mxu0 0.0
      %511 = vmatpush.msra.mxu0 0.0
      %512 = vmatpush.msra.mxu0 0.0
      %513 = vmatpush.msra.mxu0 %v54
      %514 = vmatpush.msra.mxu0 %v52
      %515 = vmatmul.f32.gmra.mxu0 %v144
      %v516 = vpop.f32.mrf.mxu0
      %v517 = vadd.f32 %v471, %v516
      %518 = vmatmul.f32.gmra.mxu0 %v147
      %v519 = vpop.f32.mrf.mxu0
      %v520 = vadd.f32 %v474, %v519
      %521 = vdwg.mxu0
      %522 = vmatpush.msra.mxu0 0.0
      %523 = vmatpush.msra.mxu0 0.0
      %524 = vmatpush.msra.mxu0 0.0
      %525 = vmatpush.msra.mxu0 0.0
      %526 = vmatpush.msra.mxu0 0.0
      %527 = vmatpush.msra.mxu0 0.0
      %528 = vmatpush.msra.mxu0 0.0
      %529 = vmatpush.msra.mxu0 0.0
      %530 = vmatpush.msra.mxu0 0.0
      %531 = vmatpush.msra.mxu0 0.0
      %532 = vmatpush.msra.mxu0 0.0
      %533 = vmatpush.msra.mxu0 0.0
      %534 = vmatpush.msra.mxu0 0.0
      %535 = vmatpush.msra.mxu0 0.0
      %536 = vmatpush.msra.mxu0 %v55
      %537 = vmatpush.msra.mxu0 %v53
      %538 = vmatmul.f32.gmra.mxu0 %v144
      %v539 = vpop.f32.mrf.mxu0
      %v540 = vadd.f32 %v494, %v539
      %541 = vmatmul.f32.gmra.mxu0 %v147
      %v542 = vpop.f32.mrf.mxu0
      %v543 = vadd.f32 %v497, %v542
      %544 = vdwg.mxu0
      %545 = vrot.lane.b32.xlu0 %v52, 112
      %v546 = vpop.permute.xlu0 %545
      %547 = vrot.lane.b32.xlu0 %v53, 112
      %v548 = vpop.permute.xlu0 %547
      %549 = vrot.lane.b32.xlu0 %v54, 112
      %v550 = vpop.permute.xlu0 %549
      %551 = vrot.lane.b32.xlu0 %v55, 112
      %v552 = vpop.permute.xlu0 %551
      %v553 = vsel %vm206, %v546, %v548
      %v554 = vsel %vm206, %v550, %v552
      %559 = vmatpush.msra.mxu0 0.0
      %560 = vmatpush.msra.mxu0 0.0
      %561 = vmatpush.msra.mxu0 0.0
      %562 = vmatpush.msra.mxu0 0.0
      %563 = vmatpush.msra.mxu0 0.0
      %564 = vmatpush.msra.mxu0 0.0
      %565 = vmatpush.msra.mxu0 0.0
      %566 = vmatpush.msra.mxu0 0.0
      %567 = vmatpush.msra.mxu0 0.0
      %568 = vmatpush.msra.mxu0 0.0
      %569 = vmatpush.msra.mxu0 0.0
      %570 = vmatpush.msra.mxu0 0.0
      %571 = vmatpush.msra.mxu0 0.0
      %572 = vmatpush.msra.mxu0 0.0
      %573 = vmatpush.msra.mxu0 %v554
      %574 = vmatpush.msra.mxu0 %v553
      %575 = vmatmul.f32.gmra.mxu0 %v214
      %v576 = vpop.f32.mrf.mxu0
      %v577 = vadd.f32 0.0, %v576
      %578 = vmatmul.f32.gmra.mxu0 %v217
      %v579 = vpop.f32.mrf.mxu0
      %v580 = vadd.f32 0.0, %v579
      %581 = vdwg.mxu0
      %582 = vmatpush.msra.mxu0 0.0
      %583 = vmatpush.msra.mxu0 0.0
      %584 = vmatpush.msra.mxu0 0.0
      %585 = vmatpush.msra.mxu0 0.0
      %586 = vmatpush.msra.mxu0 0.0
      %587 = vmatpush.msra.mxu0 0.0
      %588 = vmatpush.msra.mxu0 0.0
      %589 = vmatpush.msra.mxu0 0.0
      %590 = vmatpush.msra.mxu0 0.0
      %591 = vmatpush.msra.mxu0 0.0
      %592 = vmatpush.msra.mxu0 0.0
      %593 = vmatpush.msra.mxu0 0.0
      %594 = vmatpush.msra.mxu0 0.0
      %595 = vmatpush.msra.mxu0 0.0
      %596 = vmatpush.msra.mxu0 %v552
      %597 = vmatpush.msra.mxu0 %v548
      %598 = vmatmul.f32.gmra.mxu0 %v214
      %v599 = vpop.f32.mrf.mxu0
      %v600 = vadd.f32 0.0, %v599
      %601 = vmatmul.f32.gmra.mxu0 %v217
      %v602 = vpop.f32.mrf.mxu0
      %v603 = vadd.f32 0.0, %v602
      %604 = vdwg.mxu0
      %v605 = vadd.f32 %v517, %v577
      %v606 = vadd.f32 %v540, %v600
      %v607 = vadd.f32 %v520, %v580
      %v608 = vadd.f32 %v543, %v603
      %609 = vrot.lane.b32.xlu0 %v52, 104
      %v610 = vpop.permute.xlu0 %609
      %611 = vrot.lane.b32.xlu0 %v53, 104
      %v612 = vpop.permute.xlu0 %611
      %613 = vrot.lane.b32.xlu0 %v54, 104
      %v614 = vpop.permute.xlu0 %613
      %615 = vrot.lane.b32.xlu0 %v55, 104
      %v616 = vpop.permute.xlu0 %615
      %v617 = vsel %vm280, %v610, %v612
      %v618 = vsel %vm280, %v614, %v616
      %623 = vmatpush.msra.mxu0 0.0
      %624 = vmatpush.msra.mxu0 0.0
      %625 = vmatpush.msra.mxu0 0.0
      %626 = vmatpush.msra.mxu0 0.0
      %627 = vmatpush.msra.mxu0 0.0
      %628 = vmatpush.msra.mxu0 0.0
      %629 = vmatpush.msra.mxu0 0.0
      %630 = vmatpush.msra.mxu0 0.0
      %631 = vmatpush.msra.mxu0 0.0
      %632 = vmatpush.msra.mxu0 0.0
      %633 = vmatpush.msra.mxu0 0.0
      %634 = vmatpush.msra.mxu0 0.0
      %635 = vmatpush.msra.mxu0 0.0
      %636 = vmatpush.msra.mxu0 0.0
      %637 = vmatpush.msra.mxu0 %v618
      %638 = vmatpush.msra.mxu0 %v617
      %639 = vmatmul.f32.gmra.mxu0 %v288
      %v640 = vpop.f32.mrf.mxu0
      %v641 = vadd.f32 0.0, %v640
      %642 = vmatmul.f32.gmra.mxu0 %v291
      %v643 = vpop.f32.mrf.mxu0
      %v644 = vadd.f32 0.0, %v643
      %645 = vdwg.mxu0
      %646 = vmatpush.msra.mxu0 0.0
      %647 = vmatpush.msra.mxu0 0.0
      %648 = vmatpush.msra.mxu0 0.0
      %649 = vmatpush.msra.mxu0 0.0
      %650 = vmatpush.msra.mxu0 0.0
      %651 = vmatpush.msra.mxu0 0.0
      %652 = vmatpush.msra.mxu0 0.0
      %653 = vmatpush.msra.mxu0 0.0
      %654 = vmatpush.msra.mxu0 0.0
      %655 = vmatpush.msra.mxu0 0.0
      %656 = vmatpush.msra.mxu0 0.0
      %657 = vmatpush.msra.mxu0 0.0
      %658 = vmatpush.msra.mxu0 0.0
      %659 = vmatpush.msra.mxu0 0.0
      %660 = vmatpush.msra.mxu0 %v616
      %661 = vmatpush.msra.mxu0 %v612
      %662 = vmatmul.f32.gmra.mxu0 %v288
      %v663 = vpop.f32.mrf.mxu0
      %v664 = vadd.f32 0.0, %v663
      %665 = vmatmul.f32.gmra.mxu0 %v291
      %v666 = vpop.f32.mrf.mxu0
      %v667 = vadd.f32 0.0, %v666
      %668 = vdwg.mxu0
      %v669 = vadd.f32 %v605, %v641
      %v670 = vadd.f32 %v606, %v664
      %v671 = vadd.f32 %v607, %v644
      %v672 = vadd.f32 %v608, %v667
      %673 = vrot.lane.b32.xlu0 %v52, 96
      %v674 = vpop.permute.xlu0 %673
      %675 = vrot.lane.b32.xlu0 %v53, 96
      %v676 = vpop.permute.xlu0 %675
      %677 = vrot.lane.b32.xlu0 %v54, 96
      %v678 = vpop.permute.xlu0 %677
      %679 = vrot.lane.b32.xlu0 %v55, 96
      %v680 = vpop.permute.xlu0 %679
      %v681 = vsel %vm354, %v674, %v676
      %v682 = vsel %vm354, %v678, %v680
      %687 = vmatpush.msra.mxu0 0.0
      %688 = vmatpush.msra.mxu0 0.0
      %689 = vmatpush.msra.mxu0 0.0
      %690 = vmatpush.msra.mxu0 0.0
      %691 = vmatpush.msra.mxu0 0.0
      %692 = vmatpush.msra.mxu0 0.0
      %693 = vmatpush.msra.mxu0 0.0
      %694 = vmatpush.msra.mxu0 0.0
      %695 = vmatpush.msra.mxu0 0.0
      %696 = vmatpush.msra.mxu0 0.0
      %697 = vmatpush.msra.mxu0 0.0
      %698 = vmatpush.msra.mxu0 0.0
      %699 = vmatpush.msra.mxu0 0.0
      %700 = vmatpush.msra.mxu0 0.0
      %701 = vmatpush.msra.mxu0 %v682
      %702 = vmatpush.msra.mxu0 %v681
      %703 = vmatmul.f32.gmra.mxu0 %v362
      %v704 = vpop.f32.mrf.mxu0
      %v705 = vadd.f32 0.0, %v704
      %706 = vmatmul.f32.gmra.mxu0 %v365
      %v707 = vpop.f32.mrf.mxu0
      %v708 = vadd.f32 0.0, %v707
      %709 = vdwg.mxu0
      %710 = vmatpush.msra.mxu0 0.0
      %711 = vmatpush.msra.mxu0 0.0
      %712 = vmatpush.msra.mxu0 0.0
      %713 = vmatpush.msra.mxu0 0.0
      %714 = vmatpush.msra.mxu0 0.0
      %715 = vmatpush.msra.mxu0 0.0
      %716 = vmatpush.msra.mxu0 0.0
      %717 = vmatpush.msra.mxu0 0.0
      %718 = vmatpush.msra.mxu0 0.0
      %719 = vmatpush.msra.mxu0 0.0
      %720 = vmatpush.msra.mxu0 0.0
      %721 = vmatpush.msra.mxu0 0.0
      %722 = vmatpush.msra.mxu0 0.0
      %723 = vmatpush.msra.mxu0 0.0
      %724 = vmatpush.msra.mxu0 %v680
      %725 = vmatpush.msra.mxu0 %v676
      %726 = vmatmul.f32.gmra.mxu0 %v362
      %v727 = vpop.f32.mrf.mxu0
      %v728 = vadd.f32 0.0, %v727
      %729 = vmatmul.f32.gmra.mxu0 %v365
      %v730 = vpop.f32.mrf.mxu0
      %v731 = vadd.f32 0.0, %v730
      %732 = vdwg.mxu0
      %v733 = vadd.f32 %v669, %v705
      %v734 = vadd.f32 %v670, %v728
      %v735 = vadd.f32 %v671, %v708
      %v736 = vadd.f32 %v672, %v731
      %v737 = vadd.f32 %v733, %v420
      %v738 = vadd.f32 %v734, %v420
      %v739 = vadd.f32 %v735, %v425
      %v740 = vadd.f32 %v736, %v425
      %v741 = vmax.f32 %v737, 0.0
      %v742 = vmax.f32 %v738, 0.0
      %v743 = vmax.f32 %v739, 0.0
      %v744 = vmax.f32 %v740, 0.0
      %v745 = vmax.f32 %v431, %v741
      %v746 = vmax.f32 %v432, %v742
      %v747 = vmax.f32 %v433, %v743
      %v748 = vmax.f32 %v434, %v744
      %753 = vrot.lane.b32.xlu0 %v56, 120
      %v754 = vpop.permute.xlu0 %753
      %755 = vrot.lane.b32.xlu0 %v57, 120
      %v756 = vpop.permute.xlu0 %755
      %757 = vrot.lane.b32.xlu0 %v58, 120
      %v758 = vpop.permute.xlu0 %757
      %759 = vrot.lane.b32.xlu0 %v59, 120
      %v760 = vpop.permute.xlu0 %759
      %v761 = vsel %vm83, %v754, %v756
      %v762 = vsel %vm83, %v758, %v760
      %767 = vmatpush.msra.mxu0 0.0
      %768 = vmatpush.msra.mxu0 0.0
      %769 = vmatpush.msra.mxu0 0.0
      %770 = vmatpush.msra.mxu0 0.0
      %771 = vmatpush.msra.mxu0 0.0
      %772 = vmatpush.msra.mxu0 0.0
      %773 = vmatpush.msra.mxu0 0.0
      %774 = vmatpush.msra.mxu0 0.0
      %775 = vmatpush.msra.mxu0 0.0
      %776 = vmatpush.msra.mxu0 0.0
      %777 = vmatpush.msra.mxu0 0.0
      %778 = vmatpush.msra.mxu0 0.0
      %779 = vmatpush.msra.mxu0 0.0
      %780 = vmatpush.msra.mxu0 0.0
      %781 = vmatpush.msra.mxu0 %v762
      %782 = vmatpush.msra.mxu0 %v761
      %783 = vmatmul.f32.gmra.mxu0 %v92
      %v784 = vpop.f32.mrf.mxu0
      %v785 = vadd.f32 0.0, %v784
      %786 = vmatmul.f32.gmra.mxu0 %v95
      %v787 = vpop.f32.mrf.mxu0
      %v788 = vadd.f32 0.0, %v787
      %789 = vdwg.mxu0
      %790 = vmatpush.msra.mxu0 0.0
      %791 = vmatpush.msra.mxu0 0.0
      %792 = vmatpush.msra.mxu0 0.0
      %793 = vmatpush.msra.mxu0 0.0
      %794 = vmatpush.msra.mxu0 0.0
      %795 = vmatpush.msra.mxu0 0.0
      %796 = vmatpush.msra.mxu0 0.0
      %797 = vmatpush.msra.mxu0 0.0
      %798 = vmatpush.msra.mxu0 0.0
      %799 = vmatpush.msra.mxu0 0.0
      %800 = vmatpush.msra.mxu0 0.0
      %801 = vmatpush.msra.mxu0 0.0
      %802 = vmatpush.msra.mxu0 0.0
      %803 = vmatpush.msra.mxu0 0.0
      %804 = vmatpush.msra.mxu0 %v760
      %805 = vmatpush.msra.mxu0 %v756
      %806 = vmatmul.f32.gmra.mxu0 %v92
      %v807 = vpop.f32.mrf.mxu0
      %v808 = vadd.f32 0.0, %v807
      %809 = vmatmul.f32.gmra.mxu0 %v95
      %v810 = vpop.f32.mrf.mxu0
      %v811 = vadd.f32 0.0, %v810
      %812 = vdwg.mxu0
      %813 = vmatpush.msra.mxu0 0.0
      %814 = vmatpush.msra.mxu0 0.0
      %815 = vmatpush.msra.mxu0 0.0
      %816 = vmatpush.msra.mxu0 0.0
      %817 = vmatpush.msra.mxu0 0.0
      %818 = vmatpush.msra.mxu0 0.0
      %819 = vmatpush.msra.mxu0 0.0
      %820 = vmatpush.msra.mxu0 0.0
      %821 = vmatpush.msra.mxu0 0.0
      %822 = vmatpush.msra.mxu0 0.0
      %823 = vmatpush.msra.mxu0 0.0
      %824 = vmatpush.msra.mxu0 0.0
      %825 = vmatpush.msra.mxu0 0.0
      %826 = vmatpush.msra.mxu0 0.0
      %827 = vmatpush.msra.mxu0 %v58
      %828 = vmatpush.msra.mxu0 %v56
      %829 = vmatmul.f32.gmra.mxu0 %v144
      %v830 = vpop.f32.mrf.mxu0
      %v831 = vadd.f32 %v785, %v830
      %832 = vmatmul.f32.gmra.mxu0 %v147
      %v833 = vpop.f32.mrf.mxu0
      %v834 = vadd.f32 %v788, %v833
      %835 = vdwg.mxu0
      %836 = vmatpush.msra.mxu0 0.0
      %837 = vmatpush.msra.mxu0 0.0
      %838 = vmatpush.msra.mxu0 0.0
      %839 = vmatpush.msra.mxu0 0.0
      %840 = vmatpush.msra.mxu0 0.0
      %841 = vmatpush.msra.mxu0 0.0
      %842 = vmatpush.msra.mxu0 0.0
      %843 = vmatpush.msra.mxu0 0.0
      %844 = vmatpush.msra.mxu0 0.0
      %845 = vmatpush.msra.mxu0 0.0
      %846 = vmatpush.msra.mxu0 0.0
      %847 = vmatpush.msra.mxu0 0.0
      %848 = vmatpush.msra.mxu0 0.0
      %849 = vmatpush.msra.mxu0 0.0
      %850 = vmatpush.msra.mxu0 %v59
      %851 = vmatpush.msra.mxu0 %v57
      %852 = vmatmul.f32.gmra.mxu0 %v144
      %v853 = vpop.f32.mrf.mxu0
      %v854 = vadd.f32 %v808, %v853
      %855 = vmatmul.f32.gmra.mxu0 %v147
      %v856 = vpop.f32.mrf.mxu0
      %v857 = vadd.f32 %v811, %v856
      %858 = vdwg.mxu0
      %859 = vrot.lane.b32.xlu0 %v56, 112
      %v860 = vpop.permute.xlu0 %859
      %861 = vrot.lane.b32.xlu0 %v57, 112
      %v862 = vpop.permute.xlu0 %861
      %863 = vrot.lane.b32.xlu0 %v58, 112
      %v864 = vpop.permute.xlu0 %863
      %865 = vrot.lane.b32.xlu0 %v59, 112
      %v866 = vpop.permute.xlu0 %865
      %v867 = vsel %vm206, %v860, %v862
      %v868 = vsel %vm206, %v864, %v866
      %873 = vmatpush.msra.mxu0 0.0
      %874 = vmatpush.msra.mxu0 0.0
      %875 = vmatpush.msra.mxu0 0.0
      %876 = vmatpush.msra.mxu0 0.0
      %877 = vmatpush.msra.mxu0 0.0
      %878 = vmatpush.msra.mxu0 0.0
      %879 = vmatpush.msra.mxu0 0.0
      %880 = vmatpush.msra.mxu0 0.0
      %881 = vmatpush.msra.mxu0 0.0
      %882 = vmatpush.msra.mxu0 0.0
      %883 = vmatpush.msra.mxu0 0.0
      %884 = vmatpush.msra.mxu0 0.0
      %885 = vmatpush.msra.mxu0 0.0
      %886 = vmatpush.msra.mxu0 0.0
      %887 = vmatpush.msra.mxu0 %v868
      %888 = vmatpush.msra.mxu0 %v867
      %889 = vmatmul.f32.gmra.mxu0 %v214
      %v890 = vpop.f32.mrf.mxu0
      %v891 = vadd.f32 0.0, %v890
      %892 = vmatmul.f32.gmra.mxu0 %v217
      %v893 = vpop.f32.mrf.mxu0
      %v894 = vadd.f32 0.0, %v893
      %895 = vdwg.mxu0
      %896 = vmatpush.msra.mxu0 0.0
      %897 = vmatpush.msra.mxu0 0.0
      %898 = vmatpush.msra.mxu0 0.0
      %899 = vmatpush.msra.mxu0 0.0
      %900 = vmatpush.msra.mxu0 0.0
      %901 = vmatpush.msra.mxu0 0.0
      %902 = vmatpush.msra.mxu0 0.0
      %903 = vmatpush.msra.mxu0 0.0
      %904 = vmatpush.msra.mxu0 0.0
      %905 = vmatpush.msra.mxu0 0.0
      %906 = vmatpush.msra.mxu0 0.0
      %907 = vmatpush.msra.mxu0 0.0
      %908 = vmatpush.msra.mxu0 0.0
      %909 = vmatpush.msra.mxu0 0.0
      %910 = vmatpush.msra.mxu0 %v866
      %911 = vmatpush.msra.mxu0 %v862
      %912 = vmatmul.f32.gmra.mxu0 %v214
      %v913 = vpop.f32.mrf.mxu0
      %v914 = vadd.f32 0.0, %v913
      %915 = vmatmul.f32.gmra.mxu0 %v217
      %v916 = vpop.f32.mrf.mxu0
      %v917 = vadd.f32 0.0, %v916
      %918 = vdwg.mxu0
      %v919 = vadd.f32 %v831, %v891
      %v920 = vadd.f32 %v854, %v914
      %v921 = vadd.f32 %v834, %v894
      %v922 = vadd.f32 %v857, %v917
      %923 = vrot.lane.b32.xlu0 %v56, 104
      %v924 = vpop.permute.xlu0 %923
      %925 = vrot.lane.b32.xlu0 %v57, 104
      %v926 = vpop.permute.xlu0 %925
      %927 = vrot.lane.b32.xlu0 %v58, 104
      %v928 = vpop.permute.xlu0 %927
      %929 = vrot.lane.b32.xlu0 %v59, 104
      %v930 = vpop.permute.xlu0 %929
      %v931 = vsel %vm280, %v924, %v926
      %v932 = vsel %vm280, %v928, %v930
      %937 = vmatpush.msra.mxu0 0.0
      %938 = vmatpush.msra.mxu0 0.0
      %939 = vmatpush.msra.mxu0 0.0
      %940 = vmatpush.msra.mxu0 0.0
      %941 = vmatpush.msra.mxu0 0.0
      %942 = vmatpush.msra.mxu0 0.0
      %943 = vmatpush.msra.mxu0 0.0
      %944 = vmatpush.msra.mxu0 0.0
      %945 = vmatpush.msra.mxu0 0.0
      %946 = vmatpush.msra.mxu0 0.0
      %947 = vmatpush.msra.mxu0 0.0
      %948 = vmatpush.msra.mxu0 0.0
      %949 = vmatpush.msra.mxu0 0.0
      %950 = vmatpush.msra.mxu0 0.0
      %951 = vmatpush.msra.mxu0 %v932
      %952 = vmatpush.msra.mxu0 %v931
      %953 = vmatmul.f32.gmra.mxu0 %v288
      %v954 = vpop.f32.mrf.mxu0
      %v955 = vadd.f32 0.0, %v954
      %956 = vmatmul.f32.gmra.mxu0 %v291
      %v957 = vpop.f32.mrf.mxu0
      %v958 = vadd.f32 0.0, %v957
      %959 = vdwg.mxu0
      %960 = vmatpush.msra.mxu0 0.0
      %961 = vmatpush.msra.mxu0 0.0
      %962 = vmatpush.msra.mxu0 0.0
      %963 = vmatpush.msra.mxu0 0.0
      %964 = vmatpush.msra.mxu0 0.0
      %965 = vmatpush.msra.mxu0 0.0
      %966 = vmatpush.msra.mxu0 0.0
      %967 = vmatpush.msra.mxu0 0.0
      %968 = vmatpush.msra.mxu0 0.0
      %969 = vmatpush.msra.mxu0 0.0
      %970 = vmatpush.msra.mxu0 0.0
      %971 = vmatpush.msra.mxu0 0.0
      %972 = vmatpush.msra.mxu0 0.0
      %973 = vmatpush.msra.mxu0 0.0
      %974 = vmatpush.msra.mxu0 %v930
      %975 = vmatpush.msra.mxu0 %v926
      %976 = vmatmul.f32.gmra.mxu0 %v288
      %v977 = vpop.f32.mrf.mxu0
      %v978 = vadd.f32 0.0, %v977
      %979 = vmatmul.f32.gmra.mxu0 %v291
      %v980 = vpop.f32.mrf.mxu0
      %v981 = vadd.f32 0.0, %v980
      %982 = vdwg.mxu0
      %v983 = vadd.f32 %v919, %v955
      %v984 = vadd.f32 %v920, %v978
      %v985 = vadd.f32 %v921, %v958
      %v986 = vadd.f32 %v922, %v981
      %987 = vrot.lane.b32.xlu0 %v56, 96
      %v988 = vpop.permute.xlu0 %987
      %989 = vrot.lane.b32.xlu0 %v57, 96
      %v990 = vpop.permute.xlu0 %989
      %991 = vrot.lane.b32.xlu0 %v58, 96
      %v992 = vpop.permute.xlu0 %991
      %993 = vrot.lane.b32.xlu0 %v59, 96
      %v994 = vpop.permute.xlu0 %993
      %v995 = vsel %vm354, %v988, %v990
      %v996 = vsel %vm354, %v992, %v994
      %1001 = vmatpush.msra.mxu0 0.0
      %1002 = vmatpush.msra.mxu0 0.0
      %1003 = vmatpush.msra.mxu0 0.0
      %1004 = vmatpush.msra.mxu0 0.0
      %1005 = vmatpush.msra.mxu0 0.0
      %1006 = vmatpush.msra.mxu0 0.0
      %1007 = vmatpush.msra.mxu0 0.0
      %1008 = vmatpush.msra.mxu0 0.0
      %1009 = vmatpush.msra.mxu0 0.0
      %1010 = vmatpush.msra.mxu0 0.0
      %1011 = vmatpush.msra.mxu0 0.0
      %1012 = vmatpush.msra.mxu0 0.0
      %1013 = vmatpush.msra.mxu0 0.0
      %1014 = vmatpush.msra.mxu0 0.0
      %1015 = vmatpush.msra.mxu0 %v996
      %1016 = vmatpush.msra.mxu0 %v995
      %1017 = vmatmul.f32.gmra.mxu0 %v362
      %v1018 = vpop.f32.mrf.mxu0
      %v1019 = vadd.f32 0.0, %v1018
      %1020 = vmatmul.f32.gmra.mxu0 %v365
      %v1021 = vpop.f32.mrf.mxu0
      %v1022 = vadd.f32 0.0, %v1021
      %1023 = vdwg.mxu0
      %1024 = vmatpush.msra.mxu0 0.0
      %1025 = vmatpush.msra.mxu0 0.0
      %1026 = vmatpush.msra.mxu0 0.0
      %1027 = vmatpush.msra.mxu0 0.0
      %1028 = vmatpush.msra.mxu0 0.0
      %1029 = vmatpush.msra.mxu0 0.0
      %1030 = vmatpush.msra.mxu0 0.0
      %1031 = vmatpush.msra.mxu0 0.0
      %1032 = vmatpush.msra.mxu0 0.0
      %1033 = vmatpush.msra.mxu0 0.0
      %1034 = vmatpush.msra.mxu0 0.0
      %1035 = vmatpush.msra.mxu0 0.0
      %1036 = vmatpush.msra.mxu0 0.0
      %1037 = vmatpush.msra.mxu0 0.0
      %1038 = vmatpush.msra.mxu0 %v994
      %1039 = vmatpush.msra.mxu0 %v990
      %1040 = vmatmul.f32.gmra.mxu0 %v362
      %v1041 = vpop.f32.mrf.mxu0
      %v1042 = vadd.f32 0.0, %v1041
      %1043 = vmatmul.f32.gmra.mxu0 %v365
      %v1044 = vpop.f32.mrf.mxu0
      %v1045 = vadd.f32 0.0, %v1044
      %1046 = vdwg.mxu0
      %v1047 = vadd.f32 %v983, %v1019
      %v1048 = vadd.f32 %v984, %v1042
      %v1049 = vadd.f32 %v985, %v1022
      %v1050 = vadd.f32 %v986, %v1045
      %v1051 = vadd.f32 %v1047, %v420
      %v1052 = vadd.f32 %v1048, %v420
      %v1053 = vadd.f32 %v1049, %v425
      %v1054 = vadd.f32 %v1050, %v425
      %v1055 = vmax.f32 %v1051, 0.0
      %v1056 = vmax.f32 %v1052, 0.0
      %v1057 = vmax.f32 %v1053, 0.0
      %v1058 = vmax.f32 %v1054, 0.0
      %1063 = vrot.lane.b32.xlu0 %v60, 120
      %v1064 = vpop.permute.xlu0 %1063
      %1065 = vrot.lane.b32.xlu0 %v61, 120
      %v1066 = vpop.permute.xlu0 %1065
      %1067 = vrot.lane.b32.xlu0 %v62, 120
      %v1068 = vpop.permute.xlu0 %1067
      %1069 = vrot.lane.b32.xlu0 %v63, 120
      %v1070 = vpop.permute.xlu0 %1069
      %v1071 = vsel %vm83, %v1064, %v1066
      %v1072 = vsel %vm83, %v1068, %v1070
      %1077 = vmatpush.msra.mxu0 0.0
      %1078 = vmatpush.msra.mxu0 0.0
      %1079 = vmatpush.msra.mxu0 0.0
      %1080 = vmatpush.msra.mxu0 0.0
      %1081 = vmatpush.msra.mxu0 0.0
      %1082 = vmatpush.msra.mxu0 0.0
      %1083 = vmatpush.msra.mxu0 0.0
      %1084 = vmatpush.msra.mxu0 0.0
      %1085 = vmatpush.msra.mxu0 0.0
      %1086 = vmatpush.msra.mxu0 0.0
      %1087 = vmatpush.msra.mxu0 0.0
      %1088 = vmatpush.msra.mxu0 0.0
      %1089 = vmatpush.msra.mxu0 0.0
      %1090 = vmatpush.msra.mxu0 0.0
      %1091 = vmatpush.msra.mxu0 %v1072
      %1092 = vmatpush.msra.mxu0 %v1071
      %1093 = vmatmul.f32.gmra.mxu0 %v92
      %v1094 = vpop.f32.mrf.mxu0
      %v1095 = vadd.f32 0.0, %v1094
      %1096 = vmatmul.f32.gmra.mxu0 %v95
      %v1097 = vpop.f32.mrf.mxu0
      %v1098 = vadd.f32 0.0, %v1097
      %1099 = vdwg.mxu0
      %1100 = vmatpush.msra.mxu0 0.0
      %1101 = vmatpush.msra.mxu0 0.0
      %1102 = vmatpush.msra.mxu0 0.0
      %1103 = vmatpush.msra.mxu0 0.0
      %1104 = vmatpush.msra.mxu0 0.0
      %1105 = vmatpush.msra.mxu0 0.0
      %1106 = vmatpush.msra.mxu0 0.0
      %1107 = vmatpush.msra.mxu0 0.0
      %1108 = vmatpush.msra.mxu0 0.0
      %1109 = vmatpush.msra.mxu0 0.0
      %1110 = vmatpush.msra.mxu0 0.0
      %1111 = vmatpush.msra.mxu0 0.0
      %1112 = vmatpush.msra.mxu0 0.0
      %1113 = vmatpush.msra.mxu0 0.0
      %1114 = vmatpush.msra.mxu0 %v1070
      %1115 = vmatpush.msra.mxu0 %v1066
      %1116 = vmatmul.f32.gmra.mxu0 %v92
      %v1117 = vpop.f32.mrf.mxu0
      %v1118 = vadd.f32 0.0, %v1117
      %1119 = vmatmul.f32.gmra.mxu0 %v95
      %v1120 = vpop.f32.mrf.mxu0
      %v1121 = vadd.f32 0.0, %v1120
      %1122 = vdwg.mxu0
      %1123 = vmatpush.msra.mxu0 0.0
      %1124 = vmatpush.msra.mxu0 0.0
      %1125 = vmatpush.msra.mxu0 0.0
      %1126 = vmatpush.msra.mxu0 0.0
      %1127 = vmatpush.msra.mxu0 0.0
      %1128 = vmatpush.msra.mxu0 0.0
      %1129 = vmatpush.msra.mxu0 0.0
      %1130 = vmatpush.msra.mxu0 0.0
      %1131 = vmatpush.msra.mxu0 0.0
      %1132 = vmatpush.msra.mxu0 0.0
      %1133 = vmatpush.msra.mxu0 0.0
      %1134 = vmatpush.msra.mxu0 0.0
      %1135 = vmatpush.msra.mxu0 0.0
      %1136 = vmatpush.msra.mxu0 0.0
      %1137 = vmatpush.msra.mxu0 %v62
      %1138 = vmatpush.msra.mxu0 %v60
      %1139 = vmatmul.f32.gmra.mxu0 %v144
      %v1140 = vpop.f32.mrf.mxu0
      %v1141 = vadd.f32 %v1095, %v1140
      %1142 = vmatmul.f32.gmra.mxu0 %v147
      %v1143 = vpop.f32.mrf.mxu0
      %v1144 = vadd.f32 %v1098, %v1143
      %1145 = vdwg.mxu0
      %1146 = vmatpush.msra.mxu0 0.0
      %1147 = vmatpush.msra.mxu0 0.0
      %1148 = vmatpush.msra.mxu0 0.0
      %1149 = vmatpush.msra.mxu0 0.0
      %1150 = vmatpush.msra.mxu0 0.0
      %1151 = vmatpush.msra.mxu0 0.0
      %1152 = vmatpush.msra.mxu0 0.0
      %1153 = vmatpush.msra.mxu0 0.0
      %1154 = vmatpush.msra.mxu0 0.0
      %1155 = vmatpush.msra.mxu0 0.0
      %1156 = vmatpush.msra.mxu0 0.0
      %1157 = vmatpush.msra.mxu0 0.0
      %1158 = vmatpush.msra.mxu0 0.0
      %1159 = vmatpush.msra.mxu0 0.0
      %1160 = vmatpush.msra.mxu0 %v63
      %1161 = vmatpush.msra.mxu0 %v61
      %1162 = vmatmul.f32.gmra.mxu0 %v144
      %v1163 = vpop.f32.mrf.mxu0
      %v1164 = vadd.f32 %v1118, %v1163
      %1165 = vmatmul.f32.gmra.mxu0 %v147
      %v1166 = vpop.f32.mrf.mxu0
      %v1167 = vadd.f32 %v1121, %v1166
      %1168 = vdwg.mxu0
      %1169 = vrot.lane.b32.xlu0 %v60, 112
      %v1170 = vpop.permute.xlu0 %1169
      %1171 = vrot.lane.b32.xlu0 %v61, 112
      %v1172 = vpop.permute.xlu0 %1171
      %1173 = vrot.lane.b32.xlu0 %v62, 112
      %v1174 = vpop.permute.xlu0 %1173
      %1175 = vrot.lane.b32.xlu0 %v63, 112
      %v1176 = vpop.permute.xlu0 %1175
      %v1177 = vsel %vm206, %v1170, %v1172
      %v1178 = vsel %vm206, %v1174, %v1176
      %1183 = vmatpush.msra.mxu0 0.0
      %1184 = vmatpush.msra.mxu0 0.0
      %1185 = vmatpush.msra.mxu0 0.0
      %1186 = vmatpush.msra.mxu0 0.0
      %1187 = vmatpush.msra.mxu0 0.0
      %1188 = vmatpush.msra.mxu0 0.0
      %1189 = vmatpush.msra.mxu0 0.0
      %1190 = vmatpush.msra.mxu0 0.0
      %1191 = vmatpush.msra.mxu0 0.0
      %1192 = vmatpush.msra.mxu0 0.0
      %1193 = vmatpush.msra.mxu0 0.0
      %1194 = vmatpush.msra.mxu0 0.0
      %1195 = vmatpush.msra.mxu0 0.0
      %1196 = vmatpush.msra.mxu0 0.0
      %1197 = vmatpush.msra.mxu0 %v1178
      %1198 = vmatpush.msra.mxu0 %v1177
      %1199 = vmatmul.f32.gmra.mxu0 %v214
      %v1200 = vpop.f32.mrf.mxu0
      %v1201 = vadd.f32 0.0, %v1200
      %1202 = vmatmul.f32.gmra.mxu0 %v217
      %v1203 = vpop.f32.mrf.mxu0
      %v1204 = vadd.f32 0.0, %v1203
      %1205 = vdwg.mxu0
      %1206 = vmatpush.msra.mxu0 0.0
      %1207 = vmatpush.msra.mxu0 0.0
      %1208 = vmatpush.msra.mxu0 0.0
      %1209 = vmatpush.msra.mxu0 0.0
      %1210 = vmatpush.msra.mxu0 0.0
      %1211 = vmatpush.msra.mxu0 0.0
      %1212 = vmatpush.msra.mxu0 0.0
      %1213 = vmatpush.msra.mxu0 0.0
      %1214 = vmatpush.msra.mxu0 0.0
      %1215 = vmatpush.msra.mxu0 0.0
      %1216 = vmatpush.msra.mxu0 0.0
      %1217 = vmatpush.msra.mxu0 0.0
      %1218 = vmatpush.msra.mxu0 0.0
      %1219 = vmatpush.msra.mxu0 0.0
      %1220 = vmatpush.msra.mxu0 %v1176
      %1221 = vmatpush.msra.mxu0 %v1172
      %1222 = vmatmul.f32.gmra.mxu0 %v214
      %v1223 = vpop.f32.mrf.mxu0
      %v1224 = vadd.f32 0.0, %v1223
      %1225 = vmatmul.f32.gmra.mxu0 %v217
      %v1226 = vpop.f32.mrf.mxu0
      %v1227 = vadd.f32 0.0, %v1226
      %1228 = vdwg.mxu0
      %v1229 = vadd.f32 %v1141, %v1201
      %v1230 = vadd.f32 %v1164, %v1224
      %v1231 = vadd.f32 %v1144, %v1204
      %v1232 = vadd.f32 %v1167, %v1227
      %1233 = vrot.lane.b32.xlu0 %v60, 104
      %v1234 = vpop.permute.xlu0 %1233
      %1235 = vrot.lane.b32.xlu0 %v61, 104
      %v1236 = vpop.permute.xlu0 %1235
      %1237 = vrot.lane.b32.xlu0 %v62, 104
      %v1238 = vpop.permute.xlu0 %1237
      %1239 = vrot.lane.b32.xlu0 %v63, 104
      %v1240 = vpop.permute.xlu0 %1239
      %v1241 = vsel %vm280, %v1234, %v1236
      %v1242 = vsel %vm280, %v1238, %v1240
      %1247 = vmatpush.msra.mxu0 0.0
      %1248 = vmatpush.msra.mxu0 0.0
      %1249 = vmatpush.msra.mxu0 0.0
      %1250 = vmatpush.msra.mxu0 0.0
      %1251 = vmatpush.msra.mxu0 0.0
      %1252 = vmatpush.msra.mxu0 0.0
      %1253 = vmatpush.msra.mxu0 0.0
      %1254 = vmatpush.msra.mxu0 0.0
      %1255 = vmatpush.msra.mxu0 0.0
      %1256 = vmatpush.msra.mxu0 0.0
      %1257 = vmatpush.msra.mxu0 0.0
      %1258 = vmatpush.msra.mxu0 0.0
      %1259 = vmatpush.msra.mxu0 0.0
      %1260 = vmatpush.msra.mxu0 0.0
      %1261 = vmatpush.msra.mxu0 %v1242
      %1262 = vmatpush.msra.mxu0 %v1241
      %1263 = vmatmul.f32.gmra.mxu0 %v288
      %v1264 = vpop.f32.mrf.mxu0
      %v1265 = vadd.f32 0.0, %v1264
      %1266 = vmatmul.f32.gmra.mxu0 %v291
      %v1267 = vpop.f32.mrf.mxu0
      %v1268 = vadd.f32 0.0, %v1267
      %1269 = vdwg.mxu0
      %1270 = vmatpush.msra.mxu0 0.0
      %1271 = vmatpush.msra.mxu0 0.0
      %1272 = vmatpush.msra.mxu0 0.0
      %1273 = vmatpush.msra.mxu0 0.0
      %1274 = vmatpush.msra.mxu0 0.0
      %1275 = vmatpush.msra.mxu0 0.0
      %1276 = vmatpush.msra.mxu0 0.0
      %1277 = vmatpush.msra.mxu0 0.0
      %1278 = vmatpush.msra.mxu0 0.0
      %1279 = vmatpush.msra.mxu0 0.0
      %1280 = vmatpush.msra.mxu0 0.0
      %1281 = vmatpush.msra.mxu0 0.0
      %1282 = vmatpush.msra.mxu0 0.0
      %1283 = vmatpush.msra.mxu0 0.0
      %1284 = vmatpush.msra.mxu0 %v1240
      %1285 = vmatpush.msra.mxu0 %v1236
      %1286 = vmatmul.f32.gmra.mxu0 %v288
      %v1287 = vpop.f32.mrf.mxu0
      %v1288 = vadd.f32 0.0, %v1287
      %1289 = vmatmul.f32.gmra.mxu0 %v291
      %v1290 = vpop.f32.mrf.mxu0
      %v1291 = vadd.f32 0.0, %v1290
      %1292 = vdwg.mxu0
      %v1293 = vadd.f32 %v1229, %v1265
      %v1294 = vadd.f32 %v1230, %v1288
      %v1295 = vadd.f32 %v1231, %v1268
      %v1296 = vadd.f32 %v1232, %v1291
      %1297 = vrot.lane.b32.xlu0 %v60, 96
      %v1298 = vpop.permute.xlu0 %1297
      %1299 = vrot.lane.b32.xlu0 %v61, 96
      %v1300 = vpop.permute.xlu0 %1299
      %1301 = vrot.lane.b32.xlu0 %v62, 96
      %v1302 = vpop.permute.xlu0 %1301
      %1303 = vrot.lane.b32.xlu0 %v63, 96
      %v1304 = vpop.permute.xlu0 %1303
      %v1305 = vsel %vm354, %v1298, %v1300
      %v1306 = vsel %vm354, %v1302, %v1304
      %1311 = vmatpush.msra.mxu0 0.0
      %1312 = vmatpush.msra.mxu0 0.0
      %1313 = vmatpush.msra.mxu0 0.0
      %1314 = vmatpush.msra.mxu0 0.0
      %1315 = vmatpush.msra.mxu0 0.0
      %1316 = vmatpush.msra.mxu0 0.0
      %1317 = vmatpush.msra.mxu0 0.0
      %1318 = vmatpush.msra.mxu0 0.0
      %1319 = vmatpush.msra.mxu0 0.0
      %1320 = vmatpush.msra.mxu0 0.0
      %1321 = vmatpush.msra.mxu0 0.0
      %1322 = vmatpush.msra.mxu0 0.0
      %1323 = vmatpush.msra.mxu0 0.0
      %1324 = vmatpush.msra.mxu0 0.0
      %1325 = vmatpush.msra.mxu0 %v1306
      %1326 = vmatpush.msra.mxu0 %v1305
      %1327 = vmatmul.f32.gmra.mxu0 %v362
      %v1328 = vpop.f32.mrf.mxu0
      %v1329 = vadd.f32 0.0, %v1328
      %1330 = vmatmul.f32.gmra.mxu0 %v365
      %v1331 = vpop.f32.mrf.mxu0
      %v1332 = vadd.f32 0.0, %v1331
      %1333 = vdwg.mxu0
      %1334 = vmatpush.msra.mxu0 0.0
      %1335 = vmatpush.msra.mxu0 0.0
      %1336 = vmatpush.msra.mxu0 0.0
      %1337 = vmatpush.msra.mxu0 0.0
      %1338 = vmatpush.msra.mxu0 0.0
      %1339 = vmatpush.msra.mxu0 0.0
      %1340 = vmatpush.msra.mxu0 0.0
      %1341 = vmatpush.msra.mxu0 0.0
      %1342 = vmatpush.msra.mxu0 0.0
      %1343 = vmatpush.msra.mxu0 0.0
      %1344 = vmatpush.msra.mxu0 0.0
      %1345 = vmatpush.msra.mxu0 0.0
      %1346 = vmatpush.msra.mxu0 0.0
      %1347 = vmatpush.msra.mxu0 0.0
      %1348 = vmatpush.msra.mxu0 %v1304
      %1349 = vmatpush.msra.mxu0 %v1300
      %1350 = vmatmul.f32.gmra.mxu0 %v362
      %v1351 = vpop.f32.mrf.mxu0
      %v1352 = vadd.f32 0.0, %v1351
      %1353 = vmatmul.f32.gmra.mxu0 %v365
      %v1354 = vpop.f32.mrf.mxu0
      %v1355 = vadd.f32 0.0, %v1354
      %1356 = vdwg.mxu0
      %v1357 = vadd.f32 %v1293, %v1329
      %v1358 = vadd.f32 %v1294, %v1352
      %v1359 = vadd.f32 %v1295, %v1332
      %v1360 = vadd.f32 %v1296, %v1355
      %v1361 = vadd.f32 %v1357, %v420
      %v1362 = vadd.f32 %v1358, %v420
      %v1363 = vadd.f32 %v1359, %v425
      %v1364 = vadd.f32 %v1360, %v425
      %v1365 = vmax.f32 %v1361, 0.0
      %v1366 = vmax.f32 %v1362, 0.0
      %v1367 = vmax.f32 %v1363, 0.0
      %v1368 = vmax.f32 %v1364, 0.0
      %v1369 = vmax.f32 %v1055, %v1365
      %v1370 = vmax.f32 %v1056, %v1366
      %v1371 = vmax.f32 %v1057, %v1367
      %v1372 = vmax.f32 %v1058, %v1368
      %1377 = vrot.lane.b32.xlu0 %v745, 120
      %v1378 = vpop.permute.xlu0 %1377
      %1379 = vrot.lane.b32.xlu0 %v746, 120
      %v1380 = vpop.permute.xlu0 %1379
      %1381 = vrot.lane.b32.xlu0 %v747, 120
      %v1382 = vpop.permute.xlu0 %1381
      %1383 = vrot.lane.b32.xlu0 %v748, 120
      %v1384 = vpop.permute.xlu0 %1383
      %v1385 = vsel %vm83, %v1378, %v1380
      %v1386 = vsel %vm83, %v1382, %v1384
      %v1391 = vmax.f32 %v745, %v1385
      %v1392 = vmax.f32 %v746, %v1380
      %v1393 = vmax.f32 %v747, %v1386
      %v1394 = vmax.f32 %v748, %v1384
      %1395 = vst [vmem:[#allocation2] sm:$0xff] %v1391
      %vm1396 = vcmask 195584
      %1397 = vst.msk [vmem:[#allocation2 + $0x8] sm:$0xff] %vm1396, %v1392
      %1398 = vst [vmem:[#allocation2 + $0x10] sm:$0xff] %v1393
      %1399 = vst.msk [vmem:[#allocation2 + $0x18] sm:$0xff] %vm1396, %v1394
      %1404 = vrot.lane.b32.xlu0 %v1391, 112
      %v1405 = vpop.permute.xlu0 %1404
      %1406 = vrot.lane.b32.xlu0 %v1392, 112
      %v1407 = vpop.permute.xlu0 %1406
      %1408 = vrot.lane.b32.xlu0 %v1393, 112
      %v1409 = vpop.permute.xlu0 %1408
      %1410 = vrot.lane.b32.xlu0 %v1394, 112
      %v1411 = vpop.permute.xlu0 %1410
      %v1412 = vsel %vm206, %v1405, %v1407
      %v1413 = vsel %vm206, %v1409, %v1411
      %1418 = vst [vmem:[#allocation2 + $0x20] sm:$0xff] %v1412
      %1419 = vst.msk [vmem:[#allocation2 + $0x28] sm:$0xff] %vm1396, %v1407
      %1420 = vst [vmem:[#allocation2 + $0x30] sm:$0xff] %v1413
      %1421 = vst.msk [vmem:[#allocation2 + $0x38] sm:$0xff] %vm1396, %v1411
      %1422 = vrot.lane.b32.xlu0 %v1391, 96
      %v1423 = vpop.permute.xlu0 %1422
      %1424 = vrot.lane.b32.xlu0 %v1392, 96
      %v1425 = vpop.permute.xlu0 %1424
      %1426 = vrot.lane.b32.xlu0 %v1393, 96
      %v1427 = vpop.permute.xlu0 %1426
      %1428 = vrot.lane.b32.xlu0 %v1394, 96
      %v1429 = vpop.permute.xlu0 %1428
      %v1430 = vsel %vm354, %v1423, %v1425
      %v1431 = vsel %vm354, %v1427, %v1429
      %1436 = vst [vmem:[#allocation2 + $0x40] sm:$0xff] %v1430
      %1437 = vst.msk [vmem:[#allocation2 + $0x48] sm:$0xff] %vm1396, %v1425
      %1438 = vst [vmem:[#allocation2 + $0x50] sm:$0xff] %v1431
      %1439 = vst.msk [vmem:[#allocation2 + $0x58] sm:$0xff] %vm1396, %v1429
      %1440 = vrot.lane.b32.xlu0 %v1391, 80
      %v1441 = vpop.permute.xlu0 %1440
      %1442 = vrot.lane.b32.xlu0 %v1392, 80
      %v1443 = vpop.permute.xlu0 %1442
      %1444 = vrot.lane.b32.xlu0 %v1393, 80
      %v1445 = vpop.permute.xlu0 %1444
      %1446 = vrot.lane.b32.xlu0 %v1394, 80
      %v1447 = vpop.permute.xlu0 %1446
      %vm1448 = vcmask 654336
      %v1449 = vsel %vm1448, %v1441, %v1443
      %v1450 = vsel %vm1448, %v1445, %v1447
      %1455 = vst [vmem:[#allocation2 + $0x60] sm:$0xff] %v1449
      %1456 = vst.msk [vmem:[#allocation2 + $0x68] sm:$0xff] %vm1396, %v1443
      %1457 = vst [vmem:[#allocation2 + $0x70] sm:$0xff] %v1450
      %1458 = vst.msk [vmem:[#allocation2 + $0x78] sm:$0xff] %vm1396, %v1447
      %1459 = vrot.lane.b32.xlu0 %v1391, 64
      %v1460 = vpop.permute.xlu0 %1459
      %1461 = vrot.lane.b32.xlu0 %v1392, 64
      %v1462 = vpop.permute.xlu0 %1461
      %1463 = vrot.lane.b32.xlu0 %v1393, 64
      %v1464 = vpop.permute.xlu0 %1463
      %1465 = vrot.lane.b32.xlu0 %v1394, 64
      %v1466 = vpop.permute.xlu0 %1465
      %vm1467 = vcmask 523264
      %v1468 = vsel %vm1467, %v1460, %v1462
      %v1469 = vsel %vm1467, %v1464, %v1466
      %1474 = vst [vmem:[#allocation2 + $0x80] sm:$0xff] %v1468
      %1475 = vst.msk [vmem:[#allocation2 + $0x88] sm:$0xff] %vm1396, %v1462
      %1476 = vst [vmem:[#allocation2 + $0x90] sm:$0xff] %v1469
      %1477 = vst.msk [vmem:[#allocation2 + $0x98] sm:$0xff] %vm1396, %v1466
      %1482 = vrot.lane.b32.xlu0 %v1369, 120
      %v1483 = vpop.permute.xlu0 %1482
      %1484 = vrot.lane.b32.xlu0 %v1370, 120
      %v1485 = vpop.permute.xlu0 %1484
      %1486 = vrot.lane.b32.xlu0 %v1371, 120
      %v1487 = vpop.permute.xlu0 %1486
      %1488 = vrot.lane.b32.xlu0 %v1372, 120
      %v1489 = vpop.permute.xlu0 %1488
      %v1490 = vsel %vm83, %v1483, %v1485
      %v1491 = vsel %vm83, %v1487, %v1489
      %v1496 = vmax.f32 %v1369, %v1490
      %v1497 = vmax.f32 %v1370, %v1485
      %v1498 = vmax.f32 %v1371, %v1491
      %v1499 = vmax.f32 %v1372, %v1489
      %s1500 = scalar_lea.vmem [#allocation2], 160
      %1501 = vst [vmem:[%s1500] sm:$0xff] %v1496
      %1502 = vst.msk [vmem:[%s1500 + $0x8] sm:$0xff] %vm1396, %v1497
      %1503 = vst [vmem:[%s1500 + $0x10] sm:$0xff] %v1498
      %1504 = vst.msk [vmem:[%s1500 + $0x18] sm:$0xff] %vm1396, %v1499
      %1509 = vrot.lane.b32.xlu0 %v1496, 112
      %v1510 = vpop.permute.xlu0 %1509
      %1511 = vrot.lane.b32.xlu0 %v1497, 112
      %v1512 = vpop.permute.xlu0 %1511
      %1513 = vrot.lane.b32.xlu0 %v1498, 112
      %v1514 = vpop.permute.xlu0 %1513
      %1515 = vrot.lane.b32.xlu0 %v1499, 112
      %v1516 = vpop.permute.xlu0 %1515
      %v1517 = vsel %vm206, %v1510, %v1512
      %v1518 = vsel %vm206, %v1514, %v1516
      %1523 = vst [vmem:[%s1500 + $0x20] sm:$0xff] %v1517
      %1524 = vst.msk [vmem:[%s1500 + $0x28] sm:$0xff] %vm1396, %v1512
      %1525 = vst [vmem:[%s1500 + $0x30] sm:$0xff] %v1518
      %1526 = vst.msk [vmem:[%s1500 + $0x38] sm:$0xff] %vm1396, %v1516
      %1527 = vrot.lane.b32.xlu0 %v1496, 96
      %v1528 = vpop.permute.xlu0 %1527
      %1529 = vrot.lane.b32.xlu0 %v1497, 96
      %v1530 = vpop.permute.xlu0 %1529
      %1531 = vrot.lane.b32.xlu0 %v1498, 96
      %v1532 = vpop.permute.xlu0 %1531
      %1533 = vrot.lane.b32.xlu0 %v1499, 96
      %v1534 = vpop.permute.xlu0 %1533
      %v1535 = vsel %vm354, %v1528, %v1530
      %v1536 = vsel %vm354, %v1532, %v1534
      %1541 = vst [vmem:[%s1500 + $0x40] sm:$0xff] %v1535
      %1542 = vst.msk [vmem:[%s1500 + $0x48] sm:$0xff] %vm1396, %v1530
      %1543 = vst [vmem:[%s1500 + $0x50] sm:$0xff] %v1536
      %1544 = vst.msk [vmem:[%s1500 + $0x58] sm:$0xff] %vm1396, %v1534
      %1545 = vrot.lane.b32.xlu0 %v1496, 80
      %v1546 = vpop.permute.xlu0 %1545
      %1547 = vrot.lane.b32.xlu0 %v1497, 80
      %v1548 = vpop.permute.xlu0 %1547
      %1549 = vrot.lane.b32.xlu0 %v1498, 80
      %v1550 = vpop.permute.xlu0 %1549
      %1551 = vrot.lane.b32.xlu0 %v1499, 80
      %v1552 = vpop.permute.xlu0 %1551
      %v1553 = vsel %vm1448, %v1546, %v1548
      %v1554 = vsel %vm1448, %v1550, %v1552
      %1559 = vst [vmem:[%s1500 + $0x60] sm:$0xff] %v1553
      %1560 = vst.msk [vmem:[%s1500 + $0x68] sm:$0xff] %vm1396, %v1548
      %1561 = vst [vmem:[%s1500 + $0x70] sm:$0xff] %v1554
      %1562 = vst.msk [vmem:[%s1500 + $0x78] sm:$0xff] %vm1396, %v1552
      %1563 = vrot.lane.b32.xlu0 %v1496, 64
      %v1564 = vpop.permute.xlu0 %1563
      %1565 = vrot.lane.b32.xlu0 %v1497, 64
      %v1566 = vpop.permute.xlu0 %1565
      %1567 = vrot.lane.b32.xlu0 %v1498, 64
      %v1568 = vpop.permute.xlu0 %1567
      %1569 = vrot.lane.b32.xlu0 %v1499, 64
      %v1570 = vpop.permute.xlu0 %1569
      %v1571 = vsel %vm1467, %v1564, %v1566
      %v1572 = vsel %vm1467, %v1568, %v1570
      %1577 = vst [vmem:[%s1500 + $0x80] sm:$0xff] %v1571
      %1578 = vst.msk [vmem:[%s1500 + $0x88] sm:$0xff] %vm1396, %v1566
      %1579 = vst [vmem:[%s1500 + $0x90] sm:$0xff] %v1572
      %1580 = vst.msk [vmem:[%s1500 + $0x98] sm:$0xff] %vm1396, %v1570
      %v1581 = vld [vmem:[%s4] sm:$0xff]
      %v1582 = vld [vmem:[%s4 + $0x8] sm:$0xff]
      %v1583 = vld [vmem:[%s4 + $0x10] sm:$0xff]
      %v1584 = vld [vmem:[%s4 + $0x18] sm:$0xff]
      %v1585 = vld [vmem:[%s3] sm:$0xff]
      %v1586 = vld [vmem:[%s3 + $0x8] sm:$0xff]
      %v1587 = vld [vmem:[%s3 + $0x10] sm:$0xff]
      %v1588 = vld [vmem:[%s3 + $0x18] sm:$0xff]
      %v1589 = vld [vmem:[#allocation2] sm:$0xff]
      %v1590 = vld [vmem:[#allocation2 + $0x8] sm:$0xff]
      %v1591 = vld [vmem:[#allocation2 + $0x10] sm:$0xff]
      %v1592 = vld [vmem:[#allocation2 + $0x18] sm:$0xff]
      %v1593 = vld [vmem:[#allocation2 + $0x20] sm:$0xff]
      %v1594 = vld [vmem:[#allocation2 + $0x28] sm:$0xff]
      %v1595 = vld [vmem:[#allocation2 + $0x30] sm:$0xff]
      %v1596 = vld [vmem:[#allocation2 + $0x38] sm:$0xff]
      %v1597 = vld [vmem:[#allocation2 + $0x40] sm:$0xff]
      %v1598 = vld [vmem:[#allocation2 + $0x48] sm:$0xff]
      %v1599 = vld [vmem:[#allocation2 + $0x50] sm:$0xff]
      %v1600 = vld [vmem:[#allocation2 + $0x58] sm:$0xff]
      %v1601 = vld [vmem:[#allocation2 + $0x60] sm:$0xff]
      %v1602 = vld [vmem:[#allocation2 + $0x68] sm:$0xff]
      %v1603 = vld [vmem:[#allocation2 + $0x70] sm:$0xff]
      %v1604 = vld [vmem:[#allocation2 + $0x78] sm:$0xff]
      %v1605 = vld [vmem:[#allocation2 + $0x80] sm:$0xff]
      %v1606 = vld [vmem:[#allocation2 + $0x88] sm:$0xff]
      %v1607 = vld [vmem:[#allocation2 + $0x90] sm:$0xff]
      %v1608 = vld [vmem:[#allocation2 + $0x98] sm:$0xff]
      %s1609 = scalar_lea.vmem %s3, 32
      %v1610 = vld [vmem:[%s1609] sm:$0xff]
      %v1611 = vld [vmem:[%s1609 + $0x8] sm:$0xff]
      %v1612 = vld [vmem:[%s1609 + $0x10] sm:$0xff]
      %v1613 = vld [vmem:[%s1609 + $0x18] sm:$0xff]
      %v1614 = vld [vmem:[%s1500] sm:$0xff]
      %v1615 = vld [vmem:[%s1500 + $0x8] sm:$0xff]
      %v1616 = vld [vmem:[%s1500 + $0x10] sm:$0xff]
      %v1617 = vld [vmem:[%s1500 + $0x18] sm:$0xff]
      %v1618 = vld [vmem:[%s1500 + $0x20] sm:$0xff]
      %v1619 = vld [vmem:[%s1500 + $0x28] sm:$0xff]
      %v1620 = vld [vmem:[%s1500 + $0x30] sm:$0xff]
      %v1621 = vld [vmem:[%s1500 + $0x38] sm:$0xff]
      %v1622 = vld [vmem:[%s1500 + $0x40] sm:$0xff]
      %v1623 = vld [vmem:[%s1500 + $0x48] sm:$0xff]
      %v1624 = vld [vmem:[%s1500 + $0x50] sm:$0xff]
      %v1625 = vld [vmem:[%s1500 + $0x58] sm:$0xff]
      %v1626 = vld [vmem:[%s1500 + $0x60] sm:$0xff]
      %v1627 = vld [vmem:[%s1500 + $0x68] sm:$0xff]
      %v1628 = vld [vmem:[%s1500 + $0x70] sm:$0xff]
      %v1629 = vld [vmem:[%s1500 + $0x78] sm:$0xff]
      %v1630 = vld [vmem:[%s1500 + $0x80] sm:$0xff]
      %v1631 = vld [vmem:[%s1500 + $0x88] sm:$0xff]
      %v1632 = vld [vmem:[%s1500 + $0x90] sm:$0xff]
      %v1633 = vld [vmem:[%s1500 + $0x98] sm:$0xff]
      %v1635 = vsel %vm1448, %v1610, 0
      %v1638 = vsel %vm1448, %v1611, 0
      %v1641 = vsel %vm1448, %v1612, 0
      %v1644 = vsel %vm1448, %v1613, 0
      %1646 = vmatpush.msra.mxu0 0.0
      %1647 = vmatpush.msra.mxu0 0.0
      %1648 = vmatpush.msra.mxu0 0.0
      %1649 = vmatpush.msra.mxu0 0.0
      %1650 = vmatpush.msra.mxu0 0.0
      %1651 = vmatpush.msra.mxu0 0.0
      %1652 = vmatpush.msra.mxu0 %v1632
      %1653 = vmatpush.msra.mxu0 %v1630
      %1654 = vmatpush.msra.mxu0 %v1628
      %1655 = vmatpush.msra.mxu0 %v1626
      %1656 = vmatpush.msra.mxu0 %v1624
      %1657 = vmatpush.msra.mxu0 %v1622
      %1658 = vmatpush.msra.mxu0 %v1620
      %1659 = vmatpush.msra.mxu0 %v1618
      %1660 = vmatpush.msra.mxu0 %v1616
      %1661 = vmatpush.msra.mxu0 %v1614
      %1662 = vmatmul.f32.gmra.mxu0 %v1635
      %v1663 = vpop.f32.mrf.mxu0
      %v1664 = vadd.f32 0.0, %v1663
      %1665 = vmatmul.f32.gmra.mxu0 %v1638
      %v1666 = vpop.f32.mrf.mxu0
      %v1667 = vadd.f32 0.0, %v1666
      %1668 = vmatmul.f32.gmra.mxu0 %v1641
      %v1669 = vpop.f32.mrf.mxu0
      %v1670 = vadd.f32 0.0, %v1669
      %1671 = vmatmul.f32.gmra.mxu0 %v1644
      %v1672 = vpop.f32.mrf.mxu0
      %v1673 = vadd.f32 0.0, %v1672
      %1674 = vdwg.mxu0
      %1675 = vmatpush.msra.mxu0 0.0
      %1676 = vmatpush.msra.mxu0 0.0
      %1677 = vmatpush.msra.mxu0 0.0
      %1678 = vmatpush.msra.mxu0 0.0
      %1679 = vmatpush.msra.mxu0 0.0
      %1680 = vmatpush.msra.mxu0 0.0
      %1681 = vmatpush.msra.mxu0 %v1633
      %1682 = vmatpush.msra.mxu0 %v1631
      %1683 = vmatpush.msra.mxu0 %v1629
      %1684 = vmatpush.msra.mxu0 %v1627
      %1685 = vmatpush.msra.mxu0 %v1625
      %1686 = vmatpush.msra.mxu0 %v1623
      %1687 = vmatpush.msra.mxu0 %v1621
      %1688 = vmatpush.msra.mxu0 %v1619
      %1689 = vmatpush.msra.mxu0 %v1617
      %1690 = vmatpush.msra.mxu0 %v1615
      %1691 = vmatmul.f32.gmra.mxu0 %v1635
      %v1692 = vpop.f32.mrf.mxu0
      %v1693 = vadd.f32 0.0, %v1692
      %1694 = vmatmul.f32.gmra.mxu0 %v1638
      %v1695 = vpop.f32.mrf.mxu0
      %v1696 = vadd.f32 0.0, %v1695
      %1697 = vmatmul.f32.gmra.mxu0 %v1641
      %v1698 = vpop.f32.mrf.mxu0
      %v1699 = vadd.f32 0.0, %v1698
      %1700 = vmatmul.f32.gmra.mxu0 %v1644
      %v1701 = vpop.f32.mrf.mxu0
      %v1702 = vadd.f32 0.0, %v1701
      %1703 = vdwg.mxu0
      %v1705 = vsel %vm1448, %v1585, 0
      %v1708 = vsel %vm1448, %v1586, 0
      %v1711 = vsel %vm1448, %v1587, 0
      %v1714 = vsel %vm1448, %v1588, 0
      %1716 = vmatpush.msra.mxu0 0.0
      %1717 = vmatpush.msra.mxu0 0.0
      %1718 = vmatpush.msra.mxu0 0.0
      %1719 = vmatpush.msra.mxu0 0.0
      %1720 = vmatpush.msra.mxu0 0.0
      %1721 = vmatpush.msra.mxu0 0.0
      %1722 = vmatpush.msra.mxu0 %v1607
      %1723 = vmatpush.msra.mxu0 %v1605
      %1724 = vmatpush.msra.mxu0 %v1603
      %1725 = vmatpush.msra.mxu0 %v1601
      %1726 = vmatpush.msra.mxu0 %v1599
      %1727 = vmatpush.msra.mxu0 %v1597
      %1728 = vmatpush.msra.mxu0 %v1595
      %1729 = vmatpush.msra.mxu0 %v1593
      %1730 = vmatpush.msra.mxu0 %v1591
      %1731 = vmatpush.msra.mxu0 %v1589
      %1732 = vmatmul.f32.gmra.mxu0 %v1705
      %v1733 = vpop.f32.mrf.mxu0
      %v1734 = vadd.f32 %v1664, %v1733
      %1735 = vmatmul.f32.gmra.mxu0 %v1708
      %v1736 = vpop.f32.mrf.mxu0
      %v1737 = vadd.f32 %v1667, %v1736
      %1738 = vmatmul.f32.gmra.mxu0 %v1711
      %v1739 = vpop.f32.mrf.mxu0
      %v1740 = vadd.f32 %v1670, %v1739
      %1741 = vmatmul.f32.gmra.mxu0 %v1714
      %v1742 = vpop.f32.mrf.mxu0
      %v1743 = vadd.f32 %v1673, %v1742
      %1744 = vdwg.mxu0
      %1745 = vmatpush.msra.mxu0 0.0
      %1746 = vmatpush.msra.mxu0 0.0
      %1747 = vmatpush.msra.mxu0 0.0
      %1748 = vmatpush.msra.mxu0 0.0
      %1749 = vmatpush.msra.mxu0 0.0
      %1750 = vmatpush.msra.mxu0 0.0
      %1751 = vmatpush.msra.mxu0 %v1608
      %1752 = vmatpush.msra.mxu0 %v1606
      %1753 = vmatpush.msra.mxu0 %v1604
      %1754 = vmatpush.msra.mxu0 %v1602
      %1755 = vmatpush.msra.mxu0 %v1600
      %1756 = vmatpush.msra.mxu0 %v1598
      %1757 = vmatpush.msra.mxu0 %v1596
      %1758 = vmatpush.msra.mxu0 %v1594
      %1759 = vmatpush.msra.mxu0 %v1592
      %1760 = vmatpush.msra.mxu0 %v1590
      %1761 = vmatmul.f32.gmra.mxu0 %v1705
      %v1762 = vpop.f32.mrf.mxu0
      %v1763 = vadd.f32 %v1693, %v1762
      %1764 = vmatmul.f32.gmra.mxu0 %v1708
      %v1765 = vpop.f32.mrf.mxu0
      %v1766 = vadd.f32 %v1696, %v1765
      %1767 = vmatmul.f32.gmra.mxu0 %v1711
      %v1768 = vpop.f32.mrf.mxu0
      %v1769 = vadd.f32 %v1699, %v1768
      %1770 = vmatmul.f32.gmra.mxu0 %v1714
      %v1771 = vpop.f32.mrf.mxu0
      %v1772 = vadd.f32 %v1702, %v1771
      %1773 = vdwg.mxu0
      %s1774 = scalar_lea.vmem %s3, 64
      %v1775 = vld [vmem:[%s1774] sm:$0xff]
      %v1776 = vld [vmem:[%s1774 + $0x8] sm:$0xff]
      %v1777 = vld [vmem:[%s1774 + $0x10] sm:$0xff]
      %v1778 = vld [vmem:[%s1774 + $0x18] sm:$0xff]
      %1799 = vrot.lane.b32.xlu0 %v1589, 127
      %v1800 = vpop.permute.xlu0 %1799
      %1801 = vrot.lane.b32.xlu0 %v1590, 127
      %v1802 = vpop.permute.xlu0 %1801
      %1803 = vrot.lane.b32.xlu0 %v1591, 127
      %v1804 = vpop.permute.xlu0 %1803
      %1805 = vrot.lane.b32.xlu0 %v1592, 127
      %v1806 = vpop.permute.xlu0 %1805
      %1807 = vrot.lane.b32.xlu0 %v1593, 127
      %v1808 = vpop.permute.xlu0 %1807
      %1809 = vrot.lane.b32.xlu0 %v1594, 127
      %v1810 = vpop.permute.xlu0 %1809
      %1811 = vrot.lane.b32.xlu0 %v1595, 127
      %v1812 = vpop.permute.xlu0 %1811
      %1813 = vrot.lane.b32.xlu0 %v1596, 127
      %v1814 = vpop.permute.xlu0 %1813
      %1815 = vrot.lane.b32.xlu0 %v1597, 127
      %v1816 = vpop.permute.xlu0 %1815
      %1817 = vrot.lane.b32.xlu0 %v1598, 127
      %v1818 = vpop.permute.xlu0 %1817
      %1819 = vrot.lane.b32.xlu0 %v1599, 127
      %v1820 = vpop.permute.xlu0 %1819
      %1821 = vrot.lane.b32.xlu0 %v1600, 127
      %v1822 = vpop.permute.xlu0 %1821
      %1823 = vrot.lane.b32.xlu0 %v1601, 127
      %v1824 = vpop.permute.xlu0 %1823
      %1825 = vrot.lane.b32.xlu0 %v1602, 127
      %v1826 = vpop.permute.xlu0 %1825
      %1827 = vrot.lane.b32.xlu0 %v1603, 127
      %v1828 = vpop.permute.xlu0 %1827
      %1829 = vrot.lane.b32.xlu0 %v1604, 127
      %v1830 = vpop.permute.xlu0 %1829
      %1831 = vrot.lane.b32.xlu0 %v1605, 127
      %v1832 = vpop.permute.xlu0 %1831
      %1833 = vrot.lane.b32.xlu0 %v1606, 127
      %v1834 = vpop.permute.xlu0 %1833
      %1835 = vrot.lane.b32.xlu0 %v1607, 127
      %v1836 = vpop.permute.xlu0 %1835
      %1837 = vrot.lane.b32.xlu0 %v1608, 127
      %v1838 = vpop.permute.xlu0 %1837
      %vm1839 = vcmask 1039360
      %v1840 = vsel %vm1839, %v1800, %v1802
      %v1841 = vsel %vm1839, %v1804, %v1806
      %v1842 = vsel %vm1839, %v1808, %v1810
      %v1843 = vsel %vm1839, %v1812, %v1814
      %v1844 = vsel %vm1839, %v1816, %v1818
      %v1845 = vsel %vm1839, %v1820, %v1822
      %v1846 = vsel %vm1839, %v1824, %v1826
      %v1847 = vsel %vm1839, %v1828, %v1830
      %v1848 = vsel %vm1839, %v1832, %v1834
      %v1849 = vsel %vm1839, %v1836, %v1838
      %v1871 = vsel %vm1448, %v1775, 0
      %v1874 = vsel %vm1448, %v1776, 0
      %v1877 = vsel %vm1448, %v1777, 0
      %v1880 = vsel %vm1448, %v1778, 0
      %1882 = vmatpush.msra.mxu0 0.0
      %1883 = vmatpush.msra.mxu0 0.0
      %1884 = vmatpush.msra.mxu0 0.0
      %1885 = vmatpush.msra.mxu0 0.0
      %1886 = vmatpush.msra.mxu0 0.0
      %1887 = vmatpush.msra.mxu0 0.0
      %1888 = vmatpush.msra.mxu0 %v1849
      %1889 = vmatpush.msra.mxu0 %v1848
      %1890 = vmatpush.msra.mxu0 %v1847
      %1891 = vmatpush.msra.mxu0 %v1846
      %1892 = vmatpush.msra.mxu0 %v1845
      %1893 = vmatpush.msra.mxu0 %v1844
      %1894 = vmatpush.msra.mxu0 %v1843
      %1895 = vmatpush.msra.mxu0 %v1842
      %1896 = vmatpush.msra.mxu0 %v1841
      %1897 = vmatpush.msra.mxu0 %v1840
      %1898 = vmatmul.f32.gmra.mxu0 %v1871
      %v1899 = vpop.f32.mrf.mxu0
      %v1900 = vadd.f32 0.0, %v1899
      %1901 = vmatmul.f32.gmra.mxu0 %v1874
      %v1902 = vpop.f32.mrf.mxu0
      %v1903 = vadd.f32 0.0, %v1902
      %1904 = vmatmul.f32.gmra.mxu0 %v1877
      %v1905 = vpop.f32.mrf.mxu0
      %v1906 = vadd.f32 0.0, %v1905
      %1907 = vmatmul.f32.gmra.mxu0 %v1880
      %v1908 = vpop.f32.mrf.mxu0
      %v1909 = vadd.f32 0.0, %v1908
      %1910 = vdwg.mxu0
      %1911 = vmatpush.msra.mxu0 0.0
      %1912 = vmatpush.msra.mxu0 0.0
      %1913 = vmatpush.msra.mxu0 0.0
      %1914 = vmatpush.msra.mxu0 0.0
      %1915 = vmatpush.msra.mxu0 0.0
      %1916 = vmatpush.msra.mxu0 0.0
      %1917 = vmatpush.msra.mxu0 %v1838
      %1918 = vmatpush.msra.mxu0 %v1834
      %1919 = vmatpush.msra.mxu0 %v1830
      %1920 = vmatpush.msra.mxu0 %v1826
      %1921 = vmatpush.msra.mxu0 %v1822
      %1922 = vmatpush.msra.mxu0 %v1818
      %1923 = vmatpush.msra.mxu0 %v1814
      %1924 = vmatpush.msra.mxu0 %v1810
      %1925 = vmatpush.msra.mxu0 %v1806
      %1926 = vmatpush.msra.mxu0 %v1802
      %1927 = vmatmul.f32.gmra.mxu0 %v1871
      %v1928 = vpop.f32.mrf.mxu0
      %v1929 = vadd.f32 0.0, %v1928
      %1930 = vmatmul.f32.gmra.mxu0 %v1874
      %v1931 = vpop.f32.mrf.mxu0
      %v1932 = vadd.f32 0.0, %v1931
      %1933 = vmatmul.f32.gmra.mxu0 %v1877
      %v1934 = vpop.f32.mrf.mxu0
      %v1935 = vadd.f32 0.0, %v1934
      %1936 = vmatmul.f32.gmra.mxu0 %v1880
      %v1937 = vpop.f32.mrf.mxu0
      %v1938 = vadd.f32 0.0, %v1937
      %1939 = vdwg.mxu0
      %v1940 = vadd.f32 %v1734, %v1900
      %v1941 = vadd.f32 %v1763, %v1929
      %v1942 = vadd.f32 %v1737, %v1903
      %v1943 = vadd.f32 %v1766, %v1932
      %v1944 = vadd.f32 %v1740, %v1906
      %v1945 = vadd.f32 %v1769, %v1935
      %v1946 = vadd.f32 %v1743, %v1909
      %v1947 = vadd.f32 %v1772, %v1938
      %s1948 = scalar_lea.vmem %s3, 96
      %v1949 = vld [vmem:[%s1948] sm:$0xff]
      %v1950 = vld [vmem:[%s1948 + $0x8] sm:$0xff]
      %v1951 = vld [vmem:[%s1948 + $0x10] sm:$0xff]
      %v1952 = vld [vmem:[%s1948 + $0x18] sm:$0xff]
      %1973 = vrot.lane.b32.xlu0 %v1614, 127
      %v1974 = vpop.permute.xlu0 %1973
      %1975 = vrot.lane.b32.xlu0 %v1615, 127
      %v1976 = vpop.permute.xlu0 %1975
      %1977 = vrot.lane.b32.xlu0 %v1616, 127
      %v1978 = vpop.permute.xlu0 %1977
      %1979 = vrot.lane.b32.xlu0 %v1617, 127
      %v1980 = vpop.permute.xlu0 %1979
      %1981 = vrot.lane.b32.xlu0 %v1618, 127
      %v1982 = vpop.permute.xlu0 %1981
      %1983 = vrot.lane.b32.xlu0 %v1619, 127
      %v1984 = vpop.permute.xlu0 %1983
      %1985 = vrot.lane.b32.xlu0 %v1620, 127
      %v1986 = vpop.permute.xlu0 %1985
      %1987 = vrot.lane.b32.xlu0 %v1621, 127
      %v1988 = vpop.permute.xlu0 %1987
      %1989 = vrot.lane.b32.xlu0 %v1622, 127
      %v1990 = vpop.permute.xlu0 %1989
      %1991 = vrot.lane.b32.xlu0 %v1623, 127
      %v1992 = vpop.permute.xlu0 %1991
      %1993 = vrot.lane.b32.xlu0 %v1624, 127
      %v1994 = vpop.permute.xlu0 %1993
      %1995 = vrot.lane.b32.xlu0 %v1625, 127
      %v1996 = vpop.permute.xlu0 %1995
      %1997 = vrot.lane.b32.xlu0 %v1626, 127
      %v1998 = vpop.permute.xlu0 %1997
      %1999 = vrot.lane.b32.xlu0 %v1627, 127
      %v2000 = vpop.permute.xlu0 %1999
      %2001 = vrot.lane.b32.xlu0 %v1628, 127
      %v2002 = vpop.permute.xlu0 %2001
      %2003 = vrot.lane.b32.xlu0 %v1629, 127
      %v2004 = vpop.permute.xlu0 %2003
      %2005 = vrot.lane.b32.xlu0 %v1630, 127
      %v2006 = vpop.permute.xlu0 %2005
      %2007 = vrot.lane.b32.xlu0 %v1631, 127
      %v2008 = vpop.permute.xlu0 %2007
      %2009 = vrot.lane.b32.xlu0 %v1632, 127
      %v2010 = vpop.permute.xlu0 %2009
      %2011 = vrot.lane.b32.xlu0 %v1633, 127
      %v2012 = vpop.permute.xlu0 %2011
      %v2013 = vsel %vm1839, %v1974, %v1976
      %v2014 = vsel %vm1839, %v1978, %v1980
      %v2015 = vsel %vm1839, %v1982, %v1984
      %v2016 = vsel %vm1839, %v1986, %v1988
      %v2017 = vsel %vm1839, %v1990, %v1992
      %v2018 = vsel %vm1839, %v1994, %v1996
      %v2019 = vsel %vm1839, %v1998, %v2000
      %v2020 = vsel %vm1839, %v2002, %v2004
      %v2021 = vsel %vm1839, %v2006, %v2008
      %v2022 = vsel %vm1839, %v2010, %v2012
      %v2044 = vsel %vm1448, %v1949, 0
      %v2047 = vsel %vm1448, %v1950, 0
      %v2050 = vsel %vm1448, %v1951, 0
      %v2053 = vsel %vm1448, %v1952, 0
      %2055 = vmatpush.msra.mxu0 0.0
      %2056 = vmatpush.msra.mxu0 0.0
      %2057 = vmatpush.msra.mxu0 0.0
      %2058 = vmatpush.msra.mxu0 0.0
      %2059 = vmatpush.msra.mxu0 0.0
      %2060 = vmatpush.msra.mxu0 0.0
      %2061 = vmatpush.msra.mxu0 %v2022
      %2062 = vmatpush.msra.mxu0 %v2021
      %2063 = vmatpush.msra.mxu0 %v2020
      %2064 = vmatpush.msra.mxu0 %v2019
      %2065 = vmatpush.msra.mxu0 %v2018
      %2066 = vmatpush.msra.mxu0 %v2017
      %2067 = vmatpush.msra.mxu0 %v2016
      %2068 = vmatpush.msra.mxu0 %v2015
      %2069 = vmatpush.msra.mxu0 %v2014
      %2070 = vmatpush.msra.mxu0 %v2013
      %2071 = vmatmul.f32.gmra.mxu0 %v2044
      %v2072 = vpop.f32.mrf.mxu0
      %v2073 = vadd.f32 0.0, %v2072
      %2074 = vmatmul.f32.gmra.mxu0 %v2047
      %v2075 = vpop.f32.mrf.mxu0
      %v2076 = vadd.f32 0.0, %v2075
      %2077 = vmatmul.f32.gmra.mxu0 %v2050
      %v2078 = vpop.f32.mrf.mxu0
      %v2079 = vadd.f32 0.0, %v2078
      %2080 = vmatmul.f32.gmra.mxu0 %v2053
      %v2081 = vpop.f32.mrf.mxu0
      %v2082 = vadd.f32 0.0, %v2081
      %2083 = vdwg.mxu0
      %2084 = vmatpush.msra.mxu0 0.0
      %2085 = vmatpush.msra.mxu0 0.0
      %2086 = vmatpush.msra.mxu0 0.0
      %2087 = vmatpush.msra.mxu0 0.0
      %2088 = vmatpush.msra.mxu0 0.0
      %2089 = vmatpush.msra.mxu0 0.0
      %2090 = vmatpush.msra.mxu0 %v2012
      %2091 = vmatpush.msra.mxu0 %v2008
      %2092 = vmatpush.msra.mxu0 %v2004
      %2093 = vmatpush.msra.mxu0 %v2000
      %2094 = vmatpush.msra.mxu0 %v1996
      %2095 = vmatpush.msra.mxu0 %v1992
      %2096 = vmatpush.msra.mxu0 %v1988
      %2097 = vmatpush.msra.mxu0 %v1984
      %2098 = vmatpush.msra.mxu0 %v1980
      %2099 = vmatpush.msra.mxu0 %v1976
      %2100 = vmatmul.f32.gmra.mxu0 %v2044
      %v2101 = vpop.f32.mrf.mxu0
      %v2102 = vadd.f32 0.0, %v2101
      %2103 = vmatmul.f32.gmra.mxu0 %v2047
      %v2104 = vpop.f32.mrf.mxu0
      %v2105 = vadd.f32 0.0, %v2104
      %2106 = vmatmul.f32.gmra.mxu0 %v2050
      %v2107 = vpop.f32.mrf.mxu0
      %v2108 = vadd.f32 0.0, %v2107
      %2109 = vmatmul.f32.gmra.mxu0 %v2053
      %v2110 = vpop.f32.mrf.mxu0
      %v2111 = vadd.f32 0.0, %v2110
      %2112 = vdwg.mxu0
      %v2113 = vadd.f32 %v1940, %v2073
      %v2114 = vadd.f32 %v1941, %v2102
      %v2115 = vadd.f32 %v1942, %v2076
      %v2116 = vadd.f32 %v1943, %v2105
      %v2117 = vadd.f32 %v1944, %v2079
      %v2118 = vadd.f32 %v1945, %v2108
      %v2119 = vadd.f32 %v1946, %v2082
      %v2120 = vadd.f32 %v1947, %v2111
      %s2121 = scalar_lea.vmem %s3, 128
      %v2122 = vld [vmem:[%s2121] sm:$0xff]
      %v2123 = vld [vmem:[%s2121 + $0x8] sm:$0xff]
      %v2124 = vld [vmem:[%s2121 + $0x10] sm:$0xff]
      %v2125 = vld [vmem:[%s2121 + $0x18] sm:$0xff]
      %2126 = vrot.lane.b32.xlu0 %v1589, 126
      %v2127 = vpop.permute.xlu0 %2126
      %2128 = vrot.lane.b32.xlu0 %v1590, 126
      %v2129 = vpop.permute.xlu0 %2128
      %2130 = vrot.lane.b32.xlu0 %v1591, 126
      %v2131 = vpop.permute.xlu0 %2130
      %2132 = vrot.lane.b32.xlu0 %v1592, 126
      %v2133 = vpop.permute.xlu0 %2132
      %2134 = vrot.lane.b32.xlu0 %v1593, 126
      %v2135 = vpop.permute.xlu0 %2134
      %2136 = vrot.lane.b32.xlu0 %v1594, 126
      %v2137 = vpop.permute.xlu0 %2136
      %2138 = vrot.lane.b32.xlu0 %v1595, 126
      %v2139 = vpop.permute.xlu0 %2138
      %2140 = vrot.lane.b32.xlu0 %v1596, 126
      %v2141 = vpop.permute.xlu0 %2140
      %2142 = vrot.lane.b32.xlu0 %v1597, 126
      %v2143 = vpop.permute.xlu0 %2142
      %2144 = vrot.lane.b32.xlu0 %v1598, 126
      %v2145 = vpop.permute.xlu0 %2144
      %2146 = vrot.lane.b32.xlu0 %v1599, 126
      %v2147 = vpop.permute.xlu0 %2146
      %2148 = vrot.lane.b32.xlu0 %v1600, 126
      %v2149 = vpop.permute.xlu0 %2148
      %2150 = vrot.lane.b32.xlu0 %v1601, 126
      %v2151 = vpop.permute.xlu0 %2150
      %2152 = vrot.lane.b32.xlu0 %v1602, 126
      %v2153 = vpop.permute.xlu0 %2152
      %2154 = vrot.lane.b32.xlu0 %v1603, 126
      %v2155 = vpop.permute.xlu0 %2154
      %2156 = vrot.lane.b32.xlu0 %v1604, 126
      %v2157 = vpop.permute.xlu0 %2156
      %2158 = vrot.lane.b32.xlu0 %v1605, 126
      %v2159 = vpop.permute.xlu0 %2158
      %2160 = vrot.lane.b32.xlu0 %v1606, 126
      %v2161 = vpop.permute.xlu0 %2160
      %2162 = vrot.lane.b32.xlu0 %v1607, 126
      %v2163 = vpop.permute.xlu0 %2162
      %2164 = vrot.lane.b32.xlu0 %v1608, 126
      %v2165 = vpop.permute.xlu0 %2164
      %vm2166 = vcmask 1031168
      %v2167 = vsel %vm2166, %v2127, %v2129
      %v2168 = vsel %vm2166, %v2131, %v2133
      %v2169 = vsel %vm2166, %v2135, %v2137
      %v2170 = vsel %vm2166, %v2139, %v2141
      %v2171 = vsel %vm2166, %v2143, %v2145
      %v2172 = vsel %vm2166, %v2147, %v2149
      %v2173 = vsel %vm2166, %v2151, %v2153
      %v2174 = vsel %vm2166, %v2155, %v2157
      %v2175 = vsel %vm2166, %v2159, %v2161
      %v2176 = vsel %vm2166, %v2163, %v2165
      %v2198 = vsel %vm1448, %v2122, 0
      %v2201 = vsel %vm1448, %v2123, 0
      %v2204 = vsel %vm1448, %v2124, 0
      %v2207 = vsel %vm1448, %v2125, 0
      %2209 = vmatpush.msra.mxu0 0.0
      %2210 = vmatpush.msra.mxu0 0.0
      %2211 = vmatpush.msra.mxu0 0.0
      %2212 = vmatpush.msra.mxu0 0.0
      %2213 = vmatpush.msra.mxu0 0.0
      %2214 = vmatpush.msra.mxu0 0.0
      %2215 = vmatpush.msra.mxu0 %v2176
      %2216 = vmatpush.msra.mxu0 %v2175
      %2217 = vmatpush.msra.mxu0 %v2174
      %2218 = vmatpush.msra.mxu0 %v2173
      %2219 = vmatpush.msra.mxu0 %v2172
      %2220 = vmatpush.msra.mxu0 %v2171
      %2221 = vmatpush.msra.mxu0 %v2170
      %2222 = vmatpush.msra.mxu0 %v2169
      %2223 = vmatpush.msra.mxu0 %v2168
      %2224 = vmatpush.msra.mxu0 %v2167
      %2225 = vmatmul.f32.gmra.mxu0 %v2198
      %v2226 = vpop.f32.mrf.mxu0
      %v2227 = vadd.f32 0.0, %v2226
      %2228 = vmatmul.f32.gmra.mxu0 %v2201
      %v2229 = vpop.f32.mrf.mxu0
      %v2230 = vadd.f32 0.0, %v2229
      %2231 = vmatmul.f32.gmra.mxu0 %v2204
      %v2232 = vpop.f32.mrf.mxu0
      %v2233 = vadd.f32 0.0, %v2232
      %2234 = vmatmul.f32.gmra.mxu0 %v2207
      %v2235 = vpop.f32.mrf.mxu0
      %v2236 = vadd.f32 0.0, %v2235
      %2237 = vdwg.mxu0
      %2238 = vmatpush.msra.mxu0 0.0
      %2239 = vmatpush.msra.mxu0 0.0
      %2240 = vmatpush.msra.mxu0 0.0
      %2241 = vmatpush.msra.mxu0 0.0
      %2242 = vmatpush.msra.mxu0 0.0
      %2243 = vmatpush.msra.mxu0 0.0
      %2244 = vmatpush.msra.mxu0 %v2165
      %2245 = vmatpush.msra.mxu0 %v2161
      %2246 = vmatpush.msra.mxu0 %v2157
      %2247 = vmatpush.msra.mxu0 %v2153
      %2248 = vmatpush.msra.mxu0 %v2149
      %2249 = vmatpush.msra.mxu0 %v2145
      %2250 = vmatpush.msra.mxu0 %v2141
      %2251 = vmatpush.msra.mxu0 %v2137
      %2252 = vmatpush.msra.mxu0 %v2133
      %2253 = vmatpush.msra.mxu0 %v2129
      %2254 = vmatmul.f32.gmra.mxu0 %v2198
      %v2255 = vpop.f32.mrf.mxu0
      %v2256 = vadd.f32 0.0, %v2255
      %2257 = vmatmul.f32.gmra.mxu0 %v2201
      %v2258 = vpop.f32.mrf.mxu0
      %v2259 = vadd.f32 0.0, %v2258
      %2260 = vmatmul.f32.gmra.mxu0 %v2204
      %v2261 = vpop.f32.mrf.mxu0
      %v2262 = vadd.f32 0.0, %v2261
      %2263 = vmatmul.f32.gmra.mxu0 %v2207
      %v2264 = vpop.f32.mrf.mxu0
      %v2265 = vadd.f32 0.0, %v2264
      %2266 = vdwg.mxu0
      %v2267 = vadd.f32 %v2113, %v2227
      %v2268 = vadd.f32 %v2114, %v2256
      %v2269 = vadd.f32 %v2115, %v2230
      %v2270 = vadd.f32 %v2116, %v2259
      %v2271 = vadd.f32 %v2117, %v2233
      %v2272 = vadd.f32 %v2118, %v2262
      %v2273 = vadd.f32 %v2119, %v2236
      %v2274 = vadd.f32 %v2120, %v2265
      %2276 = vset.pattern.permute.xlu0 0
      %2277 = vperm.xlu0 %2276, %v1581
      %v2278 = vpop.permute.xlu0 %2277
      %2281 = vset.pattern.permute.xlu0 0
      %2282 = vperm.xlu0 %2281, %v1582
      %v2283 = vpop.permute.xlu0 %2282
      %2286 = vset.pattern.permute.xlu0 0
      %2287 = vperm.xlu0 %2286, %v1583
      %v2288 = vpop.permute.xlu0 %2287
      %2291 = vset.pattern.permute.xlu0 0
      %2292 = vperm.xlu0 %2291, %v1584
      %v2293 = vpop.permute.xlu0 %2292
      %v2295 = vadd.f32 %v2267, %v2278
      %v2296 = vadd.f32 %v2268, %v2278
      %v2297 = vadd.f32 %v2269, %v2283
      %v2298 = vadd.f32 %v2270, %v2283
      %v2299 = vadd.f32 %v2271, %v2288
      %v2300 = vadd.f32 %v2272, %v2288
      %v2301 = vadd.f32 %v2273, %v2293
      %v2302 = vadd.f32 %v2274, %v2293
      %v2303 = vmax.f32 %v2295, 0.0
      %v2304 = vmax.f32 %v2296, 0.0
      %v2305 = vmax.f32 %v2297, 0.0
      %v2306 = vmax.f32 %v2298, 0.0
      %v2307 = vmax.f32 %v2299, 0.0
      %v2308 = vmax.f32 %v2300, 0.0
      %v2309 = vmax.f32 %v2301, 0.0
      %v2310 = vmax.f32 %v2302, 0.0
      %2311 = vmatpush.msra.mxu0 0.0
      %2312 = vmatpush.msra.mxu0 0.0
      %2313 = vmatpush.msra.mxu0 0.0
      %2314 = vmatpush.msra.mxu0 0.0
      %2315 = vmatpush.msra.mxu0 0.0
      %2316 = vmatpush.msra.mxu0 0.0
      %2317 = vmatpush.msra.mxu0 %v1849
      %2318 = vmatpush.msra.mxu0 %v1848
      %2319 = vmatpush.msra.mxu0 %v1847
      %2320 = vmatpush.msra.mxu0 %v1846
      %2321 = vmatpush.msra.mxu0 %v1845
      %2322 = vmatpush.msra.mxu0 %v1844
      %2323 = vmatpush.msra.mxu0 %v1843
      %2324 = vmatpush.msra.mxu0 %v1842
      %2325 = vmatpush.msra.mxu0 %v1841
      %2326 = vmatpush.msra.mxu0 %v1840
      %2327 = vmatmul.f32.gmra.mxu0 %v1635
      %v2328 = vpop.f32.mrf.mxu0
      %v2329 = vadd.f32 0.0, %v2328
      %2330 = vmatmul.f32.gmra.mxu0 %v1638
      %v2331 = vpop.f32.mrf.mxu0
      %v2332 = vadd.f32 0.0, %v2331
      %2333 = vmatmul.f32.gmra.mxu0 %v1641
      %v2334 = vpop.f32.mrf.mxu0
      %v2335 = vadd.f32 0.0, %v2334
      %2336 = vmatmul.f32.gmra.mxu0 %v1644
      %v2337 = vpop.f32.mrf.mxu0
      %v2338 = vadd.f32 0.0, %v2337
      %2339 = vdwg.mxu0
      %2340 = vmatpush.msra.mxu0 0.0
      %2341 = vmatpush.msra.mxu0 0.0
      %2342 = vmatpush.msra.mxu0 0.0
      %2343 = vmatpush.msra.mxu0 0.0
      %2344 = vmatpush.msra.mxu0 0.0
      %2345 = vmatpush.msra.mxu0 0.0
      %2346 = vmatpush.msra.mxu0 %v1838
      %2347 = vmatpush.msra.mxu0 %v1834
      %2348 = vmatpush.msra.mxu0 %v1830
      %2349 = vmatpush.msra.mxu0 %v1826
      %2350 = vmatpush.msra.mxu0 %v1822
      %2351 = vmatpush.msra.mxu0 %v1818
      %2352 = vmatpush.msra.mxu0 %v1814
      %2353 = vmatpush.msra.mxu0 %v1810
      %2354 = vmatpush.msra.mxu0 %v1806
      %2355 = vmatpush.msra.mxu0 %v1802
      %2356 = vmatmul.f32.gmra.mxu0 %v1635
      %v2357 = vpop.f32.mrf.mxu0
      %v2358 = vadd.f32 0.0, %v2357
      %2359 = vmatmul.f32.gmra.mxu0 %v1638
      %v2360 = vpop.f32.mrf.mxu0
      %v2361 = vadd.f32 0.0, %v2360
      %2362 = vmatmul.f32.gmra.mxu0 %v1641
      %v2363 = vpop.f32.mrf.mxu0
      %v2364 = vadd.f32 0.0, %v2363
      %2365 = vmatmul.f32.gmra.mxu0 %v1644
      %v2366 = vpop.f32.mrf.mxu0
      %v2367 = vadd.f32 0.0, %v2366
      %2368 = vdwg.mxu0
      %2369 = vmatpush.msra.mxu0 0.0
      %2370 = vmatpush.msra.mxu0 0.0
      %2371 = vmatpush.msra.mxu0 0.0
      %2372 = vmatpush.msra.mxu0 0.0
      %2373 = vmatpush.msra.mxu0 0.0
      %2374 = vmatpush.msra.mxu0 0.0
      %2375 = vmatpush.msra.mxu0 %v1632
      %2376 = vmatpush.msra.mxu0 %v1630
      %2377 = vmatpush.msra.mxu0 %v1628
      %2378 = vmatpush.msra.mxu0 %v1626
      %2379 = vmatpush.msra.mxu0 %v1624
      %2380 = vmatpush.msra.mxu0 %v1622
      %2381 = vmatpush.msra.mxu0 %v1620
      %2382 = vmatpush.msra.mxu0 %v1618
      %2383 = vmatpush.msra.mxu0 %v1616
      %2384 = vmatpush.msra.mxu0 %v1614
      %2385 = vmatmul.f32.gmra.mxu0 %v1705
      %v2386 = vpop.f32.mrf.mxu0
      %v2387 = vadd.f32 %v2329, %v2386
      %2388 = vmatmul.f32.gmra.mxu0 %v1708
      %v2389 = vpop.f32.mrf.mxu0
      %v2390 = vadd.f32 %v2332, %v2389
      %2391 = vmatmul.f32.gmra.mxu0 %v1711
      %v2392 = vpop.f32.mrf.mxu0
      %v2393 = vadd.f32 %v2335, %v2392
      %2394 = vmatmul.f32.gmra.mxu0 %v1714
      %v2395 = vpop.f32.mrf.mxu0
      %v2396 = vadd.f32 %v2338, %v2395
      %2397 = vdwg.mxu0
      %2398 = vmatpush.msra.mxu0 0.0
      %2399 = vmatpush.msra.mxu0 0.0
      %2400 = vmatpush.msra.mxu0 0.0
      %2401 = vmatpush.msra.mxu0 0.0
      %2402 = vmatpush.msra.mxu0 0.0
      %2403 = vmatpush.msra.mxu0 0.0
      %2404 = vmatpush.msra.mxu0 %v1633
      %2405 = vmatpush.msra.mxu0 %v1631
      %2406 = vmatpush.msra.mxu0 %v1629
      %2407 = vmatpush.msra.mxu0 %v1627
      %2408 = vmatpush.msra.mxu0 %v1625
      %2409 = vmatpush.msra.mxu0 %v1623
      %2410 = vmatpush.msra.mxu0 %v1621
      %2411 = vmatpush.msra.mxu0 %v1619
      %2412 = vmatpush.msra.mxu0 %v1617
      %2413 = vmatpush.msra.mxu0 %v1615
      %2414 = vmatmul.f32.gmra.mxu0 %v1705
      %v2415 = vpop.f32.mrf.mxu0
      %v2416 = vadd.f32 %v2358, %v2415
      %2417 = vmatmul.f32.gmra.mxu0 %v1708
      %v2418 = vpop.f32.mrf.mxu0
      %v2419 = vadd.f32 %v2361, %v2418
      %2420 = vmatmul.f32.gmra.mxu0 %v1711
      %v2421 = vpop.f32.mrf.mxu0
      %v2422 = vadd.f32 %v2364, %v2421
      %2423 = vmatmul.f32.gmra.mxu0 %v1714
      %v2424 = vpop.f32.mrf.mxu0
      %v2425 = vadd.f32 %v2367, %v2424
      %2426 = vdwg.mxu0
      %2427 = vmatpush.msra.mxu0 0.0
      %2428 = vmatpush.msra.mxu0 0.0
      %2429 = vmatpush.msra.mxu0 0.0
      %2430 = vmatpush.msra.mxu0 0.0
      %2431 = vmatpush.msra.mxu0 0.0
      %2432 = vmatpush.msra.mxu0 0.0
      %2433 = vmatpush.msra.mxu0 %v2022
      %2434 = vmatpush.msra.mxu0 %v2021
      %2435 = vmatpush.msra.mxu0 %v2020
      %2436 = vmatpush.msra.mxu0 %v2019
      %2437 = vmatpush.msra.mxu0 %v2018
      %2438 = vmatpush.msra.mxu0 %v2017
      %2439 = vmatpush.msra.mxu0 %v2016
      %2440 = vmatpush.msra.mxu0 %v2015
      %2441 = vmatpush.msra.mxu0 %v2014
      %2442 = vmatpush.msra.mxu0 %v2013
      %2443 = vmatmul.f32.gmra.mxu0 %v1871
      %v2444 = vpop.f32.mrf.mxu0
      %v2445 = vadd.f32 0.0, %v2444
      %2446 = vmatmul.f32.gmra.mxu0 %v1874
      %v2447 = vpop.f32.mrf.mxu0
      %v2448 = vadd.f32 0.0, %v2447
      %2449 = vmatmul.f32.gmra.mxu0 %v1877
      %v2450 = vpop.f32.mrf.mxu0
      %v2451 = vadd.f32 0.0, %v2450
      %2452 = vmatmul.f32.gmra.mxu0 %v1880
      %v2453 = vpop.f32.mrf.mxu0
      %v2454 = vadd.f32 0.0, %v2453
      %2455 = vdwg.mxu0
      %2456 = vmatpush.msra.mxu0 0.0
      %2457 = vmatpush.msra.mxu0 0.0
      %2458 = vmatpush.msra.mxu0 0.0
      %2459 = vmatpush.msra.mxu0 0.0
      %2460 = vmatpush.msra.mxu0 0.0
      %2461 = vmatpush.msra.mxu0 0.0
      %2462 = vmatpush.msra.mxu0 %v2012
      %2463 = vmatpush.msra.mxu0 %v2008
      %2464 = vmatpush.msra.mxu0 %v2004
      %2465 = vmatpush.msra.mxu0 %v2000
      %2466 = vmatpush.msra.mxu0 %v1996
      %2467 = vmatpush.msra.mxu0 %v1992
      %2468 = vmatpush.msra.mxu0 %v1988
      %2469 = vmatpush.msra.mxu0 %v1984
      %2470 = vmatpush.msra.mxu0 %v1980
      %2471 = vmatpush.msra.mxu0 %v1976
      %2472 = vmatmul.f32.gmra.mxu0 %v1871
      %v2473 = vpop.f32.mrf.mxu0
      %v2474 = vadd.f32 0.0, %v2473
      %2475 = vmatmul.f32.gmra.mxu0 %v1874
      %v2476 = vpop.f32.mrf.mxu0
      %v2477 = vadd.f32 0.0, %v2476
      %2478 = vmatmul.f32.gmra.mxu0 %v1877
      %v2479 = vpop.f32.mrf.mxu0
      %v2480 = vadd.f32 0.0, %v2479
      %2481 = vmatmul.f32.gmra.mxu0 %v1880
      %v2482 = vpop.f32.mrf.mxu0
      %v2483 = vadd.f32 0.0, %v2482
      %2484 = vdwg.mxu0
      %v2485 = vadd.f32 %v2387, %v2445
      %v2486 = vadd.f32 %v2416, %v2474
      %v2487 = vadd.f32 %v2390, %v2448
      %v2488 = vadd.f32 %v2419, %v2477
      %v2489 = vadd.f32 %v2393, %v2451
      %v2490 = vadd.f32 %v2422, %v2480
      %v2491 = vadd.f32 %v2396, %v2454
      %v2492 = vadd.f32 %v2425, %v2483
      %2493 = vmatpush.msra.mxu0 0.0
      %2494 = vmatpush.msra.mxu0 0.0
      %2495 = vmatpush.msra.mxu0 0.0
      %2496 = vmatpush.msra.mxu0 0.0
      %2497 = vmatpush.msra.mxu0 0.0
      %2498 = vmatpush.msra.mxu0 0.0
      %2499 = vmatpush.msra.mxu0 %v2176
      %2500 = vmatpush.msra.mxu0 %v2175
      %2501 = vmatpush.msra.mxu0 %v2174
      %2502 = vmatpush.msra.mxu0 %v2173
      %2503 = vmatpush.msra.mxu0 %v2172
      %2504 = vmatpush.msra.mxu0 %v2171
      %2505 = vmatpush.msra.mxu0 %v2170
      %2506 = vmatpush.msra.mxu0 %v2169
      %2507 = vmatpush.msra.mxu0 %v2168
      %2508 = vmatpush.msra.mxu0 %v2167
      %2509 = vmatmul.f32.gmra.mxu0 %v2044
      %v2510 = vpop.f32.mrf.mxu0
      %v2511 = vadd.f32 0.0, %v2510
      %2512 = vmatmul.f32.gmra.mxu0 %v2047
      %v2513 = vpop.f32.mrf.mxu0
      %v2514 = vadd.f32 0.0, %v2513
      %2515 = vmatmul.f32.gmra.mxu0 %v2050
      %v2516 = vpop.f32.mrf.mxu0
      %v2517 = vadd.f32 0.0, %v2516
      %2518 = vmatmul.f32.gmra.mxu0 %v2053
      %v2519 = vpop.f32.mrf.mxu0
      %v2520 = vadd.f32 0.0, %v2519
      %2521 = vdwg.mxu0
      %2522 = vmatpush.msra.mxu0 0.0
      %2523 = vmatpush.msra.mxu0 0.0
      %2524 = vmatpush.msra.mxu0 0.0
      %2525 = vmatpush.msra.mxu0 0.0
      %2526 = vmatpush.msra.mxu0 0.0
      %2527 = vmatpush.msra.mxu0 0.0
      %2528 = vmatpush.msra.mxu0 %v2165
      %2529 = vmatpush.msra.mxu0 %v2161
      %2530 = vmatpush.msra.mxu0 %v2157
      %2531 = vmatpush.msra.mxu0 %v2153
      %2532 = vmatpush.msra.mxu0 %v2149
      %2533 = vmatpush.msra.mxu0 %v2145
      %2534 = vmatpush.msra.mxu0 %v2141
      %2535 = vmatpush.msra.mxu0 %v2137
      %2536 = vmatpush.msra.mxu0 %v2133
      %2537 = vmatpush.msra.mxu0 %v2129
      %2538 = vmatmul.f32.gmra.mxu0 %v2044
      %v2539 = vpop.f32.mrf.mxu0
      %v2540 = vadd.f32 0.0, %v2539
      %2541 = vmatmul.f32.gmra.mxu0 %v2047
      %v2542 = vpop.f32.mrf.mxu0
      %v2543 = vadd.f32 0.0, %v2542
      %2544 = vmatmul.f32.gmra.mxu0 %v2050
      %v2545 = vpop.f32.mrf.mxu0
      %v2546 = vadd.f32 0.0, %v2545
      %2547 = vmatmul.f32.gmra.mxu0 %v2053
      %v2548 = vpop.f32.mrf.mxu0
      %v2549 = vadd.f32 0.0, %v2548
      %2550 = vdwg.mxu0
      %v2551 = vadd.f32 %v2485, %v2511
      %v2552 = vadd.f32 %v2486, %v2540
      %v2553 = vadd.f32 %v2487, %v2514
      %v2554 = vadd.f32 %v2488, %v2543
      %v2555 = vadd.f32 %v2489, %v2517
      %v2556 = vadd.f32 %v2490, %v2546
      %v2557 = vadd.f32 %v2491, %v2520
      %v2558 = vadd.f32 %v2492, %v2549
      %2559 = vrot.lane.b32.xlu0 %v1614, 126
      %v2560 = vpop.permute.xlu0 %2559
      %2561 = vrot.lane.b32.xlu0 %v1615, 126
      %v2562 = vpop.permute.xlu0 %2561
      %2563 = vrot.lane.b32.xlu0 %v1616, 126
      %v2564 = vpop.permute.xlu0 %2563
      %2565 = vrot.lane.b32.xlu0 %v1617, 126
      %v2566 = vpop.permute.xlu0 %2565
      %2567 = vrot.lane.b32.xlu0 %v1618, 126
      %v2568 = vpop.permute.xlu0 %2567
      %2569 = vrot.lane.b32.xlu0 %v1619, 126
      %v2570 = vpop.permute.xlu0 %2569
      %2571 = vrot.lane.b32.xlu0 %v1620, 126
      %v2572 = vpop.permute.xlu0 %2571
      %2573 = vrot.lane.b32.xlu0 %v1621, 126
      %v2574 = vpop.permute.xlu0 %2573
      %2575 = vrot.lane.b32.xlu0 %v1622, 126
      %v2576 = vpop.permute.xlu0 %2575
      %2577 = vrot.lane.b32.xlu0 %v1623, 126
      %v2578 = vpop.permute.xlu0 %2577
      %2579 = vrot.lane.b32.xlu0 %v1624, 126
      %v2580 = vpop.permute.xlu0 %2579
      %2581 = vrot.lane.b32.xlu0 %v1625, 126
      %v2582 = vpop.permute.xlu0 %2581
      %2583 = vrot.lane.b32.xlu0 %v1626, 126
      %v2584 = vpop.permute.xlu0 %2583
      %2585 = vrot.lane.b32.xlu0 %v1627, 126
      %v2586 = vpop.permute.xlu0 %2585
      %2587 = vrot.lane.b32.xlu0 %v1628, 126
      %v2588 = vpop.permute.xlu0 %2587
      %2589 = vrot.lane.b32.xlu0 %v1629, 126
      %v2590 = vpop.permute.xlu0 %2589
      %2591 = vrot.lane.b32.xlu0 %v1630, 126
      %v2592 = vpop.permute.xlu0 %2591
      %2593 = vrot.lane.b32.xlu0 %v1631, 126
      %v2594 = vpop.permute.xlu0 %2593
      %2595 = vrot.lane.b32.xlu0 %v1632, 126
      %v2596 = vpop.permute.xlu0 %2595
      %2597 = vrot.lane.b32.xlu0 %v1633, 126
      %v2598 = vpop.permute.xlu0 %2597
      %v2599 = vsel %vm2166, %v2560, %v2562
      %v2600 = vsel %vm2166, %v2564, %v2566
      %v2601 = vsel %vm2166, %v2568, %v2570
      %v2602 = vsel %vm2166, %v2572, %v2574
      %v2603 = vsel %vm2166, %v2576, %v2578
      %v2604 = vsel %vm2166, %v2580, %v2582
      %v2605 = vsel %vm2166, %v2584, %v2586
      %v2606 = vsel %vm2166, %v2588, %v2590
      %v2607 = vsel %vm2166, %v2592, %v2594
      %v2608 = vsel %vm2166, %v2596, %v2598
      %2629 = vmatpush.msra.mxu0 0.0
      %2630 = vmatpush.msra.mxu0 0.0
      %2631 = vmatpush.msra.mxu0 0.0
      %2632 = vmatpush.msra.mxu0 0.0
      %2633 = vmatpush.msra.mxu0 0.0
      %2634 = vmatpush.msra.mxu0 0.0
      %2635 = vmatpush.msra.mxu0 %v2608
      %2636 = vmatpush.msra.mxu0 %v2607
      %2637 = vmatpush.msra.mxu0 %v2606
      %2638 = vmatpush.msra.mxu0 %v2605
      %2639 = vmatpush.msra.mxu0 %v2604
      %2640 = vmatpush.msra.mxu0 %v2603
      %2641 = vmatpush.msra.mxu0 %v2602
      %2642 = vmatpush.msra.mxu0 %v2601
      %2643 = vmatpush.msra.mxu0 %v2600
      %2644 = vmatpush.msra.mxu0 %v2599
      %2645 = vmatmul.f32.gmra.mxu0 %v2198
      %v2646 = vpop.f32.mrf.mxu0
      %v2647 = vadd.f32 0.0, %v2646
      %2648 = vmatmul.f32.gmra.mxu0 %v2201
      %v2649 = vpop.f32.mrf.mxu0
      %v2650 = vadd.f32 0.0, %v2649
      %2651 = vmatmul.f32.gmra.mxu0 %v2204
      %v2652 = vpop.f32.mrf.mxu0
      %v2653 = vadd.f32 0.0, %v2652
      %2654 = vmatmul.f32.gmra.mxu0 %v2207
      %v2655 = vpop.f32.mrf.mxu0
      %v2656 = vadd.f32 0.0, %v2655
      %2657 = vdwg.mxu0
      %2658 = vmatpush.msra.mxu0 0.0
      %2659 = vmatpush.msra.mxu0 0.0
      %2660 = vmatpush.msra.mxu0 0.0
      %2661 = vmatpush.msra.mxu0 0.0
      %2662 = vmatpush.msra.mxu0 0.0
      %2663 = vmatpush.msra.mxu0 0.0
      %2664 = vmatpush.msra.mxu0 %v2598
      %2665 = vmatpush.msra.mxu0 %v2594
      %2666 = vmatpush.msra.mxu0 %v2590
      %2667 = vmatpush.msra.mxu0 %v2586
      %2668 = vmatpush.msra.mxu0 %v2582
      %2669 = vmatpush.msra.mxu0 %v2578
      %2670 = vmatpush.msra.mxu0 %v2574
      %2671 = vmatpush.msra.mxu0 %v2570
      %2672 = vmatpush.msra.mxu0 %v2566
      %2673 = vmatpush.msra.mxu0 %v2562
      %2674 = vmatmul.f32.gmra.mxu0 %v2198
      %v2675 = vpop.f32.mrf.mxu0
      %v2676 = vadd.f32 0.0, %v2675
      %2677 = vmatmul.f32.gmra.mxu0 %v2201
      %v2678 = vpop.f32.mrf.mxu0
      %v2679 = vadd.f32 0.0, %v2678
      %2680 = vmatmul.f32.gmra.mxu0 %v2204
      %v2681 = vpop.f32.mrf.mxu0
      %v2682 = vadd.f32 0.0, %v2681
      %2683 = vmatmul.f32.gmra.mxu0 %v2207
      %v2684 = vpop.f32.mrf.mxu0
      %v2685 = vadd.f32 0.0, %v2684
      %2686 = vdwg.mxu0
      %v2687 = vadd.f32 %v2551, %v2647
      %v2688 = vadd.f32 %v2552, %v2676
      %v2689 = vadd.f32 %v2553, %v2650
      %v2690 = vadd.f32 %v2554, %v2679
      %v2691 = vadd.f32 %v2555, %v2653
      %v2692 = vadd.f32 %v2556, %v2682
      %v2693 = vadd.f32 %v2557, %v2656
      %v2694 = vadd.f32 %v2558, %v2685
      %v2695 = vadd.f32 %v2687, %v2278
      %v2696 = vadd.f32 %v2688, %v2278
      %v2697 = vadd.f32 %v2689, %v2283
      %v2698 = vadd.f32 %v2690, %v2283
      %v2699 = vadd.f32 %v2691, %v2288
      %v2700 = vadd.f32 %v2692, %v2288
      %v2701 = vadd.f32 %v2693, %v2293
      %v2702 = vadd.f32 %v2694, %v2293
      %v2703 = vmax.f32 %v2695, 0.0
      %v2704 = vmax.f32 %v2696, 0.0
      %v2705 = vmax.f32 %v2697, 0.0
      %v2706 = vmax.f32 %v2698, 0.0
      %v2707 = vmax.f32 %v2699, 0.0
      %v2708 = vmax.f32 %v2700, 0.0
      %v2709 = vmax.f32 %v2701, 0.0
      %v2710 = vmax.f32 %v2702, 0.0
      %v2711 = vmax.f32 %v2303, %v2703
      %v2712 = vmax.f32 %v2304, %v2704
      %v2713 = vmax.f32 %v2305, %v2705
      %v2714 = vmax.f32 %v2306, %v2706
      %v2715 = vmax.f32 %v2307, %v2707
      %v2716 = vmax.f32 %v2308, %v2708
      %v2717 = vmax.f32 %v2309, %v2709
      %v2718 = vmax.f32 %v2310, %v2710
      %2727 = vrot.lane.b32.xlu0 %v2711, 112
      %v2728 = vpop.permute.xlu0 %2727
      %2729 = vrot.lane.b32.xlu0 %v2712, 112
      %v2730 = vpop.permute.xlu0 %2729
      %2731 = vrot.lane.b32.xlu0 %v2713, 112
      %v2732 = vpop.permute.xlu0 %2731
      %2733 = vrot.lane.b32.xlu0 %v2714, 112
      %v2734 = vpop.permute.xlu0 %2733
      %2735 = vrot.lane.b32.xlu0 %v2715, 112
      %v2736 = vpop.permute.xlu0 %2735
      %2737 = vrot.lane.b32.xlu0 %v2716, 112
      %v2738 = vpop.permute.xlu0 %2737
      %2739 = vrot.lane.b32.xlu0 %v2717, 112
      %v2740 = vpop.permute.xlu0 %2739
      %2741 = vrot.lane.b32.xlu0 %v2718, 112
      %v2742 = vpop.permute.xlu0 %2741
      %v2743 = vsel %vm206, %v2728, %v2730
      %v2744 = vsel %vm206, %v2732, %v2734
      %v2745 = vsel %vm206, %v2736, %v2738
      %v2746 = vsel %vm206, %v2740, %v2742
      %v2755 = vmax.f32 %v2711, %v2743
      %v2756 = vmax.f32 %v2712, %v2730
      %v2757 = vmax.f32 %v2713, %v2744
      %v2758 = vmax.f32 %v2714, %v2734
      %v2759 = vmax.f32 %v2715, %v2745
      %v2760 = vmax.f32 %v2716, %v2738
      %v2761 = vmax.f32 %v2717, %v2746
      %v2762 = vmax.f32 %v2718, %v2742
      %s2763 = smul.u32 %s40, 8
      %s2764 = smul.addr %s2763, 8
      %s2765 = scalar_lea.vmem [#allocation3], %s2764
      %2766 = vst [vmem:[%s2765] sm:$0xff] %v2755
      %vm2767 = vcmask 48128
      %2768 = vst.msk [vmem:[%s2765 + $0x8] sm:$0xff] %vm2767, %v2756
      %2769 = vst [vmem:[%s2765 + $0x10] sm:$0xff] %v2757
      %2770 = vst.msk [vmem:[%s2765 + $0x18] sm:$0xff] %vm2767, %v2758
      %2771 = vst [vmem:[%s2765 + $0x20] sm:$0xff] %v2759
      %2772 = vst.msk [vmem:[%s2765 + $0x28] sm:$0xff] %vm2767, %v2760
      %2773 = vst [vmem:[%s2765 + $0x30] sm:$0xff] %v2761
      %2774 = vst.msk [vmem:[%s2765 + $0x38] sm:$0xff] %vm2767, %v2762
    $region50: #{net_forward.1} parent=1 // loop_footer
      %s44 = sadd.s32 1, %s40
    $region51: #{net_forward.1} parent=1 // loop_footer_branch
      %39 = sbr.rel target = $region47
    $region52: #{net_forward.1} parent=1 // loop_exit
      _
    %v2775 = vld [vmem:[#allocation3] ss:$8 sm:$0x3]
    %s2776 = scalar_lea.vmem [#allocation3], 64
    %v2777 = vld [vmem:[%s2776] ss:$8 sm:$0x3]
    %s2778 = scalar_lea.vmem [#allocation3], 128
    %v2779 = vld [vmem:[%s2778] ss:$8 sm:$0x3]
    %s2780 = scalar_lea.vmem [#allocation3], 192
    %v2781 = vld [vmem:[%s2780] ss:$8 sm:$0x3]
    %v2782 = vld [vmem:[%s5] sm:$0xff]
    %v2783 = vld [vmem:[%s5 + $0x8] sm:$0xff]
    %v2784 = vld [vmem:[%s5 + $0x10] sm:$0xff]
    %v2785 = vld [vmem:[%s5 + $0x18] sm:$0xff]
    %v2786 = vld [vmem:[%s5 + $0x20] sm:$0xff]
    %v2787 = vld [vmem:[%s5 + $0x28] sm:$0xff]
    %v2788 = vld [vmem:[%s5 + $0x30] sm:$0xff]
    %v2789 = vld [vmem:[%s5 + $0x38] sm:$0xff]
    %v2790 = vld [vmem:[%s5 + $0x40] sm:$0xff]
    %v2791 = vld [vmem:[%s5 + $0x48] sm:$0xff]
    %v2792 = vld [vmem:[%s5 + $0x50] sm:$0xff]
    %v2793 = vld [vmem:[%s5 + $0x58] sm:$0xff]
    %v2794 = vld [vmem:[%s5 + $0x60] sm:$0xff]
    %v2795 = vld [vmem:[%s5 + $0x68] sm:$0xff]
    %v2796 = vld [vmem:[%s5 + $0x70] sm:$0xff]
    %v2797 = vld [vmem:[%s5 + $0x78] sm:$0xff]
    %v2798 = vld [vmem:[%s5 + $0x80] sm:$0x3f]
    %s2799 = scalar_lea.vmem [#allocation3], 1
    %v2800 = vld [vmem:[%s2799] ss:$8 sm:$0x3]
    %s2801 = scalar_lea.vmem [#allocation3], 65
    %v2802 = vld [vmem:[%s2801] ss:$8 sm:$0x3]
    %s2803 = scalar_lea.vmem [#allocation3], 129
    %v2804 = vld [vmem:[%s2803] ss:$8 sm:$0x3]
    %s2805 = scalar_lea.vmem [#allocation3], 193
    %v2806 = vld [vmem:[%s2805] ss:$8 sm:$0x3]
    %s2807 = scalar_lea.vmem %s5, 136
    %v2808 = vld [vmem:[%s2807] sm:$0xff]
    %v2809 = vld [vmem:[%s2807 + $0x8] sm:$0xff]
    %v2810 = vld [vmem:[%s2807 + $0x10] sm:$0xff]
    %v2811 = vld [vmem:[%s2807 + $0x18] sm:$0xff]
    %v2812 = vld [vmem:[%s2807 + $0x20] sm:$0xff]
    %v2813 = vld [vmem:[%s2807 + $0x28] sm:$0xff]
    %v2814 = vld [vmem:[%s2807 + $0x30] sm:$0xff]
    %v2815 = vld [vmem:[%s2807 + $0x38] sm:$0xff]
    %v2816 = vld [vmem:[%s2807 + $0x40] sm:$0xff]
    %v2817 = vld [vmem:[%s2807 + $0x48] sm:$0xff]
    %v2818 = vld [vmem:[%s2807 + $0x50] sm:$0xff]
    %v2819 = vld [vmem:[%s2807 + $0x58] sm:$0xff]
    %v2820 = vld [vmem:[%s2807 + $0x60] sm:$0xff]
    %v2821 = vld [vmem:[%s2807 + $0x68] sm:$0xff]
    %v2822 = vld [vmem:[%s2807 + $0x70] sm:$0xff]
    %v2823 = vld [vmem:[%s2807 + $0x78] sm:$0xff]
    %v2824 = vld [vmem:[%s2807 + $0x80] sm:$0x3f]
    %2829 = vst [vmem:[#allocation1] ss:$9 sm:$0xff] %v2800
    %s2830 = scalar_lea.vmem [#allocation1], 1
    %2831 = vst [vmem:[%s2830] ss:$9 sm:$0xff] %v2802
    %s2832 = scalar_lea.vmem [#allocation1], 2
    %2833 = vst [vmem:[%s2832] ss:$9 sm:$0xff] %v2804
    %s2834 = scalar_lea.vmem [#allocation1], 3
    %2835 = vst [vmem:[%s2834] ss:$9 sm:$0xff] %v2806
    %v2836 = vld [vmem:[#allocation1] sm:$0xff]
    %v2837 = vld [vmem:[#allocation1 + $0x9] sm:$0xff]
    %vm2839 = vcmask 48128
    %v2840 = vsel %vm2839, %v2837, 0
    %vm2842 = vcmask 1045504
    %v2844 = vsel %vm2842, %v2824, 0
    %2846 = vmatpush.msra.mxu0 %v2823
    %2847 = vmatpush.msra.mxu0 %v2822
    %2848 = vmatpush.msra.mxu0 %v2821
    %2849 = vmatpush.msra.mxu0 %v2820
    %2850 = vmatpush.msra.mxu0 %v2819
    %2851 = vmatpush.msra.mxu0 %v2818
    %2852 = vmatpush.msra.mxu0 %v2817
    %2853 = vmatpush.msra.mxu0 %v2816
    %2854 = vmatpush.msra.mxu0 %v2815
    %2855 = vmatpush.msra.mxu0 %v2814
    %2856 = vmatpush.msra.mxu0 %v2813
    %2857 = vmatpush.msra.mxu0 %v2812
    %2858 = vmatpush.msra.mxu0 %v2811
    %2859 = vmatpush.msra.mxu0 %v2810
    %2860 = vmatpush.msra.mxu0 %v2809
    %2861 = vmatpush.msra.mxu0 %v2808
    %2862 = vmatmul.f32.gmra.mxu0 %v2836
    %v2863 = vpop.f32.mrf.mxu0
    %v2864 = vadd.f32 0.0, %v2863
    %2865 = vdwg.mxu0
    %2866 = vmatpush.msra.mxu0 0.0
    %2867 = vmatpush.msra.mxu0 0.0
    %2868 = vmatpush.msra.mxu0 0.0
    %2869 = vmatpush.msra.mxu0 0.0
    %2870 = vmatpush.msra.mxu0 0.0
    %2871 = vmatpush.msra.mxu0 0.0
    %2872 = vmatpush.msra.mxu0 0.0
    %2873 = vmatpush.msra.mxu0 0.0
    %2874 = vmatpush.msra.mxu0 0.0
    %2875 = vmatpush.msra.mxu0 0.0
    %2876 = vmatpush.msra.mxu0 0.0
    %2877 = vmatpush.msra.mxu0 0.0
    %2878 = vmatpush.msra.mxu0 0.0
    %2879 = vmatpush.msra.mxu0 0.0
    %2880 = vmatpush.msra.mxu0 0.0
    %2881 = vmatpush.msra.mxu0 %v2844
    %2882 = vmatmul.f32.gmra.mxu0 %v2840
    %v2883 = vpop.f32.mrf.mxu0
    %v2884 = vadd.f32 %v2864, %v2883
    %2885 = vdwg.mxu0
    %2890 = vst [vmem:[#allocation1] ss:$9 sm:$0xff] %v2775
    %s2891 = scalar_lea.vmem [#allocation1], 1
    %2892 = vst [vmem:[%s2891] ss:$9 sm:$0xff] %v2777
    %s2893 = scalar_lea.vmem [#allocation1], 2
    %2894 = vst [vmem:[%s2893] ss:$9 sm:$0xff] %v2779
    %s2895 = scalar_lea.vmem [#allocation1], 3
    %2896 = vst [vmem:[%s2895] ss:$9 sm:$0xff] %v2781
    %v2897 = vld [vmem:[#allocation1] sm:$0xff]
    %v2898 = vld [vmem:[#allocation1 + $0x9] sm:$0xff]
    %v2900 = vsel %vm2839, %v2898, 0
    %v2903 = vsel %vm2842, %v2798, 0
    %2905 = vmatpush.msra.mxu0 %v2797
    %2906 = vmatpush.msra.mxu0 %v2796
    %2907 = vmatpush.msra.mxu0 %v2795
    %2908 = vmatpush.msra.mxu0 %v2794
    %2909 = vmatpush.msra.mxu0 %v2793
    %2910 = vmatpush.msra.mxu0 %v2792
    %2911 = vmatpush.msra.mxu0 %v2791
    %2912 = vmatpush.msra.mxu0 %v2790
    %2913 = vmatpush.msra.mxu0 %v2789
    %2914 = vmatpush.msra.mxu0 %v2788
    %2915 = vmatpush.msra.mxu0 %v2787
    %2916 = vmatpush.msra.mxu0 %v2786
    %2917 = vmatpush.msra.mxu0 %v2785
    %2918 = vmatpush.msra.mxu0 %v2784
    %2919 = vmatpush.msra.mxu0 %v2783
    %2920 = vmatpush.msra.mxu0 %v2782
    %2921 = vmatmul.f32.gmra.mxu0 %v2897
    %v2922 = vpop.f32.mrf.mxu0
    %v2923 = vadd.f32 %v2884, %v2922
    %2924 = vdwg.mxu0
    %2925 = vmatpush.msra.mxu0 0.0
    %2926 = vmatpush.msra.mxu0 0.0
    %2927 = vmatpush.msra.mxu0 0.0
    %2928 = vmatpush.msra.mxu0 0.0
    %2929 = vmatpush.msra.mxu0 0.0
    %2930 = vmatpush.msra.mxu0 0.0
    %2931 = vmatpush.msra.mxu0 0.0
    %2932 = vmatpush.msra.mxu0 0.0
    %2933 = vmatpush.msra.mxu0 0.0
    %2934 = vmatpush.msra.mxu0 0.0
    %2935 = vmatpush.msra.mxu0 0.0
    %2936 = vmatpush.msra.mxu0 0.0
    %2937 = vmatpush.msra.mxu0 0.0
    %2938 = vmatpush.msra.mxu0 0.0
    %2939 = vmatpush.msra.mxu0 0.0
    %2940 = vmatpush.msra.mxu0 %v2903
    %2941 = vmatmul.f32.gmra.mxu0 %v2900
    %v2942 = vpop.f32.mrf.mxu0
    %v2943 = vadd.f32 %v2923, %v2942
    %2944 = vdwg.mxu0
    %s2945 = scalar_lea.vmem [#allocation3], 2
    %v2946 = vld [vmem:[%s2945] ss:$8 sm:$0x3]
    %s2947 = scalar_lea.vmem [#allocation3], 66
    %v2948 = vld [vmem:[%s2947] ss:$8 sm:$0x3]
    %s2949 = scalar_lea.vmem [#allocation3], 130
    %v2950 = vld [vmem:[%s2949] ss:$8 sm:$0x3]
    %s2951 = scalar_lea.vmem [#allocation3], 194
    %v2952 = vld [vmem:[%s2951] ss:$8 sm:$0x3]
    %s2953 = scalar_lea.vmem %s5, 272
    %v2954 = vld [vmem:[%s2953] sm:$0xff]
    %v2955 = vld [vmem:[%s2953 + $0x8] sm:$0xff]
    %v2956 = vld [vmem:[%s2953 + $0x10] sm:$0xff]
    %v2957 = vld [vmem:[%s2953 + $0x18] sm:$0xff]
    %v2958 = vld [vmem:[%s2953 + $0x20] sm:$0xff]
    %v2959 = vld [vmem:[%s2953 + $0x28] sm:$0xff]
    %v2960 = vld [vmem:[%s2953 + $0x30] sm:$0xff]
    %v2961 = vld [vmem:[%s2953 + $0x38] sm:$0xff]
    %v2962 = vld [vmem:[%s2953 + $0x40] sm:$0xff]
    %v2963 = vld [vmem:[%s2953 + $0x48] sm:$0xff]
    %v2964 = vld [vmem:[%s2953 + $0x50] sm:$0xff]
    %v2965 = vld [vmem:[%s2953 + $0x58] sm:$0xff]
    %v2966 = vld [vmem:[%s2953 + $0x60] sm:$0xff]
    %v2967 = vld [vmem:[%s2953 + $0x68] sm:$0xff]
    %v2968 = vld [vmem:[%s2953 + $0x70] sm:$0xff]
    %v2969 = vld [vmem:[%s2953 + $0x78] sm:$0xff]
    %v2970 = vld [vmem:[%s2953 + $0x80] sm:$0x3f]
    %2975 = vst [vmem:[#allocation1] ss:$9 sm:$0xff] %v2946
    %s2976 = scalar_lea.vmem [#allocation1], 1
    %2977 = vst [vmem:[%s2976] ss:$9 sm:$0xff] %v2948
    %s2978 = scalar_lea.vmem [#allocation1], 2
    %2979 = vst [vmem:[%s2978] ss:$9 sm:$0xff] %v2950
    %s2980 = scalar_lea.vmem [#allocation1], 3
    %2981 = vst [vmem:[%s2980] ss:$9 sm:$0xff] %v2952
    %v2982 = vld [vmem:[#allocation1] sm:$0xff]
    %v2983 = vld [vmem:[#allocation1 + $0x9] sm:$0xff]
    %v2985 = vsel %vm2839, %v2983, 0
    %v2988 = vsel %vm2842, %v2970, 0
    %2990 = vmatpush.msra.mxu0 %v2969
    %2991 = vmatpush.msra.mxu0 %v2968
    %2992 = vmatpush.msra.mxu0 %v2967
    %2993 = vmatpush.msra.mxu0 %v2966
    %2994 = vmatpush.msra.mxu0 %v2965
    %2995 = vmatpush.msra.mxu0 %v2964
    %2996 = vmatpush.msra.mxu0 %v2963
    %2997 = vmatpush.msra.mxu0 %v2962
    %2998 = vmatpush.msra.mxu0 %v2961
    %2999 = vmatpush.msra.mxu0 %v2960
    %3000 = vmatpush.msra.mxu0 %v2959
    %3001 = vmatpush.msra.mxu0 %v2958
    %3002 = vmatpush.msra.mxu0 %v2957
    %3003 = vmatpush.msra.mxu0 %v2956
    %3004 = vmatpush.msra.mxu0 %v2955
    %3005 = vmatpush.msra.mxu0 %v2954
    %3006 = vmatmul.f32.gmra.mxu0 %v2982
    %v3007 = vpop.f32.mrf.mxu0
    %v3008 = vadd.f32 0.0, %v3007
    %3009 = vdwg.mxu0
    %3010 = vmatpush.msra.mxu0 0.0
    %3011 = vmatpush.msra.mxu0 0.0
    %3012 = vmatpush.msra.mxu0 0.0
    %3013 = vmatpush.msra.mxu0 0.0
    %3014 = vmatpush.msra.mxu0 0.0
    %3015 = vmatpush.msra.mxu0 0.0
    %3016 = vmatpush.msra.mxu0 0.0
    %3017 = vmatpush.msra.mxu0 0.0
    %3018 = vmatpush.msra.mxu0 0.0
    %3019 = vmatpush.msra.mxu0 0.0
    %3020 = vmatpush.msra.mxu0 0.0
    %3021 = vmatpush.msra.mxu0 0.0
    %3022 = vmatpush.msra.mxu0 0.0
    %3023 = vmatpush.msra.mxu0 0.0
    %3024 = vmatpush.msra.mxu0 0.0
    %3025 = vmatpush.msra.mxu0 %v2988
    %3026 = vmatmul.f32.gmra.mxu0 %v2985
    %v3027 = vpop.f32.mrf.mxu0
    %v3028 = vadd.f32 %v3008, %v3027
    %3029 = vdwg.mxu0
    %v3030 = vadd.f32 %v2943, %v3028
    %s3031 = scalar_lea.vmem [#allocation3], 3
    %v3032 = vld [vmem:[%s3031] ss:$8 sm:$0x3]
    %s3033 = scalar_lea.vmem [#allocation3], 67
    %v3034 = vld [vmem:[%s3033] ss:$8 sm:$0x3]
    %s3035 = scalar_lea.vmem [#allocation3], 131
    %v3036 = vld [vmem:[%s3035] ss:$8 sm:$0x3]
    %s3037 = scalar_lea.vmem [#allocation3], 195
    %v3038 = vld [vmem:[%s3037] ss:$8 sm:$0x3]
    %s3039 = scalar_lea.vmem %s5, 408
    %v3040 = vld [vmem:[%s3039] sm:$0xff]
    %v3041 = vld [vmem:[%s3039 + $0x8] sm:$0xff]
    %v3042 = vld [vmem:[%s3039 + $0x10] sm:$0xff]
    %v3043 = vld [vmem:[%s3039 + $0x18] sm:$0xff]
    %v3044 = vld [vmem:[%s3039 + $0x20] sm:$0xff]
    %v3045 = vld [vmem:[%s3039 + $0x28] sm:$0xff]
    %v3046 = vld [vmem:[%s3039 + $0x30] sm:$0xff]
    %v3047 = vld [vmem:[%s3039 + $0x38] sm:$0xff]
    %v3048 = vld [vmem:[%s3039 + $0x40] sm:$0xff]
    %v3049 = vld [vmem:[%s3039 + $0x48] sm:$0xff]
    %v3050 = vld [vmem:[%s3039 + $0x50] sm:$0xff]
    %v3051 = vld [vmem:[%s3039 + $0x58] sm:$0xff]
    %v3052 = vld [vmem:[%s3039 + $0x60] sm:$0xff]
    %v3053 = vld [vmem:[%s3039 + $0x68] sm:$0xff]
    %v3054 = vld [vmem:[%s3039 + $0x70] sm:$0xff]
    %v3055 = vld [vmem:[%s3039 + $0x78] sm:$0xff]
    %v3056 = vld [vmem:[%s3039 + $0x80] sm:$0x3f]
    %3061 = vst [vmem:[#allocation1] ss:$9 sm:$0xff] %v3032
    %s3062 = scalar_lea.vmem [#allocation1], 1
    %3063 = vst [vmem:[%s3062] ss:$9 sm:$0xff] %v3034
    %s3064 = scalar_lea.vmem [#allocation1], 2
    %3065 = vst [vmem:[%s3064] ss:$9 sm:$0xff] %v3036
    %s3066 = scalar_lea.vmem [#allocation1], 3
    %3067 = vst [vmem:[%s3066] ss:$9 sm:$0xff] %v3038
    %v3068 = vld [vmem:[#allocation1] sm:$0xff]
    %v3069 = vld [vmem:[#allocation1 + $0x9] sm:$0xff]
    %v3071 = vsel %vm2839, %v3069, 0
    %v3074 = vsel %vm2842, %v3056, 0
    %3076 = vmatpush.msra.mxu0 %v3055
    %3077 = vmatpush.msra.mxu0 %v3054
    %3078 = vmatpush.msra.mxu0 %v3053
    %3079 = vmatpush.msra.mxu0 %v3052
    %3080 = vmatpush.msra.mxu0 %v3051
    %3081 = vmatpush.msra.mxu0 %v3050
    %3082 = vmatpush.msra.mxu0 %v3049
    %3083 = vmatpush.msra.mxu0 %v3048
    %3084 = vmatpush.msra.mxu0 %v3047
    %3085 = vmatpush.msra.mxu0 %v3046
    %3086 = vmatpush.msra.mxu0 %v3045
    %3087 = vmatpush.msra.mxu0 %v3044
    %3088 = vmatpush.msra.mxu0 %v3043
    %3089 = vmatpush.msra.mxu0 %v3042
    %3090 = vmatpush.msra.mxu0 %v3041
    %3091 = vmatpush.msra.mxu0 %v3040
    %3092 = vmatmul.f32.gmra.mxu0 %v3068
    %v3093 = vpop.f32.mrf.mxu0
    %v3094 = vadd.f32 0.0, %v3093
    %3095 = vdwg.mxu0
    %3096 = vmatpush.msra.mxu0 0.0
    %3097 = vmatpush.msra.mxu0 0.0
    %3098 = vmatpush.msra.mxu0 0.0
    %3099 = vmatpush.msra.mxu0 0.0
    %3100 = vmatpush.msra.mxu0 0.0
    %3101 = vmatpush.msra.mxu0 0.0
    %3102 = vmatpush.msra.mxu0 0.0
    %3103 = vmatpush.msra.mxu0 0.0
    %3104 = vmatpush.msra.mxu0 0.0
    %3105 = vmatpush.msra.mxu0 0.0
    %3106 = vmatpush.msra.mxu0 0.0
    %3107 = vmatpush.msra.mxu0 0.0
    %3108 = vmatpush.msra.mxu0 0.0
    %3109 = vmatpush.msra.mxu0 0.0
    %3110 = vmatpush.msra.mxu0 0.0
    %3111 = vmatpush.msra.mxu0 %v3074
    %3112 = vmatmul.f32.gmra.mxu0 %v3071
    %v3113 = vpop.f32.mrf.mxu0
    %v3114 = vadd.f32 %v3094, %v3113
    %3115 = vdwg.mxu0
    %v3116 = vadd.f32 %v3030, %v3114
    %s3117 = scalar_lea.vmem [#allocation3], 4
    %v3118 = vld [vmem:[%s3117] ss:$8 sm:$0x3]
    %s3119 = scalar_lea.vmem [#allocation3], 68
    %v3120 = vld [vmem:[%s3119] ss:$8 sm:$0x3]
    %s3121 = scalar_lea.vmem [#allocation3], 132
    %v3122 = vld [vmem:[%s3121] ss:$8 sm:$0x3]
    %s3123 = scalar_lea.vmem [#allocation3], 196
    %v3124 = vld [vmem:[%s3123] ss:$8 sm:$0x3]
    %s3125 = scalar_lea.vmem %s5, 544
    %v3126 = vld [vmem:[%s3125] sm:$0xff]
    %v3127 = vld [vmem:[%s3125 + $0x8] sm:$0xff]
    %v3128 = vld [vmem:[%s3125 + $0x10] sm:$0xff]
    %v3129 = vld [vmem:[%s3125 + $0x18] sm:$0xff]
    %v3130 = vld [vmem:[%s3125 + $0x20] sm:$0xff]
    %v3131 = vld [vmem:[%s3125 + $0x28] sm:$0xff]
    %v3132 = vld [vmem:[%s3125 + $0x30] sm:$0xff]
    %v3133 = vld [vmem:[%s3125 + $0x38] sm:$0xff]
    %v3134 = vld [vmem:[%s3125 + $0x40] sm:$0xff]
    %v3135 = vld [vmem:[%s3125 + $0x48] sm:$0xff]
    %v3136 = vld [vmem:[%s3125 + $0x50] sm:$0xff]
    %v3137 = vld [vmem:[%s3125 + $0x58] sm:$0xff]
    %v3138 = vld [vmem:[%s3125 + $0x60] sm:$0xff]
    %v3139 = vld [vmem:[%s3125 + $0x68] sm:$0xff]
    %v3140 = vld [vmem:[%s3125 + $0x70] sm:$0xff]
    %v3141 = vld [vmem:[%s3125 + $0x78] sm:$0xff]
    %v3142 = vld [vmem:[%s3125 + $0x80] sm:$0x3f]
    %3147 = vst [vmem:[#allocation1] ss:$9 sm:$0xff] %v3118
    %s3148 = scalar_lea.vmem [#allocation1], 1
    %3149 = vst [vmem:[%s3148] ss:$9 sm:$0xff] %v3120
    %s3150 = scalar_lea.vmem [#allocation1], 2
    %3151 = vst [vmem:[%s3150] ss:$9 sm:$0xff] %v3122
    %s3152 = scalar_lea.vmem [#allocation1], 3
    %3153 = vst [vmem:[%s3152] ss:$9 sm:$0xff] %v3124
    %v3154 = vld [vmem:[#allocation1] sm:$0xff]
    %v3155 = vld [vmem:[#allocation1 + $0x9] sm:$0xff]
    %v3157 = vsel %vm2839, %v3155, 0
    %v3160 = vsel %vm2842, %v3142, 0
    %3162 = vmatpush.msra.mxu0 %v3141
    %3163 = vmatpush.msra.mxu0 %v3140
    %3164 = vmatpush.msra.mxu0 %v3139
    %3165 = vmatpush.msra.mxu0 %v3138
    %3166 = vmatpush.msra.mxu0 %v3137
    %3167 = vmatpush.msra.mxu0 %v3136
    %3168 = vmatpush.msra.mxu0 %v3135
    %3169 = vmatpush.msra.mxu0 %v3134
    %3170 = vmatpush.msra.mxu0 %v3133
    %3171 = vmatpush.msra.mxu0 %v3132
    %3172 = vmatpush.msra.mxu0 %v3131
    %3173 = vmatpush.msra.mxu0 %v3130
    %3174 = vmatpush.msra.mxu0 %v3129
    %3175 = vmatpush.msra.mxu0 %v3128
    %3176 = vmatpush.msra.mxu0 %v3127
    %3177 = vmatpush.msra.mxu0 %v3126
    %3178 = vmatmul.f32.gmra.mxu0 %v3154
    %v3179 = vpop.f32.mrf.mxu0
    %v3180 = vadd.f32 0.0, %v3179
    %3181 = vdwg.mxu0
    %3182 = vmatpush.msra.mxu0 0.0
    %3183 = vmatpush.msra.mxu0 0.0
    %3184 = vmatpush.msra.mxu0 0.0
    %3185 = vmatpush.msra.mxu0 0.0
    %3186 = vmatpush.msra.mxu0 0.0
    %3187 = vmatpush.msra.mxu0 0.0
    %3188 = vmatpush.msra.mxu0 0.0
    %3189 = vmatpush.msra.mxu0 0.0
    %3190 = vmatpush.msra.mxu0 0.0
    %3191 = vmatpush.msra.mxu0 0.0
    %3192 = vmatpush.msra.mxu0 0.0
    %3193 = vmatpush.msra.mxu0 0.0
    %3194 = vmatpush.msra.mxu0 0.0
    %3195 = vmatpush.msra.mxu0 0.0
    %3196 = vmatpush.msra.mxu0 0.0
    %3197 = vmatpush.msra.mxu0 %v3160
    %3198 = vmatmul.f32.gmra.mxu0 %v3157
    %v3199 = vpop.f32.mrf.mxu0
    %v3200 = vadd.f32 %v3180, %v3199
    %3201 = vdwg.mxu0
    %v3202 = vadd.f32 %v3116, %v3200
    %s3203 = scalar_lea.vmem [#allocation3], 5
    %v3204 = vld [vmem:[%s3203] ss:$8 sm:$0x3]
    %s3205 = scalar_lea.vmem [#allocation3], 69
    %v3206 = vld [vmem:[%s3205] ss:$8 sm:$0x3]
    %s3207 = scalar_lea.vmem [#allocation3], 133
    %v3208 = vld [vmem:[%s3207] ss:$8 sm:$0x3]
    %s3209 = scalar_lea.vmem [#allocation3], 197
    %v3210 = vld [vmem:[%s3209] ss:$8 sm:$0x3]
    %s3211 = scalar_lea.vmem %s5, 680
    %v3212 = vld [vmem:[%s3211] sm:$0xff]
    %v3213 = vld [vmem:[%s3211 + $0x8] sm:$0xff]
    %v3214 = vld [vmem:[%s3211 + $0x10] sm:$0xff]
    %v3215 = vld [vmem:[%s3211 + $0x18] sm:$0xff]
    %v3216 = vld [vmem:[%s3211 + $0x20] sm:$0xff]
    %v3217 = vld [vmem:[%s3211 + $0x28] sm:$0xff]
    %v3218 = vld [vmem:[%s3211 + $0x30] sm:$0xff]
    %v3219 = vld [vmem:[%s3211 + $0x38] sm:$0xff]
    %v3220 = vld [vmem:[%s3211 + $0x40] sm:$0xff]
    %v3221 = vld [vmem:[%s3211 + $0x48] sm:$0xff]
    %v3222 = vld [vmem:[%s3211 + $0x50] sm:$0xff]
    %v3223 = vld [vmem:[%s3211 + $0x58] sm:$0xff]
    %v3224 = vld [vmem:[%s3211 + $0x60] sm:$0xff]
    %v3225 = vld [vmem:[%s3211 + $0x68] sm:$0xff]
    %v3226 = vld [vmem:[%s3211 + $0x70] sm:$0xff]
    %v3227 = vld [vmem:[%s3211 + $0x78] sm:$0xff]
    %v3228 = vld [vmem:[%s3211 + $0x80] sm:$0x3f]
    %3233 = vst [vmem:[#allocation1] ss:$9 sm:$0xff] %v3204
    %s3234 = scalar_lea.vmem [#allocation1], 1
    %3235 = vst [vmem:[%s3234] ss:$9 sm:$0xff] %v3206
    %s3236 = scalar_lea.vmem [#allocation1], 2
    %3237 = vst [vmem:[%s3236] ss:$9 sm:$0xff] %v3208
    %s3238 = scalar_lea.vmem [#allocation1], 3
    %3239 = vst [vmem:[%s3238] ss:$9 sm:$0xff] %v3210
    %v3240 = vld [vmem:[#allocation1] sm:$0xff]
    %v3241 = vld [vmem:[#allocation1 + $0x9] sm:$0xff]
    %v3243 = vsel %vm2839, %v3241, 0
    %v3246 = vsel %vm2842, %v3228, 0
    %3248 = vmatpush.msra.mxu0 %v3227
    %3249 = vmatpush.msra.mxu0 %v3226
    %3250 = vmatpush.msra.mxu0 %v3225
    %3251 = vmatpush.msra.mxu0 %v3224
    %3252 = vmatpush.msra.mxu0 %v3223
    %3253 = vmatpush.msra.mxu0 %v3222
    %3254 = vmatpush.msra.mxu0 %v3221
    %3255 = vmatpush.msra.mxu0 %v3220
    %3256 = vmatpush.msra.mxu0 %v3219
    %3257 = vmatpush.msra.mxu0 %v3218
    %3258 = vmatpush.msra.mxu0 %v3217
    %3259 = vmatpush.msra.mxu0 %v3216
    %3260 = vmatpush.msra.mxu0 %v3215
    %3261 = vmatpush.msra.mxu0 %v3214
    %3262 = vmatpush.msra.mxu0 %v3213
    %3263 = vmatpush.msra.mxu0 %v3212
    %3264 = vmatmul.f32.gmra.mxu0 %v3240
    %v3265 = vpop.f32.mrf.mxu0
    %v3266 = vadd.f32 0.0, %v3265
    %3267 = vdwg.mxu0
    %3268 = vmatpush.msra.mxu0 0.0
    %3269 = vmatpush.msra.mxu0 0.0
    %3270 = vmatpush.msra.mxu0 0.0
    %3271 = vmatpush.msra.mxu0 0.0
    %3272 = vmatpush.msra.mxu0 0.0
    %3273 = vmatpush.msra.mxu0 0.0
    %3274 = vmatpush.msra.mxu0 0.0
    %3275 = vmatpush.msra.mxu0 0.0
    %3276 = vmatpush.msra.mxu0 0.0
    %3277 = vmatpush.msra.mxu0 0.0
    %3278 = vmatpush.msra.mxu0 0.0
    %3279 = vmatpush.msra.mxu0 0.0
    %3280 = vmatpush.msra.mxu0 0.0
    %3281 = vmatpush.msra.mxu0 0.0
    %3282 = vmatpush.msra.mxu0 0.0
    %3283 = vmatpush.msra.mxu0 %v3246
    %3284 = vmatmul.f32.gmra.mxu0 %v3243
    %v3285 = vpop.f32.mrf.mxu0
    %v3286 = vadd.f32 %v3266, %v3285
    %3287 = vdwg.mxu0
    %v3288 = vadd.f32 %v3202, %v3286
    %s3289 = scalar_lea.vmem [#allocation3], 6
    %v3290 = vld [vmem:[%s3289] ss:$8 sm:$0x3]
    %s3291 = scalar_lea.vmem [#allocation3], 70
    %v3292 = vld [vmem:[%s3291] ss:$8 sm:$0x3]
    %s3293 = scalar_lea.vmem [#allocation3], 134
    %v3294 = vld [vmem:[%s3293] ss:$8 sm:$0x3]
    %s3295 = scalar_lea.vmem [#allocation3], 198
    %v3296 = vld [vmem:[%s3295] ss:$8 sm:$0x3]
    %s3297 = scalar_lea.vmem %s5, 816
    %v3298 = vld [vmem:[%s3297] sm:$0xff]
    %v3299 = vld [vmem:[%s3297 + $0x8] sm:$0xff]
    %v3300 = vld [vmem:[%s3297 + $0x10] sm:$0xff]
    %v3301 = vld [vmem:[%s3297 + $0x18] sm:$0xff]
    %v3302 = vld [vmem:[%s3297 + $0x20] sm:$0xff]
    %v3303 = vld [vmem:[%s3297 + $0x28] sm:$0xff]
    %v3304 = vld [vmem:[%s3297 + $0x30] sm:$0xff]
    %v3305 = vld [vmem:[%s3297 + $0x38] sm:$0xff]
    %v3306 = vld [vmem:[%s3297 + $0x40] sm:$0xff]
    %v3307 = vld [vmem:[%s3297 + $0x48] sm:$0xff]
    %v3308 = vld [vmem:[%s3297 + $0x50] sm:$0xff]
    %v3309 = vld [vmem:[%s3297 + $0x58] sm:$0xff]
    %v3310 = vld [vmem:[%s3297 + $0x60] sm:$0xff]
    %v3311 = vld [vmem:[%s3297 + $0x68] sm:$0xff]
    %v3312 = vld [vmem:[%s3297 + $0x70] sm:$0xff]
    %v3313 = vld [vmem:[%s3297 + $0x78] sm:$0xff]
    %v3314 = vld [vmem:[%s3297 + $0x80] sm:$0x3f]
    %3319 = vst [vmem:[#allocation1] ss:$9 sm:$0xff] %v3290
    %s3320 = scalar_lea.vmem [#allocation1], 1
    %3321 = vst [vmem:[%s3320] ss:$9 sm:$0xff] %v3292
    %s3322 = scalar_lea.vmem [#allocation1], 2
    %3323 = vst [vmem:[%s3322] ss:$9 sm:$0xff] %v3294
    %s3324 = scalar_lea.vmem [#allocation1], 3
    %3325 = vst [vmem:[%s3324] ss:$9 sm:$0xff] %v3296
    %v3326 = vld [vmem:[#allocation1] sm:$0xff]
    %v3327 = vld [vmem:[#allocation1 + $0x9] sm:$0xff]
    %v3329 = vsel %vm2839, %v3327, 0
    %v3332 = vsel %vm2842, %v3314, 0
    %3334 = vmatpush.msra.mxu0 %v3313
    %3335 = vmatpush.msra.mxu0 %v3312
    %3336 = vmatpush.msra.mxu0 %v3311
    %3337 = vmatpush.msra.mxu0 %v3310
    %3338 = vmatpush.msra.mxu0 %v3309
    %3339 = vmatpush.msra.mxu0 %v3308
    %3340 = vmatpush.msra.mxu0 %v3307
    %3341 = vmatpush.msra.mxu0 %v3306
    %3342 = vmatpush.msra.mxu0 %v3305
    %3343 = vmatpush.msra.mxu0 %v3304
    %3344 = vmatpush.msra.mxu0 %v3303
    %3345 = vmatpush.msra.mxu0 %v3302
    %3346 = vmatpush.msra.mxu0 %v3301
    %3347 = vmatpush.msra.mxu0 %v3300
    %3348 = vmatpush.msra.mxu0 %v3299
    %3349 = vmatpush.msra.mxu0 %v3298
    %3350 = vmatmul.f32.gmra.mxu0 %v3326
    %v3351 = vpop.f32.mrf.mxu0
    %v3352 = vadd.f32 0.0, %v3351
    %3353 = vdwg.mxu0
    %3354 = vmatpush.msra.mxu0 0.0
    %3355 = vmatpush.msra.mxu0 0.0
    %3356 = vmatpush.msra.mxu0 0.0
    %3357 = vmatpush.msra.mxu0 0.0
    %3358 = vmatpush.msra.mxu0 0.0
    %3359 = vmatpush.msra.mxu0 0.0
    %3360 = vmatpush.msra.mxu0 0.0
    %3361 = vmatpush.msra.mxu0 0.0
    %3362 = vmatpush.msra.mxu0 0.0
    %3363 = vmatpush.msra.mxu0 0.0
    %3364 = vmatpush.msra.mxu0 0.0
    %3365 = vmatpush.msra.mxu0 0.0
    %3366 = vmatpush.msra.mxu0 0.0
    %3367 = vmatpush.msra.mxu0 0.0
    %3368 = vmatpush.msra.mxu0 0.0
    %3369 = vmatpush.msra.mxu0 %v3332
    %3370 = vmatmul.f32.gmra.mxu0 %v3329
    %v3371 = vpop.f32.mrf.mxu0
    %v3372 = vadd.f32 %v3352, %v3371
    %3373 = vdwg.mxu0
    %v3374 = vadd.f32 %v3288, %v3372
    %s3375 = scalar_lea.vmem [#allocation3], 7
    %v3376 = vld [vmem:[%s3375] ss:$8 sm:$0x3]
    %s3377 = scalar_lea.vmem [#allocation3], 71
    %v3378 = vld [vmem:[%s3377] ss:$8 sm:$0x3]
    %s3379 = scalar_lea.vmem [#allocation3], 135
    %v3380 = vld [vmem:[%s3379] ss:$8 sm:$0x3]
    %s3381 = scalar_lea.vmem [#allocation3], 199
    %v3382 = vld [vmem:[%s3381] ss:$8 sm:$0x3]
    %s3383 = scalar_lea.vmem %s5, 952
    %v3384 = vld [vmem:[%s3383] sm:$0xff]
    %v3385 = vld [vmem:[%s3383 + $0x8] sm:$0xff]
    %v3386 = vld [vmem:[%s3383 + $0x10] sm:$0xff]
    %v3387 = vld [vmem:[%s3383 + $0x18] sm:$0xff]
    %v3388 = vld [vmem:[%s3383 + $0x20] sm:$0xff]
    %v3389 = vld [vmem:[%s3383 + $0x28] sm:$0xff]
    %v3390 = vld [vmem:[%s3383 + $0x30] sm:$0xff]
    %v3391 = vld [vmem:[%s3383 + $0x38] sm:$0xff]
    %v3392 = vld [vmem:[%s3383 + $0x40] sm:$0xff]
    %v3393 = vld [vmem:[%s3383 + $0x48] sm:$0xff]
    %v3394 = vld [vmem:[%s3383 + $0x50] sm:$0xff]
    %v3395 = vld [vmem:[%s3383 + $0x58] sm:$0xff]
    %v3396 = vld [vmem:[%s3383 + $0x60] sm:$0xff]
    %v3397 = vld [vmem:[%s3383 + $0x68] sm:$0xff]
    %v3398 = vld [vmem:[%s3383 + $0x70] sm:$0xff]
    %v3399 = vld [vmem:[%s3383 + $0x78] sm:$0xff]
    %v3400 = vld [vmem:[%s3383 + $0x80] sm:$0x3f]
    %3405 = vst [vmem:[#allocation1] ss:$9 sm:$0xff] %v3376
    %s3406 = scalar_lea.vmem [#allocation1], 1
    %3407 = vst [vmem:[%s3406] ss:$9 sm:$0xff] %v3378
    %s3408 = scalar_lea.vmem [#allocation1], 2
    %3409 = vst [vmem:[%s3408] ss:$9 sm:$0xff] %v3380
    %s3410 = scalar_lea.vmem [#allocation1], 3
    %3411 = vst [vmem:[%s3410] ss:$9 sm:$0xff] %v3382
    %v3412 = vld [vmem:[#allocation1] sm:$0xff]
    %v3413 = vld [vmem:[#allocation1 + $0x9] sm:$0xff]
    %v3415 = vsel %vm2839, %v3413, 0
    %v3418 = vsel %vm2842, %v3400, 0
    %3420 = vmatpush.msra.mxu0 %v3399
    %3421 = vmatpush.msra.mxu0 %v3398
    %3422 = vmatpush.msra.mxu0 %v3397
    %3423 = vmatpush.msra.mxu0 %v3396
    %3424 = vmatpush.msra.mxu0 %v3395
    %3425 = vmatpush.msra.mxu0 %v3394
    %3426 = vmatpush.msra.mxu0 %v3393
    %3427 = vmatpush.msra.mxu0 %v3392
    %3428 = vmatpush.msra.mxu0 %v3391
    %3429 = vmatpush.msra.mxu0 %v3390
    %3430 = vmatpush.msra.mxu0 %v3389
    %3431 = vmatpush.msra.mxu0 %v3388
    %3432 = vmatpush.msra.mxu0 %v3387
    %3433 = vmatpush.msra.mxu0 %v3386
    %3434 = vmatpush.msra.mxu0 %v3385
    %3435 = vmatpush.msra.mxu0 %v3384
    %3436 = vmatmul.f32.gmra.mxu0 %v3412
    %v3437 = vpop.f32.mrf.mxu0
    %v3438 = vadd.f32 0.0, %v3437
    %3439 = vdwg.mxu0
    %3440 = vmatpush.msra.mxu0 0.0
    %3441 = vmatpush.msra.mxu0 0.0
    %3442 = vmatpush.msra.mxu0 0.0
    %3443 = vmatpush.msra.mxu0 0.0
    %3444 = vmatpush.msra.mxu0 0.0
    %3445 = vmatpush.msra.mxu0 0.0
    %3446 = vmatpush.msra.mxu0 0.0
    %3447 = vmatpush.msra.mxu0 0.0
    %3448 = vmatpush.msra.mxu0 0.0
    %3449 = vmatpush.msra.mxu0 0.0
    %3450 = vmatpush.msra.mxu0 0.0
    %3451 = vmatpush.msra.mxu0 0.0
    %3452 = vmatpush.msra.mxu0 0.0
    %3453 = vmatpush.msra.mxu0 0.0
    %3454 = vmatpush.msra.mxu0 0.0
    %3455 = vmatpush.msra.mxu0 %v3418
    %3456 = vmatmul.f32.gmra.mxu0 %v3415
    %v3457 = vpop.f32.mrf.mxu0
    %v3458 = vadd.f32 %v3438, %v3457
    %3459 = vdwg.mxu0
    %v3460 = vadd.f32 %v3374, %v3458
    %s3461 = scalar_lea.vmem [#allocation3], 16
    %v3462 = vld [vmem:[%s3461] ss:$8 sm:$0x3]
    %s3463 = scalar_lea.vmem [#allocation3], 80
    %v3464 = vld [vmem:[%s3463] ss:$8 sm:$0x3]
    %s3465 = scalar_lea.vmem [#allocation3], 144
    %v3466 = vld [vmem:[%s3465] ss:$8 sm:$0x3]
    %s3467 = scalar_lea.vmem [#allocation3], 208
    %v3468 = vld [vmem:[%s3467] ss:$8 sm:$0x3]
    %s3469 = scalar_lea.vmem %s5, 1088
    %v3470 = vld [vmem:[%s3469] sm:$0xff]
    %v3471 = vld [vmem:[%s3469 + $0x8] sm:$0xff]
    %v3472 = vld [vmem:[%s3469 + $0x10] sm:$0xff]
    %v3473 = vld [vmem:[%s3469 + $0x18] sm:$0xff]
    %v3474 = vld [vmem:[%s3469 + $0x20] sm:$0xff]
    %v3475 = vld [vmem:[%s3469 + $0x28] sm:$0xff]
    %v3476 = vld [vmem:[%s3469 + $0x30] sm:$0xff]
    %v3477 = vld [vmem:[%s3469 + $0x38] sm:$0xff]
    %v3478 = vld [vmem:[%s3469 + $0x40] sm:$0xff]
    %v3479 = vld [vmem:[%s3469 + $0x48] sm:$0xff]
    %v3480 = vld [vmem:[%s3469 + $0x50] sm:$0xff]
    %v3481 = vld [vmem:[%s3469 + $0x58] sm:$0xff]
    %v3482 = vld [vmem:[%s3469 + $0x60] sm:$0xff]
    %v3483 = vld [vmem:[%s3469 + $0x68] sm:$0xff]
    %v3484 = vld [vmem:[%s3469 + $0x70] sm:$0xff]
    %v3485 = vld [vmem:[%s3469 + $0x78] sm:$0xff]
    %v3486 = vld [vmem:[%s3469 + $0x80] sm:$0x3f]
    %3491 = vst [vmem:[#allocation1] ss:$9 sm:$0xff] %v3462
    %s3492 = scalar_lea.vmem [#allocation1], 1
    %3493 = vst [vmem:[%s3492] ss:$9 sm:$0xff] %v3464
    %s3494 = scalar_lea.vmem [#allocation1], 2
    %3495 = vst [vmem:[%s3494] ss:$9 sm:$0xff] %v3466
    %s3496 = scalar_lea.vmem [#allocation1], 3
    %3497 = vst [vmem:[%s3496] ss:$9 sm:$0xff] %v3468
    %v3498 = vld [vmem:[#allocation1] sm:$0xff]
    %v3499 = vld [vmem:[#allocation1 + $0x9] sm:$0xff]
    %v3501 = vsel %vm2839, %v3499, 0
    %v3504 = vsel %vm2842, %v3486, 0
    %3506 = vmatpush.msra.mxu0 %v3485
    %3507 = vmatpush.msra.mxu0 %v3484
    %3508 = vmatpush.msra.mxu0 %v3483
    %3509 = vmatpush.msra.mxu0 %v3482
    %3510 = vmatpush.msra.mxu0 %v3481
    %3511 = vmatpush.msra.mxu0 %v3480
    %3512 = vmatpush.msra.mxu0 %v3479
    %3513 = vmatpush.msra.mxu0 %v3478
    %3514 = vmatpush.msra.mxu0 %v3477
    %3515 = vmatpush.msra.mxu0 %v3476
    %3516 = vmatpush.msra.mxu0 %v3475
    %3517 = vmatpush.msra.mxu0 %v3474
    %3518 = vmatpush.msra.mxu0 %v3473
    %3519 = vmatpush.msra.mxu0 %v3472
    %3520 = vmatpush.msra.mxu0 %v3471
    %3521 = vmatpush.msra.mxu0 %v3470
    %3522 = vmatmul.f32.gmra.mxu0 %v3498
    %v3523 = vpop.f32.mrf.mxu0
    %v3524 = vadd.f32 0.0, %v3523
    %3525 = vdwg.mxu0
    %3526 = vmatpush.msra.mxu0 0.0
    %3527 = vmatpush.msra.mxu0 0.0
    %3528 = vmatpush.msra.mxu0 0.0
    %3529 = vmatpush.msra.mxu0 0.0
    %3530 = vmatpush.msra.mxu0 0.0
    %3531 = vmatpush.msra.mxu0 0.0
    %3532 = vmatpush.msra.mxu0 0.0
    %3533 = vmatpush.msra.mxu0 0.0
    %3534 = vmatpush.msra.mxu0 0.0
    %3535 = vmatpush.msra.mxu0 0.0
    %3536 = vmatpush.msra.mxu0 0.0
    %3537 = vmatpush.msra.mxu0 0.0
    %3538 = vmatpush.msra.mxu0 0.0
    %3539 = vmatpush.msra.mxu0 0.0
    %3540 = vmatpush.msra.mxu0 0.0
    %3541 = vmatpush.msra.mxu0 %v3504
    %3542 = vmatmul.f32.gmra.mxu0 %v3501
    %v3543 = vpop.f32.mrf.mxu0
    %v3544 = vadd.f32 %v3524, %v3543
    %3545 = vdwg.mxu0
    %v3546 = vadd.f32 %v3460, %v3544
    %s3547 = scalar_lea.vmem [#allocation3], 17
    %v3548 = vld [vmem:[%s3547] ss:$8 sm:$0x3]
    %s3549 = scalar_lea.vmem [#allocation3], 81
    %v3550 = vld [vmem:[%s3549] ss:$8 sm:$0x3]
    %s3551 = scalar_lea.vmem [#allocation3], 145
    %v3552 = vld [vmem:[%s3551] ss:$8 sm:$0x3]
    %s3553 = scalar_lea.vmem [#allocation3], 209
    %v3554 = vld [vmem:[%s3553] ss:$8 sm:$0x3]
    %s3555 = scalar_lea.vmem %s5, 1224
    %v3556 = vld [vmem:[%s3555] sm:$0xff]
    %v3557 = vld [vmem:[%s3555 + $0x8] sm:$0xff]
    %v3558 = vld [vmem:[%s3555 + $0x10] sm:$0xff]
    %v3559 = vld [vmem:[%s3555 + $0x18] sm:$0xff]
    %v3560 = vld [vmem:[%s3555 + $0x20] sm:$0xff]
    %v3561 = vld [vmem:[%s3555 + $0x28] sm:$0xff]
    %v3562 = vld [vmem:[%s3555 + $0x30] sm:$0xff]
    %v3563 = vld [vmem:[%s3555 + $0x38] sm:$0xff]
    %v3564 = vld [vmem:[%s3555 + $0x40] sm:$0xff]
    %v3565 = vld [vmem:[%s3555 + $0x48] sm:$0xff]
    %v3566 = vld [vmem:[%s3555 + $0x50] sm:$0xff]
    %v3567 = vld [vmem:[%s3555 + $0x58] sm:$0xff]
    %v3568 = vld [vmem:[%s3555 + $0x60] sm:$0xff]
    %v3569 = vld [vmem:[%s3555 + $0x68] sm:$0xff]
    %v3570 = vld [vmem:[%s3555 + $0x70] sm:$0xff]
    %v3571 = vld [vmem:[%s3555 + $0x78] sm:$0xff]
    %v3572 = vld [vmem:[%s3555 + $0x80] sm:$0x3f]
    %3577 = vst [vmem:[#allocation1] ss:$9 sm:$0xff] %v3548
    %s3578 = scalar_lea.vmem [#allocation1], 1
    %3579 = vst [vmem:[%s3578] ss:$9 sm:$0xff] %v3550
    %s3580 = scalar_lea.vmem [#allocation1], 2
    %3581 = vst [vmem:[%s3580] ss:$9 sm:$0xff] %v3552
    %s3582 = scalar_lea.vmem [#allocation1], 3
    %3583 = vst [vmem:[%s3582] ss:$9 sm:$0xff] %v3554
    %v3584 = vld [vmem:[#allocation1] sm:$0xff]
    %v3585 = vld [vmem:[#allocation1 + $0x9] sm:$0xff]
    %v3587 = vsel %vm2839, %v3585, 0
    %v3590 = vsel %vm2842, %v3572, 0
    %3592 = vmatpush.msra.mxu0 %v3571
    %3593 = vmatpush.msra.mxu0 %v3570
    %3594 = vmatpush.msra.mxu0 %v3569
    %3595 = vmatpush.msra.mxu0 %v3568
    %3596 = vmatpush.msra.mxu0 %v3567
    %3597 = vmatpush.msra.mxu0 %v3566
    %3598 = vmatpush.msra.mxu0 %v3565
    %3599 = vmatpush.msra.mxu0 %v3564
    %3600 = vmatpush.msra.mxu0 %v3563
    %3601 = vmatpush.msra.mxu0 %v3562
    %3602 = vmatpush.msra.mxu0 %v3561
    %3603 = vmatpush.msra.mxu0 %v3560
    %3604 = vmatpush.msra.mxu0 %v3559
    %3605 = vmatpush.msra.mxu0 %v3558
    %3606 = vmatpush.msra.mxu0 %v3557
    %3607 = vmatpush.msra.mxu0 %v3556
    %3608 = vmatmul.f32.gmra.mxu0 %v3584
    %v3609 = vpop.f32.mrf.mxu0
    %v3610 = vadd.f32 0.0, %v3609
    %3611 = vdwg.mxu0
    %3612 = vmatpush.msra.mxu0 0.0
    %3613 = vmatpush.msra.mxu0 0.0
    %3614 = vmatpush.msra.mxu0 0.0
    %3615 = vmatpush.msra.mxu0 0.0
    %3616 = vmatpush.msra.mxu0 0.0
    %3617 = vmatpush.msra.mxu0 0.0
    %3618 = vmatpush.msra.mxu0 0.0
    %3619 = vmatpush.msra.mxu0 0.0
    %3620 = vmatpush.msra.mxu0 0.0
    %3621 = vmatpush.msra.mxu0 0.0
    %3622 = vmatpush.msra.mxu0 0.0
    %3623 = vmatpush.msra.mxu0 0.0
    %3624 = vmatpush.msra.mxu0 0.0
    %3625 = vmatpush.msra.mxu0 0.0
    %3626 = vmatpush.msra.mxu0 0.0
    %3627 = vmatpush.msra.mxu0 %v3590
    %3628 = vmatmul.f32.gmra.mxu0 %v3587
    %v3629 = vpop.f32.mrf.mxu0
    %v3630 = vadd.f32 %v3610, %v3629
    %3631 = vdwg.mxu0
    %v3632 = vadd.f32 %v3546, %v3630
    %s3633 = scalar_lea.vmem [#allocation3], 18
    %v3634 = vld [vmem:[%s3633] ss:$8 sm:$0x3]
    %s3635 = scalar_lea.vmem [#allocation3], 82
    %v3636 = vld [vmem:[%s3635] ss:$8 sm:$0x3]
    %s3637 = scalar_lea.vmem [#allocation3], 146
    %v3638 = vld [vmem:[%s3637] ss:$8 sm:$0x3]
    %s3639 = scalar_lea.vmem [#allocation3], 210
    %v3640 = vld [vmem:[%s3639] ss:$8 sm:$0x3]
    %s3641 = scalar_lea.vmem %s5, 1360
    %v3642 = vld [vmem:[%s3641] sm:$0xff]
    %v3643 = vld [vmem:[%s3641 + $0x8] sm:$0xff]
    %v3644 = vld [vmem:[%s3641 + $0x10] sm:$0xff]
    %v3645 = vld [vmem:[%s3641 + $0x18] sm:$0xff]
    %v3646 = vld [vmem:[%s3641 + $0x20] sm:$0xff]
    %v3647 = vld [vmem:[%s3641 + $0x28] sm:$0xff]
    %v3648 = vld [vmem:[%s3641 + $0x30] sm:$0xff]
    %v3649 = vld [vmem:[%s3641 + $0x38] sm:$0xff]
    %v3650 = vld [vmem:[%s3641 + $0x40] sm:$0xff]
    %v3651 = vld [vmem:[%s3641 + $0x48] sm:$0xff]
    %v3652 = vld [vmem:[%s3641 + $0x50] sm:$0xff]
    %v3653 = vld [vmem:[%s3641 + $0x58] sm:$0xff]
    %v3654 = vld [vmem:[%s3641 + $0x60] sm:$0xff]
    %v3655 = vld [vmem:[%s3641 + $0x68] sm:$0xff]
    %v3656 = vld [vmem:[%s3641 + $0x70] sm:$0xff]
    %v3657 = vld [vmem:[%s3641 + $0x78] sm:$0xff]
    %v3658 = vld [vmem:[%s3641 + $0x80] sm:$0x3f]
    %3663 = vst [vmem:[#allocation1] ss:$9 sm:$0xff] %v3634
    %s3664 = scalar_lea.vmem [#allocation1], 1
    %3665 = vst [vmem:[%s3664] ss:$9 sm:$0xff] %v3636
    %s3666 = scalar_lea.vmem [#allocation1], 2
    %3667 = vst [vmem:[%s3666] ss:$9 sm:$0xff] %v3638
    %s3668 = scalar_lea.vmem [#allocation1], 3
    %3669 = vst [vmem:[%s3668] ss:$9 sm:$0xff] %v3640
    %v3670 = vld [vmem:[#allocation1] sm:$0xff]
    %v3671 = vld [vmem:[#allocation1 + $0x9] sm:$0xff]
    %v3673 = vsel %vm2839, %v3671, 0
    %v3676 = vsel %vm2842, %v3658, 0
    %3678 = vmatpush.msra.mxu0 %v3657
    %3679 = vmatpush.msra.mxu0 %v3656
    %3680 = vmatpush.msra.mxu0 %v3655
    %3681 = vmatpush.msra.mxu0 %v3654
    %3682 = vmatpush.msra.mxu0 %v3653
    %3683 = vmatpush.msra.mxu0 %v3652
    %3684 = vmatpush.msra.mxu0 %v3651
    %3685 = vmatpush.msra.mxu0 %v3650
    %3686 = vmatpush.msra.mxu0 %v3649
    %3687 = vmatpush.msra.mxu0 %v3648
    %3688 = vmatpush.msra.mxu0 %v3647
    %3689 = vmatpush.msra.mxu0 %v3646
    %3690 = vmatpush.msra.mxu0 %v3645
    %3691 = vmatpush.msra.mxu0 %v3644
    %3692 = vmatpush.msra.mxu0 %v3643
    %3693 = vmatpush.msra.mxu0 %v3642
    %3694 = vmatmul.f32.gmra.mxu0 %v3670
    %v3695 = vpop.f32.mrf.mxu0
    %v3696 = vadd.f32 0.0, %v3695
    %3697 = vdwg.mxu0
    %3698 = vmatpush.msra.mxu0 0.0
    %3699 = vmatpush.msra.mxu0 0.0
    %3700 = vmatpush.msra.mxu0 0.0
    %3701 = vmatpush.msra.mxu0 0.0
    %3702 = vmatpush.msra.mxu0 0.0
    %3703 = vmatpush.msra.mxu0 0.0
    %3704 = vmatpush.msra.mxu0 0.0
    %3705 = vmatpush.msra.mxu0 0.0
    %3706 = vmatpush.msra.mxu0 0.0
    %3707 = vmatpush.msra.mxu0 0.0
    %3708 = vmatpush.msra.mxu0 0.0
    %3709 = vmatpush.msra.mxu0 0.0
    %3710 = vmatpush.msra.mxu0 0.0
    %3711 = vmatpush.msra.mxu0 0.0
    %3712 = vmatpush.msra.mxu0 0.0
    %3713 = vmatpush.msra.mxu0 %v3676
    %3714 = vmatmul.f32.gmra.mxu0 %v3673
    %v3715 = vpop.f32.mrf.mxu0
    %v3716 = vadd.f32 %v3696, %v3715
    %3717 = vdwg.mxu0
    %v3718 = vadd.f32 %v3632, %v3716
    %s3719 = scalar_lea.vmem [#allocation3], 19
    %v3720 = vld [vmem:[%s3719] ss:$8 sm:$0x3]
    %s3721 = scalar_lea.vmem [#allocation3], 83
    %v3722 = vld [vmem:[%s3721] ss:$8 sm:$0x3]
    %s3723 = scalar_lea.vmem [#allocation3], 147
    %v3724 = vld [vmem:[%s3723] ss:$8 sm:$0x3]
    %s3725 = scalar_lea.vmem [#allocation3], 211
    %v3726 = vld [vmem:[%s3725] ss:$8 sm:$0x3]
    %s3727 = scalar_lea.vmem %s5, 1496
    %v3728 = vld [vmem:[%s3727] sm:$0xff]
    %v3729 = vld [vmem:[%s3727 + $0x8] sm:$0xff]
    %v3730 = vld [vmem:[%s3727 + $0x10] sm:$0xff]
    %v3731 = vld [vmem:[%s3727 + $0x18] sm:$0xff]
    %v3732 = vld [vmem:[%s3727 + $0x20] sm:$0xff]
    %v3733 = vld [vmem:[%s3727 + $0x28] sm:$0xff]
    %v3734 = vld [vmem:[%s3727 + $0x30] sm:$0xff]
    %v3735 = vld [vmem:[%s3727 + $0x38] sm:$0xff]
    %v3736 = vld [vmem:[%s3727 + $0x40] sm:$0xff]
    %v3737 = vld [vmem:[%s3727 + $0x48] sm:$0xff]
    %v3738 = vld [vmem:[%s3727 + $0x50] sm:$0xff]
    %v3739 = vld [vmem:[%s3727 + $0x58] sm:$0xff]
    %v3740 = vld [vmem:[%s3727 + $0x60] sm:$0xff]
    %v3741 = vld [vmem:[%s3727 + $0x68] sm:$0xff]
    %v3742 = vld [vmem:[%s3727 + $0x70] sm:$0xff]
    %v3743 = vld [vmem:[%s3727 + $0x78] sm:$0xff]
    %v3744 = vld [vmem:[%s3727 + $0x80] sm:$0x3f]
    %3749 = vst [vmem:[#allocation1] ss:$9 sm:$0xff] %v3720
    %s3750 = scalar_lea.vmem [#allocation1], 1
    %3751 = vst [vmem:[%s3750] ss:$9 sm:$0xff] %v3722
    %s3752 = scalar_lea.vmem [#allocation1], 2
    %3753 = vst [vmem:[%s3752] ss:$9 sm:$0xff] %v3724
    %s3754 = scalar_lea.vmem [#allocation1], 3
    %3755 = vst [vmem:[%s3754] ss:$9 sm:$0xff] %v3726
    %v3756 = vld [vmem:[#allocation1] sm:$0xff]
    %v3757 = vld [vmem:[#allocation1 + $0x9] sm:$0xff]
    %v3759 = vsel %vm2839, %v3757, 0
    %v3762 = vsel %vm2842, %v3744, 0
    %3764 = vmatpush.msra.mxu0 %v3743
    %3765 = vmatpush.msra.mxu0 %v3742
    %3766 = vmatpush.msra.mxu0 %v3741
    %3767 = vmatpush.msra.mxu0 %v3740
    %3768 = vmatpush.msra.mxu0 %v3739
    %3769 = vmatpush.msra.mxu0 %v3738
    %3770 = vmatpush.msra.mxu0 %v3737
    %3771 = vmatpush.msra.mxu0 %v3736
    %3772 = vmatpush.msra.mxu0 %v3735
    %3773 = vmatpush.msra.mxu0 %v3734
    %3774 = vmatpush.msra.mxu0 %v3733
    %3775 = vmatpush.msra.mxu0 %v3732
    %3776 = vmatpush.msra.mxu0 %v3731
    %3777 = vmatpush.msra.mxu0 %v3730
    %3778 = vmatpush.msra.mxu0 %v3729
    %3779 = vmatpush.msra.mxu0 %v3728
    %3780 = vmatmul.f32.gmra.mxu0 %v3756
    %v3781 = vpop.f32.mrf.mxu0
    %v3782 = vadd.f32 0.0, %v3781
    %3783 = vdwg.mxu0
    %3784 = vmatpush.msra.mxu0 0.0
    %3785 = vmatpush.msra.mxu0 0.0
    %3786 = vmatpush.msra.mxu0 0.0
    %3787 = vmatpush.msra.mxu0 0.0
    %3788 = vmatpush.msra.mxu0 0.0
    %3789 = vmatpush.msra.mxu0 0.0
    %3790 = vmatpush.msra.mxu0 0.0
    %3791 = vmatpush.msra.mxu0 0.0
    %3792 = vmatpush.msra.mxu0 0.0
    %3793 = vmatpush.msra.mxu0 0.0
    %3794 = vmatpush.msra.mxu0 0.0
    %3795 = vmatpush.msra.mxu0 0.0
    %3796 = vmatpush.msra.mxu0 0.0
    %3797 = vmatpush.msra.mxu0 0.0
    %3798 = vmatpush.msra.mxu0 0.0
    %3799 = vmatpush.msra.mxu0 %v3762
    %3800 = vmatmul.f32.gmra.mxu0 %v3759
    %v3801 = vpop.f32.mrf.mxu0
    %v3802 = vadd.f32 %v3782, %v3801
    %3803 = vdwg.mxu0
    %v3804 = vadd.f32 %v3718, %v3802
    %s3805 = scalar_lea.vmem [#allocation3], 20
    %v3806 = vld [vmem:[%s3805] ss:$8 sm:$0x3]
    %s3807 = scalar_lea.vmem [#allocation3], 84
    %v3808 = vld [vmem:[%s3807] ss:$8 sm:$0x3]
    %s3809 = scalar_lea.vmem [#allocation3], 148
    %v3810 = vld [vmem:[%s3809] ss:$8 sm:$0x3]
    %s3811 = scalar_lea.vmem [#allocation3], 212
    %v3812 = vld [vmem:[%s3811] ss:$8 sm:$0x3]
    %s3813 = scalar_lea.vmem %s5, 1632
    %v3814 = vld [vmem:[%s3813] sm:$0xff]
    %v3815 = vld [vmem:[%s3813 + $0x8] sm:$0xff]
    %v3816 = vld [vmem:[%s3813 + $0x10] sm:$0xff]
    %v3817 = vld [vmem:[%s3813 + $0x18] sm:$0xff]
    %v3818 = vld [vmem:[%s3813 + $0x20] sm:$0xff]
    %v3819 = vld [vmem:[%s3813 + $0x28] sm:$0xff]
    %v3820 = vld [vmem:[%s3813 + $0x30] sm:$0xff]
    %v3821 = vld [vmem:[%s3813 + $0x38] sm:$0xff]
    %v3822 = vld [vmem:[%s3813 + $0x40] sm:$0xff]
    %v3823 = vld [vmem:[%s3813 + $0x48] sm:$0xff]
    %v3824 = vld [vmem:[%s3813 + $0x50] sm:$0xff]
    %v3825 = vld [vmem:[%s3813 + $0x58] sm:$0xff]
    %v3826 = vld [vmem:[%s3813 + $0x60] sm:$0xff]
    %v3827 = vld [vmem:[%s3813 + $0x68] sm:$0xff]
    %v3828 = vld [vmem:[%s3813 + $0x70] sm:$0xff]
    %v3829 = vld [vmem:[%s3813 + $0x78] sm:$0xff]
    %v3830 = vld [vmem:[%s3813 + $0x80] sm:$0x3f]
    %3835 = vst [vmem:[#allocation1] ss:$9 sm:$0xff] %v3806
    %s3836 = scalar_lea.vmem [#allocation1], 1
    %3837 = vst [vmem:[%s3836] ss:$9 sm:$0xff] %v3808
    %s3838 = scalar_lea.vmem [#allocation1], 2
    %3839 = vst [vmem:[%s3838] ss:$9 sm:$0xff] %v3810
    %s3840 = scalar_lea.vmem [#allocation1], 3
    %3841 = vst [vmem:[%s3840] ss:$9 sm:$0xff] %v3812
    %v3842 = vld [vmem:[#allocation1] sm:$0xff]
    %v3843 = vld [vmem:[#allocation1 + $0x9] sm:$0xff]
    %v3845 = vsel %vm2839, %v3843, 0
    %v3848 = vsel %vm2842, %v3830, 0
    %3850 = vmatpush.msra.mxu0 %v3829
    %3851 = vmatpush.msra.mxu0 %v3828
    %3852 = vmatpush.msra.mxu0 %v3827
    %3853 = vmatpush.msra.mxu0 %v3826
    %3854 = vmatpush.msra.mxu0 %v3825
    %3855 = vmatpush.msra.mxu0 %v3824
    %3856 = vmatpush.msra.mxu0 %v3823
    %3857 = vmatpush.msra.mxu0 %v3822
    %3858 = vmatpush.msra.mxu0 %v3821
    %3859 = vmatpush.msra.mxu0 %v3820
    %3860 = vmatpush.msra.mxu0 %v3819
    %3861 = vmatpush.msra.mxu0 %v3818
    %3862 = vmatpush.msra.mxu0 %v3817
    %3863 = vmatpush.msra.mxu0 %v3816
    %3864 = vmatpush.msra.mxu0 %v3815
    %3865 = vmatpush.msra.mxu0 %v3814
    %3866 = vmatmul.f32.gmra.mxu0 %v3842
    %v3867 = vpop.f32.mrf.mxu0
    %v3868 = vadd.f32 0.0, %v3867
    %3869 = vdwg.mxu0
    %3870 = vmatpush.msra.mxu0 0.0
    %3871 = vmatpush.msra.mxu0 0.0
    %3872 = vmatpush.msra.mxu0 0.0
    %3873 = vmatpush.msra.mxu0 0.0
    %3874 = vmatpush.msra.mxu0 0.0
    %3875 = vmatpush.msra.mxu0 0.0
    %3876 = vmatpush.msra.mxu0 0.0
    %3877 = vmatpush.msra.mxu0 0.0
    %3878 = vmatpush.msra.mxu0 0.0
    %3879 = vmatpush.msra.mxu0 0.0
    %3880 = vmatpush.msra.mxu0 0.0
    %3881 = vmatpush.msra.mxu0 0.0
    %3882 = vmatpush.msra.mxu0 0.0
    %3883 = vmatpush.msra.mxu0 0.0
    %3884 = vmatpush.msra.mxu0 0.0
    %3885 = vmatpush.msra.mxu0 %v3848
    %3886 = vmatmul.f32.gmra.mxu0 %v3845
    %v3887 = vpop.f32.mrf.mxu0
    %v3888 = vadd.f32 %v3868, %v3887
    %3889 = vdwg.mxu0
    %v3890 = vadd.f32 %v3804, %v3888
    %s3891 = scalar_lea.vmem [#allocation3], 21
    %v3892 = vld [vmem:[%s3891] ss:$8 sm:$0x3]
    %s3893 = scalar_lea.vmem [#allocation3], 85
    %v3894 = vld [vmem:[%s3893] ss:$8 sm:$0x3]
    %s3895 = scalar_lea.vmem [#allocation3], 149
    %v3896 = vld [vmem:[%s3895] ss:$8 sm:$0x3]
    %s3897 = scalar_lea.vmem [#allocation3], 213
    %v3898 = vld [vmem:[%s3897] ss:$8 sm:$0x3]
    %s3899 = scalar_lea.vmem %s5, 1768
    %v3900 = vld [vmem:[%s3899] sm:$0xff]
    %v3901 = vld [vmem:[%s3899 + $0x8] sm:$0xff]
    %v3902 = vld [vmem:[%s3899 + $0x10] sm:$0xff]
    %v3903 = vld [vmem:[%s3899 + $0x18] sm:$0xff]
    %v3904 = vld [vmem:[%s3899 + $0x20] sm:$0xff]
    %v3905 = vld [vmem:[%s3899 + $0x28] sm:$0xff]
    %v3906 = vld [vmem:[%s3899 + $0x30] sm:$0xff]
    %v3907 = vld [vmem:[%s3899 + $0x38] sm:$0xff]
    %v3908 = vld [vmem:[%s3899 + $0x40] sm:$0xff]
    %v3909 = vld [vmem:[%s3899 + $0x48] sm:$0xff]
    %v3910 = vld [vmem:[%s3899 + $0x50] sm:$0xff]
    %v3911 = vld [vmem:[%s3899 + $0x58] sm:$0xff]
    %v3912 = vld [vmem:[%s3899 + $0x60] sm:$0xff]
    %v3913 = vld [vmem:[%s3899 + $0x68] sm:$0xff]
    %v3914 = vld [vmem:[%s3899 + $0x70] sm:$0xff]
    %v3915 = vld [vmem:[%s3899 + $0x78] sm:$0xff]
    %v3916 = vld [vmem:[%s3899 + $0x80] sm:$0x3f]
    %3921 = vst [vmem:[#allocation1] ss:$9 sm:$0xff] %v3892
    %s3922 = scalar_lea.vmem [#allocation1], 1
    %3923 = vst [vmem:[%s3922] ss:$9 sm:$0xff] %v3894
    %s3924 = scalar_lea.vmem [#allocation1], 2
    %3925 = vst [vmem:[%s3924] ss:$9 sm:$0xff] %v3896
    %s3926 = scalar_lea.vmem [#allocation1], 3
    %3927 = vst [vmem:[%s3926] ss:$9 sm:$0xff] %v3898
    %v3928 = vld [vmem:[#allocation1] sm:$0xff]
    %v3929 = vld [vmem:[#allocation1 + $0x9] sm:$0xff]
    %v3931 = vsel %vm2839, %v3929, 0
    %v3934 = vsel %vm2842, %v3916, 0
    %3936 = vmatpush.msra.mxu0 %v3915
    %3937 = vmatpush.msra.mxu0 %v3914
    %3938 = vmatpush.msra.mxu0 %v3913
    %3939 = vmatpush.msra.mxu0 %v3912
    %3940 = vmatpush.msra.mxu0 %v3911
    %3941 = vmatpush.msra.mxu0 %v3910
    %3942 = vmatpush.msra.mxu0 %v3909
    %3943 = vmatpush.msra.mxu0 %v3908
    %3944 = vmatpush.msra.mxu0 %v3907
    %3945 = vmatpush.msra.mxu0 %v3906
    %3946 = vmatpush.msra.mxu0 %v3905
    %3947 = vmatpush.msra.mxu0 %v3904
    %3948 = vmatpush.msra.mxu0 %v3903
    %3949 = vmatpush.msra.mxu0 %v3902
    %3950 = vmatpush.msra.mxu0 %v3901
    %3951 = vmatpush.msra.mxu0 %v3900
    %3952 = vmatmul.f32.gmra.mxu0 %v3928
    %v3953 = vpop.f32.mrf.mxu0
    %v3954 = vadd.f32 0.0, %v3953
    %3955 = vdwg.mxu0
    %3956 = vmatpush.msra.mxu0 0.0
    %3957 = vmatpush.msra.mxu0 0.0
    %3958 = vmatpush.msra.mxu0 0.0
    %3959 = vmatpush.msra.mxu0 0.0
    %3960 = vmatpush.msra.mxu0 0.0
    %3961 = vmatpush.msra.mxu0 0.0
    %3962 = vmatpush.msra.mxu0 0.0
    %3963 = vmatpush.msra.mxu0 0.0
    %3964 = vmatpush.msra.mxu0 0.0
    %3965 = vmatpush.msra.mxu0 0.0
    %3966 = vmatpush.msra.mxu0 0.0
    %3967 = vmatpush.msra.mxu0 0.0
    %3968 = vmatpush.msra.mxu0 0.0
    %3969 = vmatpush.msra.mxu0 0.0
    %3970 = vmatpush.msra.mxu0 0.0
    %3971 = vmatpush.msra.mxu0 %v3934
    %3972 = vmatmul.f32.gmra.mxu0 %v3931
    %v3973 = vpop.f32.mrf.mxu0
    %v3974 = vadd.f32 %v3954, %v3973
    %3975 = vdwg.mxu0
    %v3976 = vadd.f32 %v3890, %v3974
    %s3977 = scalar_lea.vmem [#allocation3], 22
    %v3978 = vld [vmem:[%s3977] ss:$8 sm:$0x3]
    %s3979 = scalar_lea.vmem [#allocation3], 86
    %v3980 = vld [vmem:[%s3979] ss:$8 sm:$0x3]
    %s3981 = scalar_lea.vmem [#allocation3], 150
    %v3982 = vld [vmem:[%s3981] ss:$8 sm:$0x3]
    %s3983 = scalar_lea.vmem [#allocation3], 214
    %v3984 = vld [vmem:[%s3983] ss:$8 sm:$0x3]
    %s3985 = scalar_lea.vmem %s5, 1904
    %v3986 = vld [vmem:[%s3985] sm:$0xff]
    %v3987 = vld [vmem:[%s3985 + $0x8] sm:$0xff]
    %v3988 = vld [vmem:[%s3985 + $0x10] sm:$0xff]
    %v3989 = vld [vmem:[%s3985 + $0x18] sm:$0xff]
    %v3990 = vld [vmem:[%s3985 + $0x20] sm:$0xff]
    %v3991 = vld [vmem:[%s3985 + $0x28] sm:$0xff]
    %v3992 = vld [vmem:[%s3985 + $0x30] sm:$0xff]
    %v3993 = vld [vmem:[%s3985 + $0x38] sm:$0xff]
    %v3994 = vld [vmem:[%s3985 + $0x40] sm:$0xff]
    %v3995 = vld [vmem:[%s3985 + $0x48] sm:$0xff]
    %v3996 = vld [vmem:[%s3985 + $0x50] sm:$0xff]
    %v3997 = vld [vmem:[%s3985 + $0x58] sm:$0xff]
    %v3998 = vld [vmem:[%s3985 + $0x60] sm:$0xff]
    %v3999 = vld [vmem:[%s3985 + $0x68] sm:$0xff]
    %v4000 = vld [vmem:[%s3985 + $0x70] sm:$0xff]
    %v4001 = vld [vmem:[%s3985 + $0x78] sm:$0xff]
    %v4002 = vld [vmem:[%s3985 + $0x80] sm:$0x3f]
    %4007 = vst [vmem:[#allocation1] ss:$9 sm:$0xff] %v3978
    %s4008 = scalar_lea.vmem [#allocation1], 1
    %4009 = vst [vmem:[%s4008] ss:$9 sm:$0xff] %v3980
    %s4010 = scalar_lea.vmem [#allocation1], 2
    %4011 = vst [vmem:[%s4010] ss:$9 sm:$0xff] %v3982
    %s4012 = scalar_lea.vmem [#allocation1], 3
    %4013 = vst [vmem:[%s4012] ss:$9 sm:$0xff] %v3984
    %v4014 = vld [vmem:[#allocation1] sm:$0xff]
    %v4015 = vld [vmem:[#allocation1 + $0x9] sm:$0xff]
    %v4017 = vsel %vm2839, %v4015, 0
    %v4020 = vsel %vm2842, %v4002, 0
    %4022 = vmatpush.msra.mxu0 %v4001
    %4023 = vmatpush.msra.mxu0 %v4000
    %4024 = vmatpush.msra.mxu0 %v3999
    %4025 = vmatpush.msra.mxu0 %v3998
    %4026 = vmatpush.msra.mxu0 %v3997
    %4027 = vmatpush.msra.mxu0 %v3996
    %4028 = vmatpush.msra.mxu0 %v3995
    %4029 = vmatpush.msra.mxu0 %v3994
    %4030 = vmatpush.msra.mxu0 %v3993
    %4031 = vmatpush.msra.mxu0 %v3992
    %4032 = vmatpush.msra.mxu0 %v3991
    %4033 = vmatpush.msra.mxu0 %v3990
    %4034 = vmatpush.msra.mxu0 %v3989
    %4035 = vmatpush.msra.mxu0 %v3988
    %4036 = vmatpush.msra.mxu0 %v3987
    %4037 = vmatpush.msra.mxu0 %v3986
    %4038 = vmatmul.f32.gmra.mxu0 %v4014
    %v4039 = vpop.f32.mrf.mxu0
    %v4040 = vadd.f32 0.0, %v4039
    %4041 = vdwg.mxu0
    %4042 = vmatpush.msra.mxu0 0.0
    %4043 = vmatpush.msra.mxu0 0.0
    %4044 = vmatpush.msra.mxu0 0.0
    %4045 = vmatpush.msra.mxu0 0.0
    %4046 = vmatpush.msra.mxu0 0.0
    %4047 = vmatpush.msra.mxu0 0.0
    %4048 = vmatpush.msra.mxu0 0.0
    %4049 = vmatpush.msra.mxu0 0.0
    %4050 = vmatpush.msra.mxu0 0.0
    %4051 = vmatpush.msra.mxu0 0.0
    %4052 = vmatpush.msra.mxu0 0.0
    %4053 = vmatpush.msra.mxu0 0.0
    %4054 = vmatpush.msra.mxu0 0.0
    %4055 = vmatpush.msra.mxu0 0.0
    %4056 = vmatpush.msra.mxu0 0.0
    %4057 = vmatpush.msra.mxu0 %v4020
    %4058 = vmatmul.f32.gmra.mxu0 %v4017
    %v4059 = vpop.f32.mrf.mxu0
    %v4060 = vadd.f32 %v4040, %v4059
    %4061 = vdwg.mxu0
    %v4062 = vadd.f32 %v3976, %v4060
    %s4063 = scalar_lea.vmem [#allocation3], 23
    %v4064 = vld [vmem:[%s4063] ss:$8 sm:$0x3]
    %s4065 = scalar_lea.vmem [#allocation3], 87
    %v4066 = vld [vmem:[%s4065] ss:$8 sm:$0x3]
    %s4067 = scalar_lea.vmem [#allocation3], 151
    %v4068 = vld [vmem:[%s4067] ss:$8 sm:$0x3]
    %s4069 = scalar_lea.vmem [#allocation3], 215
    %v4070 = vld [vmem:[%s4069] ss:$8 sm:$0x3]
    %s4071 = scalar_lea.vmem %s5, 2040
    %v4072 = vld [vmem:[%s4071] sm:$0xff]
    %v4073 = vld [vmem:[%s4071 + $0x8] sm:$0xff]
    %v4074 = vld [vmem:[%s4071 + $0x10] sm:$0xff]
    %v4075 = vld [vmem:[%s4071 + $0x18] sm:$0xff]
    %v4076 = vld [vmem:[%s4071 + $0x20] sm:$0xff]
    %v4077 = vld [vmem:[%s4071 + $0x28] sm:$0xff]
    %v4078 = vld [vmem:[%s4071 + $0x30] sm:$0xff]
    %v4079 = vld [vmem:[%s4071 + $0x38] sm:$0xff]
    %v4080 = vld [vmem:[%s4071 + $0x40] sm:$0xff]
    %v4081 = vld [vmem:[%s4071 + $0x48] sm:$0xff]
    %v4082 = vld [vmem:[%s4071 + $0x50] sm:$0xff]
    %v4083 = vld [vmem:[%s4071 + $0x58] sm:$0xff]
    %v4084 = vld [vmem:[%s4071 + $0x60] sm:$0xff]
    %v4085 = vld [vmem:[%s4071 + $0x68] sm:$0xff]
    %v4086 = vld [vmem:[%s4071 + $0x70] sm:$0xff]
    %v4087 = vld [vmem:[%s4071 + $0x78] sm:$0xff]
    %v4088 = vld [vmem:[%s4071 + $0x80] sm:$0x3f]
    %4093 = vst [vmem:[#allocation1] ss:$9 sm:$0xff] %v4064
    %s4094 = scalar_lea.vmem [#allocation1], 1
    %4095 = vst [vmem:[%s4094] ss:$9 sm:$0xff] %v4066
    %s4096 = scalar_lea.vmem [#allocation1], 2
    %4097 = vst [vmem:[%s4096] ss:$9 sm:$0xff] %v4068
    %s4098 = scalar_lea.vmem [#allocation1], 3
    %4099 = vst [vmem:[%s4098] ss:$9 sm:$0xff] %v4070
    %v4100 = vld [vmem:[#allocation1] sm:$0xff]
    %v4101 = vld [vmem:[#allocation1 + $0x9] sm:$0xff]
    %v4103 = vsel %vm2839, %v4101, 0
    %v4106 = vsel %vm2842, %v4088, 0
    %4108 = vmatpush.msra.mxu0 %v4087
    %4109 = vmatpush.msra.mxu0 %v4086
    %4110 = vmatpush.msra.mxu0 %v4085
    %4111 = vmatpush.msra.mxu0 %v4084
    %4112 = vmatpush.msra.mxu0 %v4083
    %4113 = vmatpush.msra.mxu0 %v4082
    %4114 = vmatpush.msra.mxu0 %v4081
    %4115 = vmatpush.msra.mxu0 %v4080
    %4116 = vmatpush.msra.mxu0 %v4079
    %4117 = vmatpush.msra.mxu0 %v4078
    %4118 = vmatpush.msra.mxu0 %v4077
    %4119 = vmatpush.msra.mxu0 %v4076
    %4120 = vmatpush.msra.mxu0 %v4075
    %4121 = vmatpush.msra.mxu0 %v4074
    %4122 = vmatpush.msra.mxu0 %v4073
    %4123 = vmatpush.msra.mxu0 %v4072
    %4124 = vmatmul.f32.gmra.mxu0 %v4100
    %v4125 = vpop.f32.mrf.mxu0
    %v4126 = vadd.f32 0.0, %v4125
    %4127 = vdwg.mxu0
    %4128 = vmatpush.msra.mxu0 0.0
    %4129 = vmatpush.msra.mxu0 0.0
    %4130 = vmatpush.msra.mxu0 0.0
    %4131 = vmatpush.msra.mxu0 0.0
    %4132 = vmatpush.msra.mxu0 0.0
    %4133 = vmatpush.msra.mxu0 0.0
    %4134 = vmatpush.msra.mxu0 0.0
    %4135 = vmatpush.msra.mxu0 0.0
    %4136 = vmatpush.msra.mxu0 0.0
    %4137 = vmatpush.msra.mxu0 0.0
    %4138 = vmatpush.msra.mxu0 0.0
    %4139 = vmatpush.msra.mxu0 0.0
    %4140 = vmatpush.msra.mxu0 0.0
    %4141 = vmatpush.msra.mxu0 0.0
    %4142 = vmatpush.msra.mxu0 0.0
    %4143 = vmatpush.msra.mxu0 %v4106
    %4144 = vmatmul.f32.gmra.mxu0 %v4103
    %v4145 = vpop.f32.mrf.mxu0
    %v4146 = vadd.f32 %v4126, %v4145
    %4147 = vdwg.mxu0
    %v4148 = vadd.f32 %v4062, %v4146
    %s4149 = scalar_lea.vmem [#allocation3], 32
    %v4150 = vld [vmem:[%s4149] ss:$8 sm:$0x3]
    %s4151 = scalar_lea.vmem [#allocation3], 96
    %v4152 = vld [vmem:[%s4151] ss:$8 sm:$0x3]
    %s4153 = scalar_lea.vmem [#allocation3], 160
    %v4154 = vld [vmem:[%s4153] ss:$8 sm:$0x3]
    %s4155 = scalar_lea.vmem [#allocation3], 224
    %v4156 = vld [vmem:[%s4155] ss:$8 sm:$0x3]
    %s4157 = scalar_lea.vmem %s5, 2176
    %v4158 = vld [vmem:[%s4157] sm:$0xff]
    %v4159 = vld [vmem:[%s4157 + $0x8] sm:$0xff]
    %v4160 = vld [vmem:[%s4157 + $0x10] sm:$0xff]
    %v4161 = vld [vmem:[%s4157 + $0x18] sm:$0xff]
    %v4162 = vld [vmem:[%s4157 + $0x20] sm:$0xff]
    %v4163 = vld [vmem:[%s4157 + $0x28] sm:$0xff]
    %v4164 = vld [vmem:[%s4157 + $0x30] sm:$0xff]
    %v4165 = vld [vmem:[%s4157 + $0x38] sm:$0xff]
    %v4166 = vld [vmem:[%s4157 + $0x40] sm:$0xff]
    %v4167 = vld [vmem:[%s4157 + $0x48] sm:$0xff]
    %v4168 = vld [vmem:[%s4157 + $0x50] sm:$0xff]
    %v4169 = vld [vmem:[%s4157 + $0x58] sm:$0xff]
    %v4170 = vld [vmem:[%s4157 + $0x60] sm:$0xff]
    %v4171 = vld [vmem:[%s4157 + $0x68] sm:$0xff]
    %v4172 = vld [vmem:[%s4157 + $0x70] sm:$0xff]
    %v4173 = vld [vmem:[%s4157 + $0x78] sm:$0xff]
    %v4174 = vld [vmem:[%s4157 + $0x80] sm:$0x3f]
    %4179 = vst [vmem:[#allocation1] ss:$9 sm:$0xff] %v4150
    %s4180 = scalar_lea.vmem [#allocation1], 1
    %4181 = vst [vmem:[%s4180] ss:$9 sm:$0xff] %v4152
    %s4182 = scalar_lea.vmem [#allocation1], 2
    %4183 = vst [vmem:[%s4182] ss:$9 sm:$0xff] %v4154
    %s4184 = scalar_lea.vmem [#allocation1], 3
    %4185 = vst [vmem:[%s4184] ss:$9 sm:$0xff] %v4156
    %v4186 = vld [vmem:[#allocation1] sm:$0xff]
    %v4187 = vld [vmem:[#allocation1 + $0x9] sm:$0xff]
    %v4189 = vsel %vm2839, %v4187, 0
    %v4192 = vsel %vm2842, %v4174, 0
    %4194 = vmatpush.msra.mxu0 %v4173
    %4195 = vmatpush.msra.mxu0 %v4172
    %4196 = vmatpush.msra.mxu0 %v4171
    %4197 = vmatpush.msra.mxu0 %v4170
    %4198 = vmatpush.msra.mxu0 %v4169
    %4199 = vmatpush.msra.mxu0 %v4168
    %4200 = vmatpush.msra.mxu0 %v4167
    %4201 = vmatpush.msra.mxu0 %v4166
    %4202 = vmatpush.msra.mxu0 %v4165
    %4203 = vmatpush.msra.mxu0 %v4164
    %4204 = vmatpush.msra.mxu0 %v4163
    %4205 = vmatpush.msra.mxu0 %v4162
    %4206 = vmatpush.msra.mxu0 %v4161
    %4207 = vmatpush.msra.mxu0 %v4160
    %4208 = vmatpush.msra.mxu0 %v4159
    %4209 = vmatpush.msra.mxu0 %v4158
    %4210 = vmatmul.f32.gmra.mxu0 %v4186
    %v4211 = vpop.f32.mrf.mxu0
    %v4212 = vadd.f32 0.0, %v4211
    %4213 = vdwg.mxu0
    %4214 = vmatpush.msra.mxu0 0.0
    %4215 = vmatpush.msra.mxu0 0.0
    %4216 = vmatpush.msra.mxu0 0.0
    %4217 = vmatpush.msra.mxu0 0.0
    %4218 = vmatpush.msra.mxu0 0.0
    %4219 = vmatpush.msra.mxu0 0.0
    %4220 = vmatpush.msra.mxu0 0.0
    %4221 = vmatpush.msra.mxu0 0.0
    %4222 = vmatpush.msra.mxu0 0.0
    %4223 = vmatpush.msra.mxu0 0.0
    %4224 = vmatpush.msra.mxu0 0.0
    %4225 = vmatpush.msra.mxu0 0.0
    %4226 = vmatpush.msra.mxu0 0.0
    %4227 = vmatpush.msra.mxu0 0.0
    %4228 = vmatpush.msra.mxu0 0.0
    %4229 = vmatpush.msra.mxu0 %v4192
    %4230 = vmatmul.f32.gmra.mxu0 %v4189
    %v4231 = vpop.f32.mrf.mxu0
    %v4232 = vadd.f32 %v4212, %v4231
    %4233 = vdwg.mxu0
    %v4234 = vadd.f32 %v4148, %v4232
    %s4235 = scalar_lea.vmem [#allocation3], 33
    %v4236 = vld [vmem:[%s4235] ss:$8 sm:$0x3]
    %s4237 = scalar_lea.vmem [#allocation3], 97
    %v4238 = vld [vmem:[%s4237] ss:$8 sm:$0x3]
    %s4239 = scalar_lea.vmem [#allocation3], 161
    %v4240 = vld [vmem:[%s4239] ss:$8 sm:$0x3]
    %s4241 = scalar_lea.vmem [#allocation3], 225
    %v4242 = vld [vmem:[%s4241] ss:$8 sm:$0x3]
    %s4243 = scalar_lea.vmem %s5, 2312
    %v4244 = vld [vmem:[%s4243] sm:$0xff]
    %v4245 = vld [vmem:[%s4243 + $0x8] sm:$0xff]
    %v4246 = vld [vmem:[%s4243 + $0x10] sm:$0xff]
    %v4247 = vld [vmem:[%s4243 + $0x18] sm:$0xff]
    %v4248 = vld [vmem:[%s4243 + $0x20] sm:$0xff]
    %v4249 = vld [vmem:[%s4243 + $0x28] sm:$0xff]
    %v4250 = vld [vmem:[%s4243 + $0x30] sm:$0xff]
    %v4251 = vld [vmem:[%s4243 + $0x38] sm:$0xff]
    %v4252 = vld [vmem:[%s4243 + $0x40] sm:$0xff]
    %v4253 = vld [vmem:[%s4243 + $0x48] sm:$0xff]
    %v4254 = vld [vmem:[%s4243 + $0x50] sm:$0xff]
    %v4255 = vld [vmem:[%s4243 + $0x58] sm:$0xff]
    %v4256 = vld [vmem:[%s4243 + $0x60] sm:$0xff]
    %v4257 = vld [vmem:[%s4243 + $0x68] sm:$0xff]
    %v4258 = vld [vmem:[%s4243 + $0x70] sm:$0xff]
    %v4259 = vld [vmem:[%s4243 + $0x78] sm:$0xff]
    %v4260 = vld [vmem:[%s4243 + $0x80] sm:$0x3f]
    %4265 = vst [vmem:[#allocation1] ss:$9 sm:$0xff] %v4236
    %s4266 = scalar_lea.vmem [#allocation1], 1
    %4267 = vst [vmem:[%s4266] ss:$9 sm:$0xff] %v4238
    %s4268 = scalar_lea.vmem [#allocation1], 2
    %4269 = vst [vmem:[%s4268] ss:$9 sm:$0xff] %v4240
    %s4270 = scalar_lea.vmem [#allocation1], 3
    %4271 = vst [vmem:[%s4270] ss:$9 sm:$0xff] %v4242
    %v4272 = vld [vmem:[#allocation1] sm:$0xff]
    %v4273 = vld [vmem:[#allocation1 + $0x9] sm:$0xff]
    %v4275 = vsel %vm2839, %v4273, 0
    %v4278 = vsel %vm2842, %v4260, 0
    %4280 = vmatpush.msra.mxu0 %v4259
    %4281 = vmatpush.msra.mxu0 %v4258
    %4282 = vmatpush.msra.mxu0 %v4257
    %4283 = vmatpush.msra.mxu0 %v4256
    %4284 = vmatpush.msra.mxu0 %v4255
    %4285 = vmatpush.msra.mxu0 %v4254
    %4286 = vmatpush.msra.mxu0 %v4253
    %4287 = vmatpush.msra.mxu0 %v4252
    %4288 = vmatpush.msra.mxu0 %v4251
    %4289 = vmatpush.msra.mxu0 %v4250
    %4290 = vmatpush.msra.mxu0 %v4249
    %4291 = vmatpush.msra.mxu0 %v4248
    %4292 = vmatpush.msra.mxu0 %v4247
    %4293 = vmatpush.msra.mxu0 %v4246
    %4294 = vmatpush.msra.mxu0 %v4245
    %4295 = vmatpush.msra.mxu0 %v4244
    %4296 = vmatmul.f32.gmra.mxu0 %v4272
    %v4297 = vpop.f32.mrf.mxu0
    %v4298 = vadd.f32 0.0, %v4297
    %4299 = vdwg.mxu0
    %4300 = vmatpush.msra.mxu0 0.0
    %4301 = vmatpush.msra.mxu0 0.0
    %4302 = vmatpush.msra.mxu0 0.0
    %4303 = vmatpush.msra.mxu0 0.0
    %4304 = vmatpush.msra.mxu0 0.0
    %4305 = vmatpush.msra.mxu0 0.0
    %4306 = vmatpush.msra.mxu0 0.0
    %4307 = vmatpush.msra.mxu0 0.0
    %4308 = vmatpush.msra.mxu0 0.0
    %4309 = vmatpush.msra.mxu0 0.0
    %4310 = vmatpush.msra.mxu0 0.0
    %4311 = vmatpush.msra.mxu0 0.0
    %4312 = vmatpush.msra.mxu0 0.0
    %4313 = vmatpush.msra.mxu0 0.0
    %4314 = vmatpush.msra.mxu0 0.0
    %4315 = vmatpush.msra.mxu0 %v4278
    %4316 = vmatmul.f32.gmra.mxu0 %v4275
    %v4317 = vpop.f32.mrf.mxu0
    %v4318 = vadd.f32 %v4298, %v4317
    %4319 = vdwg.mxu0
    %v4320 = vadd.f32 %v4234, %v4318
    %s4321 = scalar_lea.vmem [#allocation3], 34
    %v4322 = vld [vmem:[%s4321] ss:$8 sm:$0x3]
    %s4323 = scalar_lea.vmem [#allocation3], 98
    %v4324 = vld [vmem:[%s4323] ss:$8 sm:$0x3]
    %s4325 = scalar_lea.vmem [#allocation3], 162
    %v4326 = vld [vmem:[%s4325] ss:$8 sm:$0x3]
    %s4327 = scalar_lea.vmem [#allocation3], 226
    %v4328 = vld [vmem:[%s4327] ss:$8 sm:$0x3]
    %s4329 = scalar_lea.vmem %s5, 2448
    %v4330 = vld [vmem:[%s4329] sm:$0xff]
    %v4331 = vld [vmem:[%s4329 + $0x8] sm:$0xff]
    %v4332 = vld [vmem:[%s4329 + $0x10] sm:$0xff]
    %v4333 = vld [vmem:[%s4329 + $0x18] sm:$0xff]
    %v4334 = vld [vmem:[%s4329 + $0x20] sm:$0xff]
    %v4335 = vld [vmem:[%s4329 + $0x28] sm:$0xff]
    %v4336 = vld [vmem:[%s4329 + $0x30] sm:$0xff]
    %v4337 = vld [vmem:[%s4329 + $0x38] sm:$0xff]
    %v4338 = vld [vmem:[%s4329 + $0x40] sm:$0xff]
    %v4339 = vld [vmem:[%s4329 + $0x48] sm:$0xff]
    %v4340 = vld [vmem:[%s4329 + $0x50] sm:$0xff]
    %v4341 = vld [vmem:[%s4329 + $0x58] sm:$0xff]
    %v4342 = vld [vmem:[%s4329 + $0x60] sm:$0xff]
    %v4343 = vld [vmem:[%s4329 + $0x68] sm:$0xff]
    %v4344 = vld [vmem:[%s4329 + $0x70] sm:$0xff]
    %v4345 = vld [vmem:[%s4329 + $0x78] sm:$0xff]
    %v4346 = vld [vmem:[%s4329 + $0x80] sm:$0x3f]
    %4351 = vst [vmem:[#allocation1] ss:$9 sm:$0xff] %v4322
    %s4352 = scalar_lea.vmem [#allocation1], 1
    %4353 = vst [vmem:[%s4352] ss:$9 sm:$0xff] %v4324
    %s4354 = scalar_lea.vmem [#allocation1], 2
    %4355 = vst [vmem:[%s4354] ss:$9 sm:$0xff] %v4326
    %s4356 = scalar_lea.vmem [#allocation1], 3
    %4357 = vst [vmem:[%s4356] ss:$9 sm:$0xff] %v4328
    %v4358 = vld [vmem:[#allocation1] sm:$0xff]
    %v4359 = vld [vmem:[#allocation1 + $0x9] sm:$0xff]
    %v4361 = vsel %vm2839, %v4359, 0
    %v4364 = vsel %vm2842, %v4346, 0
    %4366 = vmatpush.msra.mxu0 %v4345
    %4367 = vmatpush.msra.mxu0 %v4344
    %4368 = vmatpush.msra.mxu0 %v4343
    %4369 = vmatpush.msra.mxu0 %v4342
    %4370 = vmatpush.msra.mxu0 %v4341
    %4371 = vmatpush.msra.mxu0 %v4340
    %4372 = vmatpush.msra.mxu0 %v4339
    %4373 = vmatpush.msra.mxu0 %v4338
    %4374 = vmatpush.msra.mxu0 %v4337
    %4375 = vmatpush.msra.mxu0 %v4336
    %4376 = vmatpush.msra.mxu0 %v4335
    %4377 = vmatpush.msra.mxu0 %v4334
    %4378 = vmatpush.msra.mxu0 %v4333
    %4379 = vmatpush.msra.mxu0 %v4332
    %4380 = vmatpush.msra.mxu0 %v4331
    %4381 = vmatpush.msra.mxu0 %v4330
    %4382 = vmatmul.f32.gmra.mxu0 %v4358
    %v4383 = vpop.f32.mrf.mxu0
    %v4384 = vadd.f32 0.0, %v4383
    %4385 = vdwg.mxu0
    %4386 = vmatpush.msra.mxu0 0.0
    %4387 = vmatpush.msra.mxu0 0.0
    %4388 = vmatpush.msra.mxu0 0.0
    %4389 = vmatpush.msra.mxu0 0.0
    %4390 = vmatpush.msra.mxu0 0.0
    %4391 = vmatpush.msra.mxu0 0.0
    %4392 = vmatpush.msra.mxu0 0.0
    %4393 = vmatpush.msra.mxu0 0.0
    %4394 = vmatpush.msra.mxu0 0.0
    %4395 = vmatpush.msra.mxu0 0.0
    %4396 = vmatpush.msra.mxu0 0.0
    %4397 = vmatpush.msra.mxu0 0.0
    %4398 = vmatpush.msra.mxu0 0.0
    %4399 = vmatpush.msra.mxu0 0.0
    %4400 = vmatpush.msra.mxu0 0.0
    %4401 = vmatpush.msra.mxu0 %v4364
    %4402 = vmatmul.f32.gmra.mxu0 %v4361
    %v4403 = vpop.f32.mrf.mxu0
    %v4404 = vadd.f32 %v4384, %v4403
    %4405 = vdwg.mxu0
    %v4406 = vadd.f32 %v4320, %v4404
    %s4407 = scalar_lea.vmem [#allocation3], 35
    %v4408 = vld [vmem:[%s4407] ss:$8 sm:$0x3]
    %s4409 = scalar_lea.vmem [#allocation3], 99
    %v4410 = vld [vmem:[%s4409] ss:$8 sm:$0x3]
    %s4411 = scalar_lea.vmem [#allocation3], 163
    %v4412 = vld [vmem:[%s4411] ss:$8 sm:$0x3]
    %s4413 = scalar_lea.vmem [#allocation3], 227
    %v4414 = vld [vmem:[%s4413] ss:$8 sm:$0x3]
    %s4415 = scalar_lea.vmem %s5, 2584
    %v4416 = vld [vmem:[%s4415] sm:$0xff]
    %v4417 = vld [vmem:[%s4415 + $0x8] sm:$0xff]
    %v4418 = vld [vmem:[%s4415 + $0x10] sm:$0xff]
    %v4419 = vld [vmem:[%s4415 + $0x18] sm:$0xff]
    %v4420 = vld [vmem:[%s4415 + $0x20] sm:$0xff]
    %v4421 = vld [vmem:[%s4415 + $0x28] sm:$0xff]
    %v4422 = vld [vmem:[%s4415 + $0x30] sm:$0xff]
    %v4423 = vld [vmem:[%s4415 + $0x38] sm:$0xff]
    %v4424 = vld [vmem:[%s4415 + $0x40] sm:$0xff]
    %v4425 = vld [vmem:[%s4415 + $0x48] sm:$0xff]
    %v4426 = vld [vmem:[%s4415 + $0x50] sm:$0xff]
    %v4427 = vld [vmem:[%s4415 + $0x58] sm:$0xff]
    %v4428 = vld [vmem:[%s4415 + $0x60] sm:$0xff]
    %v4429 = vld [vmem:[%s4415 + $0x68] sm:$0xff]
    %v4430 = vld [vmem:[%s4415 + $0x70] sm:$0xff]
    %v4431 = vld [vmem:[%s4415 + $0x78] sm:$0xff]
    %v4432 = vld [vmem:[%s4415 + $0x80] sm:$0x3f]
    %4437 = vst [vmem:[#allocation1] ss:$9 sm:$0xff] %v4408
    %s4438 = scalar_lea.vmem [#allocation1], 1
    %4439 = vst [vmem:[%s4438] ss:$9 sm:$0xff] %v4410
    %s4440 = scalar_lea.vmem [#allocation1], 2
    %4441 = vst [vmem:[%s4440] ss:$9 sm:$0xff] %v4412
    %s4442 = scalar_lea.vmem [#allocation1], 3
    %4443 = vst [vmem:[%s4442] ss:$9 sm:$0xff] %v4414
    %v4444 = vld [vmem:[#allocation1] sm:$0xff]
    %v4445 = vld [vmem:[#allocation1 + $0x9] sm:$0xff]
    %v4447 = vsel %vm2839, %v4445, 0
    %v4450 = vsel %vm2842, %v4432, 0
    %4452 = vmatpush.msra.mxu0 %v4431
    %4453 = vmatpush.msra.mxu0 %v4430
    %4454 = vmatpush.msra.mxu0 %v4429
    %4455 = vmatpush.msra.mxu0 %v4428
    %4456 = vmatpush.msra.mxu0 %v4427
    %4457 = vmatpush.msra.mxu0 %v4426
    %4458 = vmatpush.msra.mxu0 %v4425
    %4459 = vmatpush.msra.mxu0 %v4424
    %4460 = vmatpush.msra.mxu0 %v4423
    %4461 = vmatpush.msra.mxu0 %v4422
    %4462 = vmatpush.msra.mxu0 %v4421
    %4463 = vmatpush.msra.mxu0 %v4420
    %4464 = vmatpush.msra.mxu0 %v4419
    %4465 = vmatpush.msra.mxu0 %v4418
    %4466 = vmatpush.msra.mxu0 %v4417
    %4467 = vmatpush.msra.mxu0 %v4416
    %4468 = vmatmul.f32.gmra.mxu0 %v4444
    %v4469 = vpop.f32.mrf.mxu0
    %v4470 = vadd.f32 0.0, %v4469
    %4471 = vdwg.mxu0
    %4472 = vmatpush.msra.mxu0 0.0
    %4473 = vmatpush.msra.mxu0 0.0
    %4474 = vmatpush.msra.mxu0 0.0
    %4475 = vmatpush.msra.mxu0 0.0
    %4476 = vmatpush.msra.mxu0 0.0
    %4477 = vmatpush.msra.mxu0 0.0
    %4478 = vmatpush.msra.mxu0 0.0
    %4479 = vmatpush.msra.mxu0 0.0
    %4480 = vmatpush.msra.mxu0 0.0
    %4481 = vmatpush.msra.mxu0 0.0
    %4482 = vmatpush.msra.mxu0 0.0
    %4483 = vmatpush.msra.mxu0 0.0
    %4484 = vmatpush.msra.mxu0 0.0
    %4485 = vmatpush.msra.mxu0 0.0
    %4486 = vmatpush.msra.mxu0 0.0
    %4487 = vmatpush.msra.mxu0 %v4450
    %4488 = vmatmul.f32.gmra.mxu0 %v4447
    %v4489 = vpop.f32.mrf.mxu0
    %v4490 = vadd.f32 %v4470, %v4489
    %4491 = vdwg.mxu0
    %v4492 = vadd.f32 %v4406, %v4490
    %s4493 = scalar_lea.vmem [#allocation3], 36
    %v4494 = vld [vmem:[%s4493] ss:$8 sm:$0x3]
    %s4495 = scalar_lea.vmem [#allocation3], 100
    %v4496 = vld [vmem:[%s4495] ss:$8 sm:$0x3]
    %s4497 = scalar_lea.vmem [#allocation3], 164
    %v4498 = vld [vmem:[%s4497] ss:$8 sm:$0x3]
    %s4499 = scalar_lea.vmem [#allocation3], 228
    %v4500 = vld [vmem:[%s4499] ss:$8 sm:$0x3]
    %s4501 = scalar_lea.vmem %s5, 2720
    %v4502 = vld [vmem:[%s4501] sm:$0xff]
    %v4503 = vld [vmem:[%s4501 + $0x8] sm:$0xff]
    %v4504 = vld [vmem:[%s4501 + $0x10] sm:$0xff]
    %v4505 = vld [vmem:[%s4501 + $0x18] sm:$0xff]
    %v4506 = vld [vmem:[%s4501 + $0x20] sm:$0xff]
    %v4507 = vld [vmem:[%s4501 + $0x28] sm:$0xff]
    %v4508 = vld [vmem:[%s4501 + $0x30] sm:$0xff]
    %v4509 = vld [vmem:[%s4501 + $0x38] sm:$0xff]
    %v4510 = vld [vmem:[%s4501 + $0x40] sm:$0xff]
    %v4511 = vld [vmem:[%s4501 + $0x48] sm:$0xff]
    %v4512 = vld [vmem:[%s4501 + $0x50] sm:$0xff]
    %v4513 = vld [vmem:[%s4501 + $0x58] sm:$0xff]
    %v4514 = vld [vmem:[%s4501 + $0x60] sm:$0xff]
    %v4515 = vld [vmem:[%s4501 + $0x68] sm:$0xff]
    %v4516 = vld [vmem:[%s4501 + $0x70] sm:$0xff]
    %v4517 = vld [vmem:[%s4501 + $0x78] sm:$0xff]
    %v4518 = vld [vmem:[%s4501 + $0x80] sm:$0x3f]
    %4523 = vst [vmem:[#allocation1] ss:$9 sm:$0xff] %v4494
    %s4524 = scalar_lea.vmem [#allocation1], 1
    %4525 = vst [vmem:[%s4524] ss:$9 sm:$0xff] %v4496
    %s4526 = scalar_lea.vmem [#allocation1], 2
    %4527 = vst [vmem:[%s4526] ss:$9 sm:$0xff] %v4498
    %s4528 = scalar_lea.vmem [#allocation1], 3
    %4529 = vst [vmem:[%s4528] ss:$9 sm:$0xff] %v4500
    %v4530 = vld [vmem:[#allocation1] sm:$0xff]
    %v4531 = vld [vmem:[#allocation1 + $0x9] sm:$0xff]
    %v4533 = vsel %vm2839, %v4531, 0
    %v4536 = vsel %vm2842, %v4518, 0
    %4538 = vmatpush.msra.mxu0 %v4517
    %4539 = vmatpush.msra.mxu0 %v4516
    %4540 = vmatpush.msra.mxu0 %v4515
    %4541 = vmatpush.msra.mxu0 %v4514
    %4542 = vmatpush.msra.mxu0 %v4513
    %4543 = vmatpush.msra.mxu0 %v4512
    %4544 = vmatpush.msra.mxu0 %v4511
    %4545 = vmatpush.msra.mxu0 %v4510
    %4546 = vmatpush.msra.mxu0 %v4509
    %4547 = vmatpush.msra.mxu0 %v4508
    %4548 = vmatpush.msra.mxu0 %v4507
    %4549 = vmatpush.msra.mxu0 %v4506
    %4550 = vmatpush.msra.mxu0 %v4505
    %4551 = vmatpush.msra.mxu0 %v4504
    %4552 = vmatpush.msra.mxu0 %v4503
    %4553 = vmatpush.msra.mxu0 %v4502
    %4554 = vmatmul.f32.gmra.mxu0 %v4530
    %v4555 = vpop.f32.mrf.mxu0
    %v4556 = vadd.f32 0.0, %v4555
    %4557 = vdwg.mxu0
    %4558 = vmatpush.msra.mxu0 0.0
    %4559 = vmatpush.msra.mxu0 0.0
    %4560 = vmatpush.msra.mxu0 0.0
    %4561 = vmatpush.msra.mxu0 0.0
    %4562 = vmatpush.msra.mxu0 0.0
    %4563 = vmatpush.msra.mxu0 0.0
    %4564 = vmatpush.msra.mxu0 0.0
    %4565 = vmatpush.msra.mxu0 0.0
    %4566 = vmatpush.msra.mxu0 0.0
    %4567 = vmatpush.msra.mxu0 0.0
    %4568 = vmatpush.msra.mxu0 0.0
    %4569 = vmatpush.msra.mxu0 0.0
    %4570 = vmatpush.msra.mxu0 0.0
    %4571 = vmatpush.msra.mxu0 0.0
    %4572 = vmatpush.msra.mxu0 0.0
    %4573 = vmatpush.msra.mxu0 %v4536
    %4574 = vmatmul.f32.gmra.mxu0 %v4533
    %v4575 = vpop.f32.mrf.mxu0
    %v4576 = vadd.f32 %v4556, %v4575
    %4577 = vdwg.mxu0
    %v4578 = vadd.f32 %v4492, %v4576
    %s4579 = scalar_lea.vmem [#allocation3], 37
    %v4580 = vld [vmem:[%s4579] ss:$8 sm:$0x3]
    %s4581 = scalar_lea.vmem [#allocation3], 101
    %v4582 = vld [vmem:[%s4581] ss:$8 sm:$0x3]
    %s4583 = scalar_lea.vmem [#allocation3], 165
    %v4584 = vld [vmem:[%s4583] ss:$8 sm:$0x3]
    %s4585 = scalar_lea.vmem [#allocation3], 229
    %v4586 = vld [vmem:[%s4585] ss:$8 sm:$0x3]
    %s4587 = scalar_lea.vmem %s5, 2856
    %v4588 = vld [vmem:[%s4587] sm:$0xff]
    %v4589 = vld [vmem:[%s4587 + $0x8] sm:$0xff]
    %v4590 = vld [vmem:[%s4587 + $0x10] sm:$0xff]
    %v4591 = vld [vmem:[%s4587 + $0x18] sm:$0xff]
    %v4592 = vld [vmem:[%s4587 + $0x20] sm:$0xff]
    %v4593 = vld [vmem:[%s4587 + $0x28] sm:$0xff]
    %v4594 = vld [vmem:[%s4587 + $0x30] sm:$0xff]
    %v4595 = vld [vmem:[%s4587 + $0x38] sm:$0xff]
    %v4596 = vld [vmem:[%s4587 + $0x40] sm:$0xff]
    %v4597 = vld [vmem:[%s4587 + $0x48] sm:$0xff]
    %v4598 = vld [vmem:[%s4587 + $0x50] sm:$0xff]
    %v4599 = vld [vmem:[%s4587 + $0x58] sm:$0xff]
    %v4600 = vld [vmem:[%s4587 + $0x60] sm:$0xff]
    %v4601 = vld [vmem:[%s4587 + $0x68] sm:$0xff]
    %v4602 = vld [vmem:[%s4587 + $0x70] sm:$0xff]
    %v4603 = vld [vmem:[%s4587 + $0x78] sm:$0xff]
    %v4604 = vld [vmem:[%s4587 + $0x80] sm:$0x3f]
    %4609 = vst [vmem:[#allocation1] ss:$9 sm:$0xff] %v4580
    %s4610 = scalar_lea.vmem [#allocation1], 1
    %4611 = vst [vmem:[%s4610] ss:$9 sm:$0xff] %v4582
    %s4612 = scalar_lea.vmem [#allocation1], 2
    %4613 = vst [vmem:[%s4612] ss:$9 sm:$0xff] %v4584
    %s4614 = scalar_lea.vmem [#allocation1], 3
    %4615 = vst [vmem:[%s4614] ss:$9 sm:$0xff] %v4586
    %v4616 = vld [vmem:[#allocation1] sm:$0xff]
    %v4617 = vld [vmem:[#allocation1 + $0x9] sm:$0xff]
    %v4619 = vsel %vm2839, %v4617, 0
    %v4622 = vsel %vm2842, %v4604, 0
    %4624 = vmatpush.msra.mxu0 %v4603
    %4625 = vmatpush.msra.mxu0 %v4602
    %4626 = vmatpush.msra.mxu0 %v4601
    %4627 = vmatpush.msra.mxu0 %v4600
    %4628 = vmatpush.msra.mxu0 %v4599
    %4629 = vmatpush.msra.mxu0 %v4598
    %4630 = vmatpush.msra.mxu0 %v4597
    %4631 = vmatpush.msra.mxu0 %v4596
    %4632 = vmatpush.msra.mxu0 %v4595
    %4633 = vmatpush.msra.mxu0 %v4594
    %4634 = vmatpush.msra.mxu0 %v4593
    %4635 = vmatpush.msra.mxu0 %v4592
    %4636 = vmatpush.msra.mxu0 %v4591
    %4637 = vmatpush.msra.mxu0 %v4590
    %4638 = vmatpush.msra.mxu0 %v4589
    %4639 = vmatpush.msra.mxu0 %v4588
    %4640 = vmatmul.f32.gmra.mxu0 %v4616
    %v4641 = vpop.f32.mrf.mxu0
    %v4642 = vadd.f32 0.0, %v4641
    %4643 = vdwg.mxu0
    %4644 = vmatpush.msra.mxu0 0.0
    %4645 = vmatpush.msra.mxu0 0.0
    %4646 = vmatpush.msra.mxu0 0.0
    %4647 = vmatpush.msra.mxu0 0.0
    %4648 = vmatpush.msra.mxu0 0.0
    %4649 = vmatpush.msra.mxu0 0.0
    %4650 = vmatpush.msra.mxu0 0.0
    %4651 = vmatpush.msra.mxu0 0.0
    %4652 = vmatpush.msra.mxu0 0.0
    %4653 = vmatpush.msra.mxu0 0.0
    %4654 = vmatpush.msra.mxu0 0.0
    %4655 = vmatpush.msra.mxu0 0.0
    %4656 = vmatpush.msra.mxu0 0.0
    %4657 = vmatpush.msra.mxu0 0.0
    %4658 = vmatpush.msra.mxu0 0.0
    %4659 = vmatpush.msra.mxu0 %v4622
    %4660 = vmatmul.f32.gmra.mxu0 %v4619
    %v4661 = vpop.f32.mrf.mxu0
    %v4662 = vadd.f32 %v4642, %v4661
    %4663 = vdwg.mxu0
    %v4664 = vadd.f32 %v4578, %v4662
    %s4665 = scalar_lea.vmem [#allocation3], 38
    %v4666 = vld [vmem:[%s4665] ss:$8 sm:$0x3]
    %s4667 = scalar_lea.vmem [#allocation3], 102
    %v4668 = vld [vmem:[%s4667] ss:$8 sm:$0x3]
    %s4669 = scalar_lea.vmem [#allocation3], 166
    %v4670 = vld [vmem:[%s4669] ss:$8 sm:$0x3]
    %s4671 = scalar_lea.vmem [#allocation3], 230
    %v4672 = vld [vmem:[%s4671] ss:$8 sm:$0x3]
    %s4673 = scalar_lea.vmem %s5, 2992
    %v4674 = vld [vmem:[%s4673] sm:$0xff]
    %v4675 = vld [vmem:[%s4673 + $0x8] sm:$0xff]
    %v4676 = vld [vmem:[%s4673 + $0x10] sm:$0xff]
    %v4677 = vld [vmem:[%s4673 + $0x18] sm:$0xff]
    %v4678 = vld [vmem:[%s4673 + $0x20] sm:$0xff]
    %v4679 = vld [vmem:[%s4673 + $0x28] sm:$0xff]
    %v4680 = vld [vmem:[%s4673 + $0x30] sm:$0xff]
    %v4681 = vld [vmem:[%s4673 + $0x38] sm:$0xff]
    %v4682 = vld [vmem:[%s4673 + $0x40] sm:$0xff]
    %v4683 = vld [vmem:[%s4673 + $0x48] sm:$0xff]
    %v4684 = vld [vmem:[%s4673 + $0x50] sm:$0xff]
    %v4685 = vld [vmem:[%s4673 + $0x58] sm:$0xff]
    %v4686 = vld [vmem:[%s4673 + $0x60] sm:$0xff]
    %v4687 = vld [vmem:[%s4673 + $0x68] sm:$0xff]
    %v4688 = vld [vmem:[%s4673 + $0x70] sm:$0xff]
    %v4689 = vld [vmem:[%s4673 + $0x78] sm:$0xff]
    %v4690 = vld [vmem:[%s4673 + $0x80] sm:$0x3f]
    %4695 = vst [vmem:[#allocation1] ss:$9 sm:$0xff] %v4666
    %s4696 = scalar_lea.vmem [#allocation1], 1
    %4697 = vst [vmem:[%s4696] ss:$9 sm:$0xff] %v4668
    %s4698 = scalar_lea.vmem [#allocation1], 2
    %4699 = vst [vmem:[%s4698] ss:$9 sm:$0xff] %v4670
    %s4700 = scalar_lea.vmem [#allocation1], 3
    %4701 = vst [vmem:[%s4700] ss:$9 sm:$0xff] %v4672
    %v4702 = vld [vmem:[#allocation1] sm:$0xff]
    %v4703 = vld [vmem:[#allocation1 + $0x9] sm:$0xff]
    %v4705 = vsel %vm2839, %v4703, 0
    %v4708 = vsel %vm2842, %v4690, 0
    %4710 = vmatpush.msra.mxu0 %v4689
    %4711 = vmatpush.msra.mxu0 %v4688
    %4712 = vmatpush.msra.mxu0 %v4687
    %4713 = vmatpush.msra.mxu0 %v4686
    %4714 = vmatpush.msra.mxu0 %v4685
    %4715 = vmatpush.msra.mxu0 %v4684
    %4716 = vmatpush.msra.mxu0 %v4683
    %4717 = vmatpush.msra.mxu0 %v4682
    %4718 = vmatpush.msra.mxu0 %v4681
    %4719 = vmatpush.msra.mxu0 %v4680
    %4720 = vmatpush.msra.mxu0 %v4679
    %4721 = vmatpush.msra.mxu0 %v4678
    %4722 = vmatpush.msra.mxu0 %v4677
    %4723 = vmatpush.msra.mxu0 %v4676
    %4724 = vmatpush.msra.mxu0 %v4675
    %4725 = vmatpush.msra.mxu0 %v4674
    %4726 = vmatmul.f32.gmra.mxu0 %v4702
    %v4727 = vpop.f32.mrf.mxu0
    %v4728 = vadd.f32 0.0, %v4727
    %4729 = vdwg.mxu0
    %4730 = vmatpush.msra.mxu0 0.0
    %4731 = vmatpush.msra.mxu0 0.0
    %4732 = vmatpush.msra.mxu0 0.0
    %4733 = vmatpush.msra.mxu0 0.0
    %4734 = vmatpush.msra.mxu0 0.0
    %4735 = vmatpush.msra.mxu0 0.0
    %4736 = vmatpush.msra.mxu0 0.0
    %4737 = vmatpush.msra.mxu0 0.0
    %4738 = vmatpush.msra.mxu0 0.0
    %4739 = vmatpush.msra.mxu0 0.0
    %4740 = vmatpush.msra.mxu0 0.0
    %4741 = vmatpush.msra.mxu0 0.0
    %4742 = vmatpush.msra.mxu0 0.0
    %4743 = vmatpush.msra.mxu0 0.0
    %4744 = vmatpush.msra.mxu0 0.0
    %4745 = vmatpush.msra.mxu0 %v4708
    %4746 = vmatmul.f32.gmra.mxu0 %v4705
    %v4747 = vpop.f32.mrf.mxu0
    %v4748 = vadd.f32 %v4728, %v4747
    %4749 = vdwg.mxu0
    %v4750 = vadd.f32 %v4664, %v4748
    %s4751 = scalar_lea.vmem [#allocation3], 39
    %v4752 = vld [vmem:[%s4751] ss:$8 sm:$0x3]
    %s4753 = scalar_lea.vmem [#allocation3], 103
    %v4754 = vld [vmem:[%s4753] ss:$8 sm:$0x3]
    %s4755 = scalar_lea.vmem [#allocation3], 167
    %v4756 = vld [vmem:[%s4755] ss:$8 sm:$0x3]
    %s4757 = scalar_lea.vmem [#allocation3], 231
    %v4758 = vld [vmem:[%s4757] ss:$8 sm:$0x3]
    %s4759 = scalar_lea.vmem %s5, 3128
    %v4760 = vld [vmem:[%s4759] sm:$0xff]
    %v4761 = vld [vmem:[%s4759 + $0x8] sm:$0xff]
    %v4762 = vld [vmem:[%s4759 + $0x10] sm:$0xff]
    %v4763 = vld [vmem:[%s4759 + $0x18] sm:$0xff]
    %v4764 = vld [vmem:[%s4759 + $0x20] sm:$0xff]
    %v4765 = vld [vmem:[%s4759 + $0x28] sm:$0xff]
    %v4766 = vld [vmem:[%s4759 + $0x30] sm:$0xff]
    %v4767 = vld [vmem:[%s4759 + $0x38] sm:$0xff]
    %v4768 = vld [vmem:[%s4759 + $0x40] sm:$0xff]
    %v4769 = vld [vmem:[%s4759 + $0x48] sm:$0xff]
    %v4770 = vld [vmem:[%s4759 + $0x50] sm:$0xff]
    %v4771 = vld [vmem:[%s4759 + $0x58] sm:$0xff]
    %v4772 = vld [vmem:[%s4759 + $0x60] sm:$0xff]
    %v4773 = vld [vmem:[%s4759 + $0x68] sm:$0xff]
    %v4774 = vld [vmem:[%s4759 + $0x70] sm:$0xff]
    %v4775 = vld [vmem:[%s4759 + $0x78] sm:$0xff]
    %v4776 = vld [vmem:[%s4759 + $0x80] sm:$0x3f]
    %4781 = vst [vmem:[#allocation1] ss:$9 sm:$0xff] %v4752
    %s4782 = scalar_lea.vmem [#allocation1], 1
    %4783 = vst [vmem:[%s4782] ss:$9 sm:$0xff] %v4754
    %s4784 = scalar_lea.vmem [#allocation1], 2
    %4785 = vst [vmem:[%s4784] ss:$9 sm:$0xff] %v4756
    %s4786 = scalar_lea.vmem [#allocation1], 3
    %4787 = vst [vmem:[%s4786] ss:$9 sm:$0xff] %v4758
    %v4788 = vld [vmem:[#allocation1] sm:$0xff]
    %v4789 = vld [vmem:[#allocation1 + $0x9] sm:$0xff]
    %v4791 = vsel %vm2839, %v4789, 0
    %v4794 = vsel %vm2842, %v4776, 0
    %4796 = vmatpush.msra.mxu0 %v4775
    %4797 = vmatpush.msra.mxu0 %v4774
    %4798 = vmatpush.msra.mxu0 %v4773
    %4799 = vmatpush.msra.mxu0 %v4772
    %4800 = vmatpush.msra.mxu0 %v4771
    %4801 = vmatpush.msra.mxu0 %v4770
    %4802 = vmatpush.msra.mxu0 %v4769
    %4803 = vmatpush.msra.mxu0 %v4768
    %4804 = vmatpush.msra.mxu0 %v4767
    %4805 = vmatpush.msra.mxu0 %v4766
    %4806 = vmatpush.msra.mxu0 %v4765
    %4807 = vmatpush.msra.mxu0 %v4764
    %4808 = vmatpush.msra.mxu0 %v4763
    %4809 = vmatpush.msra.mxu0 %v4762
    %4810 = vmatpush.msra.mxu0 %v4761
    %4811 = vmatpush.msra.mxu0 %v4760
    %4812 = vmatmul.f32.gmra.mxu0 %v4788
    %v4813 = vpop.f32.mrf.mxu0
    %v4814 = vadd.f32 0.0, %v4813
    %4815 = vdwg.mxu0
    %4816 = vmatpush.msra.mxu0 0.0
    %4817 = vmatpush.msra.mxu0 0.0
    %4818 = vmatpush.msra.mxu0 0.0
    %4819 = vmatpush.msra.mxu0 0.0
    %4820 = vmatpush.msra.mxu0 0.0
    %4821 = vmatpush.msra.mxu0 0.0
    %4822 = vmatpush.msra.mxu0 0.0
    %4823 = vmatpush.msra.mxu0 0.0
    %4824 = vmatpush.msra.mxu0 0.0
    %4825 = vmatpush.msra.mxu0 0.0
    %4826 = vmatpush.msra.mxu0 0.0
    %4827 = vmatpush.msra.mxu0 0.0
    %4828 = vmatpush.msra.mxu0 0.0
    %4829 = vmatpush.msra.mxu0 0.0
    %4830 = vmatpush.msra.mxu0 0.0
    %4831 = vmatpush.msra.mxu0 %v4794
    %4832 = vmatmul.f32.gmra.mxu0 %v4791
    %v4833 = vpop.f32.mrf.mxu0
    %v4834 = vadd.f32 %v4814, %v4833
    %4835 = vdwg.mxu0
    %v4836 = vadd.f32 %v4750, %v4834
    %s4837 = scalar_lea.vmem [#allocation3], 48
    %v4838 = vld [vmem:[%s4837] ss:$8 sm:$0x3]
    %s4839 = scalar_lea.vmem [#allocation3], 112
    %v4840 = vld [vmem:[%s4839] ss:$8 sm:$0x3]
    %s4841 = scalar_lea.vmem [#allocation3], 176
    %v4842 = vld [vmem:[%s4841] ss:$8 sm:$0x3]
    %s4843 = scalar_lea.vmem [#allocation3], 240
    %v4844 = vld [vmem:[%s4843] ss:$8 sm:$0x3]
    %s4845 = scalar_lea.vmem %s5, 3264
    %v4846 = vld [vmem:[%s4845] sm:$0xff]
    %v4847 = vld [vmem:[%s4845 + $0x8] sm:$0xff]
    %v4848 = vld [vmem:[%s4845 + $0x10] sm:$0xff]
    %v4849 = vld [vmem:[%s4845 + $0x18] sm:$0xff]
    %v4850 = vld [vmem:[%s4845 + $0x20] sm:$0xff]
    %v4851 = vld [vmem:[%s4845 + $0x28] sm:$0xff]
    %v4852 = vld [vmem:[%s4845 + $0x30] sm:$0xff]
    %v4853 = vld [vmem:[%s4845 + $0x38] sm:$0xff]
    %v4854 = vld [vmem:[%s4845 + $0x40] sm:$0xff]
    %v4855 = vld [vmem:[%s4845 + $0x48] sm:$0xff]
    %v4856 = vld [vmem:[%s4845 + $0x50] sm:$0xff]
    %v4857 = vld [vmem:[%s4845 + $0x58] sm:$0xff]
    %v4858 = vld [vmem:[%s4845 + $0x60] sm:$0xff]
    %v4859 = vld [vmem:[%s4845 + $0x68] sm:$0xff]
    %v4860 = vld [vmem:[%s4845 + $0x70] sm:$0xff]
    %v4861 = vld [vmem:[%s4845 + $0x78] sm:$0xff]
    %v4862 = vld [vmem:[%s4845 + $0x80] sm:$0x3f]
    %4867 = vst [vmem:[#allocation1] ss:$9 sm:$0xff] %v4838
    %s4868 = scalar_lea.vmem [#allocation1], 1
    %4869 = vst [vmem:[%s4868] ss:$9 sm:$0xff] %v4840
    %s4870 = scalar_lea.vmem [#allocation1], 2
    %4871 = vst [vmem:[%s4870] ss:$9 sm:$0xff] %v4842
    %s4872 = scalar_lea.vmem [#allocation1], 3
    %4873 = vst [vmem:[%s4872] ss:$9 sm:$0xff] %v4844
    %v4874 = vld [vmem:[#allocation1] sm:$0xff]
    %v4875 = vld [vmem:[#allocation1 + $0x9] sm:$0xff]
    %v4877 = vsel %vm2839, %v4875, 0
    %v4880 = vsel %vm2842, %v4862, 0
    %4882 = vmatpush.msra.mxu0 %v4861
    %4883 = vmatpush.msra.mxu0 %v4860
    %4884 = vmatpush.msra.mxu0 %v4859
    %4885 = vmatpush.msra.mxu0 %v4858
    %4886 = vmatpush.msra.mxu0 %v4857
    %4887 = vmatpush.msra.mxu0 %v4856
    %4888 = vmatpush.msra.mxu0 %v4855
    %4889 = vmatpush.msra.mxu0 %v4854
    %4890 = vmatpush.msra.mxu0 %v4853
    %4891 = vmatpush.msra.mxu0 %v4852
    %4892 = vmatpush.msra.mxu0 %v4851
    %4893 = vmatpush.msra.mxu0 %v4850
    %4894 = vmatpush.msra.mxu0 %v4849
    %4895 = vmatpush.msra.mxu0 %v4848
    %4896 = vmatpush.msra.mxu0 %v4847
    %4897 = vmatpush.msra.mxu0 %v4846
    %4898 = vmatmul.f32.gmra.mxu0 %v4874
    %v4899 = vpop.f32.mrf.mxu0
    %v4900 = vadd.f32 0.0, %v4899
    %4901 = vdwg.mxu0
    %4902 = vmatpush.msra.mxu0 0.0
    %4903 = vmatpush.msra.mxu0 0.0
    %4904 = vmatpush.msra.mxu0 0.0
    %4905 = vmatpush.msra.mxu0 0.0
    %4906 = vmatpush.msra.mxu0 0.0
    %4907 = vmatpush.msra.mxu0 0.0
    %4908 = vmatpush.msra.mxu0 0.0
    %4909 = vmatpush.msra.mxu0 0.0
    %4910 = vmatpush.msra.mxu0 0.0
    %4911 = vmatpush.msra.mxu0 0.0
    %4912 = vmatpush.msra.mxu0 0.0
    %4913 = vmatpush.msra.mxu0 0.0
    %4914 = vmatpush.msra.mxu0 0.0
    %4915 = vmatpush.msra.mxu0 0.0
    %4916 = vmatpush.msra.mxu0 0.0
    %4917 = vmatpush.msra.mxu0 %v4880
    %4918 = vmatmul.f32.gmra.mxu0 %v4877
    %v4919 = vpop.f32.mrf.mxu0
    %v4920 = vadd.f32 %v4900, %v4919
    %4921 = vdwg.mxu0
    %v4922 = vadd.f32 %v4836, %v4920
    %s4923 = scalar_lea.vmem [#allocation3], 49
    %v4924 = vld [vmem:[%s4923] ss:$8 sm:$0x3]
    %s4925 = scalar_lea.vmem [#allocation3], 113
    %v4926 = vld [vmem:[%s4925] ss:$8 sm:$0x3]
    %s4927 = scalar_lea.vmem [#allocation3], 177
    %v4928 = vld [vmem:[%s4927] ss:$8 sm:$0x3]
    %s4929 = scalar_lea.vmem [#allocation3], 241
    %v4930 = vld [vmem:[%s4929] ss:$8 sm:$0x3]
    %s4931 = scalar_lea.vmem %s5, 3400
    %v4932 = vld [vmem:[%s4931] sm:$0xff]
    %v4933 = vld [vmem:[%s4931 + $0x8] sm:$0xff]
    %v4934 = vld [vmem:[%s4931 + $0x10] sm:$0xff]
    %v4935 = vld [vmem:[%s4931 + $0x18] sm:$0xff]
    %v4936 = vld [vmem:[%s4931 + $0x20] sm:$0xff]
    %v4937 = vld [vmem:[%s4931 + $0x28] sm:$0xff]
    %v4938 = vld [vmem:[%s4931 + $0x30] sm:$0xff]
    %v4939 = vld [vmem:[%s4931 + $0x38] sm:$0xff]
    %v4940 = vld [vmem:[%s4931 + $0x40] sm:$0xff]
    %v4941 = vld [vmem:[%s4931 + $0x48] sm:$0xff]
    %v4942 = vld [vmem:[%s4931 + $0x50] sm:$0xff]
    %v4943 = vld [vmem:[%s4931 + $0x58] sm:$0xff]
    %v4944 = vld [vmem:[%s4931 + $0x60] sm:$0xff]
    %v4945 = vld [vmem:[%s4931 + $0x68] sm:$0xff]
    %v4946 = vld [vmem:[%s4931 + $0x70] sm:$0xff]
    %v4947 = vld [vmem:[%s4931 + $0x78] sm:$0xff]
    %v4948 = vld [vmem:[%s4931 + $0x80] sm:$0x3f]
    %4953 = vst [vmem:[#allocation1] ss:$9 sm:$0xff] %v4924
    %s4954 = scalar_lea.vmem [#allocation1], 1
    %4955 = vst [vmem:[%s4954] ss:$9 sm:$0xff] %v4926
    %s4956 = scalar_lea.vmem [#allocation1], 2
    %4957 = vst [vmem:[%s4956] ss:$9 sm:$0xff] %v4928
    %s4958 = scalar_lea.vmem [#allocation1], 3
    %4959 = vst [vmem:[%s4958] ss:$9 sm:$0xff] %v4930
    %v4960 = vld [vmem:[#allocation1] sm:$0xff]
    %v4961 = vld [vmem:[#allocation1 + $0x9] sm:$0xff]
    %v4963 = vsel %vm2839, %v4961, 0
    %v4966 = vsel %vm2842, %v4948, 0
    %4968 = vmatpush.msra.mxu0 %v4947
    %4969 = vmatpush.msra.mxu0 %v4946
    %4970 = vmatpush.msra.mxu0 %v4945
    %4971 = vmatpush.msra.mxu0 %v4944
    %4972 = vmatpush.msra.mxu0 %v4943
    %4973 = vmatpush.msra.mxu0 %v4942
    %4974 = vmatpush.msra.mxu0 %v4941
    %4975 = vmatpush.msra.mxu0 %v4940
    %4976 = vmatpush.msra.mxu0 %v4939
    %4977 = vmatpush.msra.mxu0 %v4938
    %4978 = vmatpush.msra.mxu0 %v4937
    %4979 = vmatpush.msra.mxu0 %v4936
    %4980 = vmatpush.msra.mxu0 %v4935
    %4981 = vmatpush.msra.mxu0 %v4934
    %4982 = vmatpush.msra.mxu0 %v4933
    %4983 = vmatpush.msra.mxu0 %v4932
    %4984 = vmatmul.f32.gmra.mxu0 %v4960
    %v4985 = vpop.f32.mrf.mxu0
    %v4986 = vadd.f32 0.0, %v4985
    %4987 = vdwg.mxu0
    %4988 = vmatpush.msra.mxu0 0.0
    %4989 = vmatpush.msra.mxu0 0.0
    %4990 = vmatpush.msra.mxu0 0.0
    %4991 = vmatpush.msra.mxu0 0.0
    %4992 = vmatpush.msra.mxu0 0.0
    %4993 = vmatpush.msra.mxu0 0.0
    %4994 = vmatpush.msra.mxu0 0.0
    %4995 = vmatpush.msra.mxu0 0.0
    %4996 = vmatpush.msra.mxu0 0.0
    %4997 = vmatpush.msra.mxu0 0.0
    %4998 = vmatpush.msra.mxu0 0.0
    %4999 = vmatpush.msra.mxu0 0.0
    %5000 = vmatpush.msra.mxu0 0.0
    %5001 = vmatpush.msra.mxu0 0.0
    %5002 = vmatpush.msra.mxu0 0.0
    %5003 = vmatpush.msra.mxu0 %v4966
    %5004 = vmatmul.f32.gmra.mxu0 %v4963
    %v5005 = vpop.f32.mrf.mxu0
    %v5006 = vadd.f32 %v4986, %v5005
    %5007 = vdwg.mxu0
    %v5008 = vadd.f32 %v4922, %v5006
    %s5009 = scalar_lea.vmem [#allocation3], 50
    %v5010 = vld [vmem:[%s5009] ss:$8 sm:$0x3]
    %s5011 = scalar_lea.vmem [#allocation3], 114
    %v5012 = vld [vmem:[%s5011] ss:$8 sm:$0x3]
    %s5013 = scalar_lea.vmem [#allocation3], 178
    %v5014 = vld [vmem:[%s5013] ss:$8 sm:$0x3]
    %s5015 = scalar_lea.vmem [#allocation3], 242
    %v5016 = vld [vmem:[%s5015] ss:$8 sm:$0x3]
    %s5017 = scalar_lea.vmem %s5, 3536
    %v5018 = vld [vmem:[%s5017] sm:$0xff]
    %v5019 = vld [vmem:[%s5017 + $0x8] sm:$0xff]
    %v5020 = vld [vmem:[%s5017 + $0x10] sm:$0xff]
    %v5021 = vld [vmem:[%s5017 + $0x18] sm:$0xff]
    %v5022 = vld [vmem:[%s5017 + $0x20] sm:$0xff]
    %v5023 = vld [vmem:[%s5017 + $0x28] sm:$0xff]
    %v5024 = vld [vmem:[%s5017 + $0x30] sm:$0xff]
    %v5025 = vld [vmem:[%s5017 + $0x38] sm:$0xff]
    %v5026 = vld [vmem:[%s5017 + $0x40] sm:$0xff]
    %v5027 = vld [vmem:[%s5017 + $0x48] sm:$0xff]
    %v5028 = vld [vmem:[%s5017 + $0x50] sm:$0xff]
    %v5029 = vld [vmem:[%s5017 + $0x58] sm:$0xff]
    %v5030 = vld [vmem:[%s5017 + $0x60] sm:$0xff]
    %v5031 = vld [vmem:[%s5017 + $0x68] sm:$0xff]
    %v5032 = vld [vmem:[%s5017 + $0x70] sm:$0xff]
    %v5033 = vld [vmem:[%s5017 + $0x78] sm:$0xff]
    %v5034 = vld [vmem:[%s5017 + $0x80] sm:$0x3f]
    %5039 = vst [vmem:[#allocation1] ss:$9 sm:$0xff] %v5010
    %s5040 = scalar_lea.vmem [#allocation1], 1
    %5041 = vst [vmem:[%s5040] ss:$9 sm:$0xff] %v5012
    %s5042 = scalar_lea.vmem [#allocation1], 2
    %5043 = vst [vmem:[%s5042] ss:$9 sm:$0xff] %v5014
    %s5044 = scalar_lea.vmem [#allocation1], 3
    %5045 = vst [vmem:[%s5044] ss:$9 sm:$0xff] %v5016
    %v5046 = vld [vmem:[#allocation1] sm:$0xff]
    %v5047 = vld [vmem:[#allocation1 + $0x9] sm:$0xff]
    %v5049 = vsel %vm2839, %v5047, 0
    %v5052 = vsel %vm2842, %v5034, 0
    %5054 = vmatpush.msra.mxu0 %v5033
    %5055 = vmatpush.msra.mxu0 %v5032
    %5056 = vmatpush.msra.mxu0 %v5031
    %5057 = vmatpush.msra.mxu0 %v5030
    %5058 = vmatpush.msra.mxu0 %v5029
    %5059 = vmatpush.msra.mxu0 %v5028
    %5060 = vmatpush.msra.mxu0 %v5027
    %5061 = vmatpush.msra.mxu0 %v5026
    %5062 = vmatpush.msra.mxu0 %v5025
    %5063 = vmatpush.msra.mxu0 %v5024
    %5064 = vmatpush.msra.mxu0 %v5023
    %5065 = vmatpush.msra.mxu0 %v5022
    %5066 = vmatpush.msra.mxu0 %v5021
    %5067 = vmatpush.msra.mxu0 %v5020
    %5068 = vmatpush.msra.mxu0 %v5019
    %5069 = vmatpush.msra.mxu0 %v5018
    %5070 = vmatmul.f32.gmra.mxu0 %v5046
    %v5071 = vpop.f32.mrf.mxu0
    %v5072 = vadd.f32 0.0, %v5071
    %5073 = vdwg.mxu0
    %5074 = vmatpush.msra.mxu0 0.0
    %5075 = vmatpush.msra.mxu0 0.0
    %5076 = vmatpush.msra.mxu0 0.0
    %5077 = vmatpush.msra.mxu0 0.0
    %5078 = vmatpush.msra.mxu0 0.0
    %5079 = vmatpush.msra.mxu0 0.0
    %5080 = vmatpush.msra.mxu0 0.0
    %5081 = vmatpush.msra.mxu0 0.0
    %5082 = vmatpush.msra.mxu0 0.0
    %5083 = vmatpush.msra.mxu0 0.0
    %5084 = vmatpush.msra.mxu0 0.0
    %5085 = vmatpush.msra.mxu0 0.0
    %5086 = vmatpush.msra.mxu0 0.0
    %5087 = vmatpush.msra.mxu0 0.0
    %5088 = vmatpush.msra.mxu0 0.0
    %5089 = vmatpush.msra.mxu0 %v5052
    %5090 = vmatmul.f32.gmra.mxu0 %v5049
    %v5091 = vpop.f32.mrf.mxu0
    %v5092 = vadd.f32 %v5072, %v5091
    %5093 = vdwg.mxu0
    %v5094 = vadd.f32 %v5008, %v5092
    %s5095 = scalar_lea.vmem [#allocation3], 51
    %v5096 = vld [vmem:[%s5095] ss:$8 sm:$0x3]
    %s5097 = scalar_lea.vmem [#allocation3], 115
    %v5098 = vld [vmem:[%s5097] ss:$8 sm:$0x3]
    %s5099 = scalar_lea.vmem [#allocation3], 179
    %v5100 = vld [vmem:[%s5099] ss:$8 sm:$0x3]
    %s5101 = scalar_lea.vmem [#allocation3], 243
    %v5102 = vld [vmem:[%s5101] ss:$8 sm:$0x3]
    %s5103 = scalar_lea.vmem %s5, 3672
    %v5104 = vld [vmem:[%s5103] sm:$0xff]
    %v5105 = vld [vmem:[%s5103 + $0x8] sm:$0xff]
    %v5106 = vld [vmem:[%s5103 + $0x10] sm:$0xff]
    %v5107 = vld [vmem:[%s5103 + $0x18] sm:$0xff]
    %v5108 = vld [vmem:[%s5103 + $0x20] sm:$0xff]
    %v5109 = vld [vmem:[%s5103 + $0x28] sm:$0xff]
    %v5110 = vld [vmem:[%s5103 + $0x30] sm:$0xff]
    %v5111 = vld [vmem:[%s5103 + $0x38] sm:$0xff]
    %v5112 = vld [vmem:[%s5103 + $0x40] sm:$0xff]
    %v5113 = vld [vmem:[%s5103 + $0x48] sm:$0xff]
    %v5114 = vld [vmem:[%s5103 + $0x50] sm:$0xff]
    %v5115 = vld [vmem:[%s5103 + $0x58] sm:$0xff]
    %v5116 = vld [vmem:[%s5103 + $0x60] sm:$0xff]
    %v5117 = vld [vmem:[%s5103 + $0x68] sm:$0xff]
    %v5118 = vld [vmem:[%s5103 + $0x70] sm:$0xff]
    %v5119 = vld [vmem:[%s5103 + $0x78] sm:$0xff]
    %v5120 = vld [vmem:[%s5103 + $0x80] sm:$0x3f]
    %5125 = vst [vmem:[#allocation1] ss:$9 sm:$0xff] %v5096
    %s5126 = scalar_lea.vmem [#allocation1], 1
    %5127 = vst [vmem:[%s5126] ss:$9 sm:$0xff] %v5098
    %s5128 = scalar_lea.vmem [#allocation1], 2
    %5129 = vst [vmem:[%s5128] ss:$9 sm:$0xff] %v5100
    %s5130 = scalar_lea.vmem [#allocation1], 3
    %5131 = vst [vmem:[%s5130] ss:$9 sm:$0xff] %v5102
    %v5132 = vld [vmem:[#allocation1] sm:$0xff]
    %v5133 = vld [vmem:[#allocation1 + $0x9] sm:$0xff]
    %v5135 = vsel %vm2839, %v5133, 0
    %v5138 = vsel %vm2842, %v5120, 0
    %5140 = vmatpush.msra.mxu0 %v5119
    %5141 = vmatpush.msra.mxu0 %v5118
    %5142 = vmatpush.msra.mxu0 %v5117
    %5143 = vmatpush.msra.mxu0 %v5116
    %5144 = vmatpush.msra.mxu0 %v5115
    %5145 = vmatpush.msra.mxu0 %v5114
    %5146 = vmatpush.msra.mxu0 %v5113
    %5147 = vmatpush.msra.mxu0 %v5112
    %5148 = vmatpush.msra.mxu0 %v5111
    %5149 = vmatpush.msra.mxu0 %v5110
    %5150 = vmatpush.msra.mxu0 %v5109
    %5151 = vmatpush.msra.mxu0 %v5108
    %5152 = vmatpush.msra.mxu0 %v5107
    %5153 = vmatpush.msra.mxu0 %v5106
    %5154 = vmatpush.msra.mxu0 %v5105
    %5155 = vmatpush.msra.mxu0 %v5104
    %5156 = vmatmul.f32.gmra.mxu0 %v5132
    %v5157 = vpop.f32.mrf.mxu0
    %v5158 = vadd.f32 0.0, %v5157
    %5159 = vdwg.mxu0
    %5160 = vmatpush.msra.mxu0 0.0
    %5161 = vmatpush.msra.mxu0 0.0
    %5162 = vmatpush.msra.mxu0 0.0
    %5163 = vmatpush.msra.mxu0 0.0
    %5164 = vmatpush.msra.mxu0 0.0
    %5165 = vmatpush.msra.mxu0 0.0
    %5166 = vmatpush.msra.mxu0 0.0
    %5167 = vmatpush.msra.mxu0 0.0
    %5168 = vmatpush.msra.mxu0 0.0
    %5169 = vmatpush.msra.mxu0 0.0
    %5170 = vmatpush.msra.mxu0 0.0
    %5171 = vmatpush.msra.mxu0 0.0
    %5172 = vmatpush.msra.mxu0 0.0
    %5173 = vmatpush.msra.mxu0 0.0
    %5174 = vmatpush.msra.mxu0 0.0
    %5175 = vmatpush.msra.mxu0 %v5138
    %5176 = vmatmul.f32.gmra.mxu0 %v5135
    %v5177 = vpop.f32.mrf.mxu0
    %v5178 = vadd.f32 %v5158, %v5177
    %5179 = vdwg.mxu0
    %v5180 = vadd.f32 %v5094, %v5178
    %s5181 = scalar_lea.vmem [#allocation3], 52
    %v5182 = vld [vmem:[%s5181] ss:$8 sm:$0x3]
    %s5183 = scalar_lea.vmem [#allocation3], 116
    %v5184 = vld [vmem:[%s5183] ss:$8 sm:$0x3]
    %s5185 = scalar_lea.vmem [#allocation3], 180
    %v5186 = vld [vmem:[%s5185] ss:$8 sm:$0x3]
    %s5187 = scalar_lea.vmem [#allocation3], 244
    %v5188 = vld [vmem:[%s5187] ss:$8 sm:$0x3]
    %s5189 = scalar_lea.vmem %s5, 3808
    %v5190 = vld [vmem:[%s5189] sm:$0xff]
    %v5191 = vld [vmem:[%s5189 + $0x8] sm:$0xff]
    %v5192 = vld [vmem:[%s5189 + $0x10] sm:$0xff]
    %v5193 = vld [vmem:[%s5189 + $0x18] sm:$0xff]
    %v5194 = vld [vmem:[%s5189 + $0x20] sm:$0xff]
    %v5195 = vld [vmem:[%s5189 + $0x28] sm:$0xff]
    %v5196 = vld [vmem:[%s5189 + $0x30] sm:$0xff]
    %v5197 = vld [vmem:[%s5189 + $0x38] sm:$0xff]
    %v5198 = vld [vmem:[%s5189 + $0x40] sm:$0xff]
    %v5199 = vld [vmem:[%s5189 + $0x48] sm:$0xff]
    %v5200 = vld [vmem:[%s5189 + $0x50] sm:$0xff]
    %v5201 = vld [vmem:[%s5189 + $0x58] sm:$0xff]
    %v5202 = vld [vmem:[%s5189 + $0x60] sm:$0xff]
    %v5203 = vld [vmem:[%s5189 + $0x68] sm:$0xff]
    %v5204 = vld [vmem:[%s5189 + $0x70] sm:$0xff]
    %v5205 = vld [vmem:[%s5189 + $0x78] sm:$0xff]
    %v5206 = vld [vmem:[%s5189 + $0x80] sm:$0x3f]
    %5211 = vst [vmem:[#allocation1] ss:$9 sm:$0xff] %v5182
    %s5212 = scalar_lea.vmem [#allocation1], 1
    %5213 = vst [vmem:[%s5212] ss:$9 sm:$0xff] %v5184
    %s5214 = scalar_lea.vmem [#allocation1], 2
    %5215 = vst [vmem:[%s5214] ss:$9 sm:$0xff] %v5186
    %s5216 = scalar_lea.vmem [#allocation1], 3
    %5217 = vst [vmem:[%s5216] ss:$9 sm:$0xff] %v5188
    %v5218 = vld [vmem:[#allocation1] sm:$0xff]
    %v5219 = vld [vmem:[#allocation1 + $0x9] sm:$0xff]
    %v5221 = vsel %vm2839, %v5219, 0
    %v5224 = vsel %vm2842, %v5206, 0
    %5226 = vmatpush.msra.mxu0 %v5205
    %5227 = vmatpush.msra.mxu0 %v5204
    %5228 = vmatpush.msra.mxu0 %v5203
    %5229 = vmatpush.msra.mxu0 %v5202
    %5230 = vmatpush.msra.mxu0 %v5201
    %5231 = vmatpush.msra.mxu0 %v5200
    %5232 = vmatpush.msra.mxu0 %v5199
    %5233 = vmatpush.msra.mxu0 %v5198
    %5234 = vmatpush.msra.mxu0 %v5197
    %5235 = vmatpush.msra.mxu0 %v5196
    %5236 = vmatpush.msra.mxu0 %v5195
    %5237 = vmatpush.msra.mxu0 %v5194
    %5238 = vmatpush.msra.mxu0 %v5193
    %5239 = vmatpush.msra.mxu0 %v5192
    %5240 = vmatpush.msra.mxu0 %v5191
    %5241 = vmatpush.msra.mxu0 %v5190
    %5242 = vmatmul.f32.gmra.mxu0 %v5218
    %v5243 = vpop.f32.mrf.mxu0
    %v5244 = vadd.f32 0.0, %v5243
    %5245 = vdwg.mxu0
    %5246 = vmatpush.msra.mxu0 0.0
    %5247 = vmatpush.msra.mxu0 0.0
    %5248 = vmatpush.msra.mxu0 0.0
    %5249 = vmatpush.msra.mxu0 0.0
    %5250 = vmatpush.msra.mxu0 0.0
    %5251 = vmatpush.msra.mxu0 0.0
    %5252 = vmatpush.msra.mxu0 0.0
    %5253 = vmatpush.msra.mxu0 0.0
    %5254 = vmatpush.msra.mxu0 0.0
    %5255 = vmatpush.msra.mxu0 0.0
    %5256 = vmatpush.msra.mxu0 0.0
    %5257 = vmatpush.msra.mxu0 0.0
    %5258 = vmatpush.msra.mxu0 0.0
    %5259 = vmatpush.msra.mxu0 0.0
    %5260 = vmatpush.msra.mxu0 0.0
    %5261 = vmatpush.msra.mxu0 %v5224
    %5262 = vmatmul.f32.gmra.mxu0 %v5221
    %v5263 = vpop.f32.mrf.mxu0
    %v5264 = vadd.f32 %v5244, %v5263
    %5265 = vdwg.mxu0
    %v5266 = vadd.f32 %v5180, %v5264
    %s5267 = scalar_lea.vmem [#allocation3], 53
    %v5268 = vld [vmem:[%s5267] ss:$8 sm:$0x3]
    %s5269 = scalar_lea.vmem [#allocation3], 117
    %v5270 = vld [vmem:[%s5269] ss:$8 sm:$0x3]
    %s5271 = scalar_lea.vmem [#allocation3], 181
    %v5272 = vld [vmem:[%s5271] ss:$8 sm:$0x3]
    %s5273 = scalar_lea.vmem [#allocation3], 245
    %v5274 = vld [vmem:[%s5273] ss:$8 sm:$0x3]
    %s5275 = scalar_lea.vmem %s5, 3944
    %v5276 = vld [vmem:[%s5275] sm:$0xff]
    %v5277 = vld [vmem:[%s5275 + $0x8] sm:$0xff]
    %v5278 = vld [vmem:[%s5275 + $0x10] sm:$0xff]
    %v5279 = vld [vmem:[%s5275 + $0x18] sm:$0xff]
    %v5280 = vld [vmem:[%s5275 + $0x20] sm:$0xff]
    %v5281 = vld [vmem:[%s5275 + $0x28] sm:$0xff]
    %v5282 = vld [vmem:[%s5275 + $0x30] sm:$0xff]
    %v5283 = vld [vmem:[%s5275 + $0x38] sm:$0xff]
    %v5284 = vld [vmem:[%s5275 + $0x40] sm:$0xff]
    %v5285 = vld [vmem:[%s5275 + $0x48] sm:$0xff]
    %v5286 = vld [vmem:[%s5275 + $0x50] sm:$0xff]
    %v5287 = vld [vmem:[%s5275 + $0x58] sm:$0xff]
    %v5288 = vld [vmem:[%s5275 + $0x60] sm:$0xff]
    %v5289 = vld [vmem:[%s5275 + $0x68] sm:$0xff]
    %v5290 = vld [vmem:[%s5275 + $0x70] sm:$0xff]
    %v5291 = vld [vmem:[%s5275 + $0x78] sm:$0xff]
    %v5292 = vld [vmem:[%s5275 + $0x80] sm:$0x3f]
    %5297 = vst [vmem:[#allocation1] ss:$9 sm:$0xff] %v5268
    %s5298 = scalar_lea.vmem [#allocation1], 1
    %5299 = vst [vmem:[%s5298] ss:$9 sm:$0xff] %v5270
    %s5300 = scalar_lea.vmem [#allocation1], 2
    %5301 = vst [vmem:[%s5300] ss:$9 sm:$0xff] %v5272
    %s5302 = scalar_lea.vmem [#allocation1], 3
    %5303 = vst [vmem:[%s5302] ss:$9 sm:$0xff] %v5274
    %v5304 = vld [vmem:[#allocation1] sm:$0xff]
    %v5305 = vld [vmem:[#allocation1 + $0x9] sm:$0xff]
    %v5307 = vsel %vm2839, %v5305, 0
    %v5310 = vsel %vm2842, %v5292, 0
    %5312 = vmatpush.msra.mxu0 %v5291
    %5313 = vmatpush.msra.mxu0 %v5290
    %5314 = vmatpush.msra.mxu0 %v5289
    %5315 = vmatpush.msra.mxu0 %v5288
    %5316 = vmatpush.msra.mxu0 %v5287
    %5317 = vmatpush.msra.mxu0 %v5286
    %5318 = vmatpush.msra.mxu0 %v5285
    %5319 = vmatpush.msra.mxu0 %v5284
    %5320 = vmatpush.msra.mxu0 %v5283
    %5321 = vmatpush.msra.mxu0 %v5282
    %5322 = vmatpush.msra.mxu0 %v5281
    %5323 = vmatpush.msra.mxu0 %v5280
    %5324 = vmatpush.msra.mxu0 %v5279
    %5325 = vmatpush.msra.mxu0 %v5278
    %5326 = vmatpush.msra.mxu0 %v5277
    %5327 = vmatpush.msra.mxu0 %v5276
    %5328 = vmatmul.f32.gmra.mxu0 %v5304
    %v5329 = vpop.f32.mrf.mxu0
    %v5330 = vadd.f32 0.0, %v5329
    %5331 = vdwg.mxu0
    %5332 = vmatpush.msra.mxu0 0.0
    %5333 = vmatpush.msra.mxu0 0.0
    %5334 = vmatpush.msra.mxu0 0.0
    %5335 = vmatpush.msra.mxu0 0.0
    %5336 = vmatpush.msra.mxu0 0.0
    %5337 = vmatpush.msra.mxu0 0.0
    %5338 = vmatpush.msra.mxu0 0.0
    %5339 = vmatpush.msra.mxu0 0.0
    %5340 = vmatpush.msra.mxu0 0.0
    %5341 = vmatpush.msra.mxu0 0.0
    %5342 = vmatpush.msra.mxu0 0.0
    %5343 = vmatpush.msra.mxu0 0.0
    %5344 = vmatpush.msra.mxu0 0.0
    %5345 = vmatpush.msra.mxu0 0.0
    %5346 = vmatpush.msra.mxu0 0.0
    %5347 = vmatpush.msra.mxu0 %v5310
    %5348 = vmatmul.f32.gmra.mxu0 %v5307
    %v5349 = vpop.f32.mrf.mxu0
    %v5350 = vadd.f32 %v5330, %v5349
    %5351 = vdwg.mxu0
    %v5352 = vadd.f32 %v5266, %v5350
    %s5353 = scalar_lea.vmem [#allocation3], 54
    %v5354 = vld [vmem:[%s5353] ss:$8 sm:$0x3]
    %s5355 = scalar_lea.vmem [#allocation3], 118
    %v5356 = vld [vmem:[%s5355] ss:$8 sm:$0x3]
    %s5357 = scalar_lea.vmem [#allocation3], 182
    %v5358 = vld [vmem:[%s5357] ss:$8 sm:$0x3]
    %s5359 = scalar_lea.vmem [#allocation3], 246
    %v5360 = vld [vmem:[%s5359] ss:$8 sm:$0x3]
    %s5361 = scalar_lea.vmem %s5, 4080
    %v5362 = vld [vmem:[%s5361] sm:$0xff]
    %v5363 = vld [vmem:[%s5361 + $0x8] sm:$0xff]
    %v5364 = vld [vmem:[%s5361 + $0x10] sm:$0xff]
    %v5365 = vld [vmem:[%s5361 + $0x18] sm:$0xff]
    %v5366 = vld [vmem:[%s5361 + $0x20] sm:$0xff]
    %v5367 = vld [vmem:[%s5361 + $0x28] sm:$0xff]
    %v5368 = vld [vmem:[%s5361 + $0x30] sm:$0xff]
    %v5369 = vld [vmem:[%s5361 + $0x38] sm:$0xff]
    %v5370 = vld [vmem:[%s5361 + $0x40] sm:$0xff]
    %v5371 = vld [vmem:[%s5361 + $0x48] sm:$0xff]
    %v5372 = vld [vmem:[%s5361 + $0x50] sm:$0xff]
    %v5373 = vld [vmem:[%s5361 + $0x58] sm:$0xff]
    %v5374 = vld [vmem:[%s5361 + $0x60] sm:$0xff]
    %v5375 = vld [vmem:[%s5361 + $0x68] sm:$0xff]
    %v5376 = vld [vmem:[%s5361 + $0x70] sm:$0xff]
    %v5377 = vld [vmem:[%s5361 + $0x78] sm:$0xff]
    %v5378 = vld [vmem:[%s5361 + $0x80] sm:$0x3f]
    %5383 = vst [vmem:[#allocation1] ss:$9 sm:$0xff] %v5354
    %s5384 = scalar_lea.vmem [#allocation1], 1
    %5385 = vst [vmem:[%s5384] ss:$9 sm:$0xff] %v5356
    %s5386 = scalar_lea.vmem [#allocation1], 2
    %5387 = vst [vmem:[%s5386] ss:$9 sm:$0xff] %v5358
    %s5388 = scalar_lea.vmem [#allocation1], 3
    %5389 = vst [vmem:[%s5388] ss:$9 sm:$0xff] %v5360
    %v5390 = vld [vmem:[#allocation1] sm:$0xff]
    %v5391 = vld [vmem:[#allocation1 + $0x9] sm:$0xff]
    %v5393 = vsel %vm2839, %v5391, 0
    %v5396 = vsel %vm2842, %v5378, 0
    %5398 = vmatpush.msra.mxu0 %v5377
    %5399 = vmatpush.msra.mxu0 %v5376
    %5400 = vmatpush.msra.mxu0 %v5375
    %5401 = vmatpush.msra.mxu0 %v5374
    %5402 = vmatpush.msra.mxu0 %v5373
    %5403 = vmatpush.msra.mxu0 %v5372
    %5404 = vmatpush.msra.mxu0 %v5371
    %5405 = vmatpush.msra.mxu0 %v5370
    %5406 = vmatpush.msra.mxu0 %v5369
    %5407 = vmatpush.msra.mxu0 %v5368
    %5408 = vmatpush.msra.mxu0 %v5367
    %5409 = vmatpush.msra.mxu0 %v5366
    %5410 = vmatpush.msra.mxu0 %v5365
    %5411 = vmatpush.msra.mxu0 %v5364
    %5412 = vmatpush.msra.mxu0 %v5363
    %5413 = vmatpush.msra.mxu0 %v5362
    %5414 = vmatmul.f32.gmra.mxu0 %v5390
    %v5415 = vpop.f32.mrf.mxu0
    %v5416 = vadd.f32 0.0, %v5415
    %5417 = vdwg.mxu0
    %5418 = vmatpush.msra.mxu0 0.0
    %5419 = vmatpush.msra.mxu0 0.0
    %5420 = vmatpush.msra.mxu0 0.0
    %5421 = vmatpush.msra.mxu0 0.0
    %5422 = vmatpush.msra.mxu0 0.0
    %5423 = vmatpush.msra.mxu0 0.0
    %5424 = vmatpush.msra.mxu0 0.0
    %5425 = vmatpush.msra.mxu0 0.0
    %5426 = vmatpush.msra.mxu0 0.0
    %5427 = vmatpush.msra.mxu0 0.0
    %5428 = vmatpush.msra.mxu0 0.0
    %5429 = vmatpush.msra.mxu0 0.0
    %5430 = vmatpush.msra.mxu0 0.0
    %5431 = vmatpush.msra.mxu0 0.0
    %5432 = vmatpush.msra.mxu0 0.0
    %5433 = vmatpush.msra.mxu0 %v5396
    %5434 = vmatmul.f32.gmra.mxu0 %v5393
    %v5435 = vpop.f32.mrf.mxu0
    %v5436 = vadd.f32 %v5416, %v5435
    %5437 = vdwg.mxu0
    %v5438 = vadd.f32 %v5352, %v5436
    %s5439 = scalar_lea.vmem [#allocation3], 55
    %v5440 = vld [vmem:[%s5439] ss:$8 sm:$0x3]
    %s5441 = scalar_lea.vmem [#allocation3], 119
    %v5442 = vld [vmem:[%s5441] ss:$8 sm:$0x3]
    %s5443 = scalar_lea.vmem [#allocation3], 183
    %v5444 = vld [vmem:[%s5443] ss:$8 sm:$0x3]
    %s5445 = scalar_lea.vmem [#allocation3], 247
    %v5446 = vld [vmem:[%s5445] ss:$8 sm:$0x3]
    %s5447 = scalar_lea.vmem %s5, 4216
    %v5448 = vld [vmem:[%s5447] sm:$0xff]
    %v5449 = vld [vmem:[%s5447 + $0x8] sm:$0xff]
    %v5450 = vld [vmem:[%s5447 + $0x10] sm:$0xff]
    %v5451 = vld [vmem:[%s5447 + $0x18] sm:$0xff]
    %v5452 = vld [vmem:[%s5447 + $0x20] sm:$0xff]
    %v5453 = vld [vmem:[%s5447 + $0x28] sm:$0xff]
    %v5454 = vld [vmem:[%s5447 + $0x30] sm:$0xff]
    %v5455 = vld [vmem:[%s5447 + $0x38] sm:$0xff]
    %v5456 = vld [vmem:[%s5447 + $0x40] sm:$0xff]
    %v5457 = vld [vmem:[%s5447 + $0x48] sm:$0xff]
    %v5458 = vld [vmem:[%s5447 + $0x50] sm:$0xff]
    %v5459 = vld [vmem:[%s5447 + $0x58] sm:$0xff]
    %v5460 = vld [vmem:[%s5447 + $0x60] sm:$0xff]
    %v5461 = vld [vmem:[%s5447 + $0x68] sm:$0xff]
    %v5462 = vld [vmem:[%s5447 + $0x70] sm:$0xff]
    %v5463 = vld [vmem:[%s5447 + $0x78] sm:$0xff]
    %v5464 = vld [vmem:[%s5447 + $0x80] sm:$0x3f]
    %5469 = vst [vmem:[#allocation1] ss:$9 sm:$0xff] %v5440
    %s5470 = scalar_lea.vmem [#allocation1], 1
    %5471 = vst [vmem:[%s5470] ss:$9 sm:$0xff] %v5442
    %s5472 = scalar_lea.vmem [#allocation1], 2
    %5473 = vst [vmem:[%s5472] ss:$9 sm:$0xff] %v5444
    %s5474 = scalar_lea.vmem [#allocation1], 3
    %5475 = vst [vmem:[%s5474] ss:$9 sm:$0xff] %v5446
    %v5476 = vld [vmem:[#allocation1] sm:$0xff]
    %v5477 = vld [vmem:[#allocation1 + $0x9] sm:$0xff]
    %v5479 = vsel %vm2839, %v5477, 0
    %v5482 = vsel %vm2842, %v5464, 0
    %5484 = vmatpush.msra.mxu0 %v5463
    %5485 = vmatpush.msra.mxu0 %v5462
    %5486 = vmatpush.msra.mxu0 %v5461
    %5487 = vmatpush.msra.mxu0 %v5460
    %5488 = vmatpush.msra.mxu0 %v5459
    %5489 = vmatpush.msra.mxu0 %v5458
    %5490 = vmatpush.msra.mxu0 %v5457
    %5491 = vmatpush.msra.mxu0 %v5456
    %5492 = vmatpush.msra.mxu0 %v5455
    %5493 = vmatpush.msra.mxu0 %v5454
    %5494 = vmatpush.msra.mxu0 %v5453
    %5495 = vmatpush.msra.mxu0 %v5452
    %5496 = vmatpush.msra.mxu0 %v5451
    %5497 = vmatpush.msra.mxu0 %v5450
    %5498 = vmatpush.msra.mxu0 %v5449
    %5499 = vmatpush.msra.mxu0 %v5448
    %5500 = vmatmul.f32.gmra.mxu0 %v5476
    %v5501 = vpop.f32.mrf.mxu0
    %v5502 = vadd.f32 0.0, %v5501
    %5503 = vdwg.mxu0
    %5504 = vmatpush.msra.mxu0 0.0
    %5505 = vmatpush.msra.mxu0 0.0
    %5506 = vmatpush.msra.mxu0 0.0
    %5507 = vmatpush.msra.mxu0 0.0
    %5508 = vmatpush.msra.mxu0 0.0
    %5509 = vmatpush.msra.mxu0 0.0
    %5510 = vmatpush.msra.mxu0 0.0
    %5511 = vmatpush.msra.mxu0 0.0
    %5512 = vmatpush.msra.mxu0 0.0
    %5513 = vmatpush.msra.mxu0 0.0
    %5514 = vmatpush.msra.mxu0 0.0
    %5515 = vmatpush.msra.mxu0 0.0
    %5516 = vmatpush.msra.mxu0 0.0
    %5517 = vmatpush.msra.mxu0 0.0
    %5518 = vmatpush.msra.mxu0 0.0
    %5519 = vmatpush.msra.mxu0 %v5482
    %5520 = vmatmul.f32.gmra.mxu0 %v5479
    %v5521 = vpop.f32.mrf.mxu0
    %v5522 = vadd.f32 %v5502, %v5521
    %5523 = vdwg.mxu0
    %v5524 = vadd.f32 %v5438, %v5522
    %v5525 = vld [vmem:[%s6] sm:$0x1]
    %v5527 = vperm.slane %v5525, 0
    %v5529 = vadd.f32 %v5524, %v5527
    %v5530 = vmax.f32 %v5529, 0.0
    %v5531 = vld [vmem:[%s7] sm:$0xff]
    %v5532 = vld [vmem:[%s7 + $0x8] sm:$0xff]
    %v5533 = vld [vmem:[%s7 + $0x10] sm:$0xff]
    %v5534 = vld [vmem:[%s7 + $0x18] sm:$0xff]
    %v5535 = vld [vmem:[%s7 + $0x20] sm:$0xff]
    %v5536 = vld [vmem:[%s7 + $0x28] sm:$0xff]
    %v5537 = vld [vmem:[%s7 + $0x30] sm:$0xff]
    %v5538 = vld [vmem:[%s7 + $0x38] sm:$0xff]
    %v5539 = vld [vmem:[%s7 + $0x40] sm:$0xff]
    %v5540 = vld [vmem:[%s7 + $0x48] sm:$0xff]
    %v5541 = vld [vmem:[%s7 + $0x50] sm:$0xff]
    %v5542 = vld [vmem:[%s7 + $0x58] sm:$0xff]
    %v5543 = vld [vmem:[%s7 + $0x60] sm:$0xff]
    %v5544 = vld [vmem:[%s7 + $0x68] sm:$0xff]
    %v5545 = vld [vmem:[%s7 + $0x70] sm:$0xff]
    %v5546 = vld [vmem:[%s7 + $0x78] sm:$0xff]
    %v5547 = vld [vmem:[%s8] sm:$0x1]
    %v5549 = vperm.slane %v5547, 0
    %5551 = vmatpush.msra.mxu0 %v5546
    %5552 = vmatpush.msra.mxu0 %v5545
    %5553 = vmatpush.msra.mxu0 %v5544
    %5554 = vmatpush.msra.mxu0 %v5543
    %5555 = vmatpush.msra.mxu0 %v5542
    %5556 = vmatpush.msra.mxu0 %v5541
    %5557 = vmatpush.msra.mxu0 %v5540
    %5558 = vmatpush.msra.mxu0 %v5539
    %5559 = vmatpush.msra.mxu0 %v5538
    %5560 = vmatpush.msra.mxu0 %v5537
    %5561 = vmatpush.msra.mxu0 %v5536
    %5562 = vmatpush.msra.mxu0 %v5535
    %5563 = vmatpush.msra.mxu0 %v5534
    %5564 = vmatpush.msra.mxu0 %v5533
    %5565 = vmatpush.msra.mxu0 %v5532
    %5566 = vmatpush.msra.mxu0 %v5531
    %5567 = vmatmul.f32.gmra.mxu0 %v5530
    %v5568 = vpop.f32.mrf.mxu0
    %v5569 = vadd.f32 %v5549, %v5568
    %5570 = vdwg.mxu0
    %v5571 = vmax.f32 %v5569, 0.0
    %v5572 = vld [vmem:[%s9] sm:$0xff]
    %v5573 = vld [vmem:[%s9 + $0x8] sm:$0xff]
    %v5574 = vld [vmem:[%s9 + $0x10] sm:$0xff]
    %v5575 = vld [vmem:[%s9 + $0x18] sm:$0xff]
    %v5576 = vld [vmem:[%s9 + $0x20] sm:$0xff]
    %v5577 = vld [vmem:[%s9 + $0x28] sm:$0xff]
    %v5578 = vld [vmem:[%s9 + $0x30] sm:$0xff]
    %v5579 = vld [vmem:[%s9 + $0x38] sm:$0xff]
    %v5580 = vld [vmem:[%s9 + $0x40] sm:$0xff]
    %v5581 = vld [vmem:[%s9 + $0x48] sm:$0xff]
    %v5582 = vld [vmem:[%s9 + $0x50] sm:$0xff]
    %v5583 = vld [vmem:[%s9 + $0x58] sm:$0xff]
    %v5584 = vld [vmem:[%s9 + $0x60] sm:$0xff]
    %v5585 = vld [vmem:[%s9 + $0x68] sm:$0xff]
    %v5586 = vld [vmem:[%s9 + $0x70] sm:$0xff]
    %v5587 = vld [vmem:[%s9 + $0x78] sm:$0xff]
    %v5588 = vld [vmem:[%s10] sm:$0x1]
    %v5590 = vperm.slane %v5588, 0
    %5592 = vmatpush.msra.mxu0 %v5587
    %5593 = vmatpush.msra.mxu0 %v5586
    %5594 = vmatpush.msra.mxu0 %v5585
    %5595 = vmatpush.msra.mxu0 %v5584
    %5596 = vmatpush.msra.mxu0 %v5583
    %5597 = vmatpush.msra.mxu0 %v5582
    %5598 = vmatpush.msra.mxu0 %v5581
    %5599 = vmatpush.msra.mxu0 %v5580
    %5600 = vmatpush.msra.mxu0 %v5579
    %5601 = vmatpush.msra.mxu0 %v5578
    %5602 = vmatpush.msra.mxu0 %v5577
    %5603 = vmatpush.msra.mxu0 %v5576
    %5604 = vmatpush.msra.mxu0 %v5575
    %5605 = vmatpush.msra.mxu0 %v5574
    %5606 = vmatpush.msra.mxu0 %v5573
    %5607 = vmatpush.msra.mxu0 %v5572
    %5608 = vmatmul.f32.gmra.mxu0 %v5571
    %v5609 = vpop.f32.mrf.mxu0
    %v5610 = vadd.f32 %v5590, %v5609
    %5611 = vdwg.mxu0
    %vm5612 = vcmask 76800
    %v5613 = vsel %vm5612, %v5610, -inf
    %5614 = vmax.xlane.f32.xlu0 %v5613
    %v5615 = vpop.xlane.xlu0 %5614
    %v5616 = vsub.f32 %v5610, %v5615
    %v5617 = vmul.f32 %v5616, 1.442695
    %v5618 = vpow.pop %v5617
    %v5619 = vsel %vm5612, %v5618, 0.0
    %5620 = vadd.xlane.f32.xlu0 %v5619
    %v5621 = vpop.xlane.xlu0 %5620
    %v5622 = vlog2.pop %v5621
    %v5623 = vmul.f32 %v5622, 0.6931472
    %v5624 = vsub.f32 %v5616, %v5623
    %5625 = vst.msk [vmem:[#allocation4] sm:$0xf] %vm5612, %v5624
    // Predicated region
    $region53: #{net_forward.1} parent=1 // pred_check
      _
    $region54: #{net_forward.1} parent=1 // pred_check_branch
      %5627 = sbr.rel (0) target = $region56
    $region55: #{net_forward.1} parent=1 // pred_region
      %5629 = vsyncadd [#allocation5], 0
      %s5631 = sshll.u32 [#allocation4], 4
      %s5632 = int_to_ptr.vmem [resolvable:$true] %s5631
      %s5633 = sshll.u32 %s11, 4
      %s5634 = int_to_ptr.hbm [resolvable:$true] %s5633
      %5636 = dma.vmem_to_hbm [thread:$0]  %s5632, 64, %s5634, [#allocation5]
    $region56: #{net_forward.1} parent=1 // pred_fallthru
      _
    // Predicated region
    $region57: #{net_forward.1} parent=1 // pred_check
      _
    $region58: #{net_forward.1} parent=1 // pred_check_branch
      %5638 = sbr.rel (0) target = $region60
    $region59: #{net_forward.1} parent=1 // pred_region
      %5640 = dma.done [#allocation5], 64
    $region60: #{net_forward.1} parent=1 // pred_fallthru
      _
    %5641 = vsyncpa [#allocation5], 1

</llo_original>
